<compile_context>
chip_gen: v6e
topology: v6e:2x2x1
jax: 0.10.0
libtpu: 0.0.40
codegen_flags: <defaults>
</compile_context>

<pallas_src>
import functools

import jax
import jax.numpy as jnp
from jax import lax
from jax.experimental import pallas as pl
from jax.experimental.pallas import tpu as pltpu

LEAKY_SLOPE = 0.2
BN_EPS = 1e-5
TILE_M = 2048                      # rows of the im2col matrix per grid step (multiple of 8)
VMEM_LIMIT_BYTES = 48 * 1024 * 1024  # headroom for larger TILE_M; < 64 MiB physical on v7x


# ----------------------------- Pallas kernels ------------------------------

def _stats_kernel(p_ref, w_ref, stats_ref):
    """(tm, K)bf16 @ (K, Cout)bf16 -> f32; emit per-tile partial BN sums (no y writeback)."""
    y = jnp.dot(p_ref[...], w_ref[...], preferred_element_type=jnp.float32)
    s = jnp.sum(y, axis=0, keepdims=True)          # (1, Cout) partial sum
    sq = jnp.sum(y * y, axis=0, keepdims=True)     # (1, Cout) partial sum of squares
    cout = s.shape[-1]
    # Pack into a full (8, Cout) sublane-aligned block: row 0 = sum, row 1 = sumsq.
    stats_ref[...] = jnp.concatenate(
        [s, sq, jnp.zeros((6, cout), jnp.float32)], axis=0)


def _matmul_bn_lrelu_kernel(p_ref, w_ref, scale_ref, shift_ref, o_ref):
    """Recompute the matmul, apply folded BN scale/shift + LeakyReLU(0.2), store bf16."""
    y = jnp.dot(p_ref[...], w_ref[...], preferred_element_type=jnp.float32)
    z = y * scale_ref[...] + shift_ref[...]
    o_ref[...] = jnp.where(z > 0, z, LEAKY_SLOPE * z).astype(o_ref.dtype)


# ------------------------------ glue (JAX) ---------------------------------

def _build_patches(x_nhwc_bf16, pad=1):
    """4x4/stride-2 conv rewritten as 2x2/stride-1 over space-to-depth(2) input.

    Input must already be bf16 so the XLA-side pad/s2d/concat run at half HBM traffic.
    Returns (patches (M, 16*Cin) bf16, OH, OW).  Activation duplication is 4x (not 16x).
    """
    n, h, w, c = x_nhwc_bf16.shape
    xp = jnp.pad(x_nhwc_bf16, ((0, 0), (pad, pad), (pad, pad), (0, 0)))
    hp, wp = h + 2 * pad, w + 2 * pad
    assert hp % 2 == 0 and wp % 2 == 0, "H, W must be even for the s2d-s2 conv rewrite"
    h2, w2 = hp // 2, wp // 2
    # s2d[n, r, s, (py*2+px)*C + c] = xp[n, 2r+py, 2s+px, c]
    s2d = xp.reshape(n, h2, 2, w2, 2, c)
    s2d = jnp.transpose(s2d, (0, 1, 3, 2, 4, 5)).reshape(n, h2, w2, 4 * c)
    oh, ow = h2 - 1, w2 - 1
    cols = []
    for ky in range(2):
        for kx in range(2):
            cols.append(s2d[:, ky:ky + oh, kx:kx + ow, :])
    patches = jnp.concatenate(cols, axis=-1)          # (N, OH, OW, 16*Cin) bf16
    return patches.reshape(n * oh * ow, 16 * c), oh, ow


def prepare_weight(weight_oihw):
    """Pre-reorder the PyTorch OIHW 4x4 weight to match the s2d im2col K layout; cast bf16.

    K index = (ky*2+kx)*4*Cin + (py*2+px)*Cin + c, with (dy, dx) = (2ky+py, 2kx+px).
    Done once, outside the forward hot path.
    """
    cout, cin, kh, kw = weight_oihw.shape
    assert (kh, kw) == (4, 4)
    wt = jnp.transpose(weight_oihw, (2, 3, 1, 0))       # (4,4,Cin,Cout)  [dy,dx,c,co]
    wt = wt.reshape(2, 2, 2, 2, cin, cout)              # [ky,py,kx,px,c,co]
    wt = jnp.transpose(wt, (0, 2, 1, 3, 4, 5))          # [ky,kx,py,px,c,co]
    return wt.reshape(16 * cin, cout).astype(jnp.bfloat16)


def _conv_partial_stats(patches_bf16, w_bf16, tm):
    """Pass 1: per-tile partial per-channel sum / sumsq of the conv output."""
    m_pad, k = patches_bf16.shape
    cout = w_bf16.shape[1]
    n_tiles = m_pad // tm
    cost = pl.CostEstimate(
        flops=2 * m_pad * k * cout + 3 * m_pad * cout,
        transcendentals=0,
        bytes_accessed=m_pad * k * 2 + k * cout * 2 + n_tiles * 8 * cout * 4)
    return pl.pallas_call(
        _stats_kernel,
        out_shape=jax.ShapeDtypeStruct((n_tiles, 8, cout), jnp.float32),
        grid=(n_tiles,),
        in_specs=[
            pl.BlockSpec((tm, k), lambda i: (i, 0)),
            pl.BlockSpec((k, cout), lambda i: (0, 0)),
        ],
        # Per-tile stats block -> no cross-iteration dependence -> 'parallel' (megacore).
        out_specs=pl.BlockSpec((None, 8, cout), lambda i: (i, 0, 0)),
        compiler_params=pltpu.CompilerParams(
            dimension_semantics=("parallel",),
            vmem_limit_bytes=VMEM_LIMIT_BYTES),
        cost_estimate=cost,
    )(patches_bf16, w_bf16)


def _conv_bn_lrelu(patches_bf16, w_bf16, scale, shift, tm):
    """Pass 2: recompute matmul, apply BN scale/shift + LeakyReLU, write bf16 output."""
    m_pad, k = patches_bf16.shape
    cout = w_bf16.shape[1]
    n_tiles = m_pad // tm
    cost = pl.CostEstimate(
        flops=2 * m_pad * k * cout + 4 * m_pad * cout,
        transcendentals=0,
        bytes_accessed=m_pad * k * 2 + k * cout * 2 + 2 * cout * 4 + m_pad * cout * 2)
    return pl.pallas_call(
        _matmul_bn_lrelu_kernel,
        out_shape=jax.ShapeDtypeStruct((m_pad, cout), jnp.bfloat16),
        grid=(n_tiles,),
        in_specs=[
            pl.BlockSpec((tm, k), lambda i: (i, 0)),
            pl.BlockSpec((k, cout), lambda i: (0, 0)),
            pl.BlockSpec((1, cout), lambda i: (0, 0)),
            pl.BlockSpec((1, cout), lambda i: (0, 0)),
        ],
        out_specs=pl.BlockSpec((tm, cout), lambda i: (i, 0)),
        compiler_params=pltpu.CompilerParams(
            dimension_semantics=("parallel",),
            vmem_limit_bytes=VMEM_LIMIT_BYTES),
        cost_estimate=cost,
    )(patches_bf16, w_bf16, scale, shift)


@functools.partial(jax.jit, static_argnames=("tm",))
def conv_block_forward(x_nchw, w_mat_bf16, gamma, beta, *, tm=TILE_M):
    """ConvBlock forward: NCHW in, NCHW (bf16) out.  w_mat_bf16 from prepare_weight()."""
    n = x_nchw.shape[0]
    k, cout = w_mat_bf16.shape

    # Lane-density guard: pad Cout to a multiple of 128 (pix2pix first block has out_dim=64).
    cout_p = pl.cdiv(cout, 128) * 128
    if cout_p != cout:
        w_mat_bf16 = jnp.pad(w_mat_bf16, ((0, 0), (0, cout_p - cout)))
        gamma = jnp.pad(gamma, (0, cout_p - cout))
        beta = jnp.pad(beta, (0, cout_p - cout))

    # bf16 BEFORE building patches: pad/s2d/concat run at half the HBM traffic.
    x_nhwc = jnp.transpose(x_nchw, (0, 2, 3, 1)).astype(jnp.bfloat16)
    patches, oh, ow = _build_patches(x_nhwc)
    m = patches.shape[0]                                 # true row count (= N*OH*OW)

    # Pick an effective tile (multiple of 8, no larger than needed) and pad M to a multiple.
    tm_eff = max(8, min(tm, pl.cdiv(m, 8) * 8))
    m_pad = pl.cdiv(m, tm_eff) * tm_eff
    patches = jnp.pad(patches, ((0, m_pad - m), (0, 0)))  # zero rows: no effect on BN sums
    n_tiles = m_pad // tm_eff

    # Pass 1: per-tile partial per-channel sum / sumsq (no y materialization).
    stats = _conv_partial_stats(patches, w_mat_bf16, tm_eff)   # (n_tiles, 8, cout_p) f32
    s = jnp.sum(stats[:, 0, :], axis=0)                        # (cout_p,)
    sq = jnp.sum(stats[:, 1, :], axis=0)

    # Finish BN statistics (tiny) and fold gamma/beta into scale/shift.
    # Note: E[y^2]-E[y]^2 over per-tile f32 partial sums; adequate at these M, see review.
    count = jnp.float32(m)
    mean = s / count
    var = jnp.maximum(sq / count - mean * mean, 0.0)     # biased variance (PyTorch train mode)
    scale = (gamma * lax.rsqrt(var + BN_EPS)).reshape(1, cout_p).astype(jnp.float32)
    shift = (beta - mean * gamma * lax.rsqrt(var + BN_EPS)).reshape(1, cout_p).astype(jnp.float32)

    # Pass 2: recompute matmul + BN apply + LeakyReLU, bf16 output.
    out = _conv_bn_lrelu(patches, w_mat_bf16, scale, shift, tm_eff)

    out = out[:m].reshape(n, oh, ow, cout_p)[..., :cout]
    return jnp.transpose(out, (0, 3, 1, 2))              # NHWC -> NCHW (bf16)


# --------------------------- pure-JAX reference -----------------------------

def ref_conv_block(x_nchw, weight_oihw, gamma, beta):
    y = lax.conv_general_dilated(
        x_nchw, weight_oihw, (2, 2), ((1, 1), (1, 1)),
        dimension_numbers=("NCHW", "OIHW", "NCHW"),
        precision=lax.Precision.HIGHEST)
    mean = jnp.mean(y, axis=(0, 2, 3), keepdims=True)
    var = jnp.mean(jnp.square(y - mean), axis=(0, 2, 3), keepdims=True)
    yhat = (y - mean) * lax.rsqrt(var + BN_EPS)
    yhat = yhat * gamma.reshape(1, -1, 1, 1) + beta.reshape(1, -1, 1, 1)
    return jnp.where(yhat > 0, yhat, LEAKY_SLOPE * yhat)


# --------------------------------- main -------------------------------------

if __name__ == "__main__":
    key = jax.random.PRNGKey(0)
    kx, kw, kg, kb = jax.random.split(key, 4)

    # Lane-dense ConvBlock: in_dim=8 (K = 16*8 = 128), out_dim=128, 64x64 spatial, batch 4
    # (M = 4*32*32 = 4096 -> two 2048-row tiles, exercising the per-tile-stats path).
    N, CIN, H, W = 4, 8, 64, 64
    COUT = 128

    x = jax.random.normal(kx, (N, CIN, H, W), jnp.float32)
    weight = (1.0 / jnp.sqrt(jnp.float32(16 * CIN))) * \
        jax.random.normal(kw, (COUT, CIN, 4, 4), jnp.float32)
    gamma = 1.0 + 0.1 * jax.random.normal(kg, (COUT,), jnp.float32)
    beta = 0.1 * jax.random.normal(kb, (COUT,), jnp.float32)

    w_mat = prepare_weight(weight)                       # precomputed once, bf16

    out = conv_block_forward(x, w_mat, gamma, beta)
    out = jax.block_until_ready(out)

    ref = ref_conv_block(x, weight, gamma, beta)
    assert out.shape == ref.shape == (N, COUT, H // 2, W // 2), out.shape
    max_err = float(jnp.max(jnp.abs(out.astype(jnp.float32) - ref)))
    # bf16 MXU inputs + bf16 output vs f32 HIGHEST reference -> allow several e-2 absolute.
    if max_err > 6e-2:
        raise AssertionError(f"Pallas output mismatch vs reference, max abs err = {max_err}")

    print("KERNEL_OK")
</pallas_src>

<mosaic_0001>
module attributes {stable_mosaic.version = 11 : i64} {
  func.func @_stats_kernel(%arg0: i32, %arg1: memref<2048x128xbf16, #tpu.memory_space<vmem>>, %arg2: memref<128x128xbf16, #tpu.memory_space<vmem>>, %arg3: memref<1x8x128xf32, #tpu.memory_space<vmem>>) attributes {dimension_semantics = [#tpu.dimension_semantics<parallel>], iteration_bounds = array<i64: 2>, scalar_prefetch = 0 : i64, scratch_operands = 0 : i64, tpu.core_type = #tpu.core_type<tc>, window_params = [{transform_indices = @transform_0, window_bounds = array<i64: 2048, 128>}, {pipeline_mode = #tpu.pipeline_mode<synchronous>, transform_indices = @transform_1, window_bounds = array<i64: 128, 128>}, {transform_indices = @transform_2, window_bounds = array<i64: 1, 8, 128>}]} {
    %c0 = arith.constant 0 : index
    %c0_0 = arith.constant 0 : index
    %0 = vector.load %arg1[%c0, %c0_0] : memref<2048x128xbf16, #tpu.memory_space<vmem>>, vector<2048x128xbf16>
    %c0_1 = arith.constant 0 : index
    %c0_2 = arith.constant 0 : index
    %1 = vector.load %arg2[%c0_1, %c0_2] : memref<128x128xbf16, #tpu.memory_space<vmem>>, vector<128x128xbf16>
    %cst = arith.constant dense<0.000000e+00> : vector<2048x128xf32>
    %2 = tpu.matmul %0, %1, %cst {dimension_numbers = #tpu.dot_dimension_numbers<[1], [0], [0], [1], [0, 0, 1, 1], [], []>} : vector<2048x128xbf16>, vector<128x128xbf16>, vector<2048x128xf32> -> vector<2048x128xf32>
    %cst_3 = arith.constant dense<0.000000e+00> : vector<128xf32>
    %3 = vector.multi_reduction <add>, %2, %cst_3 [0] : vector<2048x128xf32> to vector<128xf32>
    %4 = vector.shape_cast %3 : vector<128xf32> to vector<1x128xf32>
    %5 = arith.mulf %2, %2 : vector<2048x128xf32>
    %cst_4 = arith.constant dense<0.000000e+00> : vector<128xf32>
    %6 = vector.multi_reduction <add>, %5, %cst_4 [0] : vector<2048x128xf32> to vector<128xf32>
    %7 = vector.shape_cast %6 : vector<128xf32> to vector<1x128xf32>
    %cst_5 = arith.constant 0.000000e+00 : f32
    %8 = vector.broadcast %cst_5 : f32 to vector<6x128xf32>
    %9 = tpu.concatenate %4, %7, %8 in 0 : vector<1x128xf32>, vector<1x128xf32>, vector<6x128xf32> -> vector<8x128xf32>
    %c0_6 = arith.constant 0 : index
    %c0_7 = arith.constant 0 : index
    %c0_8 = arith.constant 0 : index
    %10 = vector.load %arg3[%c0_6, %c0_7, %c0_8] : memref<1x8x128xf32, #tpu.memory_space<vmem>>, vector<1x8x128xf32>
    %11 = vector.shape_cast %10 : vector<1x8x128xf32> to vector<8x128xf32>
    %12 = vector.shape_cast %9 : vector<8x128xf32> to vector<1x8x128xf32>
    tpu.vector_store %arg3[%c0_6, %c0_7, %c0_8], %12 {strides = array<i32>} : memref<1x8x128xf32, #tpu.memory_space<vmem>>, vector<1x8x128xf32>,
    return
  }
  func.func @transform_0(%arg0: i32) -> (i32, i32) {
    %c0_i32 = arith.constant 0 : i32
    %c0_i32_0 = arith.constant 0 : i32
    return %arg0, %c0_i32 : i32, i32
  }
  func.func @transform_1(%arg0: i32) -> (i32, i32) {
    %c0_i32 = arith.constant 0 : i32
    %c0_i32_0 = arith.constant 0 : i32
    %c0_i32_1 = arith.constant 0 : i32
    return %c0_i32, %c0_i32_0 : i32, i32
  }
  func.func @transform_2(%arg0: i32) -> (i32, i32, i32) {
    %c0_i32 = arith.constant 0 : i32
    %c0_i32_0 = arith.constant 0 : i32
    %c0_i32_1 = arith.constant 0 : i32
    return %arg0, %c0_i32, %c0_i32_0 : i32, i32, i32
  }
}

module attributes {stable_mosaic.version = 11 : i64} {
  func.func @_matmul_bn_lrelu_kernel(%arg0: i32, %arg1: memref<2048x128xbf16, #tpu.memory_space<vmem>>, %arg2: memref<128x128xbf16, #tpu.memory_space<vmem>>, %arg3: memref<1x128xf32, #tpu.memory_space<vmem>>, %arg4: memref<1x128xf32, #tpu.memory_space<vmem>>, %arg5: memref<2048x128xbf16, #tpu.memory_space<vmem>>) attributes {dimension_semantics = [#tpu.dimension_semantics<parallel>], iteration_bounds = array<i64: 2>, scalar_prefetch = 0 : i64, scratch_operands = 0 : i64, tpu.core_type = #tpu.core_type<tc>, window_params = [{transform_indices = @transform_0, window_bounds = array<i64: 2048, 128>}, {pipeline_mode = #tpu.pipeline_mode<synchronous>, transform_indices = @transform_1, window_bounds = array<i64: 128, 128>}, {pipeline_mode = #tpu.pipeline_mode<synchronous>, transform_indices = @transform_2, window_bounds = array<i64: 1, 128>}, {pipeline_mode = #tpu.pipeline_mode<synchronous>, transform_indices = @transform_3, window_bounds = array<i64: 1, 128>}, {transform_indices = @transform_4, window_bounds = array<i64: 2048, 128>}]} {
    %c0 = arith.constant 0 : index
    %c0_0 = arith.constant 0 : index
    %0 = vector.load %arg1[%c0, %c0_0] : memref<2048x128xbf16, #tpu.memory_space<vmem>>, vector<2048x128xbf16>
    %c0_1 = arith.constant 0 : index
    %c0_2 = arith.constant 0 : index
    %1 = vector.load %arg2[%c0_1, %c0_2] : memref<128x128xbf16, #tpu.memory_space<vmem>>, vector<128x128xbf16>
    %cst = arith.constant dense<0.000000e+00> : vector<2048x128xf32>
    %2 = tpu.matmul %0, %1, %cst {dimension_numbers = #tpu.dot_dimension_numbers<[1], [0], [0], [1], [0, 0, 1, 1], [], []>} : vector<2048x128xbf16>, vector<128x128xbf16>, vector<2048x128xf32> -> vector<2048x128xf32>
    %c0_3 = arith.constant 0 : index
    %c0_4 = arith.constant 0 : index
    %3 = vector.load %arg3[%c0_3, %c0_4] : memref<1x128xf32, #tpu.memory_space<vmem>>, vector<1x128xf32>
    %4 = vector.broadcast %3 : vector<1x128xf32> to vector<2048x128xf32>
    %5 = arith.mulf %2, %4 : vector<2048x128xf32>
    %c0_5 = arith.constant 0 : index
    %c0_6 = arith.constant 0 : index
    %6 = vector.load %arg4[%c0_5, %c0_6] : memref<1x128xf32, #tpu.memory_space<vmem>>, vector<1x128xf32>
    %7 = vector.broadcast %6 : vector<1x128xf32> to vector<2048x128xf32>
    %8 = arith.addf %5, %7 : vector<2048x128xf32>
    %cst_7 = arith.constant 0.000000e+00 : f32
    %9 = vector.broadcast %cst_7 : f32 to vector<2048x128xf32>
    %10 = arith.cmpf ogt, %8, %9 : vector<2048x128xf32>
    %cst_8 = arith.constant 2.000000e-01 : f32
    %11 = vector.broadcast %cst_8 : f32 to vector<2048x128xf32>
    %12 = arith.mulf %11, %8 : vector<2048x128xf32>
    %13 = arith.select %10, %8, %12 : vector<2048x128xi1>, vector<2048x128xf32>
    %14 = arith.truncf %13 : vector<2048x128xf32> to vector<2048x128xbf16>
    %c0_9 = arith.constant 0 : index
    %c0_10 = arith.constant 0 : index
    %15 = vector.load %arg5[%c0_9, %c0_10] : memref<2048x128xbf16, #tpu.memory_space<vmem>>, vector<2048x128xbf16>
    tpu.vector_store %arg5[%c0_9, %c0_10], %14 {strides = array<i32>} : memref<2048x128xbf16, #tpu.memory_space<vmem>>, vector<2048x128xbf16>,
    return
  }
  func.func @transform_0(%arg0: i32) -> (i32, i32) {
    %c0_i32 = arith.constant 0 : i32
    %c0_i32_0 = arith.constant 0 : i32
    return %arg0, %c0_i32 : i32, i32
  }
  func.func @transform_1(%arg0: i32) -> (i32, i32) {
    %c0_i32 = arith.constant 0 : i32
    %c0_i32_0 = arith.constant 0 : i32
    %c0_i32_1 = arith.constant 0 : i32
    return %c0_i32, %c0_i32_0 : i32, i32
  }
  func.func @transform_2(%arg0: i32) -> (i32, i32) {
    %c0_i32 = arith.constant 0 : i32
    %c0_i32_0 = arith.constant 0 : i32
    %c0_i32_1 = arith.constant 0 : i32
    return %c0_i32, %c0_i32_0 : i32, i32
  }
  func.func @transform_3(%arg0: i32) -> (i32, i32) {
    %c0_i32 = arith.constant 0 : i32
    %c0_i32_0 = arith.constant 0 : i32
    %c0_i32_1 = arith.constant 0 : i32
    return %c0_i32, %c0_i32_0 : i32, i32
  }
  func.func @transform_4(%arg0: i32) -> (i32, i32) {
    %c0_i32 = arith.constant 0 : i32
    %c0_i32_0 = arith.constant 0 : i32
    return %arg0, %c0_i32 : i32, i32
  }
}

</mosaic_0001>

<llo_original>
// kernel: conv_block_forward.2
$region0: #{conv_block_forward.2}
  #allocation0 [shape = 'u32[]', space=smem, size = 0x4, offset = 0x4, fixed_abs, tag = 'smem constant byte address 0x4 - core index']
  #allocation1 [shape = 'u32[144,128]{1,0:T(1,128)}', space=vmem, size = 0x12000, scoped, tag = 'internal scratch']
  %s0 = inlined_call_operand.vmem [shape: bf16[4096,128], index: 0, kind: input, shape index: {}]
  %s1 = inlined_call_operand.vmem [shape: bf16[128,128], index: 1, kind: input, shape index: {}]
  %s2 = inlined_call_operand.vmem [shape: f32[2,8,128], index: 2, kind: output, shape index: {}]
  %s3 = sld [smem:[#allocation0]]
  $region41: #{conv_block_forward.2} parent=0
    _
  %s5 = ssub.s32 1, %s3
  %s6 = scalar_select 0, %s5, %s3
  loop: start=0, step=1, limit=4
  $region2: #{conv_block_forward.2} parent=0 // loop_pre_header
    _
  $region3: #{conv_block_forward.2} parent=0 // loop_header
    %s8 = sphi 0, %s12
    %p9 = scmp.ge.s32.totalorder %s8, 4
    %s18 = sphi 0, %s20
    %s21 = sphi 0, %s18
    %s22 = sphi 0, %s21
    %s38 = sphi 0, %s22
    %s42 = sphi 0, %s42
    %s44 = sphi 0, %s42
    %s45 = sphi 0, %s44
    %s59 = sphi 0, %s45
    %s65 = sphi 0, %s67
    %s68 = sphi 0, %s65
    %s69 = sphi 0, %s68
    %s85 = sphi 0, %s69
  $region4: #{conv_block_forward.2} parent=0 // loop_header_branch
    %11 = sbr.rel (%p9) target = $region8
  $region5: #{conv_block_forward.2} parent=0 // loop_body
    %s13 = ssub.s32 %s8, 1
    %s14 = ssub.s32 %s8, 2
    %s15 = sadd.s32 %s8, 1
    %s16 = ssub.s32 %s8, %s15
    %p17 = scmp.eq.s32.totalorder %s16, 0
    %s19 = sadd.s32 %s18, 1
    %s20 = scalar_select %p17, %s18, %s19
    %p23 = pneg %p17
    %p24 = scmp.eq.s32.totalorder %s8, 1
    %p25 = por %p23, %p24
    %p26 = scmp.ne.s32.totalorder %s18, %s21
    %p27 = scmp.eq.s32.totalorder %s8, 0
    %p28 = por %p26, %p27
    %p29 = scmp.ne.s32.totalorder %s18, %s21
    %p30 = scmp.eq.s32.totalorder %s13, 1
    %p31 = por %p29, %p30
    %p32 = scmp.ne.s32.totalorder %s21, %s22
    %p33 = scmp.eq.s32.totalorder %s13, 0
    %p34 = por %p32, %p33
    %p35 = scmp.ne.s32.totalorder %s21, %s22
    %p36 = scmp.eq.s32.totalorder %s14, 1
    %p37 = por %p35, %p36
    %p39 = scmp.ne.s32.totalorder %s22, %s38
    %p40 = scmp.eq.s32.totalorder %s14, 0
    %p41 = por %p39, %p40
    %s43 = sadd.s32 %s42, 1
    %p46 = scmp.eq.s32.totalorder %s8, 1
    %p47 = scmp.ne.s32.totalorder %s42, %s44
    %p48 = scmp.eq.s32.totalorder %s8, 0
    %p49 = por %p47, %p48
    %p50 = scmp.ne.s32.totalorder %s42, %s44
    %p51 = scmp.eq.s32.totalorder %s13, 1
    %p52 = por %p50, %p51
    %p53 = scmp.ne.s32.totalorder %s44, %s45
    %p54 = scmp.eq.s32.totalorder %s13, 0
    %p55 = por %p53, %p54
    %p56 = scmp.ne.s32.totalorder %s44, %s45
    %p57 = scmp.eq.s32.totalorder %s14, 1
    %p58 = por %p56, %p57
    %p60 = scmp.ne.s32.totalorder %s45, %s59
    %p61 = scmp.eq.s32.totalorder %s14, 0
    %p62 = por %p60, %p61
    %s63 = ssub.s32 %s8, %s15
    %p64 = scmp.eq.s32.totalorder %s63, 0
    %s66 = sadd.s32 %s65, 1
    %s67 = scalar_select %p64, %s65, %s66
    %p70 = pneg %p64
    %p71 = scmp.eq.s32.totalorder %s8, 1
    %p72 = por %p70, %p71
    %p73 = scmp.ne.s32.totalorder %s65, %s68
    %p74 = scmp.eq.s32.totalorder %s8, 0
    %p75 = por %p73, %p74
    %p76 = scmp.ne.s32.totalorder %s65, %s68
    %p77 = scmp.eq.s32.totalorder %s13, 1
    %p78 = por %p76, %p77
    %p79 = scmp.ne.s32.totalorder %s68, %s69
    %p80 = scmp.eq.s32.totalorder %s13, 0
    %p81 = por %p79, %p80
    %p82 = scmp.ne.s32.totalorder %s68, %s69
    %p83 = scmp.eq.s32.totalorder %s14, 1
    %p84 = por %p82, %p83
    %p86 = scmp.ne.s32.totalorder %s69, %s85
    %p87 = scmp.eq.s32.totalorder %s14, 0
    %p88 = por %p86, %p87
    %p89 = scmp.le.s32.totalorder 1, %s8
    %p90 = scmp.lt.s32.totalorder %s8, 3
    %p91 = pnand %p89, %p90
    %p92 = pneg %p91
    // Predicated region
    $region9: #{conv_block_forward.2} parent=5 // pred_check
      _
    $region10: #{conv_block_forward.2} parent=5 // pred_check_branch
      %94 = sbr.rel (%p91) target = $region12
    $region11: #{conv_block_forward.2} parent=5 // pred_region
      %s95 = ssub.s32 %s8, 1
      // Predicated region
      $region13: #{conv_block_forward.2} parent=11 // pred_check
        %p96 = pneg %p55
      $region14: #{conv_block_forward.2} parent=11 // pred_check_branch
        %98 = sbr.rel (%p96) target = $region16
      $region15: #{conv_block_forward.2} parent=11 // pred_region
        _
      $region16: #{conv_block_forward.2} parent=11 // pred_fallthru
        _
    $region12: #{conv_block_forward.2} parent=5 // pred_fallthru
      _
    %p99 = scmp.lt.s32.totalorder %s8, 2
    // Predicated region
    $region17: #{conv_block_forward.2} parent=5 // pred_check
      %p100 = pneg %p99
    $region18: #{conv_block_forward.2} parent=5 // pred_check_branch
      %102 = sbr.rel (%p100) target = $region20
    $region19: #{conv_block_forward.2} parent=5 // pred_region
      // Predicated region
      $region21: #{conv_block_forward.2} parent=19 // pred_check
        %p103 = pneg %p28
      $region22: #{conv_block_forward.2} parent=19 // pred_check_branch
        %105 = sbr.rel (%p103) target = $region24
      $region23: #{conv_block_forward.2} parent=19 // pred_region
        %s106 = smul.u32 256, %s8
        %p107 = scmp.lt.s32.totalorder %s106, 511
        %s108 = scalar_select %p107, %s106, 511
        %s109 = smul.addr %s108, 4
        %s110 = scalar_lea.vmem %s0, %s109
        %s111 = smul.u32 256, %s8
      $region24: #{conv_block_forward.2} parent=19 // pred_fallthru
        _
    $region20: #{conv_block_forward.2} parent=5 // pred_fallthru
      _
    %p112 = scmp.le.s32.totalorder 1, %s8
    %p113 = scmp.lt.s32.totalorder %s8, 3
    %p114 = pnand %p112, %p113
    %p115 = pneg %p114
    // Predicated region
    $region25: #{conv_block_forward.2} parent=5 // pred_check
      _
    $region26: #{conv_block_forward.2} parent=5 // pred_check_branch
      %117 = sbr.rel (%p114) target = $region28
    $region27: #{conv_block_forward.2} parent=5 // pred_region
      %s118 = ssub.s32 %s8, 1
      %s119 = smul.u32 256, %s13
      %p120 = scmp.lt.s32.totalorder %s119, 511
      %s121 = scalar_select %p120, %s119, 511
      %s122 = smul.addr %s121, 4
      %s123 = scalar_lea.vmem %s0, %s122
      %p124 = pneg %p34
      %p125 = pneg %p31
      %p126 = pneg %p55
      %p127 = pneg %p52
      %p128 = pneg %p81
      %p129 = pneg %p78
      %p130 = scmp.lt.s32.totalorder %s13, 1
      %s131 = scalar_select %p130, %s13, 1
      %s132 = smul.addr %s131, 8
      %s133 = scalar_lea.vmem %s2, %s132
      %s134 = smul.u32 256, %s13
      %p135 = scmp.lt.s32.totalorder %s134, 511
      %s136 = scalar_select %p135, %s134, 511
      %s137 = smul.addr %s136, 4
      %s138 = scalar_lea.vmem %s0, %s137
      %s139 = smul.u32 256, %s13
      %p140 = scmp.lt.s32.totalorder %s13, 1
      %s141 = scalar_select %p140, %s13, 1
      %s142 = smul.addr %s141, 8
      %s143 = scalar_lea.vmem %s2, %s142
      %v145 = vld [vmem:[%s138] sm:$0xf]
      %v146 = vld [vmem:[%s138 + $0x4] sm:$0xf]
      %v147 = vld [vmem:[%s138 + $0x8] sm:$0xf]
      %v148 = vld [vmem:[%s138 + $0xc] sm:$0xf]
      %v149 = vld [vmem:[%s138 + $0x10] sm:$0xf]
      %v150 = vld [vmem:[%s138 + $0x14] sm:$0xf]
      %v151 = vld [vmem:[%s138 + $0x18] sm:$0xf]
      %v152 = vld [vmem:[%s138 + $0x1c] sm:$0xf]
      %v153 = vld [vmem:[%s138 + $0x20] sm:$0xf]
      %v154 = vld [vmem:[%s138 + $0x24] sm:$0xf]
      %v155 = vld [vmem:[%s138 + $0x28] sm:$0xf]
      %v156 = vld [vmem:[%s138 + $0x2c] sm:$0xf]
      %v157 = vld [vmem:[%s138 + $0x30] sm:$0xf]
      %v158 = vld [vmem:[%s138 + $0x34] sm:$0xf]
      %v159 = vld [vmem:[%s138 + $0x38] sm:$0xf]
      %v160 = vld [vmem:[%s138 + $0x3c] sm:$0xf]
      %v161 = vld [vmem:[%s138 + $0x40] sm:$0xf]
      %v162 = vld [vmem:[%s138 + $0x44] sm:$0xf]
      %v163 = vld [vmem:[%s138 + $0x48] sm:$0xf]
      %v164 = vld [vmem:[%s138 + $0x4c] sm:$0xf]
      %v165 = vld [vmem:[%s138 + $0x50] sm:$0xf]
      %v166 = vld [vmem:[%s138 + $0x54] sm:$0xf]
      %v167 = vld [vmem:[%s138 + $0x58] sm:$0xf]
      %v168 = vld [vmem:[%s138 + $0x5c] sm:$0xf]
      %v169 = vld [vmem:[%s138 + $0x60] sm:$0xf]
      %v170 = vld [vmem:[%s138 + $0x64] sm:$0xf]
      %v171 = vld [vmem:[%s138 + $0x68] sm:$0xf]
      %v172 = vld [vmem:[%s138 + $0x6c] sm:$0xf]
      %v173 = vld [vmem:[%s138 + $0x70] sm:$0xf]
      %v174 = vld [vmem:[%s138 + $0x74] sm:$0xf]
      %v175 = vld [vmem:[%s138 + $0x78] sm:$0xf]
      %v176 = vld [vmem:[%s138 + $0x7c] sm:$0xf]
      %v177 = vld [vmem:[%s138 + $0x80] sm:$0xf]
      %v178 = vld [vmem:[%s138 + $0x84] sm:$0xf]
      %v179 = vld [vmem:[%s138 + $0x88] sm:$0xf]
      %v180 = vld [vmem:[%s138 + $0x8c] sm:$0xf]
      %v181 = vld [vmem:[%s138 + $0x90] sm:$0xf]
      %v182 = vld [vmem:[%s138 + $0x94] sm:$0xf]
      %v183 = vld [vmem:[%s138 + $0x98] sm:$0xf]
      %v184 = vld [vmem:[%s138 + $0x9c] sm:$0xf]
      %v185 = vld [vmem:[%s138 + $0xa0] sm:$0xf]
      %v186 = vld [vmem:[%s138 + $0xa4] sm:$0xf]
      %v187 = vld [vmem:[%s138 + $0xa8] sm:$0xf]
      %v188 = vld [vmem:[%s138 + $0xac] sm:$0xf]
      %v189 = vld [vmem:[%s138 + $0xb0] sm:$0xf]
      %v190 = vld [vmem:[%s138 + $0xb4] sm:$0xf]
      %v191 = vld [vmem:[%s138 + $0xb8] sm:$0xf]
      %v192 = vld [vmem:[%s138 + $0xbc] sm:$0xf]
      %v193 = vld [vmem:[%s138 + $0xc0] sm:$0xf]
      %v194 = vld [vmem:[%s138 + $0xc4] sm:$0xf]
      %v195 = vld [vmem:[%s138 + $0xc8] sm:$0xf]
      %v196 = vld [vmem:[%s138 + $0xcc] sm:$0xf]
      %v197 = vld [vmem:[%s138 + $0xd0] sm:$0xf]
      %v198 = vld [vmem:[%s138 + $0xd4] sm:$0xf]
      %v199 = vld [vmem:[%s138 + $0xd8] sm:$0xf]
      %v200 = vld [vmem:[%s138 + $0xdc] sm:$0xf]
      %v201 = vld [vmem:[%s138 + $0xe0] sm:$0xf]
      %v202 = vld [vmem:[%s138 + $0xe4] sm:$0xf]
      %v203 = vld [vmem:[%s138 + $0xe8] sm:$0xf]
      %v204 = vld [vmem:[%s138 + $0xec] sm:$0xf]
      %v205 = vld [vmem:[%s138 + $0xf0] sm:$0xf]
      %v206 = vld [vmem:[%s138 + $0xf4] sm:$0xf]
      %v207 = vld [vmem:[%s138 + $0xf8] sm:$0xf]
      %v208 = vld [vmem:[%s138 + $0xfc] sm:$0xf]
      %v209 = vld [vmem:[%s138 + $0x100] sm:$0xf]
      %v210 = vld [vmem:[%s138 + $0x104] sm:$0xf]
      %v211 = vld [vmem:[%s138 + $0x108] sm:$0xf]
      %v212 = vld [vmem:[%s138 + $0x10c] sm:$0xf]
      %v213 = vld [vmem:[%s138 + $0x110] sm:$0xf]
      %v214 = vld [vmem:[%s138 + $0x114] sm:$0xf]
      %v215 = vld [vmem:[%s138 + $0x118] sm:$0xf]
      %v216 = vld [vmem:[%s138 + $0x11c] sm:$0xf]
      %v217 = vld [vmem:[%s138 + $0x120] sm:$0xf]
      %v218 = vld [vmem:[%s138 + $0x124] sm:$0xf]
      %v219 = vld [vmem:[%s138 + $0x128] sm:$0xf]
      %v220 = vld [vmem:[%s138 + $0x12c] sm:$0xf]
      %v221 = vld [vmem:[%s138 + $0x130] sm:$0xf]
      %v222 = vld [vmem:[%s138 + $0x134] sm:$0xf]
      %v223 = vld [vmem:[%s138 + $0x138] sm:$0xf]
      %v224 = vld [vmem:[%s138 + $0x13c] sm:$0xf]
      %v225 = vld [vmem:[%s138 + $0x140] sm:$0xf]
      %v226 = vld [vmem:[%s138 + $0x144] sm:$0xf]
      %v227 = vld [vmem:[%s138 + $0x148] sm:$0xf]
      %v228 = vld [vmem:[%s138 + $0x14c] sm:$0xf]
      %v229 = vld [vmem:[%s138 + $0x150] sm:$0xf]
      %v230 = vld [vmem:[%s138 + $0x154] sm:$0xf]
      %v231 = vld [vmem:[%s138 + $0x158] sm:$0xf]
      %v232 = vld [vmem:[%s138 + $0x15c] sm:$0xf]
      %v233 = vld [vmem:[%s138 + $0x160] sm:$0xf]
      %v234 = vld [vmem:[%s138 + $0x164] sm:$0xf]
      %v235 = vld [vmem:[%s138 + $0x168] sm:$0xf]
      %v236 = vld [vmem:[%s138 + $0x16c] sm:$0xf]
      %v237 = vld [vmem:[%s138 + $0x170] sm:$0xf]
      %v238 = vld [vmem:[%s138 + $0x174] sm:$0xf]
      %v239 = vld [vmem:[%s138 + $0x178] sm:$0xf]
      %v240 = vld [vmem:[%s138 + $0x17c] sm:$0xf]
      %v241 = vld [vmem:[%s138 + $0x180] sm:$0xf]
      %v242 = vld [vmem:[%s138 + $0x184] sm:$0xf]
      %v243 = vld [vmem:[%s138 + $0x188] sm:$0xf]
      %v244 = vld [vmem:[%s138 + $0x18c] sm:$0xf]
      %v245 = vld [vmem:[%s138 + $0x190] sm:$0xf]
      %v246 = vld [vmem:[%s138 + $0x194] sm:$0xf]
      %v247 = vld [vmem:[%s138 + $0x198] sm:$0xf]
      %v248 = vld [vmem:[%s138 + $0x19c] sm:$0xf]
      %v249 = vld [vmem:[%s138 + $0x1a0] sm:$0xf]
      %v250 = vld [vmem:[%s138 + $0x1a4] sm:$0xf]
      %v251 = vld [vmem:[%s138 + $0x1a8] sm:$0xf]
      %v252 = vld [vmem:[%s138 + $0x1ac] sm:$0xf]
      %v253 = vld [vmem:[%s138 + $0x1b0] sm:$0xf]
      %v254 = vld [vmem:[%s138 + $0x1b4] sm:$0xf]
      %v255 = vld [vmem:[%s138 + $0x1b8] sm:$0xf]
      %v256 = vld [vmem:[%s138 + $0x1bc] sm:$0xf]
      %v257 = vld [vmem:[%s138 + $0x1c0] sm:$0xf]
      %v258 = vld [vmem:[%s138 + $0x1c4] sm:$0xf]
      %v259 = vld [vmem:[%s138 + $0x1c8] sm:$0xf]
      %v260 = vld [vmem:[%s138 + $0x1cc] sm:$0xf]
      %v261 = vld [vmem:[%s138 + $0x1d0] sm:$0xf]
      %v262 = vld [vmem:[%s138 + $0x1d4] sm:$0xf]
      %v263 = vld [vmem:[%s138 + $0x1d8] sm:$0xf]
      %v264 = vld [vmem:[%s138 + $0x1dc] sm:$0xf]
      %v265 = vld [vmem:[%s138 + $0x1e0] sm:$0xf]
      %v266 = vld [vmem:[%s138 + $0x1e4] sm:$0xf]
      %v267 = vld [vmem:[%s138 + $0x1e8] sm:$0xf]
      %v268 = vld [vmem:[%s138 + $0x1ec] sm:$0xf]
      %v269 = vld [vmem:[%s138 + $0x1f0] sm:$0xf]
      %v270 = vld [vmem:[%s138 + $0x1f4] sm:$0xf]
      %v271 = vld [vmem:[%s138 + $0x1f8] sm:$0xf]
      %v272 = vld [vmem:[%s138 + $0x1fc] sm:$0xf]
      %v273 = vld [vmem:[%s138 + $0x200] sm:$0xf]
      %v274 = vld [vmem:[%s138 + $0x204] sm:$0xf]
      %v275 = vld [vmem:[%s138 + $0x208] sm:$0xf]
      %v276 = vld [vmem:[%s138 + $0x20c] sm:$0xf]
      %v277 = vld [vmem:[%s138 + $0x210] sm:$0xf]
      %v278 = vld [vmem:[%s138 + $0x214] sm:$0xf]
      %v279 = vld [vmem:[%s138 + $0x218] sm:$0xf]
      %v280 = vld [vmem:[%s138 + $0x21c] sm:$0xf]
      %v281 = vld [vmem:[%s138 + $0x220] sm:$0xf]
      %v282 = vld [vmem:[%s138 + $0x224] sm:$0xf]
      %v283 = vld [vmem:[%s138 + $0x228] sm:$0xf]
      %v284 = vld [vmem:[%s138 + $0x22c] sm:$0xf]
      %v285 = vld [vmem:[%s138 + $0x230] sm:$0xf]
      %v286 = vld [vmem:[%s138 + $0x234] sm:$0xf]
      %v287 = vld [vmem:[%s138 + $0x238] sm:$0xf]
      %v288 = vld [vmem:[%s138 + $0x23c] sm:$0xf]
      %v289 = vld [vmem:[%s138 + $0x240] sm:$0xf]
      %v290 = vld [vmem:[%s138 + $0x244] sm:$0xf]
      %v291 = vld [vmem:[%s138 + $0x248] sm:$0xf]
      %v292 = vld [vmem:[%s138 + $0x24c] sm:$0xf]
      %v293 = vld [vmem:[%s138 + $0x250] sm:$0xf]
      %v294 = vld [vmem:[%s138 + $0x254] sm:$0xf]
      %v295 = vld [vmem:[%s138 + $0x258] sm:$0xf]
      %v296 = vld [vmem:[%s138 + $0x25c] sm:$0xf]
      %v297 = vld [vmem:[%s138 + $0x260] sm:$0xf]
      %v298 = vld [vmem:[%s138 + $0x264] sm:$0xf]
      %v299 = vld [vmem:[%s138 + $0x268] sm:$0xf]
      %v300 = vld [vmem:[%s138 + $0x26c] sm:$0xf]
      %v301 = vld [vmem:[%s138 + $0x270] sm:$0xf]
      %v302 = vld [vmem:[%s138 + $0x274] sm:$0xf]
      %v303 = vld [vmem:[%s138 + $0x278] sm:$0xf]
      %v304 = vld [vmem:[%s138 + $0x27c] sm:$0xf]
      %v305 = vld [vmem:[%s138 + $0x280] sm:$0xf]
      %v306 = vld [vmem:[%s138 + $0x284] sm:$0xf]
      %v307 = vld [vmem:[%s138 + $0x288] sm:$0xf]
      %v308 = vld [vmem:[%s138 + $0x28c] sm:$0xf]
      %v309 = vld [vmem:[%s138 + $0x290] sm:$0xf]
      %v310 = vld [vmem:[%s138 + $0x294] sm:$0xf]
      %v311 = vld [vmem:[%s138 + $0x298] sm:$0xf]
      %v312 = vld [vmem:[%s138 + $0x29c] sm:$0xf]
      %v313 = vld [vmem:[%s138 + $0x2a0] sm:$0xf]
      %v314 = vld [vmem:[%s138 + $0x2a4] sm:$0xf]
      %v315 = vld [vmem:[%s138 + $0x2a8] sm:$0xf]
      %v316 = vld [vmem:[%s138 + $0x2ac] sm:$0xf]
      %v317 = vld [vmem:[%s138 + $0x2b0] sm:$0xf]
      %v318 = vld [vmem:[%s138 + $0x2b4] sm:$0xf]
      %v319 = vld [vmem:[%s138 + $0x2b8] sm:$0xf]
      %v320 = vld [vmem:[%s138 + $0x2bc] sm:$0xf]
      %v321 = vld [vmem:[%s138 + $0x2c0] sm:$0xf]
      %v322 = vld [vmem:[%s138 + $0x2c4] sm:$0xf]
      %v323 = vld [vmem:[%s138 + $0x2c8] sm:$0xf]
      %v324 = vld [vmem:[%s138 + $0x2cc] sm:$0xf]
      %v325 = vld [vmem:[%s138 + $0x2d0] sm:$0xf]
      %v326 = vld [vmem:[%s138 + $0x2d4] sm:$0xf]
      %v327 = vld [vmem:[%s138 + $0x2d8] sm:$0xf]
      %v328 = vld [vmem:[%s138 + $0x2dc] sm:$0xf]
      %v329 = vld [vmem:[%s138 + $0x2e0] sm:$0xf]
      %v330 = vld [vmem:[%s138 + $0x2e4] sm:$0xf]
      %v331 = vld [vmem:[%s138 + $0x2e8] sm:$0xf]
      %v332 = vld [vmem:[%s138 + $0x2ec] sm:$0xf]
      %v333 = vld [vmem:[%s138 + $0x2f0] sm:$0xf]
      %v334 = vld [vmem:[%s138 + $0x2f4] sm:$0xf]
      %v335 = vld [vmem:[%s138 + $0x2f8] sm:$0xf]
      %v336 = vld [vmem:[%s138 + $0x2fc] sm:$0xf]
      %v337 = vld [vmem:[%s138 + $0x300] sm:$0xf]
      %v338 = vld [vmem:[%s138 + $0x304] sm:$0xf]
      %v339 = vld [vmem:[%s138 + $0x308] sm:$0xf]
      %v340 = vld [vmem:[%s138 + $0x30c] sm:$0xf]
      %v341 = vld [vmem:[%s138 + $0x310] sm:$0xf]
      %v342 = vld [vmem:[%s138 + $0x314] sm:$0xf]
      %v343 = vld [vmem:[%s138 + $0x318] sm:$0xf]
      %v344 = vld [vmem:[%s138 + $0x31c] sm:$0xf]
      %v345 = vld [vmem:[%s138 + $0x320] sm:$0xf]
      %v346 = vld [vmem:[%s138 + $0x324] sm:$0xf]
      %v347 = vld [vmem:[%s138 + $0x328] sm:$0xf]
      %v348 = vld [vmem:[%s138 + $0x32c] sm:$0xf]
      %v349 = vld [vmem:[%s138 + $0x330] sm:$0xf]
      %v350 = vld [vmem:[%s138 + $0x334] sm:$0xf]
      %v351 = vld [vmem:[%s138 + $0x338] sm:$0xf]
      %v352 = vld [vmem:[%s138 + $0x33c] sm:$0xf]
      %v353 = vld [vmem:[%s138 + $0x340] sm:$0xf]
      %v354 = vld [vmem:[%s138 + $0x344] sm:$0xf]
      %v355 = vld [vmem:[%s138 + $0x348] sm:$0xf]
      %v356 = vld [vmem:[%s138 + $0x34c] sm:$0xf]
      %v357 = vld [vmem:[%s138 + $0x350] sm:$0xf]
      %v358 = vld [vmem:[%s138 + $0x354] sm:$0xf]
      %v359 = vld [vmem:[%s138 + $0x358] sm:$0xf]
      %v360 = vld [vmem:[%s138 + $0x35c] sm:$0xf]
      %v361 = vld [vmem:[%s138 + $0x360] sm:$0xf]
      %v362 = vld [vmem:[%s138 + $0x364] sm:$0xf]
      %v363 = vld [vmem:[%s138 + $0x368] sm:$0xf]
      %v364 = vld [vmem:[%s138 + $0x36c] sm:$0xf]
      %v365 = vld [vmem:[%s138 + $0x370] sm:$0xf]
      %v366 = vld [vmem:[%s138 + $0x374] sm:$0xf]
      %v367 = vld [vmem:[%s138 + $0x378] sm:$0xf]
      %v368 = vld [vmem:[%s138 + $0x37c] sm:$0xf]
      %v369 = vld [vmem:[%s138 + $0x380] sm:$0xf]
      %v370 = vld [vmem:[%s138 + $0x384] sm:$0xf]
      %v371 = vld [vmem:[%s138 + $0x388] sm:$0xf]
      %v372 = vld [vmem:[%s138 + $0x38c] sm:$0xf]
      %v373 = vld [vmem:[%s138 + $0x390] sm:$0xf]
      %v374 = vld [vmem:[%s138 + $0x394] sm:$0xf]
      %v375 = vld [vmem:[%s138 + $0x398] sm:$0xf]
      %v376 = vld [vmem:[%s138 + $0x39c] sm:$0xf]
      %v377 = vld [vmem:[%s138 + $0x3a0] sm:$0xf]
      %v378 = vld [vmem:[%s138 + $0x3a4] sm:$0xf]
      %v379 = vld [vmem:[%s138 + $0x3a8] sm:$0xf]
      %v380 = vld [vmem:[%s138 + $0x3ac] sm:$0xf]
      %v381 = vld [vmem:[%s138 + $0x3b0] sm:$0xf]
      %v382 = vld [vmem:[%s138 + $0x3b4] sm:$0xf]
      %v383 = vld [vmem:[%s138 + $0x3b8] sm:$0xf]
      %v384 = vld [vmem:[%s138 + $0x3bc] sm:$0xf]
      %v385 = vld [vmem:[%s138 + $0x3c0] sm:$0xf]
      %v386 = vld [vmem:[%s138 + $0x3c4] sm:$0xf]
      %v387 = vld [vmem:[%s138 + $0x3c8] sm:$0xf]
      %v388 = vld [vmem:[%s138 + $0x3cc] sm:$0xf]
      %v389 = vld [vmem:[%s138 + $0x3d0] sm:$0xf]
      %v390 = vld [vmem:[%s138 + $0x3d4] sm:$0xf]
      %v391 = vld [vmem:[%s138 + $0x3d8] sm:$0xf]
      %v392 = vld [vmem:[%s138 + $0x3dc] sm:$0xf]
      %v393 = vld [vmem:[%s138 + $0x3e0] sm:$0xf]
      %v394 = vld [vmem:[%s138 + $0x3e4] sm:$0xf]
      %v395 = vld [vmem:[%s138 + $0x3e8] sm:$0xf]
      %v396 = vld [vmem:[%s138 + $0x3ec] sm:$0xf]
      %v397 = vld [vmem:[%s138 + $0x3f0] sm:$0xf]
      %v398 = vld [vmem:[%s138 + $0x3f4] sm:$0xf]
      %v399 = vld [vmem:[%s138 + $0x3f8] sm:$0xf]
      %v400 = vld [vmem:[%s138 + $0x3fc] sm:$0xf]
      %v401 = vld [vmem:[%s1] sm:$0xf]
      %v402 = vld [vmem:[%s1 + $0x4] sm:$0xf]
      %v403 = vld [vmem:[%s1 + $0x8] sm:$0xf]
      %v404 = vld [vmem:[%s1 + $0xc] sm:$0xf]
      %v405 = vld [vmem:[%s1 + $0x10] sm:$0xf]
      %v406 = vld [vmem:[%s1 + $0x14] sm:$0xf]
      %v407 = vld [vmem:[%s1 + $0x18] sm:$0xf]
      %v408 = vld [vmem:[%s1 + $0x1c] sm:$0xf]
      %v409 = vld [vmem:[%s1 + $0x20] sm:$0xf]
      %v410 = vld [vmem:[%s1 + $0x24] sm:$0xf]
      %v411 = vld [vmem:[%s1 + $0x28] sm:$0xf]
      %v412 = vld [vmem:[%s1 + $0x2c] sm:$0xf]
      %v413 = vld [vmem:[%s1 + $0x30] sm:$0xf]
      %v414 = vld [vmem:[%s1 + $0x34] sm:$0xf]
      %v415 = vld [vmem:[%s1 + $0x38] sm:$0xf]
      %v416 = vld [vmem:[%s1 + $0x3c] sm:$0xf]
      %v673 = vunpack.c.l.b16 %v145
      %v674 = vunpack.c.l.b16 %v146
      %v675 = vunpack.c.l.b16 %v147
      %v676 = vunpack.c.l.b16 %v148
      %v677 = vunpack.c.l.b16 %v149
      %v678 = vunpack.c.l.b16 %v150
      %v679 = vunpack.c.l.b16 %v151
      %v680 = vunpack.c.l.b16 %v152
      %v681 = vunpack.c.l.b16 %v153
      %v682 = vunpack.c.l.b16 %v154
      %v683 = vunpack.c.l.b16 %v155
      %v684 = vunpack.c.l.b16 %v156
      %v685 = vunpack.c.l.b16 %v157
      %v686 = vunpack.c.l.b16 %v158
      %v687 = vunpack.c.l.b16 %v159
      %v688 = vunpack.c.l.b16 %v160
      %v689 = vunpack.c.l.b16 %v161
      %v690 = vunpack.c.l.b16 %v162
      %v691 = vunpack.c.l.b16 %v163
      %v692 = vunpack.c.l.b16 %v164
      %v693 = vunpack.c.l.b16 %v165
      %v694 = vunpack.c.l.b16 %v166
      %v695 = vunpack.c.l.b16 %v167
      %v696 = vunpack.c.l.b16 %v168
      %v697 = vunpack.c.l.b16 %v169
      %v698 = vunpack.c.l.b16 %v170
      %v699 = vunpack.c.l.b16 %v171
      %v700 = vunpack.c.l.b16 %v172
      %v701 = vunpack.c.l.b16 %v173
      %v702 = vunpack.c.l.b16 %v174
      %v703 = vunpack.c.l.b16 %v175
      %v704 = vunpack.c.l.b16 %v176
      %v705 = vunpack.c.l.b16 %v177
      %v706 = vunpack.c.l.b16 %v178
      %v707 = vunpack.c.l.b16 %v179
      %v708 = vunpack.c.l.b16 %v180
      %v709 = vunpack.c.l.b16 %v181
      %v710 = vunpack.c.l.b16 %v182
      %v711 = vunpack.c.l.b16 %v183
      %v712 = vunpack.c.l.b16 %v184
      %v713 = vunpack.c.l.b16 %v185
      %v714 = vunpack.c.l.b16 %v186
      %v715 = vunpack.c.l.b16 %v187
      %v716 = vunpack.c.l.b16 %v188
      %v717 = vunpack.c.l.b16 %v189
      %v718 = vunpack.c.l.b16 %v190
      %v719 = vunpack.c.l.b16 %v191
      %v720 = vunpack.c.l.b16 %v192
      %v721 = vunpack.c.l.b16 %v193
      %v722 = vunpack.c.l.b16 %v194
      %v723 = vunpack.c.l.b16 %v195
      %v724 = vunpack.c.l.b16 %v196
      %v725 = vunpack.c.l.b16 %v197
      %v726 = vunpack.c.l.b16 %v198
      %v727 = vunpack.c.l.b16 %v199
      %v728 = vunpack.c.l.b16 %v200
      %v729 = vunpack.c.l.b16 %v201
      %v730 = vunpack.c.l.b16 %v202
      %v731 = vunpack.c.l.b16 %v203
      %v732 = vunpack.c.l.b16 %v204
      %v733 = vunpack.c.l.b16 %v205
      %v734 = vunpack.c.l.b16 %v206
      %v735 = vunpack.c.l.b16 %v207
      %v736 = vunpack.c.l.b16 %v208
      %v737 = vunpack.c.l.b16 %v209
      %v738 = vunpack.c.l.b16 %v210
      %v739 = vunpack.c.l.b16 %v211
      %v740 = vunpack.c.l.b16 %v212
      %v741 = vunpack.c.l.b16 %v213
      %v742 = vunpack.c.l.b16 %v214
      %v743 = vunpack.c.l.b16 %v215
      %v744 = vunpack.c.l.b16 %v216
      %v745 = vunpack.c.l.b16 %v217
      %v746 = vunpack.c.l.b16 %v218
      %v747 = vunpack.c.l.b16 %v219
      %v748 = vunpack.c.l.b16 %v220
      %v749 = vunpack.c.l.b16 %v221
      %v750 = vunpack.c.l.b16 %v222
      %v751 = vunpack.c.l.b16 %v223
      %v752 = vunpack.c.l.b16 %v224
      %v753 = vunpack.c.l.b16 %v225
      %v754 = vunpack.c.l.b16 %v226
      %v755 = vunpack.c.l.b16 %v227
      %v756 = vunpack.c.l.b16 %v228
      %v757 = vunpack.c.l.b16 %v229
      %v758 = vunpack.c.l.b16 %v230
      %v759 = vunpack.c.l.b16 %v231
      %v760 = vunpack.c.l.b16 %v232
      %v761 = vunpack.c.l.b16 %v233
      %v762 = vunpack.c.l.b16 %v234
      %v763 = vunpack.c.l.b16 %v235
      %v764 = vunpack.c.l.b16 %v236
      %v765 = vunpack.c.l.b16 %v237
      %v766 = vunpack.c.l.b16 %v238
      %v767 = vunpack.c.l.b16 %v239
      %v768 = vunpack.c.l.b16 %v240
      %v769 = vunpack.c.l.b16 %v241
      %v770 = vunpack.c.l.b16 %v242
      %v771 = vunpack.c.l.b16 %v243
      %v772 = vunpack.c.l.b16 %v244
      %v773 = vunpack.c.l.b16 %v245
      %v774 = vunpack.c.l.b16 %v246
      %v775 = vunpack.c.l.b16 %v247
      %v776 = vunpack.c.l.b16 %v248
      %v777 = vunpack.c.l.b16 %v249
      %v778 = vunpack.c.l.b16 %v250
      %v779 = vunpack.c.l.b16 %v251
      %v780 = vunpack.c.l.b16 %v252
      %v781 = vunpack.c.l.b16 %v253
      %v782 = vunpack.c.l.b16 %v254
      %v783 = vunpack.c.l.b16 %v255
      %v784 = vunpack.c.l.b16 %v256
      %v785 = vunpack.c.l.b16 %v257
      %v786 = vunpack.c.l.b16 %v258
      %v787 = vunpack.c.l.b16 %v259
      %v788 = vunpack.c.l.b16 %v260
      %v789 = vunpack.c.l.b16 %v261
      %v790 = vunpack.c.l.b16 %v262
      %v791 = vunpack.c.l.b16 %v263
      %v792 = vunpack.c.l.b16 %v264
      %v793 = vunpack.c.l.b16 %v265
      %v794 = vunpack.c.l.b16 %v266
      %v795 = vunpack.c.l.b16 %v267
      %v796 = vunpack.c.l.b16 %v268
      %v797 = vunpack.c.l.b16 %v269
      %v798 = vunpack.c.l.b16 %v270
      %v799 = vunpack.c.l.b16 %v271
      %v800 = vunpack.c.l.b16 %v272
      %v801 = vunpack.c.l.b16 %v273
      %v802 = vunpack.c.l.b16 %v274
      %v803 = vunpack.c.l.b16 %v275
      %v804 = vunpack.c.l.b16 %v276
      %v805 = vunpack.c.l.b16 %v277
      %v806 = vunpack.c.l.b16 %v278
      %v807 = vunpack.c.l.b16 %v279
      %v808 = vunpack.c.l.b16 %v280
      %v809 = vunpack.c.l.b16 %v281
      %v810 = vunpack.c.l.b16 %v282
      %v811 = vunpack.c.l.b16 %v283
      %v812 = vunpack.c.l.b16 %v284
      %v813 = vunpack.c.l.b16 %v285
      %v814 = vunpack.c.l.b16 %v286
      %v815 = vunpack.c.l.b16 %v287
      %v816 = vunpack.c.l.b16 %v288
      %v817 = vunpack.c.l.b16 %v289
      %v818 = vunpack.c.l.b16 %v290
      %v819 = vunpack.c.l.b16 %v291
      %v820 = vunpack.c.l.b16 %v292
      %v821 = vunpack.c.l.b16 %v293
      %v822 = vunpack.c.l.b16 %v294
      %v823 = vunpack.c.l.b16 %v295
      %v824 = vunpack.c.l.b16 %v296
      %v825 = vunpack.c.l.b16 %v297
      %v826 = vunpack.c.l.b16 %v298
      %v827 = vunpack.c.l.b16 %v299
      %v828 = vunpack.c.l.b16 %v300
      %v829 = vunpack.c.l.b16 %v301
      %v830 = vunpack.c.l.b16 %v302
      %v831 = vunpack.c.l.b16 %v303
      %v832 = vunpack.c.l.b16 %v304
      %v833 = vunpack.c.l.b16 %v305
      %v834 = vunpack.c.l.b16 %v306
      %v835 = vunpack.c.l.b16 %v307
      %v836 = vunpack.c.l.b16 %v308
      %v837 = vunpack.c.l.b16 %v309
      %v838 = vunpack.c.l.b16 %v310
      %v839 = vunpack.c.l.b16 %v311
      %v840 = vunpack.c.l.b16 %v312
      %v841 = vunpack.c.l.b16 %v313
      %v842 = vunpack.c.l.b16 %v314
      %v843 = vunpack.c.l.b16 %v315
      %v844 = vunpack.c.l.b16 %v316
      %v845 = vunpack.c.l.b16 %v317
      %v846 = vunpack.c.l.b16 %v318
      %v847 = vunpack.c.l.b16 %v319
      %v848 = vunpack.c.l.b16 %v320
      %v849 = vunpack.c.l.b16 %v321
      %v850 = vunpack.c.l.b16 %v322
      %v851 = vunpack.c.l.b16 %v323
      %v852 = vunpack.c.l.b16 %v324
      %v853 = vunpack.c.l.b16 %v325
      %v854 = vunpack.c.l.b16 %v326
      %v855 = vunpack.c.l.b16 %v327
      %v856 = vunpack.c.l.b16 %v328
      %v857 = vunpack.c.l.b16 %v329
      %v858 = vunpack.c.l.b16 %v330
      %v859 = vunpack.c.l.b16 %v331
      %v860 = vunpack.c.l.b16 %v332
      %v861 = vunpack.c.l.b16 %v333
      %v862 = vunpack.c.l.b16 %v334
      %v863 = vunpack.c.l.b16 %v335
      %v864 = vunpack.c.l.b16 %v336
      %v865 = vunpack.c.l.b16 %v337
      %v866 = vunpack.c.l.b16 %v338
      %v867 = vunpack.c.l.b16 %v339
      %v868 = vunpack.c.l.b16 %v340
      %v869 = vunpack.c.l.b16 %v341
      %v870 = vunpack.c.l.b16 %v342
      %v871 = vunpack.c.l.b16 %v343
      %v872 = vunpack.c.l.b16 %v344
      %v873 = vunpack.c.l.b16 %v345
      %v874 = vunpack.c.l.b16 %v346
      %v875 = vunpack.c.l.b16 %v347
      %v876 = vunpack.c.l.b16 %v348
      %v877 = vunpack.c.l.b16 %v349
      %v878 = vunpack.c.l.b16 %v350
      %v879 = vunpack.c.l.b16 %v351
      %v880 = vunpack.c.l.b16 %v352
      %v881 = vunpack.c.l.b16 %v353
      %v882 = vunpack.c.l.b16 %v354
      %v883 = vunpack.c.l.b16 %v355
      %v884 = vunpack.c.l.b16 %v356
      %v885 = vunpack.c.l.b16 %v357
      %v886 = vunpack.c.l.b16 %v358
      %v887 = vunpack.c.l.b16 %v359
      %v888 = vunpack.c.l.b16 %v360
      %v889 = vunpack.c.l.b16 %v361
      %v890 = vunpack.c.l.b16 %v362
      %v891 = vunpack.c.l.b16 %v363
      %v892 = vunpack.c.l.b16 %v364
      %v893 = vunpack.c.l.b16 %v365
      %v894 = vunpack.c.l.b16 %v366
      %v895 = vunpack.c.l.b16 %v367
      %v896 = vunpack.c.l.b16 %v368
      %v897 = vunpack.c.l.b16 %v369
      %v898 = vunpack.c.l.b16 %v370
      %v899 = vunpack.c.l.b16 %v371
      %v900 = vunpack.c.l.b16 %v372
      %v901 = vunpack.c.l.b16 %v373
      %v902 = vunpack.c.l.b16 %v374
      %v903 = vunpack.c.l.b16 %v375
      %v904 = vunpack.c.l.b16 %v376
      %v905 = vunpack.c.l.b16 %v377
      %v906 = vunpack.c.l.b16 %v378
      %v907 = vunpack.c.l.b16 %v379
      %v908 = vunpack.c.l.b16 %v380
      %v909 = vunpack.c.l.b16 %v381
      %v910 = vunpack.c.l.b16 %v382
      %v911 = vunpack.c.l.b16 %v383
      %v912 = vunpack.c.l.b16 %v384
      %v913 = vunpack.c.l.b16 %v385
      %v914 = vunpack.c.l.b16 %v386
      %v915 = vunpack.c.l.b16 %v387
      %v916 = vunpack.c.l.b16 %v388
      %v917 = vunpack.c.l.b16 %v389
      %v918 = vunpack.c.l.b16 %v390
      %v919 = vunpack.c.l.b16 %v391
      %v920 = vunpack.c.l.b16 %v392
      %v921 = vunpack.c.l.b16 %v393
      %v922 = vunpack.c.l.b16 %v394
      %v923 = vunpack.c.l.b16 %v395
      %v924 = vunpack.c.l.b16 %v396
      %v925 = vunpack.c.l.b16 %v397
      %v926 = vunpack.c.l.b16 %v398
      %v927 = vunpack.c.l.b16 %v399
      %v928 = vunpack.c.l.b16 %v400
      %v929 = vpack.c.b16 %v674, %v673
      %v930 = vpack.c.b16 %v676, %v675
      %v931 = vpack.c.b16 %v678, %v677
      %v932 = vpack.c.b16 %v680, %v679
      %v933 = vpack.c.b16 %v682, %v681
      %v934 = vpack.c.b16 %v684, %v683
      %v935 = vpack.c.b16 %v686, %v685
      %v936 = vpack.c.b16 %v688, %v687
      %v937 = vpack.c.b16 %v690, %v689
      %v938 = vpack.c.b16 %v692, %v691
      %v939 = vpack.c.b16 %v694, %v693
      %v940 = vpack.c.b16 %v696, %v695
      %v941 = vpack.c.b16 %v698, %v697
      %v942 = vpack.c.b16 %v700, %v699
      %v943 = vpack.c.b16 %v702, %v701
      %v944 = vpack.c.b16 %v704, %v703
      %v945 = vpack.c.b16 %v706, %v705
      %v946 = vpack.c.b16 %v708, %v707
      %v947 = vpack.c.b16 %v710, %v709
      %v948 = vpack.c.b16 %v712, %v711
      %v949 = vpack.c.b16 %v714, %v713
      %v950 = vpack.c.b16 %v716, %v715
      %v951 = vpack.c.b16 %v718, %v717
      %v952 = vpack.c.b16 %v720, %v719
      %v953 = vpack.c.b16 %v722, %v721
      %v954 = vpack.c.b16 %v724, %v723
      %v955 = vpack.c.b16 %v726, %v725
      %v956 = vpack.c.b16 %v728, %v727
      %v957 = vpack.c.b16 %v730, %v729
      %v958 = vpack.c.b16 %v732, %v731
      %v959 = vpack.c.b16 %v734, %v733
      %v960 = vpack.c.b16 %v736, %v735
      %v961 = vpack.c.b16 %v738, %v737
      %v962 = vpack.c.b16 %v740, %v739
      %v963 = vpack.c.b16 %v742, %v741
      %v964 = vpack.c.b16 %v744, %v743
      %v965 = vpack.c.b16 %v746, %v745
      %v966 = vpack.c.b16 %v748, %v747
      %v967 = vpack.c.b16 %v750, %v749
      %v968 = vpack.c.b16 %v752, %v751
      %v969 = vpack.c.b16 %v754, %v753
      %v970 = vpack.c.b16 %v756, %v755
      %v971 = vpack.c.b16 %v758, %v757
      %v972 = vpack.c.b16 %v760, %v759
      %v973 = vpack.c.b16 %v762, %v761
      %v974 = vpack.c.b16 %v764, %v763
      %v975 = vpack.c.b16 %v766, %v765
      %v976 = vpack.c.b16 %v768, %v767
      %v977 = vpack.c.b16 %v770, %v769
      %v978 = vpack.c.b16 %v772, %v771
      %v979 = vpack.c.b16 %v774, %v773
      %v980 = vpack.c.b16 %v776, %v775
      %v981 = vpack.c.b16 %v778, %v777
      %v982 = vpack.c.b16 %v780, %v779
      %v983 = vpack.c.b16 %v782, %v781
      %v984 = vpack.c.b16 %v784, %v783
      %v985 = vpack.c.b16 %v786, %v785
      %v986 = vpack.c.b16 %v788, %v787
      %v987 = vpack.c.b16 %v790, %v789
      %v988 = vpack.c.b16 %v792, %v791
      %v989 = vpack.c.b16 %v794, %v793
      %v990 = vpack.c.b16 %v796, %v795
      %v991 = vpack.c.b16 %v798, %v797
      %v992 = vpack.c.b16 %v800, %v799
      %v993 = vpack.c.b16 %v802, %v801
      %v994 = vpack.c.b16 %v804, %v803
      %v995 = vpack.c.b16 %v806, %v805
      %v996 = vpack.c.b16 %v808, %v807
      %v997 = vpack.c.b16 %v810, %v809
      %v998 = vpack.c.b16 %v812, %v811
      %v999 = vpack.c.b16 %v814, %v813
      %v1000 = vpack.c.b16 %v816, %v815
      %v1001 = vpack.c.b16 %v818, %v817
      %v1002 = vpack.c.b16 %v820, %v819
      %v1003 = vpack.c.b16 %v822, %v821
      %v1004 = vpack.c.b16 %v824, %v823
      %v1005 = vpack.c.b16 %v826, %v825
      %v1006 = vpack.c.b16 %v828, %v827
      %v1007 = vpack.c.b16 %v830, %v829
      %v1008 = vpack.c.b16 %v832, %v831
      %v1009 = vpack.c.b16 %v834, %v833
      %v1010 = vpack.c.b16 %v836, %v835
      %v1011 = vpack.c.b16 %v838, %v837
      %v1012 = vpack.c.b16 %v840, %v839
      %v1013 = vpack.c.b16 %v842, %v841
      %v1014 = vpack.c.b16 %v844, %v843
      %v1015 = vpack.c.b16 %v846, %v845
      %v1016 = vpack.c.b16 %v848, %v847
      %v1017 = vpack.c.b16 %v850, %v849
      %v1018 = vpack.c.b16 %v852, %v851
      %v1019 = vpack.c.b16 %v854, %v853
      %v1020 = vpack.c.b16 %v856, %v855
      %v1021 = vpack.c.b16 %v858, %v857
      %v1022 = vpack.c.b16 %v860, %v859
      %v1023 = vpack.c.b16 %v862, %v861
      %v1024 = vpack.c.b16 %v864, %v863
      %v1025 = vpack.c.b16 %v866, %v865
      %v1026 = vpack.c.b16 %v868, %v867
      %v1027 = vpack.c.b16 %v870, %v869
      %v1028 = vpack.c.b16 %v872, %v871
      %v1029 = vpack.c.b16 %v874, %v873
      %v1030 = vpack.c.b16 %v876, %v875
      %v1031 = vpack.c.b16 %v878, %v877
      %v1032 = vpack.c.b16 %v880, %v879
      %v1033 = vpack.c.b16 %v882, %v881
      %v1034 = vpack.c.b16 %v884, %v883
      %v1035 = vpack.c.b16 %v886, %v885
      %v1036 = vpack.c.b16 %v888, %v887
      %v1037 = vpack.c.b16 %v890, %v889
      %v1038 = vpack.c.b16 %v892, %v891
      %v1039 = vpack.c.b16 %v894, %v893
      %v1040 = vpack.c.b16 %v896, %v895
      %v1041 = vpack.c.b16 %v898, %v897
      %v1042 = vpack.c.b16 %v900, %v899
      %v1043 = vpack.c.b16 %v902, %v901
      %v1044 = vpack.c.b16 %v904, %v903
      %v1045 = vpack.c.b16 %v906, %v905
      %v1046 = vpack.c.b16 %v908, %v907
      %v1047 = vpack.c.b16 %v910, %v909
      %v1048 = vpack.c.b16 %v912, %v911
      %v1049 = vpack.c.b16 %v914, %v913
      %v1050 = vpack.c.b16 %v916, %v915
      %v1051 = vpack.c.b16 %v918, %v917
      %v1052 = vpack.c.b16 %v920, %v919
      %v1053 = vpack.c.b16 %v922, %v921
      %v1054 = vpack.c.b16 %v924, %v923
      %v1055 = vpack.c.b16 %v926, %v925
      %v1056 = vpack.c.b16 %v928, %v927
      %v1201 = vunpack.c.l.b16 %v401
      %v1202 = vunpack.c.l.b16 %v402
      %v1203 = vunpack.c.l.b16 %v403
      %v1204 = vunpack.c.l.b16 %v404
      %v1205 = vunpack.c.l.b16 %v405
      %v1206 = vunpack.c.l.b16 %v406
      %v1207 = vunpack.c.l.b16 %v407
      %v1208 = vunpack.c.l.b16 %v408
      %v1209 = vunpack.c.l.b16 %v409
      %v1210 = vunpack.c.l.b16 %v410
      %v1211 = vunpack.c.l.b16 %v411
      %v1212 = vunpack.c.l.b16 %v412
      %v1213 = vunpack.c.l.b16 %v413
      %v1214 = vunpack.c.l.b16 %v414
      %v1215 = vunpack.c.l.b16 %v415
      %v1216 = vunpack.c.l.b16 %v416
      %v1217 = vpack.c.b16 %v1202, %v1201
      %v1218 = vpack.c.b16 %v1204, %v1203
      %v1219 = vpack.c.b16 %v1206, %v1205
      %v1220 = vpack.c.b16 %v1208, %v1207
      %v1221 = vpack.c.b16 %v1210, %v1209
      %v1222 = vpack.c.b16 %v1212, %v1211
      %v1223 = vpack.c.b16 %v1214, %v1213
      %v1224 = vpack.c.b16 %v1216, %v1215
      %1233 = vmatprep.subr.bf16.mxu0 0
      %1234 = vmatpush1.bf16.msra.mxu0 %v1224
      %1235 = vmatprep.subr.bf16.mxu0 0
      %1236 = vmatpush1.bf16.msra.mxu0 %v1223
      %1237 = vmatprep.subr.bf16.mxu0 0
      %1238 = vmatpush1.bf16.msra.mxu0 %v1222
      %1239 = vmatprep.subr.bf16.mxu0 0
      %1240 = vmatpush1.bf16.msra.mxu0 %v1221
      %1241 = vmatprep.subr.bf16.mxu0 0
      %1242 = vmatpush1.bf16.msra.mxu0 %v1220
      %1243 = vmatprep.subr.bf16.mxu0 0
      %1244 = vmatpush1.bf16.msra.mxu0 %v1219
      %1245 = vmatprep.subr.bf16.mxu0 0
      %1246 = vmatpush1.bf16.msra.mxu0 %v1218
      %1247 = vmatprep.subr.bf16.mxu0 0
      %1248 = vmatpush1.bf16.msra.mxu0 %v1217
      %1249 = vmatprep.subr.bf16.mxu0 0
      %1250 = vmatpush2.bf16.msra.mxu0 0
      %1251 = vmatprep.subr.bf16.mxu0 0
      %1252 = vmatpush2.bf16.msra.mxu0 0
      %1253 = vmatprep.subr.bf16.mxu0 0
      %1254 = vmatpush2.bf16.msra.mxu0 0
      %1255 = vmatprep.subr.bf16.mxu0 0
      %1256 = vmatpush2.bf16.msra.mxu0 0
      %1257 = vmatprep.subr.bf16.mxu0 0
      %1258 = vmatpush2.bf16.msra.mxu0 0
      %1259 = vmatprep.subr.bf16.mxu0 0
      %1260 = vmatpush2.bf16.msra.mxu0 0
      %1261 = vmatprep.subr.bf16.mxu0 0
      %1262 = vmatpush2.bf16.msra.mxu0 0
      %1263 = vmatprep.subr.bf16.mxu0 0
      %1264 = vmatpush2.bf16.msra.mxu0 0
      %1265 = vmatprep.mubr.bf16.mxu0 0
      %1266 = vmatmul.mubr.bf16.gmra.mxu0 %v929
      %v1267 = vpop.f32.mrf.mxu0
      %v1268 = vadd.f32 0.0, %v1267
      %v1269 = vpop.f32.mrf.mxu0
      %v1270 = vpop.f32.mrf.mxu0
      %v1271 = vadd.f32 0.0, %v1270
      %v1272 = vpop.f32.mrf.mxu0
      %1273 = vmatprep.mubr.bf16.mxu0 0
      %1274 = vmatmul.mubr.bf16.gmra.mxu0 %v930
      %v1275 = vpop.f32.mrf.mxu0
      %v1276 = vadd.f32 0.0, %v1275
      %v1277 = vpop.f32.mrf.mxu0
      %v1278 = vpop.f32.mrf.mxu0
      %v1279 = vadd.f32 0.0, %v1278
      %v1280 = vpop.f32.mrf.mxu0
      %1281 = vmatprep.mubr.bf16.mxu0 0
      %1282 = vmatmul.mubr.bf16.gmra.mxu0 %v931
      %v1283 = vpop.f32.mrf.mxu0
      %v1284 = vadd.f32 0.0, %v1283
      %v1285 = vpop.f32.mrf.mxu0
      %v1286 = vpop.f32.mrf.mxu0
      %v1287 = vadd.f32 0.0, %v1286
      %v1288 = vpop.f32.mrf.mxu0
      %1289 = vmatprep.mubr.bf16.mxu0 0
      %1290 = vmatmul.mubr.bf16.gmra.mxu0 %v932
      %v1291 = vpop.f32.mrf.mxu0
      %v1292 = vadd.f32 0.0, %v1291
      %v1293 = vpop.f32.mrf.mxu0
      %v1294 = vpop.f32.mrf.mxu0
      %v1295 = vadd.f32 0.0, %v1294
      %v1296 = vpop.f32.mrf.mxu0
      %1297 = vmatprep.mubr.bf16.mxu0 0
      %1298 = vmatmul.mubr.bf16.gmra.mxu0 %v933
      %v1299 = vpop.f32.mrf.mxu0
      %v1300 = vadd.f32 0.0, %v1299
      %v1301 = vpop.f32.mrf.mxu0
      %v1302 = vpop.f32.mrf.mxu0
      %v1303 = vadd.f32 0.0, %v1302
      %v1304 = vpop.f32.mrf.mxu0
      %1305 = vmatprep.mubr.bf16.mxu0 0
      %1306 = vmatmul.mubr.bf16.gmra.mxu0 %v934
      %v1307 = vpop.f32.mrf.mxu0
      %v1308 = vadd.f32 0.0, %v1307
      %v1309 = vpop.f32.mrf.mxu0
      %v1310 = vpop.f32.mrf.mxu0
      %v1311 = vadd.f32 0.0, %v1310
      %v1312 = vpop.f32.mrf.mxu0
      %1313 = vmatprep.mubr.bf16.mxu0 0
      %1314 = vmatmul.mubr.bf16.gmra.mxu0 %v935
      %v1315 = vpop.f32.mrf.mxu0
      %v1316 = vadd.f32 0.0, %v1315
      %v1317 = vpop.f32.mrf.mxu0
      %v1318 = vpop.f32.mrf.mxu0
      %v1319 = vadd.f32 0.0, %v1318
      %v1320 = vpop.f32.mrf.mxu0
      %1321 = vmatprep.mubr.bf16.mxu0 0
      %1322 = vmatmul.mubr.bf16.gmra.mxu0 %v936
      %v1323 = vpop.f32.mrf.mxu0
      %v1324 = vadd.f32 0.0, %v1323
      %v1325 = vpop.f32.mrf.mxu0
      %v1326 = vpop.f32.mrf.mxu0
      %v1327 = vadd.f32 0.0, %v1326
      %v1328 = vpop.f32.mrf.mxu0
      %1329 = vmatprep.mubr.bf16.mxu0 0
      %1330 = vmatmul.mubr.bf16.gmra.mxu0 %v937
      %v1331 = vpop.f32.mrf.mxu0
      %v1332 = vadd.f32 0.0, %v1331
      %v1333 = vpop.f32.mrf.mxu0
      %v1334 = vpop.f32.mrf.mxu0
      %v1335 = vadd.f32 0.0, %v1334
      %v1336 = vpop.f32.mrf.mxu0
      %1337 = vmatprep.mubr.bf16.mxu0 0
      %1338 = vmatmul.mubr.bf16.gmra.mxu0 %v938
      %v1339 = vpop.f32.mrf.mxu0
      %v1340 = vadd.f32 0.0, %v1339
      %v1341 = vpop.f32.mrf.mxu0
      %v1342 = vpop.f32.mrf.mxu0
      %v1343 = vadd.f32 0.0, %v1342
      %v1344 = vpop.f32.mrf.mxu0
      %1345 = vmatprep.mubr.bf16.mxu0 0
      %1346 = vmatmul.mubr.bf16.gmra.mxu0 %v939
      %v1347 = vpop.f32.mrf.mxu0
      %v1348 = vadd.f32 0.0, %v1347
      %v1349 = vpop.f32.mrf.mxu0
      %v1350 = vpop.f32.mrf.mxu0
      %v1351 = vadd.f32 0.0, %v1350
      %v1352 = vpop.f32.mrf.mxu0
      %1353 = vmatprep.mubr.bf16.mxu0 0
      %1354 = vmatmul.mubr.bf16.gmra.mxu0 %v940
      %v1355 = vpop.f32.mrf.mxu0
      %v1356 = vadd.f32 0.0, %v1355
      %v1357 = vpop.f32.mrf.mxu0
      %v1358 = vpop.f32.mrf.mxu0
      %v1359 = vadd.f32 0.0, %v1358
      %v1360 = vpop.f32.mrf.mxu0
      %1361 = vmatprep.mubr.bf16.mxu0 0
      %1362 = vmatmul.mubr.bf16.gmra.mxu0 %v941
      %v1363 = vpop.f32.mrf.mxu0
      %v1364 = vadd.f32 0.0, %v1363
      %v1365 = vpop.f32.mrf.mxu0
      %v1366 = vpop.f32.mrf.mxu0
      %v1367 = vadd.f32 0.0, %v1366
      %v1368 = vpop.f32.mrf.mxu0
      %1369 = vmatprep.mubr.bf16.mxu0 0
      %1370 = vmatmul.mubr.bf16.gmra.mxu0 %v942
      %v1371 = vpop.f32.mrf.mxu0
      %v1372 = vadd.f32 0.0, %v1371
      %v1373 = vpop.f32.mrf.mxu0
      %v1374 = vpop.f32.mrf.mxu0
      %v1375 = vadd.f32 0.0, %v1374
      %v1376 = vpop.f32.mrf.mxu0
      %1377 = vmatprep.mubr.bf16.mxu0 0
      %1378 = vmatmul.mubr.bf16.gmra.mxu0 %v943
      %v1379 = vpop.f32.mrf.mxu0
      %v1380 = vadd.f32 0.0, %v1379
      %v1381 = vpop.f32.mrf.mxu0
      %v1382 = vpop.f32.mrf.mxu0
      %v1383 = vadd.f32 0.0, %v1382
      %v1384 = vpop.f32.mrf.mxu0
      %1385 = vmatprep.mubr.bf16.mxu0 0
      %1386 = vmatmul.mubr.bf16.gmra.mxu0 %v944
      %v1387 = vpop.f32.mrf.mxu0
      %v1388 = vadd.f32 0.0, %v1387
      %v1389 = vpop.f32.mrf.mxu0
      %v1390 = vpop.f32.mrf.mxu0
      %v1391 = vadd.f32 0.0, %v1390
      %v1392 = vpop.f32.mrf.mxu0
      %1393 = vmatprep.mubr.bf16.mxu0 0
      %1394 = vmatmul.mubr.bf16.gmra.mxu0 %v945
      %v1395 = vpop.f32.mrf.mxu0
      %v1396 = vadd.f32 0.0, %v1395
      %v1397 = vpop.f32.mrf.mxu0
      %v1398 = vpop.f32.mrf.mxu0
      %v1399 = vadd.f32 0.0, %v1398
      %v1400 = vpop.f32.mrf.mxu0
      %1401 = vmatprep.mubr.bf16.mxu0 0
      %1402 = vmatmul.mubr.bf16.gmra.mxu0 %v946
      %v1403 = vpop.f32.mrf.mxu0
      %v1404 = vadd.f32 0.0, %v1403
      %v1405 = vpop.f32.mrf.mxu0
      %v1406 = vpop.f32.mrf.mxu0
      %v1407 = vadd.f32 0.0, %v1406
      %v1408 = vpop.f32.mrf.mxu0
      %1409 = vmatprep.mubr.bf16.mxu0 0
      %1410 = vmatmul.mubr.bf16.gmra.mxu0 %v947
      %v1411 = vpop.f32.mrf.mxu0
      %v1412 = vadd.f32 0.0, %v1411
      %v1413 = vpop.f32.mrf.mxu0
      %v1414 = vpop.f32.mrf.mxu0
      %v1415 = vadd.f32 0.0, %v1414
      %v1416 = vpop.f32.mrf.mxu0
      %1417 = vmatprep.mubr.bf16.mxu0 0
      %1418 = vmatmul.mubr.bf16.gmra.mxu0 %v948
      %v1419 = vpop.f32.mrf.mxu0
      %v1420 = vadd.f32 0.0, %v1419
      %v1421 = vpop.f32.mrf.mxu0
      %v1422 = vpop.f32.mrf.mxu0
      %v1423 = vadd.f32 0.0, %v1422
      %v1424 = vpop.f32.mrf.mxu0
      %1425 = vmatprep.mubr.bf16.mxu0 0
      %1426 = vmatmul.mubr.bf16.gmra.mxu0 %v949
      %v1427 = vpop.f32.mrf.mxu0
      %v1428 = vadd.f32 0.0, %v1427
      %v1429 = vpop.f32.mrf.mxu0
      %v1430 = vpop.f32.mrf.mxu0
      %v1431 = vadd.f32 0.0, %v1430
      %v1432 = vpop.f32.mrf.mxu0
      %1433 = vmatprep.mubr.bf16.mxu0 0
      %1434 = vmatmul.mubr.bf16.gmra.mxu0 %v950
      %v1435 = vpop.f32.mrf.mxu0
      %v1436 = vadd.f32 0.0, %v1435
      %v1437 = vpop.f32.mrf.mxu0
      %v1438 = vpop.f32.mrf.mxu0
      %v1439 = vadd.f32 0.0, %v1438
      %v1440 = vpop.f32.mrf.mxu0
      %1441 = vmatprep.mubr.bf16.mxu0 0
      %1442 = vmatmul.mubr.bf16.gmra.mxu0 %v951
      %v1443 = vpop.f32.mrf.mxu0
      %v1444 = vadd.f32 0.0, %v1443
      %v1445 = vpop.f32.mrf.mxu0
      %v1446 = vpop.f32.mrf.mxu0
      %v1447 = vadd.f32 0.0, %v1446
      %v1448 = vpop.f32.mrf.mxu0
      %1449 = vmatprep.mubr.bf16.mxu0 0
      %1450 = vmatmul.mubr.bf16.gmra.mxu0 %v952
      %v1451 = vpop.f32.mrf.mxu0
      %v1452 = vadd.f32 0.0, %v1451
      %v1453 = vpop.f32.mrf.mxu0
      %v1454 = vpop.f32.mrf.mxu0
      %v1455 = vadd.f32 0.0, %v1454
      %v1456 = vpop.f32.mrf.mxu0
      %1457 = vmatprep.mubr.bf16.mxu0 0
      %1458 = vmatmul.mubr.bf16.gmra.mxu0 %v953
      %v1459 = vpop.f32.mrf.mxu0
      %v1460 = vadd.f32 0.0, %v1459
      %v1461 = vpop.f32.mrf.mxu0
      %v1462 = vpop.f32.mrf.mxu0
      %v1463 = vadd.f32 0.0, %v1462
      %v1464 = vpop.f32.mrf.mxu0
      %1465 = vmatprep.mubr.bf16.mxu0 0
      %1466 = vmatmul.mubr.bf16.gmra.mxu0 %v954
      %v1467 = vpop.f32.mrf.mxu0
      %v1468 = vadd.f32 0.0, %v1467
      %v1469 = vpop.f32.mrf.mxu0
      %v1470 = vpop.f32.mrf.mxu0
      %v1471 = vadd.f32 0.0, %v1470
      %v1472 = vpop.f32.mrf.mxu0
      %1473 = vmatprep.mubr.bf16.mxu0 0
      %1474 = vmatmul.mubr.bf16.gmra.mxu0 %v955
      %v1475 = vpop.f32.mrf.mxu0
      %v1476 = vadd.f32 0.0, %v1475
      %v1477 = vpop.f32.mrf.mxu0
      %v1478 = vpop.f32.mrf.mxu0
      %v1479 = vadd.f32 0.0, %v1478
      %v1480 = vpop.f32.mrf.mxu0
      %1481 = vmatprep.mubr.bf16.mxu0 0
      %1482 = vmatmul.mubr.bf16.gmra.mxu0 %v956
      %v1483 = vpop.f32.mrf.mxu0
      %v1484 = vadd.f32 0.0, %v1483
      %v1485 = vpop.f32.mrf.mxu0
      %v1486 = vpop.f32.mrf.mxu0
      %v1487 = vadd.f32 0.0, %v1486
      %v1488 = vpop.f32.mrf.mxu0
      %1489 = vmatprep.mubr.bf16.mxu0 0
      %1490 = vmatmul.mubr.bf16.gmra.mxu0 %v957
      %v1491 = vpop.f32.mrf.mxu0
      %v1492 = vadd.f32 0.0, %v1491
      %v1493 = vpop.f32.mrf.mxu0
      %v1494 = vpop.f32.mrf.mxu0
      %v1495 = vadd.f32 0.0, %v1494
      %v1496 = vpop.f32.mrf.mxu0
      %1497 = vmatprep.mubr.bf16.mxu0 0
      %1498 = vmatmul.mubr.bf16.gmra.mxu0 %v958
      %v1499 = vpop.f32.mrf.mxu0
      %v1500 = vadd.f32 0.0, %v1499
      %v1501 = vpop.f32.mrf.mxu0
      %v1502 = vpop.f32.mrf.mxu0
      %v1503 = vadd.f32 0.0, %v1502
      %v1504 = vpop.f32.mrf.mxu0
      %1505 = vmatprep.mubr.bf16.mxu0 0
      %1506 = vmatmul.mubr.bf16.gmra.mxu0 %v959
      %v1507 = vpop.f32.mrf.mxu0
      %v1508 = vadd.f32 0.0, %v1507
      %v1509 = vpop.f32.mrf.mxu0
      %v1510 = vpop.f32.mrf.mxu0
      %v1511 = vadd.f32 0.0, %v1510
      %v1512 = vpop.f32.mrf.mxu0
      %1513 = vmatprep.mubr.bf16.mxu0 0
      %1514 = vmatmul.mubr.bf16.gmra.mxu0 %v960
      %v1515 = vpop.f32.mrf.mxu0
      %v1516 = vadd.f32 0.0, %v1515
      %v1517 = vpop.f32.mrf.mxu0
      %v1518 = vpop.f32.mrf.mxu0
      %v1519 = vadd.f32 0.0, %v1518
      %v1520 = vpop.f32.mrf.mxu0
      %1521 = vmatprep.mubr.bf16.mxu0 0
      %1522 = vmatmul.mubr.bf16.gmra.mxu0 %v961
      %v1523 = vpop.f32.mrf.mxu0
      %v1524 = vadd.f32 0.0, %v1523
      %v1525 = vpop.f32.mrf.mxu0
      %v1526 = vpop.f32.mrf.mxu0
      %v1527 = vadd.f32 0.0, %v1526
      %v1528 = vpop.f32.mrf.mxu0
      %1529 = vmatprep.mubr.bf16.mxu0 0
      %1530 = vmatmul.mubr.bf16.gmra.mxu0 %v962
      %v1531 = vpop.f32.mrf.mxu0
      %v1532 = vadd.f32 0.0, %v1531
      %v1533 = vpop.f32.mrf.mxu0
      %v1534 = vpop.f32.mrf.mxu0
      %v1535 = vadd.f32 0.0, %v1534
      %v1536 = vpop.f32.mrf.mxu0
      %1537 = vmatprep.mubr.bf16.mxu0 0
      %1538 = vmatmul.mubr.bf16.gmra.mxu0 %v963
      %v1539 = vpop.f32.mrf.mxu0
      %v1540 = vadd.f32 0.0, %v1539
      %v1541 = vpop.f32.mrf.mxu0
      %v1542 = vpop.f32.mrf.mxu0
      %v1543 = vadd.f32 0.0, %v1542
      %v1544 = vpop.f32.mrf.mxu0
      %1545 = vmatprep.mubr.bf16.mxu0 0
      %1546 = vmatmul.mubr.bf16.gmra.mxu0 %v964
      %v1547 = vpop.f32.mrf.mxu0
      %v1548 = vadd.f32 0.0, %v1547
      %v1549 = vpop.f32.mrf.mxu0
      %v1550 = vpop.f32.mrf.mxu0
      %v1551 = vadd.f32 0.0, %v1550
      %v1552 = vpop.f32.mrf.mxu0
      %1553 = vmatprep.mubr.bf16.mxu0 0
      %1554 = vmatmul.mubr.bf16.gmra.mxu0 %v965
      %v1555 = vpop.f32.mrf.mxu0
      %v1556 = vadd.f32 0.0, %v1555
      %v1557 = vpop.f32.mrf.mxu0
      %v1558 = vpop.f32.mrf.mxu0
      %v1559 = vadd.f32 0.0, %v1558
      %v1560 = vpop.f32.mrf.mxu0
      %1561 = vmatprep.mubr.bf16.mxu0 0
      %1562 = vmatmul.mubr.bf16.gmra.mxu0 %v966
      %v1563 = vpop.f32.mrf.mxu0
      %v1564 = vadd.f32 0.0, %v1563
      %v1565 = vpop.f32.mrf.mxu0
      %v1566 = vpop.f32.mrf.mxu0
      %v1567 = vadd.f32 0.0, %v1566
      %v1568 = vpop.f32.mrf.mxu0
      %1569 = vmatprep.mubr.bf16.mxu0 0
      %1570 = vmatmul.mubr.bf16.gmra.mxu0 %v967
      %v1571 = vpop.f32.mrf.mxu0
      %v1572 = vadd.f32 0.0, %v1571
      %v1573 = vpop.f32.mrf.mxu0
      %v1574 = vpop.f32.mrf.mxu0
      %v1575 = vadd.f32 0.0, %v1574
      %v1576 = vpop.f32.mrf.mxu0
      %1577 = vmatprep.mubr.bf16.mxu0 0
      %1578 = vmatmul.mubr.bf16.gmra.mxu0 %v968
      %v1579 = vpop.f32.mrf.mxu0
      %v1580 = vadd.f32 0.0, %v1579
      %v1581 = vpop.f32.mrf.mxu0
      %v1582 = vpop.f32.mrf.mxu0
      %v1583 = vadd.f32 0.0, %v1582
      %v1584 = vpop.f32.mrf.mxu0
      %1585 = vmatprep.mubr.bf16.mxu0 0
      %1586 = vmatmul.mubr.bf16.gmra.mxu0 %v969
      %v1587 = vpop.f32.mrf.mxu0
      %v1588 = vadd.f32 0.0, %v1587
      %v1589 = vpop.f32.mrf.mxu0
      %v1590 = vpop.f32.mrf.mxu0
      %v1591 = vadd.f32 0.0, %v1590
      %v1592 = vpop.f32.mrf.mxu0
      %1593 = vmatprep.mubr.bf16.mxu0 0
      %1594 = vmatmul.mubr.bf16.gmra.mxu0 %v970
      %v1595 = vpop.f32.mrf.mxu0
      %v1596 = vadd.f32 0.0, %v1595
      %v1597 = vpop.f32.mrf.mxu0
      %v1598 = vpop.f32.mrf.mxu0
      %v1599 = vadd.f32 0.0, %v1598
      %v1600 = vpop.f32.mrf.mxu0
      %1601 = vmatprep.mubr.bf16.mxu0 0
      %1602 = vmatmul.mubr.bf16.gmra.mxu0 %v971
      %v1603 = vpop.f32.mrf.mxu0
      %v1604 = vadd.f32 0.0, %v1603
      %v1605 = vpop.f32.mrf.mxu0
      %v1606 = vpop.f32.mrf.mxu0
      %v1607 = vadd.f32 0.0, %v1606
      %v1608 = vpop.f32.mrf.mxu0
      %1609 = vmatprep.mubr.bf16.mxu0 0
      %1610 = vmatmul.mubr.bf16.gmra.mxu0 %v972
      %v1611 = vpop.f32.mrf.mxu0
      %v1612 = vadd.f32 0.0, %v1611
      %v1613 = vpop.f32.mrf.mxu0
      %v1614 = vpop.f32.mrf.mxu0
      %v1615 = vadd.f32 0.0, %v1614
      %v1616 = vpop.f32.mrf.mxu0
      %1617 = vmatprep.mubr.bf16.mxu0 0
      %1618 = vmatmul.mubr.bf16.gmra.mxu0 %v973
      %v1619 = vpop.f32.mrf.mxu0
      %v1620 = vadd.f32 0.0, %v1619
      %v1621 = vpop.f32.mrf.mxu0
      %v1622 = vpop.f32.mrf.mxu0
      %v1623 = vadd.f32 0.0, %v1622
      %v1624 = vpop.f32.mrf.mxu0
      %1625 = vmatprep.mubr.bf16.mxu0 0
      %1626 = vmatmul.mubr.bf16.gmra.mxu0 %v974
      %v1627 = vpop.f32.mrf.mxu0
      %v1628 = vadd.f32 0.0, %v1627
      %v1629 = vpop.f32.mrf.mxu0
      %v1630 = vpop.f32.mrf.mxu0
      %v1631 = vadd.f32 0.0, %v1630
      %v1632 = vpop.f32.mrf.mxu0
      %1633 = vmatprep.mubr.bf16.mxu0 0
      %1634 = vmatmul.mubr.bf16.gmra.mxu0 %v975
      %v1635 = vpop.f32.mrf.mxu0
      %v1636 = vadd.f32 0.0, %v1635
      %v1637 = vpop.f32.mrf.mxu0
      %v1638 = vpop.f32.mrf.mxu0
      %v1639 = vadd.f32 0.0, %v1638
      %v1640 = vpop.f32.mrf.mxu0
      %1641 = vmatprep.mubr.bf16.mxu0 0
      %1642 = vmatmul.mubr.bf16.gmra.mxu0 %v976
      %v1643 = vpop.f32.mrf.mxu0
      %v1644 = vadd.f32 0.0, %v1643
      %v1645 = vpop.f32.mrf.mxu0
      %v1646 = vpop.f32.mrf.mxu0
      %v1647 = vadd.f32 0.0, %v1646
      %v1648 = vpop.f32.mrf.mxu0
      %1649 = vmatprep.mubr.bf16.mxu0 0
      %1650 = vmatmul.mubr.bf16.gmra.mxu0 %v977
      %v1651 = vpop.f32.mrf.mxu0
      %v1652 = vadd.f32 0.0, %v1651
      %v1653 = vpop.f32.mrf.mxu0
      %v1654 = vpop.f32.mrf.mxu0
      %v1655 = vadd.f32 0.0, %v1654
      %v1656 = vpop.f32.mrf.mxu0
      %1657 = vmatprep.mubr.bf16.mxu0 0
      %1658 = vmatmul.mubr.bf16.gmra.mxu0 %v978
      %v1659 = vpop.f32.mrf.mxu0
      %v1660 = vadd.f32 0.0, %v1659
      %v1661 = vpop.f32.mrf.mxu0
      %v1662 = vpop.f32.mrf.mxu0
      %v1663 = vadd.f32 0.0, %v1662
      %v1664 = vpop.f32.mrf.mxu0
      %1665 = vmatprep.mubr.bf16.mxu0 0
      %1666 = vmatmul.mubr.bf16.gmra.mxu0 %v979
      %v1667 = vpop.f32.mrf.mxu0
      %v1668 = vadd.f32 0.0, %v1667
      %v1669 = vpop.f32.mrf.mxu0
      %v1670 = vpop.f32.mrf.mxu0
      %v1671 = vadd.f32 0.0, %v1670
      %v1672 = vpop.f32.mrf.mxu0
      %1673 = vmatprep.mubr.bf16.mxu0 0
      %1674 = vmatmul.mubr.bf16.gmra.mxu0 %v980
      %v1675 = vpop.f32.mrf.mxu0
      %v1676 = vadd.f32 0.0, %v1675
      %v1677 = vpop.f32.mrf.mxu0
      %v1678 = vpop.f32.mrf.mxu0
      %v1679 = vadd.f32 0.0, %v1678
      %v1680 = vpop.f32.mrf.mxu0
      %1681 = vmatprep.mubr.bf16.mxu0 0
      %1682 = vmatmul.mubr.bf16.gmra.mxu0 %v981
      %v1683 = vpop.f32.mrf.mxu0
      %v1684 = vadd.f32 0.0, %v1683
      %v1685 = vpop.f32.mrf.mxu0
      %v1686 = vpop.f32.mrf.mxu0
      %v1687 = vadd.f32 0.0, %v1686
      %v1688 = vpop.f32.mrf.mxu0
      %1689 = vmatprep.mubr.bf16.mxu0 0
      %1690 = vmatmul.mubr.bf16.gmra.mxu0 %v982
      %v1691 = vpop.f32.mrf.mxu0
      %v1692 = vadd.f32 0.0, %v1691
      %v1693 = vpop.f32.mrf.mxu0
      %v1694 = vpop.f32.mrf.mxu0
      %v1695 = vadd.f32 0.0, %v1694
      %v1696 = vpop.f32.mrf.mxu0
      %1697 = vmatprep.mubr.bf16.mxu0 0
      %1698 = vmatmul.mubr.bf16.gmra.mxu0 %v983
      %v1699 = vpop.f32.mrf.mxu0
      %v1700 = vadd.f32 0.0, %v1699
      %v1701 = vpop.f32.mrf.mxu0
      %v1702 = vpop.f32.mrf.mxu0
      %v1703 = vadd.f32 0.0, %v1702
      %v1704 = vpop.f32.mrf.mxu0
      %1705 = vmatprep.mubr.bf16.mxu0 0
      %1706 = vmatmul.mubr.bf16.gmra.mxu0 %v984
      %v1707 = vpop.f32.mrf.mxu0
      %v1708 = vadd.f32 0.0, %v1707
      %v1709 = vpop.f32.mrf.mxu0
      %v1710 = vpop.f32.mrf.mxu0
      %v1711 = vadd.f32 0.0, %v1710
      %v1712 = vpop.f32.mrf.mxu0
      %1713 = vmatprep.mubr.bf16.mxu0 0
      %1714 = vmatmul.mubr.bf16.gmra.mxu0 %v985
      %v1715 = vpop.f32.mrf.mxu0
      %v1716 = vadd.f32 0.0, %v1715
      %v1717 = vpop.f32.mrf.mxu0
      %v1718 = vpop.f32.mrf.mxu0
      %v1719 = vadd.f32 0.0, %v1718
      %v1720 = vpop.f32.mrf.mxu0
      %1721 = vmatprep.mubr.bf16.mxu0 0
      %1722 = vmatmul.mubr.bf16.gmra.mxu0 %v986
      %v1723 = vpop.f32.mrf.mxu0
      %v1724 = vadd.f32 0.0, %v1723
      %v1725 = vpop.f32.mrf.mxu0
      %v1726 = vpop.f32.mrf.mxu0
      %v1727 = vadd.f32 0.0, %v1726
      %v1728 = vpop.f32.mrf.mxu0
      %1729 = vmatprep.mubr.bf16.mxu0 0
      %1730 = vmatmul.mubr.bf16.gmra.mxu0 %v987
      %v1731 = vpop.f32.mrf.mxu0
      %v1732 = vadd.f32 0.0, %v1731
      %v1733 = vpop.f32.mrf.mxu0
      %v1734 = vpop.f32.mrf.mxu0
      %v1735 = vadd.f32 0.0, %v1734
      %v1736 = vpop.f32.mrf.mxu0
      %1737 = vmatprep.mubr.bf16.mxu0 0
      %1738 = vmatmul.mubr.bf16.gmra.mxu0 %v988
      %v1739 = vpop.f32.mrf.mxu0
      %v1740 = vadd.f32 0.0, %v1739
      %v1741 = vpop.f32.mrf.mxu0
      %v1742 = vpop.f32.mrf.mxu0
      %v1743 = vadd.f32 0.0, %v1742
      %v1744 = vpop.f32.mrf.mxu0
      %1745 = vmatprep.mubr.bf16.mxu0 0
      %1746 = vmatmul.mubr.bf16.gmra.mxu0 %v989
      %v1747 = vpop.f32.mrf.mxu0
      %v1748 = vadd.f32 0.0, %v1747
      %v1749 = vpop.f32.mrf.mxu0
      %v1750 = vpop.f32.mrf.mxu0
      %v1751 = vadd.f32 0.0, %v1750
      %v1752 = vpop.f32.mrf.mxu0
      %1753 = vmatprep.mubr.bf16.mxu0 0
      %1754 = vmatmul.mubr.bf16.gmra.mxu0 %v990
      %v1755 = vpop.f32.mrf.mxu0
      %v1756 = vadd.f32 0.0, %v1755
      %v1757 = vpop.f32.mrf.mxu0
      %v1758 = vpop.f32.mrf.mxu0
      %v1759 = vadd.f32 0.0, %v1758
      %v1760 = vpop.f32.mrf.mxu0
      %1761 = vmatprep.mubr.bf16.mxu0 0
      %1762 = vmatmul.mubr.bf16.gmra.mxu0 %v991
      %v1763 = vpop.f32.mrf.mxu0
      %v1764 = vadd.f32 0.0, %v1763
      %v1765 = vpop.f32.mrf.mxu0
      %v1766 = vpop.f32.mrf.mxu0
      %v1767 = vadd.f32 0.0, %v1766
      %v1768 = vpop.f32.mrf.mxu0
      %1769 = vmatprep.mubr.bf16.mxu0 0
      %1770 = vmatmul.mubr.bf16.gmra.mxu0 %v992
      %v1771 = vpop.f32.mrf.mxu0
      %v1772 = vadd.f32 0.0, %v1771
      %v1773 = vpop.f32.mrf.mxu0
      %v1774 = vpop.f32.mrf.mxu0
      %v1775 = vadd.f32 0.0, %v1774
      %v1776 = vpop.f32.mrf.mxu0
      %1777 = vmatprep.mubr.bf16.mxu0 0
      %1778 = vmatmul.mubr.bf16.gmra.mxu0 %v993
      %v1779 = vpop.f32.mrf.mxu0
      %v1780 = vadd.f32 0.0, %v1779
      %v1781 = vpop.f32.mrf.mxu0
      %v1782 = vpop.f32.mrf.mxu0
      %v1783 = vadd.f32 0.0, %v1782
      %v1784 = vpop.f32.mrf.mxu0
      %1785 = vmatprep.mubr.bf16.mxu0 0
      %1786 = vmatmul.mubr.bf16.gmra.mxu0 %v994
      %v1787 = vpop.f32.mrf.mxu0
      %v1788 = vadd.f32 0.0, %v1787
      %v1789 = vpop.f32.mrf.mxu0
      %v1790 = vpop.f32.mrf.mxu0
      %v1791 = vadd.f32 0.0, %v1790
      %v1792 = vpop.f32.mrf.mxu0
      %1793 = vmatprep.mubr.bf16.mxu0 0
      %1794 = vmatmul.mubr.bf16.gmra.mxu0 %v995
      %v1795 = vpop.f32.mrf.mxu0
      %v1796 = vadd.f32 0.0, %v1795
      %v1797 = vpop.f32.mrf.mxu0
      %v1798 = vpop.f32.mrf.mxu0
      %v1799 = vadd.f32 0.0, %v1798
      %v1800 = vpop.f32.mrf.mxu0
      %1801 = vmatprep.mubr.bf16.mxu0 0
      %1802 = vmatmul.mubr.bf16.gmra.mxu0 %v996
      %v1803 = vpop.f32.mrf.mxu0
      %v1804 = vadd.f32 0.0, %v1803
      %v1805 = vpop.f32.mrf.mxu0
      %v1806 = vpop.f32.mrf.mxu0
      %v1807 = vadd.f32 0.0, %v1806
      %v1808 = vpop.f32.mrf.mxu0
      %1809 = vmatprep.mubr.bf16.mxu0 0
      %1810 = vmatmul.mubr.bf16.gmra.mxu0 %v997
      %v1811 = vpop.f32.mrf.mxu0
      %v1812 = vadd.f32 0.0, %v1811
      %v1813 = vpop.f32.mrf.mxu0
      %v1814 = vpop.f32.mrf.mxu0
      %v1815 = vadd.f32 0.0, %v1814
      %v1816 = vpop.f32.mrf.mxu0
      %1817 = vmatprep.mubr.bf16.mxu0 0
      %1818 = vmatmul.mubr.bf16.gmra.mxu0 %v998
      %v1819 = vpop.f32.mrf.mxu0
      %v1820 = vadd.f32 0.0, %v1819
      %v1821 = vpop.f32.mrf.mxu0
      %v1822 = vpop.f32.mrf.mxu0
      %v1823 = vadd.f32 0.0, %v1822
      %v1824 = vpop.f32.mrf.mxu0
      %1825 = vmatprep.mubr.bf16.mxu0 0
      %1826 = vmatmul.mubr.bf16.gmra.mxu0 %v999
      %v1827 = vpop.f32.mrf.mxu0
      %v1828 = vadd.f32 0.0, %v1827
      %v1829 = vpop.f32.mrf.mxu0
      %v1830 = vpop.f32.mrf.mxu0
      %v1831 = vadd.f32 0.0, %v1830
      %v1832 = vpop.f32.mrf.mxu0
      %1833 = vmatprep.mubr.bf16.mxu0 0
      %1834 = vmatmul.mubr.bf16.gmra.mxu0 %v1000
      %v1835 = vpop.f32.mrf.mxu0
      %v1836 = vadd.f32 0.0, %v1835
      %v1837 = vpop.f32.mrf.mxu0
      %v1838 = vpop.f32.mrf.mxu0
      %v1839 = vadd.f32 0.0, %v1838
      %v1840 = vpop.f32.mrf.mxu0
      %1841 = vmatprep.mubr.bf16.mxu0 0
      %1842 = vmatmul.mubr.bf16.gmra.mxu0 %v1001
      %v1843 = vpop.f32.mrf.mxu0
      %v1844 = vadd.f32 0.0, %v1843
      %v1845 = vpop.f32.mrf.mxu0
      %v1846 = vpop.f32.mrf.mxu0
      %v1847 = vadd.f32 0.0, %v1846
      %v1848 = vpop.f32.mrf.mxu0
      %1849 = vmatprep.mubr.bf16.mxu0 0
      %1850 = vmatmul.mubr.bf16.gmra.mxu0 %v1002
      %v1851 = vpop.f32.mrf.mxu0
      %v1852 = vadd.f32 0.0, %v1851
      %v1853 = vpop.f32.mrf.mxu0
      %v1854 = vpop.f32.mrf.mxu0
      %v1855 = vadd.f32 0.0, %v1854
      %v1856 = vpop.f32.mrf.mxu0
      %1857 = vmatprep.mubr.bf16.mxu0 0
      %1858 = vmatmul.mubr.bf16.gmra.mxu0 %v1003
      %v1859 = vpop.f32.mrf.mxu0
      %v1860 = vadd.f32 0.0, %v1859
      %v1861 = vpop.f32.mrf.mxu0
      %v1862 = vpop.f32.mrf.mxu0
      %v1863 = vadd.f32 0.0, %v1862
      %v1864 = vpop.f32.mrf.mxu0
      %1865 = vmatprep.mubr.bf16.mxu0 0
      %1866 = vmatmul.mubr.bf16.gmra.mxu0 %v1004
      %v1867 = vpop.f32.mrf.mxu0
      %v1868 = vadd.f32 0.0, %v1867
      %v1869 = vpop.f32.mrf.mxu0
      %v1870 = vpop.f32.mrf.mxu0
      %v1871 = vadd.f32 0.0, %v1870
      %v1872 = vpop.f32.mrf.mxu0
      %1873 = vmatprep.mubr.bf16.mxu0 0
      %1874 = vmatmul.mubr.bf16.gmra.mxu0 %v1005
      %v1875 = vpop.f32.mrf.mxu0
      %v1876 = vadd.f32 0.0, %v1875
      %v1877 = vpop.f32.mrf.mxu0
      %v1878 = vpop.f32.mrf.mxu0
      %v1879 = vadd.f32 0.0, %v1878
      %v1880 = vpop.f32.mrf.mxu0
      %1881 = vmatprep.mubr.bf16.mxu0 0
      %1882 = vmatmul.mubr.bf16.gmra.mxu0 %v1006
      %v1883 = vpop.f32.mrf.mxu0
      %v1884 = vadd.f32 0.0, %v1883
      %v1885 = vpop.f32.mrf.mxu0
      %v1886 = vpop.f32.mrf.mxu0
      %v1887 = vadd.f32 0.0, %v1886
      %v1888 = vpop.f32.mrf.mxu0
      %1889 = vmatprep.mubr.bf16.mxu0 0
      %1890 = vmatmul.mubr.bf16.gmra.mxu0 %v1007
      %v1891 = vpop.f32.mrf.mxu0
      %v1892 = vadd.f32 0.0, %v1891
      %v1893 = vpop.f32.mrf.mxu0
      %v1894 = vpop.f32.mrf.mxu0
      %v1895 = vadd.f32 0.0, %v1894
      %v1896 = vpop.f32.mrf.mxu0
      %1897 = vmatprep.mubr.bf16.mxu0 0
      %1898 = vmatmul.mubr.bf16.gmra.mxu0 %v1008
      %v1899 = vpop.f32.mrf.mxu0
      %v1900 = vadd.f32 0.0, %v1899
      %v1901 = vpop.f32.mrf.mxu0
      %v1902 = vpop.f32.mrf.mxu0
      %v1903 = vadd.f32 0.0, %v1902
      %v1904 = vpop.f32.mrf.mxu0
      %1905 = vmatprep.mubr.bf16.mxu0 0
      %1906 = vmatmul.mubr.bf16.gmra.mxu0 %v1009
      %v1907 = vpop.f32.mrf.mxu0
      %v1908 = vadd.f32 0.0, %v1907
      %v1909 = vpop.f32.mrf.mxu0
      %v1910 = vpop.f32.mrf.mxu0
      %v1911 = vadd.f32 0.0, %v1910
      %v1912 = vpop.f32.mrf.mxu0
      %1913 = vmatprep.mubr.bf16.mxu0 0
      %1914 = vmatmul.mubr.bf16.gmra.mxu0 %v1010
      %v1915 = vpop.f32.mrf.mxu0
      %v1916 = vadd.f32 0.0, %v1915
      %v1917 = vpop.f32.mrf.mxu0
      %v1918 = vpop.f32.mrf.mxu0
      %v1919 = vadd.f32 0.0, %v1918
      %v1920 = vpop.f32.mrf.mxu0
      %1921 = vmatprep.mubr.bf16.mxu0 0
      %1922 = vmatmul.mubr.bf16.gmra.mxu0 %v1011
      %v1923 = vpop.f32.mrf.mxu0
      %v1924 = vadd.f32 0.0, %v1923
      %v1925 = vpop.f32.mrf.mxu0
      %v1926 = vpop.f32.mrf.mxu0
      %v1927 = vadd.f32 0.0, %v1926
      %v1928 = vpop.f32.mrf.mxu0
      %1929 = vmatprep.mubr.bf16.mxu0 0
      %1930 = vmatmul.mubr.bf16.gmra.mxu0 %v1012
      %v1931 = vpop.f32.mrf.mxu0
      %v1932 = vadd.f32 0.0, %v1931
      %v1933 = vpop.f32.mrf.mxu0
      %v1934 = vpop.f32.mrf.mxu0
      %v1935 = vadd.f32 0.0, %v1934
      %v1936 = vpop.f32.mrf.mxu0
      %1937 = vmatprep.mubr.bf16.mxu0 0
      %1938 = vmatmul.mubr.bf16.gmra.mxu0 %v1013
      %v1939 = vpop.f32.mrf.mxu0
      %v1940 = vadd.f32 0.0, %v1939
      %v1941 = vpop.f32.mrf.mxu0
      %v1942 = vpop.f32.mrf.mxu0
      %v1943 = vadd.f32 0.0, %v1942
      %v1944 = vpop.f32.mrf.mxu0
      %1945 = vmatprep.mubr.bf16.mxu0 0
      %1946 = vmatmul.mubr.bf16.gmra.mxu0 %v1014
      %v1947 = vpop.f32.mrf.mxu0
      %v1948 = vadd.f32 0.0, %v1947
      %v1949 = vpop.f32.mrf.mxu0
      %v1950 = vpop.f32.mrf.mxu0
      %v1951 = vadd.f32 0.0, %v1950
      %v1952 = vpop.f32.mrf.mxu0
      %1953 = vmatprep.mubr.bf16.mxu0 0
      %1954 = vmatmul.mubr.bf16.gmra.mxu0 %v1015
      %v1955 = vpop.f32.mrf.mxu0
      %v1956 = vadd.f32 0.0, %v1955
      %v1957 = vpop.f32.mrf.mxu0
      %v1958 = vpop.f32.mrf.mxu0
      %v1959 = vadd.f32 0.0, %v1958
      %v1960 = vpop.f32.mrf.mxu0
      %1961 = vmatprep.mubr.bf16.mxu0 0
      %1962 = vmatmul.mubr.bf16.gmra.mxu0 %v1016
      %v1963 = vpop.f32.mrf.mxu0
      %v1964 = vadd.f32 0.0, %v1963
      %v1965 = vpop.f32.mrf.mxu0
      %v1966 = vpop.f32.mrf.mxu0
      %v1967 = vadd.f32 0.0, %v1966
      %v1968 = vpop.f32.mrf.mxu0
      %1969 = vmatprep.mubr.bf16.mxu0 0
      %1970 = vmatmul.mubr.bf16.gmra.mxu0 %v1017
      %v1971 = vpop.f32.mrf.mxu0
      %v1972 = vadd.f32 0.0, %v1971
      %v1973 = vpop.f32.mrf.mxu0
      %v1974 = vpop.f32.mrf.mxu0
      %v1975 = vadd.f32 0.0, %v1974
      %v1976 = vpop.f32.mrf.mxu0
      %1977 = vmatprep.mubr.bf16.mxu0 0
      %1978 = vmatmul.mubr.bf16.gmra.mxu0 %v1018
      %v1979 = vpop.f32.mrf.mxu0
      %v1980 = vadd.f32 0.0, %v1979
      %v1981 = vpop.f32.mrf.mxu0
      %v1982 = vpop.f32.mrf.mxu0
      %v1983 = vadd.f32 0.0, %v1982
      %v1984 = vpop.f32.mrf.mxu0
      %1985 = vmatprep.mubr.bf16.mxu0 0
      %1986 = vmatmul.mubr.bf16.gmra.mxu0 %v1019
      %v1987 = vpop.f32.mrf.mxu0
      %v1988 = vadd.f32 0.0, %v1987
      %v1989 = vpop.f32.mrf.mxu0
      %v1990 = vpop.f32.mrf.mxu0
      %v1991 = vadd.f32 0.0, %v1990
      %v1992 = vpop.f32.mrf.mxu0
      %1993 = vmatprep.mubr.bf16.mxu0 0
      %1994 = vmatmul.mubr.bf16.gmra.mxu0 %v1020
      %v1995 = vpop.f32.mrf.mxu0
      %v1996 = vadd.f32 0.0, %v1995
      %v1997 = vpop.f32.mrf.mxu0
      %v1998 = vpop.f32.mrf.mxu0
      %v1999 = vadd.f32 0.0, %v1998
      %v2000 = vpop.f32.mrf.mxu0
      %2001 = vmatprep.mubr.bf16.mxu0 0
      %2002 = vmatmul.mubr.bf16.gmra.mxu0 %v1021
      %v2003 = vpop.f32.mrf.mxu0
      %v2004 = vadd.f32 0.0, %v2003
      %v2005 = vpop.f32.mrf.mxu0
      %v2006 = vpop.f32.mrf.mxu0
      %v2007 = vadd.f32 0.0, %v2006
      %v2008 = vpop.f32.mrf.mxu0
      %2009 = vmatprep.mubr.bf16.mxu0 0
      %2010 = vmatmul.mubr.bf16.gmra.mxu0 %v1022
      %v2011 = vpop.f32.mrf.mxu0
      %v2012 = vadd.f32 0.0, %v2011
      %v2013 = vpop.f32.mrf.mxu0
      %v2014 = vpop.f32.mrf.mxu0
      %v2015 = vadd.f32 0.0, %v2014
      %v2016 = vpop.f32.mrf.mxu0
      %2017 = vmatprep.mubr.bf16.mxu0 0
      %2018 = vmatmul.mubr.bf16.gmra.mxu0 %v1023
      %v2019 = vpop.f32.mrf.mxu0
      %v2020 = vadd.f32 0.0, %v2019
      %v2021 = vpop.f32.mrf.mxu0
      %v2022 = vpop.f32.mrf.mxu0
      %v2023 = vadd.f32 0.0, %v2022
      %v2024 = vpop.f32.mrf.mxu0
      %2025 = vmatprep.mubr.bf16.mxu0 0
      %2026 = vmatmul.mubr.bf16.gmra.mxu0 %v1024
      %v2027 = vpop.f32.mrf.mxu0
      %v2028 = vadd.f32 0.0, %v2027
      %v2029 = vpop.f32.mrf.mxu0
      %v2030 = vpop.f32.mrf.mxu0
      %v2031 = vadd.f32 0.0, %v2030
      %v2032 = vpop.f32.mrf.mxu0
      %2033 = vmatprep.mubr.bf16.mxu0 0
      %2034 = vmatmul.mubr.bf16.gmra.mxu0 %v1025
      %v2035 = vpop.f32.mrf.mxu0
      %v2036 = vadd.f32 0.0, %v2035
      %v2037 = vpop.f32.mrf.mxu0
      %v2038 = vpop.f32.mrf.mxu0
      %v2039 = vadd.f32 0.0, %v2038
      %v2040 = vpop.f32.mrf.mxu0
      %2041 = vmatprep.mubr.bf16.mxu0 0
      %2042 = vmatmul.mubr.bf16.gmra.mxu0 %v1026
      %v2043 = vpop.f32.mrf.mxu0
      %v2044 = vadd.f32 0.0, %v2043
      %v2045 = vpop.f32.mrf.mxu0
      %v2046 = vpop.f32.mrf.mxu0
      %v2047 = vadd.f32 0.0, %v2046
      %v2048 = vpop.f32.mrf.mxu0
      %2049 = vmatprep.mubr.bf16.mxu0 0
      %2050 = vmatmul.mubr.bf16.gmra.mxu0 %v1027
      %v2051 = vpop.f32.mrf.mxu0
      %v2052 = vadd.f32 0.0, %v2051
      %v2053 = vpop.f32.mrf.mxu0
      %v2054 = vpop.f32.mrf.mxu0
      %v2055 = vadd.f32 0.0, %v2054
      %v2056 = vpop.f32.mrf.mxu0
      %2057 = vmatprep.mubr.bf16.mxu0 0
      %2058 = vmatmul.mubr.bf16.gmra.mxu0 %v1028
      %v2059 = vpop.f32.mrf.mxu0
      %v2060 = vadd.f32 0.0, %v2059
      %v2061 = vpop.f32.mrf.mxu0
      %v2062 = vpop.f32.mrf.mxu0
      %v2063 = vadd.f32 0.0, %v2062
      %v2064 = vpop.f32.mrf.mxu0
      %2065 = vmatprep.mubr.bf16.mxu0 0
      %2066 = vmatmul.mubr.bf16.gmra.mxu0 %v1029
      %v2067 = vpop.f32.mrf.mxu0
      %v2068 = vadd.f32 0.0, %v2067
      %v2069 = vpop.f32.mrf.mxu0
      %v2070 = vpop.f32.mrf.mxu0
      %v2071 = vadd.f32 0.0, %v2070
      %v2072 = vpop.f32.mrf.mxu0
      %2073 = vmatprep.mubr.bf16.mxu0 0
      %2074 = vmatmul.mubr.bf16.gmra.mxu0 %v1030
      %v2075 = vpop.f32.mrf.mxu0
      %v2076 = vadd.f32 0.0, %v2075
      %v2077 = vpop.f32.mrf.mxu0
      %v2078 = vpop.f32.mrf.mxu0
      %v2079 = vadd.f32 0.0, %v2078
      %v2080 = vpop.f32.mrf.mxu0
      %2081 = vmatprep.mubr.bf16.mxu0 0
      %2082 = vmatmul.mubr.bf16.gmra.mxu0 %v1031
      %v2083 = vpop.f32.mrf.mxu0
      %v2084 = vadd.f32 0.0, %v2083
      %v2085 = vpop.f32.mrf.mxu0
      %v2086 = vpop.f32.mrf.mxu0
      %v2087 = vadd.f32 0.0, %v2086
      %v2088 = vpop.f32.mrf.mxu0
      %2089 = vmatprep.mubr.bf16.mxu0 0
      %2090 = vmatmul.mubr.bf16.gmra.mxu0 %v1032
      %v2091 = vpop.f32.mrf.mxu0
      %v2092 = vadd.f32 0.0, %v2091
      %v2093 = vpop.f32.mrf.mxu0
      %v2094 = vpop.f32.mrf.mxu0
      %v2095 = vadd.f32 0.0, %v2094
      %v2096 = vpop.f32.mrf.mxu0
      %2097 = vmatprep.mubr.bf16.mxu0 0
      %2098 = vmatmul.mubr.bf16.gmra.mxu0 %v1033
      %v2099 = vpop.f32.mrf.mxu0
      %v2100 = vadd.f32 0.0, %v2099
      %v2101 = vpop.f32.mrf.mxu0
      %v2102 = vpop.f32.mrf.mxu0
      %v2103 = vadd.f32 0.0, %v2102
      %v2104 = vpop.f32.mrf.mxu0
      %2105 = vmatprep.mubr.bf16.mxu0 0
      %2106 = vmatmul.mubr.bf16.gmra.mxu0 %v1034
      %v2107 = vpop.f32.mrf.mxu0
      %v2108 = vadd.f32 0.0, %v2107
      %v2109 = vpop.f32.mrf.mxu0
      %v2110 = vpop.f32.mrf.mxu0
      %v2111 = vadd.f32 0.0, %v2110
      %v2112 = vpop.f32.mrf.mxu0
      %2113 = vmatprep.mubr.bf16.mxu0 0
      %2114 = vmatmul.mubr.bf16.gmra.mxu0 %v1035
      %v2115 = vpop.f32.mrf.mxu0
      %v2116 = vadd.f32 0.0, %v2115
      %v2117 = vpop.f32.mrf.mxu0
      %v2118 = vpop.f32.mrf.mxu0
      %v2119 = vadd.f32 0.0, %v2118
      %v2120 = vpop.f32.mrf.mxu0
      %2121 = vmatprep.mubr.bf16.mxu0 0
      %2122 = vmatmul.mubr.bf16.gmra.mxu0 %v1036
      %v2123 = vpop.f32.mrf.mxu0
      %v2124 = vadd.f32 0.0, %v2123
      %v2125 = vpop.f32.mrf.mxu0
      %v2126 = vpop.f32.mrf.mxu0
      %v2127 = vadd.f32 0.0, %v2126
      %v2128 = vpop.f32.mrf.mxu0
      %2129 = vmatprep.mubr.bf16.mxu0 0
      %2130 = vmatmul.mubr.bf16.gmra.mxu0 %v1037
      %v2131 = vpop.f32.mrf.mxu0
      %v2132 = vadd.f32 0.0, %v2131
      %v2133 = vpop.f32.mrf.mxu0
      %v2134 = vpop.f32.mrf.mxu0
      %v2135 = vadd.f32 0.0, %v2134
      %v2136 = vpop.f32.mrf.mxu0
      %2137 = vmatprep.mubr.bf16.mxu0 0
      %2138 = vmatmul.mubr.bf16.gmra.mxu0 %v1038
      %v2139 = vpop.f32.mrf.mxu0
      %v2140 = vadd.f32 0.0, %v2139
      %v2141 = vpop.f32.mrf.mxu0
      %v2142 = vpop.f32.mrf.mxu0
      %v2143 = vadd.f32 0.0, %v2142
      %v2144 = vpop.f32.mrf.mxu0
      %2145 = vmatprep.mubr.bf16.mxu0 0
      %2146 = vmatmul.mubr.bf16.gmra.mxu0 %v1039
      %v2147 = vpop.f32.mrf.mxu0
      %v2148 = vadd.f32 0.0, %v2147
      %v2149 = vpop.f32.mrf.mxu0
      %v2150 = vpop.f32.mrf.mxu0
      %v2151 = vadd.f32 0.0, %v2150
      %v2152 = vpop.f32.mrf.mxu0
      %2153 = vmatprep.mubr.bf16.mxu0 0
      %2154 = vmatmul.mubr.bf16.gmra.mxu0 %v1040
      %v2155 = vpop.f32.mrf.mxu0
      %v2156 = vadd.f32 0.0, %v2155
      %v2157 = vpop.f32.mrf.mxu0
      %v2158 = vpop.f32.mrf.mxu0
      %v2159 = vadd.f32 0.0, %v2158
      %v2160 = vpop.f32.mrf.mxu0
      %2161 = vmatprep.mubr.bf16.mxu0 0
      %2162 = vmatmul.mubr.bf16.gmra.mxu0 %v1041
      %v2163 = vpop.f32.mrf.mxu0
      %v2164 = vadd.f32 0.0, %v2163
      %v2165 = vpop.f32.mrf.mxu0
      %v2166 = vpop.f32.mrf.mxu0
      %v2167 = vadd.f32 0.0, %v2166
      %v2168 = vpop.f32.mrf.mxu0
      %2169 = vmatprep.mubr.bf16.mxu0 0
      %2170 = vmatmul.mubr.bf16.gmra.mxu0 %v1042
      %v2171 = vpop.f32.mrf.mxu0
      %v2172 = vadd.f32 0.0, %v2171
      %v2173 = vpop.f32.mrf.mxu0
      %v2174 = vpop.f32.mrf.mxu0
      %v2175 = vadd.f32 0.0, %v2174
      %v2176 = vpop.f32.mrf.mxu0
      %2177 = vmatprep.mubr.bf16.mxu0 0
      %2178 = vmatmul.mubr.bf16.gmra.mxu0 %v1043
      %v2179 = vpop.f32.mrf.mxu0
      %v2180 = vadd.f32 0.0, %v2179
      %v2181 = vpop.f32.mrf.mxu0
      %v2182 = vpop.f32.mrf.mxu0
      %v2183 = vadd.f32 0.0, %v2182
      %v2184 = vpop.f32.mrf.mxu0
      %2185 = vmatprep.mubr.bf16.mxu0 0
      %2186 = vmatmul.mubr.bf16.gmra.mxu0 %v1044
      %v2187 = vpop.f32.mrf.mxu0
      %v2188 = vadd.f32 0.0, %v2187
      %v2189 = vpop.f32.mrf.mxu0
      %v2190 = vpop.f32.mrf.mxu0
      %v2191 = vadd.f32 0.0, %v2190
      %v2192 = vpop.f32.mrf.mxu0
      %2193 = vmatprep.mubr.bf16.mxu0 0
      %2194 = vmatmul.mubr.bf16.gmra.mxu0 %v1045
      %v2195 = vpop.f32.mrf.mxu0
      %v2196 = vadd.f32 0.0, %v2195
      %v2197 = vpop.f32.mrf.mxu0
      %v2198 = vpop.f32.mrf.mxu0
      %v2199 = vadd.f32 0.0, %v2198
      %v2200 = vpop.f32.mrf.mxu0
      %2201 = vmatprep.mubr.bf16.mxu0 0
      %2202 = vmatmul.mubr.bf16.gmra.mxu0 %v1046
      %v2203 = vpop.f32.mrf.mxu0
      %v2204 = vadd.f32 0.0, %v2203
      %v2205 = vpop.f32.mrf.mxu0
      %v2206 = vpop.f32.mrf.mxu0
      %v2207 = vadd.f32 0.0, %v2206
      %v2208 = vpop.f32.mrf.mxu0
      %2209 = vmatprep.mubr.bf16.mxu0 0
      %2210 = vmatmul.mubr.bf16.gmra.mxu0 %v1047
      %v2211 = vpop.f32.mrf.mxu0
      %v2212 = vadd.f32 0.0, %v2211
      %v2213 = vpop.f32.mrf.mxu0
      %v2214 = vpop.f32.mrf.mxu0
      %v2215 = vadd.f32 0.0, %v2214
      %v2216 = vpop.f32.mrf.mxu0
      %2217 = vmatprep.mubr.bf16.mxu0 0
      %2218 = vmatmul.mubr.bf16.gmra.mxu0 %v1048
      %v2219 = vpop.f32.mrf.mxu0
      %v2220 = vadd.f32 0.0, %v2219
      %v2221 = vpop.f32.mrf.mxu0
      %v2222 = vpop.f32.mrf.mxu0
      %v2223 = vadd.f32 0.0, %v2222
      %v2224 = vpop.f32.mrf.mxu0
      %2225 = vmatprep.mubr.bf16.mxu0 0
      %2226 = vmatmul.mubr.bf16.gmra.mxu0 %v1049
      %v2227 = vpop.f32.mrf.mxu0
      %v2228 = vadd.f32 0.0, %v2227
      %v2229 = vpop.f32.mrf.mxu0
      %v2230 = vpop.f32.mrf.mxu0
      %v2231 = vadd.f32 0.0, %v2230
      %v2232 = vpop.f32.mrf.mxu0
      %2233 = vmatprep.mubr.bf16.mxu0 0
      %2234 = vmatmul.mubr.bf16.gmra.mxu0 %v1050
      %v2235 = vpop.f32.mrf.mxu0
      %v2236 = vadd.f32 0.0, %v2235
      %v2237 = vpop.f32.mrf.mxu0
      %v2238 = vpop.f32.mrf.mxu0
      %v2239 = vadd.f32 0.0, %v2238
      %v2240 = vpop.f32.mrf.mxu0
      %2241 = vmatprep.mubr.bf16.mxu0 0
      %2242 = vmatmul.mubr.bf16.gmra.mxu0 %v1051
      %v2243 = vpop.f32.mrf.mxu0
      %v2244 = vadd.f32 0.0, %v2243
      %v2245 = vpop.f32.mrf.mxu0
      %v2246 = vpop.f32.mrf.mxu0
      %v2247 = vadd.f32 0.0, %v2246
      %v2248 = vpop.f32.mrf.mxu0
      %2249 = vmatprep.mubr.bf16.mxu0 0
      %2250 = vmatmul.mubr.bf16.gmra.mxu0 %v1052
      %v2251 = vpop.f32.mrf.mxu0
      %v2252 = vadd.f32 0.0, %v2251
      %v2253 = vpop.f32.mrf.mxu0
      %v2254 = vpop.f32.mrf.mxu0
      %v2255 = vadd.f32 0.0, %v2254
      %v2256 = vpop.f32.mrf.mxu0
      %2257 = vmatprep.mubr.bf16.mxu0 0
      %2258 = vmatmul.mubr.bf16.gmra.mxu0 %v1053
      %v2259 = vpop.f32.mrf.mxu0
      %v2260 = vadd.f32 0.0, %v2259
      %v2261 = vpop.f32.mrf.mxu0
      %v2262 = vpop.f32.mrf.mxu0
      %v2263 = vadd.f32 0.0, %v2262
      %v2264 = vpop.f32.mrf.mxu0
      %2265 = vmatprep.mubr.bf16.mxu0 0
      %2266 = vmatmul.mubr.bf16.gmra.mxu0 %v1054
      %v2267 = vpop.f32.mrf.mxu0
      %v2268 = vadd.f32 0.0, %v2267
      %v2269 = vpop.f32.mrf.mxu0
      %v2270 = vpop.f32.mrf.mxu0
      %v2271 = vadd.f32 0.0, %v2270
      %v2272 = vpop.f32.mrf.mxu0
      %2273 = vmatprep.mubr.bf16.mxu0 0
      %2274 = vmatmul.mubr.bf16.gmra.mxu0 %v1055
      %v2275 = vpop.f32.mrf.mxu0
      %v2276 = vadd.f32 0.0, %v2275
      %v2277 = vpop.f32.mrf.mxu0
      %v2278 = vpop.f32.mrf.mxu0
      %v2279 = vadd.f32 0.0, %v2278
      %v2280 = vpop.f32.mrf.mxu0
      %2281 = vmatprep.mubr.bf16.mxu0 0
      %2282 = vmatmul.mubr.bf16.gmra.mxu0 %v1056
      %v2283 = vpop.f32.mrf.mxu0
      %v2284 = vadd.f32 0.0, %v2283
      %v2285 = vpop.f32.mrf.mxu0
      %v2286 = vpop.f32.mrf.mxu0
      %v2287 = vadd.f32 0.0, %v2286
      %v2288 = vpop.f32.mrf.mxu0
      %2289 = vdwg.mxu0
      %v2290 = vadd.f32 %v1268, %v1271
      %v2291 = vadd.f32 %v2290, %v1276
      %v2292 = vadd.f32 %v2291, %v1279
      %v2293 = vadd.f32 %v2292, %v1284
      %v2294 = vadd.f32 %v2293, %v1287
      %v2295 = vadd.f32 %v2294, %v1292
      %v2296 = vadd.f32 %v2295, %v1295
      %v2297 = vadd.f32 %v2296, %v1300
      %v2298 = vadd.f32 %v2297, %v1303
      %v2299 = vadd.f32 %v2298, %v1308
      %v2300 = vadd.f32 %v2299, %v1311
      %v2301 = vadd.f32 %v2300, %v1316
      %v2302 = vadd.f32 %v2301, %v1319
      %v2303 = vadd.f32 %v2302, %v1324
      %v2304 = vadd.f32 %v2303, %v1327
      %v2305 = vadd.f32 %v2304, %v1332
      %v2306 = vadd.f32 %v2305, %v1335
      %v2307 = vadd.f32 %v2306, %v1340
      %v2308 = vadd.f32 %v2307, %v1343
      %v2309 = vadd.f32 %v2308, %v1348
      %v2310 = vadd.f32 %v2309, %v1351
      %v2311 = vadd.f32 %v2310, %v1356
      %v2312 = vadd.f32 %v2311, %v1359
      %v2313 = vadd.f32 %v2312, %v1364
      %v2314 = vadd.f32 %v2313, %v1367
      %v2315 = vadd.f32 %v2314, %v1372
      %v2316 = vadd.f32 %v2315, %v1375
      %v2317 = vadd.f32 %v2316, %v1380
      %v2318 = vadd.f32 %v2317, %v1383
      %v2319 = vadd.f32 %v2318, %v1388
      %v2320 = vadd.f32 %v2319, %v1391
      %v2321 = vadd.f32 %v2320, %v1396
      %v2322 = vadd.f32 %v2321, %v1399
      %v2323 = vadd.f32 %v2322, %v1404
      %v2324 = vadd.f32 %v2323, %v1407
      %v2325 = vadd.f32 %v2324, %v1412
      %v2326 = vadd.f32 %v2325, %v1415
      %v2327 = vadd.f32 %v2326, %v1420
      %v2328 = vadd.f32 %v2327, %v1423
      %v2329 = vadd.f32 %v2328, %v1428
      %v2330 = vadd.f32 %v2329, %v1431
      %v2331 = vadd.f32 %v2330, %v1436
      %v2332 = vadd.f32 %v2331, %v1439
      %v2333 = vadd.f32 %v2332, %v1444
      %v2334 = vadd.f32 %v2333, %v1447
      %v2335 = vadd.f32 %v2334, %v1452
      %v2336 = vadd.f32 %v2335, %v1455
      %v2337 = vadd.f32 %v2336, %v1460
      %v2338 = vadd.f32 %v2337, %v1463
      %v2339 = vadd.f32 %v2338, %v1468
      %v2340 = vadd.f32 %v2339, %v1471
      %v2341 = vadd.f32 %v2340, %v1476
      %v2342 = vadd.f32 %v2341, %v1479
      %v2343 = vadd.f32 %v2342, %v1484
      %v2344 = vadd.f32 %v2343, %v1487
      %v2345 = vadd.f32 %v2344, %v1492
      %v2346 = vadd.f32 %v2345, %v1495
      %v2347 = vadd.f32 %v2346, %v1500
      %v2348 = vadd.f32 %v2347, %v1503
      %v2349 = vadd.f32 %v2348, %v1508
      %v2350 = vadd.f32 %v2349, %v1511
      %v2351 = vadd.f32 %v2350, %v1516
      %v2352 = vadd.f32 %v2351, %v1519
      %v2353 = vadd.f32 %v2352, %v1524
      %v2354 = vadd.f32 %v2353, %v1527
      %v2355 = vadd.f32 %v2354, %v1532
      %v2356 = vadd.f32 %v2355, %v1535
      %v2357 = vadd.f32 %v2356, %v1540
      %v2358 = vadd.f32 %v2357, %v1543
      %v2359 = vadd.f32 %v2358, %v1548
      %v2360 = vadd.f32 %v2359, %v1551
      %v2361 = vadd.f32 %v2360, %v1556
      %v2362 = vadd.f32 %v2361, %v1559
      %v2363 = vadd.f32 %v2362, %v1564
      %v2364 = vadd.f32 %v2363, %v1567
      %v2365 = vadd.f32 %v2364, %v1572
      %v2366 = vadd.f32 %v2365, %v1575
      %v2367 = vadd.f32 %v2366, %v1580
      %v2368 = vadd.f32 %v2367, %v1583
      %v2369 = vadd.f32 %v2368, %v1588
      %v2370 = vadd.f32 %v2369, %v1591
      %v2371 = vadd.f32 %v2370, %v1596
      %v2372 = vadd.f32 %v2371, %v1599
      %v2373 = vadd.f32 %v2372, %v1604
      %v2374 = vadd.f32 %v2373, %v1607
      %v2375 = vadd.f32 %v2374, %v1612
      %v2376 = vadd.f32 %v2375, %v1615
      %v2377 = vadd.f32 %v2376, %v1620
      %v2378 = vadd.f32 %v2377, %v1623
      %v2379 = vadd.f32 %v2378, %v1628
      %v2380 = vadd.f32 %v2379, %v1631
      %v2381 = vadd.f32 %v2380, %v1636
      %v2382 = vadd.f32 %v2381, %v1639
      %v2383 = vadd.f32 %v2382, %v1644
      %v2384 = vadd.f32 %v2383, %v1647
      %v2385 = vadd.f32 %v2384, %v1652
      %v2386 = vadd.f32 %v2385, %v1655
      %v2387 = vadd.f32 %v2386, %v1660
      %v2388 = vadd.f32 %v2387, %v1663
      %v2389 = vadd.f32 %v2388, %v1668
      %v2390 = vadd.f32 %v2389, %v1671
      %v2391 = vadd.f32 %v2390, %v1676
      %v2392 = vadd.f32 %v2391, %v1679
      %v2393 = vadd.f32 %v2392, %v1684
      %v2394 = vadd.f32 %v2393, %v1687
      %v2395 = vadd.f32 %v2394, %v1692
      %v2396 = vadd.f32 %v2395, %v1695
      %v2397 = vadd.f32 %v2396, %v1700
      %v2398 = vadd.f32 %v2397, %v1703
      %v2399 = vadd.f32 %v2398, %v1708
      %v2400 = vadd.f32 %v2399, %v1711
      %v2401 = vadd.f32 %v2400, %v1716
      %v2402 = vadd.f32 %v2401, %v1719
      %v2403 = vadd.f32 %v2402, %v1724
      %v2404 = vadd.f32 %v2403, %v1727
      %v2405 = vadd.f32 %v2404, %v1732
      %v2406 = vadd.f32 %v2405, %v1735
      %v2407 = vadd.f32 %v2406, %v1740
      %v2408 = vadd.f32 %v2407, %v1743
      %v2409 = vadd.f32 %v2408, %v1748
      %v2410 = vadd.f32 %v2409, %v1751
      %v2411 = vadd.f32 %v2410, %v1756
      %v2412 = vadd.f32 %v2411, %v1759
      %v2413 = vadd.f32 %v2412, %v1764
      %v2414 = vadd.f32 %v2413, %v1767
      %v2415 = vadd.f32 %v2414, %v1772
      %v2416 = vadd.f32 %v2415, %v1775
      %v2417 = vadd.f32 %v2416, %v1780
      %v2418 = vadd.f32 %v2417, %v1783
      %v2419 = vadd.f32 %v2418, %v1788
      %v2420 = vadd.f32 %v2419, %v1791
      %v2421 = vadd.f32 %v2420, %v1796
      %v2422 = vadd.f32 %v2421, %v1799
      %v2423 = vadd.f32 %v2422, %v1804
      %v2424 = vadd.f32 %v2423, %v1807
      %v2425 = vadd.f32 %v2424, %v1812
      %v2426 = vadd.f32 %v2425, %v1815
      %v2427 = vadd.f32 %v2426, %v1820
      %v2428 = vadd.f32 %v2427, %v1823
      %v2429 = vadd.f32 %v2428, %v1828
      %v2430 = vadd.f32 %v2429, %v1831
      %v2431 = vadd.f32 %v2430, %v1836
      %v2432 = vadd.f32 %v2431, %v1839
      %v2433 = vadd.f32 %v2432, %v1844
      %v2434 = vadd.f32 %v2433, %v1847
      %v2435 = vadd.f32 %v2434, %v1852
      %v2436 = vadd.f32 %v2435, %v1855
      %v2437 = vadd.f32 %v2436, %v1860
      %v2438 = vadd.f32 %v2437, %v1863
      %v2439 = vadd.f32 %v2438, %v1868
      %v2440 = vadd.f32 %v2439, %v1871
      %v2441 = vadd.f32 %v2440, %v1876
      %v2442 = vadd.f32 %v2441, %v1879
      %v2443 = vadd.f32 %v2442, %v1884
      %v2444 = vadd.f32 %v2443, %v1887
      %v2445 = vadd.f32 %v2444, %v1892
      %v2446 = vadd.f32 %v2445, %v1895
      %v2447 = vadd.f32 %v2446, %v1900
      %v2448 = vadd.f32 %v2447, %v1903
      %v2449 = vadd.f32 %v2448, %v1908
      %v2450 = vadd.f32 %v2449, %v1911
      %v2451 = vadd.f32 %v2450, %v1916
      %v2452 = vadd.f32 %v2451, %v1919
      %v2453 = vadd.f32 %v2452, %v1924
      %v2454 = vadd.f32 %v2453, %v1927
      %v2455 = vadd.f32 %v2454, %v1932
      %v2456 = vadd.f32 %v2455, %v1935
      %v2457 = vadd.f32 %v2456, %v1940
      %v2458 = vadd.f32 %v2457, %v1943
      %v2459 = vadd.f32 %v2458, %v1948
      %v2460 = vadd.f32 %v2459, %v1951
      %v2461 = vadd.f32 %v2460, %v1956
      %v2462 = vadd.f32 %v2461, %v1959
      %v2463 = vadd.f32 %v2462, %v1964
      %v2464 = vadd.f32 %v2463, %v1967
      %v2465 = vadd.f32 %v2464, %v1972
      %v2466 = vadd.f32 %v2465, %v1975
      %v2467 = vadd.f32 %v2466, %v1980
      %v2468 = vadd.f32 %v2467, %v1983
      %v2469 = vadd.f32 %v2468, %v1988
      %v2470 = vadd.f32 %v2469, %v1991
      %v2471 = vadd.f32 %v2470, %v1996
      %v2472 = vadd.f32 %v2471, %v1999
      %v2473 = vadd.f32 %v2472, %v2004
      %v2474 = vadd.f32 %v2473, %v2007
      %v2475 = vadd.f32 %v2474, %v2012
      %v2476 = vadd.f32 %v2475, %v2015
      %v2477 = vadd.f32 %v2476, %v2020
      %v2478 = vadd.f32 %v2477, %v2023
      %v2479 = vadd.f32 %v2478, %v2028
      %v2480 = vadd.f32 %v2479, %v2031
      %v2481 = vadd.f32 %v2480, %v2036
      %v2482 = vadd.f32 %v2481, %v2039
      %v2483 = vadd.f32 %v2482, %v2044
      %v2484 = vadd.f32 %v2483, %v2047
      %v2485 = vadd.f32 %v2484, %v2052
      %v2486 = vadd.f32 %v2485, %v2055
      %v2487 = vadd.f32 %v2486, %v2060
      %v2488 = vadd.f32 %v2487, %v2063
      %v2489 = vadd.f32 %v2488, %v2068
      %v2490 = vadd.f32 %v2489, %v2071
      %v2491 = vadd.f32 %v2490, %v2076
      %v2492 = vadd.f32 %v2491, %v2079
      %v2493 = vadd.f32 %v2492, %v2084
      %v2494 = vadd.f32 %v2493, %v2087
      %v2495 = vadd.f32 %v2494, %v2092
      %v2496 = vadd.f32 %v2495, %v2095
      %v2497 = vadd.f32 %v2496, %v2100
      %v2498 = vadd.f32 %v2497, %v2103
      %v2499 = vadd.f32 %v2498, %v2108
      %v2500 = vadd.f32 %v2499, %v2111
      %v2501 = vadd.f32 %v2500, %v2116
      %v2502 = vadd.f32 %v2501, %v2119
      %v2503 = vadd.f32 %v2502, %v2124
      %v2504 = vadd.f32 %v2503, %v2127
      %v2505 = vadd.f32 %v2504, %v2132
      %v2506 = vadd.f32 %v2505, %v2135
      %v2507 = vadd.f32 %v2506, %v2140
      %v2508 = vadd.f32 %v2507, %v2143
      %v2509 = vadd.f32 %v2508, %v2148
      %v2510 = vadd.f32 %v2509, %v2151
      %v2511 = vadd.f32 %v2510, %v2156
      %v2512 = vadd.f32 %v2511, %v2159
      %v2513 = vadd.f32 %v2512, %v2164
      %v2514 = vadd.f32 %v2513, %v2167
      %v2515 = vadd.f32 %v2514, %v2172
      %v2516 = vadd.f32 %v2515, %v2175
      %v2517 = vadd.f32 %v2516, %v2180
      %v2518 = vadd.f32 %v2517, %v2183
      %v2519 = vadd.f32 %v2518, %v2188
      %v2520 = vadd.f32 %v2519, %v2191
      %v2521 = vadd.f32 %v2520, %v2196
      %v2522 = vadd.f32 %v2521, %v2199
      %v2523 = vadd.f32 %v2522, %v2204
      %v2524 = vadd.f32 %v2523, %v2207
      %v2525 = vadd.f32 %v2524, %v2212
      %v2526 = vadd.f32 %v2525, %v2215
      %v2527 = vadd.f32 %v2526, %v2220
      %v2528 = vadd.f32 %v2527, %v2223
      %v2529 = vadd.f32 %v2528, %v2228
      %v2530 = vadd.f32 %v2529, %v2231
      %v2531 = vadd.f32 %v2530, %v2236
      %v2532 = vadd.f32 %v2531, %v2239
      %v2533 = vadd.f32 %v2532, %v2244
      %v2534 = vadd.f32 %v2533, %v2247
      %v2535 = vadd.f32 %v2534, %v2252
      %v2536 = vadd.f32 %v2535, %v2255
      %v2537 = vadd.f32 %v2536, %v2260
      %v2538 = vadd.f32 %v2537, %v2263
      %v2539 = vadd.f32 %v2538, %v2268
      %v2540 = vadd.f32 %v2539, %v2271
      %v2541 = vadd.f32 %v2540, %v2276
      %v2542 = vadd.f32 %v2541, %v2279
      %v2543 = vadd.f32 %v2542, %v2284
      %v2544 = vadd.f32 %v2543, %v2287
      %v2545 = vrot.slane %v2544, 4
      %v2546 = vadd.f32 %v2544, %v2545
      %v2547 = vrot.slane %v2546, 2
      %v2548 = vadd.f32 %v2546, %v2547
      %v2549 = vrot.slane %v2548, 1
      %v2550 = vadd.f32 %v2548, %v2549
      %v2551 = vmul.f32 %v1268, %v1268
      %v2552 = vmul.f32 %v1271, %v1271
      %v2553 = vmul.f32 %v1276, %v1276
      %v2554 = vmul.f32 %v1279, %v1279
      %v2555 = vmul.f32 %v1284, %v1284
      %v2556 = vmul.f32 %v1287, %v1287
      %v2557 = vmul.f32 %v1292, %v1292
      %v2558 = vmul.f32 %v1295, %v1295
      %v2559 = vmul.f32 %v1300, %v1300
      %v2560 = vmul.f32 %v1303, %v1303
      %v2561 = vmul.f32 %v1308, %v1308
      %v2562 = vmul.f32 %v1311, %v1311
      %v2563 = vmul.f32 %v1316, %v1316
      %v2564 = vmul.f32 %v1319, %v1319
      %v2565 = vmul.f32 %v1324, %v1324
      %v2566 = vmul.f32 %v1327, %v1327
      %v2567 = vmul.f32 %v1332, %v1332
      %v2568 = vmul.f32 %v1335, %v1335
      %v2569 = vmul.f32 %v1340, %v1340
      %v2570 = vmul.f32 %v1343, %v1343
      %v2571 = vmul.f32 %v1348, %v1348
      %v2572 = vmul.f32 %v1351, %v1351
      %v2573 = vmul.f32 %v1356, %v1356
      %v2574 = vmul.f32 %v1359, %v1359
      %v2575 = vmul.f32 %v1364, %v1364
      %v2576 = vmul.f32 %v1367, %v1367
      %v2577 = vmul.f32 %v1372, %v1372
      %v2578 = vmul.f32 %v1375, %v1375
      %v2579 = vmul.f32 %v1380, %v1380
      %v2580 = vmul.f32 %v1383, %v1383
      %v2581 = vmul.f32 %v1388, %v1388
      %v2582 = vmul.f32 %v1391, %v1391
      %v2583 = vmul.f32 %v1396, %v1396
      %v2584 = vmul.f32 %v1399, %v1399
      %v2585 = vmul.f32 %v1404, %v1404
      %v2586 = vmul.f32 %v1407, %v1407
      %v2587 = vmul.f32 %v1412, %v1412
      %v2588 = vmul.f32 %v1415, %v1415
      %v2589 = vmul.f32 %v1420, %v1420
      %v2590 = vmul.f32 %v1423, %v1423
      %v2591 = vmul.f32 %v1428, %v1428
      %v2592 = vmul.f32 %v1431, %v1431
      %v2593 = vmul.f32 %v1436, %v1436
      %v2594 = vmul.f32 %v1439, %v1439
      %v2595 = vmul.f32 %v1444, %v1444
      %v2596 = vmul.f32 %v1447, %v1447
      %v2597 = vmul.f32 %v1452, %v1452
      %v2598 = vmul.f32 %v1455, %v1455
      %v2599 = vmul.f32 %v1460, %v1460
      %v2600 = vmul.f32 %v1463, %v1463
      %v2601 = vmul.f32 %v1468, %v1468
      %v2602 = vmul.f32 %v1471, %v1471
      %v2603 = vmul.f32 %v1476, %v1476
      %v2604 = vmul.f32 %v1479, %v1479
      %v2605 = vmul.f32 %v1484, %v1484
      %v2606 = vmul.f32 %v1487, %v1487
      %v2607 = vmul.f32 %v1492, %v1492
      %v2608 = vmul.f32 %v1495, %v1495
      %v2609 = vmul.f32 %v1500, %v1500
      %v2610 = vmul.f32 %v1503, %v1503
      %v2611 = vmul.f32 %v1508, %v1508
      %v2612 = vmul.f32 %v1511, %v1511
      %v2613 = vmul.f32 %v1516, %v1516
      %v2614 = vmul.f32 %v1519, %v1519
      %v2615 = vmul.f32 %v1524, %v1524
      %v2616 = vmul.f32 %v1527, %v1527
      %v2617 = vmul.f32 %v1532, %v1532
      %v2618 = vmul.f32 %v1535, %v1535
      %v2619 = vmul.f32 %v1540, %v1540
      %v2620 = vmul.f32 %v1543, %v1543
      %v2621 = vmul.f32 %v1548, %v1548
      %v2622 = vmul.f32 %v1551, %v1551
      %v2623 = vmul.f32 %v1556, %v1556
      %v2624 = vmul.f32 %v1559, %v1559
      %v2625 = vmul.f32 %v1564, %v1564
      %v2626 = vmul.f32 %v1567, %v1567
      %v2627 = vmul.f32 %v1572, %v1572
      %v2628 = vmul.f32 %v1575, %v1575
      %v2629 = vmul.f32 %v1580, %v1580
      %v2630 = vmul.f32 %v1583, %v1583
      %v2631 = vmul.f32 %v1588, %v1588
      %v2632 = vmul.f32 %v1591, %v1591
      %v2633 = vmul.f32 %v1596, %v1596
      %v2634 = vmul.f32 %v1599, %v1599
      %v2635 = vmul.f32 %v1604, %v1604
      %v2636 = vmul.f32 %v1607, %v1607
      %v2637 = vmul.f32 %v1612, %v1612
      %v2638 = vmul.f32 %v1615, %v1615
      %v2639 = vmul.f32 %v1620, %v1620
      %v2640 = vmul.f32 %v1623, %v1623
      %v2641 = vmul.f32 %v1628, %v1628
      %v2642 = vmul.f32 %v1631, %v1631
      %v2643 = vmul.f32 %v1636, %v1636
      %v2644 = vmul.f32 %v1639, %v1639
      %v2645 = vmul.f32 %v1644, %v1644
      %v2646 = vmul.f32 %v1647, %v1647
      %v2647 = vmul.f32 %v1652, %v1652
      %v2648 = vmul.f32 %v1655, %v1655
      %v2649 = vmul.f32 %v1660, %v1660
      %v2650 = vmul.f32 %v1663, %v1663
      %v2651 = vmul.f32 %v1668, %v1668
      %v2652 = vmul.f32 %v1671, %v1671
      %v2653 = vmul.f32 %v1676, %v1676
      %v2654 = vmul.f32 %v1679, %v1679
      %v2655 = vmul.f32 %v1684, %v1684
      %v2656 = vmul.f32 %v1687, %v1687
      %v2657 = vmul.f32 %v1692, %v1692
      %v2658 = vmul.f32 %v1695, %v1695
      %v2659 = vmul.f32 %v1700, %v1700
      %v2660 = vmul.f32 %v1703, %v1703
      %v2661 = vmul.f32 %v1708, %v1708
      %v2662 = vmul.f32 %v1711, %v1711
      %v2663 = vmul.f32 %v1716, %v1716
      %v2664 = vmul.f32 %v1719, %v1719
      %v2665 = vmul.f32 %v1724, %v1724
      %v2666 = vmul.f32 %v1727, %v1727
      %v2667 = vmul.f32 %v1732, %v1732
      %v2668 = vmul.f32 %v1735, %v1735
      %v2669 = vmul.f32 %v1740, %v1740
      %v2670 = vmul.f32 %v1743, %v1743
      %v2671 = vmul.f32 %v1748, %v1748
      %v2672 = vmul.f32 %v1751, %v1751
      %v2673 = vmul.f32 %v1756, %v1756
      %v2674 = vmul.f32 %v1759, %v1759
      %v2675 = vmul.f32 %v1764, %v1764
      %v2676 = vmul.f32 %v1767, %v1767
      %v2677 = vmul.f32 %v1772, %v1772
      %v2678 = vmul.f32 %v1775, %v1775
      %v2679 = vmul.f32 %v1780, %v1780
      %v2680 = vmul.f32 %v1783, %v1783
      %v2681 = vmul.f32 %v1788, %v1788
      %v2682 = vmul.f32 %v1791, %v1791
      %v2683 = vmul.f32 %v1796, %v1796
      %v2684 = vmul.f32 %v1799, %v1799
      %v2685 = vmul.f32 %v1804, %v1804
      %v2686 = vmul.f32 %v1807, %v1807
      %v2687 = vmul.f32 %v1812, %v1812
      %v2688 = vmul.f32 %v1815, %v1815
      %v2689 = vmul.f32 %v1820, %v1820
      %v2690 = vmul.f32 %v1823, %v1823
      %v2691 = vmul.f32 %v1828, %v1828
      %v2692 = vmul.f32 %v1831, %v1831
      %v2693 = vmul.f32 %v1836, %v1836
      %v2694 = vmul.f32 %v1839, %v1839
      %v2695 = vmul.f32 %v1844, %v1844
      %v2696 = vmul.f32 %v1847, %v1847
      %v2697 = vmul.f32 %v1852, %v1852
      %v2698 = vmul.f32 %v1855, %v1855
      %v2699 = vmul.f32 %v1860, %v1860
      %v2700 = vmul.f32 %v1863, %v1863
      %v2701 = vmul.f32 %v1868, %v1868
      %v2702 = vmul.f32 %v1871, %v1871
      %v2703 = vmul.f32 %v1876, %v1876
      %v2704 = vmul.f32 %v1879, %v1879
      %v2705 = vmul.f32 %v1884, %v1884
      %v2706 = vmul.f32 %v1887, %v1887
      %v2707 = vmul.f32 %v1892, %v1892
      %v2708 = vmul.f32 %v1895, %v1895
      %v2709 = vmul.f32 %v1900, %v1900
      %v2710 = vmul.f32 %v1903, %v1903
      %v2711 = vmul.f32 %v1908, %v1908
      %v2712 = vmul.f32 %v1911, %v1911
      %v2713 = vmul.f32 %v1916, %v1916
      %v2714 = vmul.f32 %v1919, %v1919
      %v2715 = vmul.f32 %v1924, %v1924
      %v2716 = vmul.f32 %v1927, %v1927
      %v2717 = vmul.f32 %v1932, %v1932
      %v2718 = vmul.f32 %v1935, %v1935
      %v2719 = vmul.f32 %v1940, %v1940
      %v2720 = vmul.f32 %v1943, %v1943
      %v2721 = vmul.f32 %v1948, %v1948
      %v2722 = vmul.f32 %v1951, %v1951
      %v2723 = vmul.f32 %v1956, %v1956
      %v2724 = vmul.f32 %v1959, %v1959
      %v2725 = vmul.f32 %v1964, %v1964
      %v2726 = vmul.f32 %v1967, %v1967
      %v2727 = vmul.f32 %v1972, %v1972
      %v2728 = vmul.f32 %v1975, %v1975
      %v2729 = vmul.f32 %v1980, %v1980
      %v2730 = vmul.f32 %v1983, %v1983
      %v2731 = vmul.f32 %v1988, %v1988
      %v2732 = vmul.f32 %v1991, %v1991
      %v2733 = vmul.f32 %v1996, %v1996
      %v2734 = vmul.f32 %v1999, %v1999
      %v2735 = vmul.f32 %v2004, %v2004
      %v2736 = vmul.f32 %v2007, %v2007
      %v2737 = vmul.f32 %v2012, %v2012
      %v2738 = vmul.f32 %v2015, %v2015
      %v2739 = vmul.f32 %v2020, %v2020
      %v2740 = vmul.f32 %v2023, %v2023
      %v2741 = vmul.f32 %v2028, %v2028
      %v2742 = vmul.f32 %v2031, %v2031
      %v2743 = vmul.f32 %v2036, %v2036
      %v2744 = vmul.f32 %v2039, %v2039
      %v2745 = vmul.f32 %v2044, %v2044
      %v2746 = vmul.f32 %v2047, %v2047
      %v2747 = vmul.f32 %v2052, %v2052
      %v2748 = vmul.f32 %v2055, %v2055
      %v2749 = vmul.f32 %v2060, %v2060
      %v2750 = vmul.f32 %v2063, %v2063
      %v2751 = vmul.f32 %v2068, %v2068
      %v2752 = vmul.f32 %v2071, %v2071
      %v2753 = vmul.f32 %v2076, %v2076
      %v2754 = vmul.f32 %v2079, %v2079
      %v2755 = vmul.f32 %v2084, %v2084
      %v2756 = vmul.f32 %v2087, %v2087
      %v2757 = vmul.f32 %v2092, %v2092
      %v2758 = vmul.f32 %v2095, %v2095
      %v2759 = vmul.f32 %v2100, %v2100
      %v2760 = vmul.f32 %v2103, %v2103
      %v2761 = vmul.f32 %v2108, %v2108
      %v2762 = vmul.f32 %v2111, %v2111
      %v2763 = vmul.f32 %v2116, %v2116
      %v2764 = vmul.f32 %v2119, %v2119
      %v2765 = vmul.f32 %v2124, %v2124
      %v2766 = vmul.f32 %v2127, %v2127
      %v2767 = vmul.f32 %v2132, %v2132
      %v2768 = vmul.f32 %v2135, %v2135
      %v2769 = vmul.f32 %v2140, %v2140
      %v2770 = vmul.f32 %v2143, %v2143
      %v2771 = vmul.f32 %v2148, %v2148
      %v2772 = vmul.f32 %v2151, %v2151
      %v2773 = vmul.f32 %v2156, %v2156
      %v2774 = vmul.f32 %v2159, %v2159
      %v2775 = vmul.f32 %v2164, %v2164
      %v2776 = vmul.f32 %v2167, %v2167
      %v2777 = vmul.f32 %v2172, %v2172
      %v2778 = vmul.f32 %v2175, %v2175
      %v2779 = vmul.f32 %v2180, %v2180
      %v2780 = vmul.f32 %v2183, %v2183
      %v2781 = vmul.f32 %v2188, %v2188
      %v2782 = vmul.f32 %v2191, %v2191
      %v2783 = vmul.f32 %v2196, %v2196
      %v2784 = vmul.f32 %v2199, %v2199
      %v2785 = vmul.f32 %v2204, %v2204
      %v2786 = vmul.f32 %v2207, %v2207
      %v2787 = vmul.f32 %v2212, %v2212
      %v2788 = vmul.f32 %v2215, %v2215
      %v2789 = vmul.f32 %v2220, %v2220
      %v2790 = vmul.f32 %v2223, %v2223
      %v2791 = vmul.f32 %v2228, %v2228
      %v2792 = vmul.f32 %v2231, %v2231
      %v2793 = vmul.f32 %v2236, %v2236
      %v2794 = vmul.f32 %v2239, %v2239
      %v2795 = vmul.f32 %v2244, %v2244
      %v2796 = vmul.f32 %v2247, %v2247
      %v2797 = vmul.f32 %v2252, %v2252
      %v2798 = vmul.f32 %v2255, %v2255
      %v2799 = vmul.f32 %v2260, %v2260
      %v2800 = vmul.f32 %v2263, %v2263
      %v2801 = vmul.f32 %v2268, %v2268
      %v2802 = vmul.f32 %v2271, %v2271
      %v2803 = vmul.f32 %v2276, %v2276
      %v2804 = vmul.f32 %v2279, %v2279
      %v2805 = vmul.f32 %v2284, %v2284
      %v2806 = vmul.f32 %v2287, %v2287
      %v2807 = vadd.f32 %v2551, %v2552
      %v2808 = vadd.f32 %v2807, %v2553
      %v2809 = vadd.f32 %v2808, %v2554
      %v2810 = vadd.f32 %v2809, %v2555
      %v2811 = vadd.f32 %v2810, %v2556
      %v2812 = vadd.f32 %v2811, %v2557
      %v2813 = vadd.f32 %v2812, %v2558
      %v2814 = vadd.f32 %v2813, %v2559
      %v2815 = vadd.f32 %v2814, %v2560
      %v2816 = vadd.f32 %v2815, %v2561
      %v2817 = vadd.f32 %v2816, %v2562
      %v2818 = vadd.f32 %v2817, %v2563
      %v2819 = vadd.f32 %v2818, %v2564
      %v2820 = vadd.f32 %v2819, %v2565
      %v2821 = vadd.f32 %v2820, %v2566
      %v2822 = vadd.f32 %v2821, %v2567
      %v2823 = vadd.f32 %v2822, %v2568
      %v2824 = vadd.f32 %v2823, %v2569
      %v2825 = vadd.f32 %v2824, %v2570
      %v2826 = vadd.f32 %v2825, %v2571
      %v2827 = vadd.f32 %v2826, %v2572
      %v2828 = vadd.f32 %v2827, %v2573
      %v2829 = vadd.f32 %v2828, %v2574
      %v2830 = vadd.f32 %v2829, %v2575
      %v2831 = vadd.f32 %v2830, %v2576
      %v2832 = vadd.f32 %v2831, %v2577
      %v2833 = vadd.f32 %v2832, %v2578
      %v2834 = vadd.f32 %v2833, %v2579
      %v2835 = vadd.f32 %v2834, %v2580
      %v2836 = vadd.f32 %v2835, %v2581
      %v2837 = vadd.f32 %v2836, %v2582
      %v2838 = vadd.f32 %v2837, %v2583
      %v2839 = vadd.f32 %v2838, %v2584
      %v2840 = vadd.f32 %v2839, %v2585
      %v2841 = vadd.f32 %v2840, %v2586
      %v2842 = vadd.f32 %v2841, %v2587
      %v2843 = vadd.f32 %v2842, %v2588
      %v2844 = vadd.f32 %v2843, %v2589
      %v2845 = vadd.f32 %v2844, %v2590
      %v2846 = vadd.f32 %v2845, %v2591
      %v2847 = vadd.f32 %v2846, %v2592
      %v2848 = vadd.f32 %v2847, %v2593
      %v2849 = vadd.f32 %v2848, %v2594
      %v2850 = vadd.f32 %v2849, %v2595
      %v2851 = vadd.f32 %v2850, %v2596
      %v2852 = vadd.f32 %v2851, %v2597
      %v2853 = vadd.f32 %v2852, %v2598
      %v2854 = vadd.f32 %v2853, %v2599
      %v2855 = vadd.f32 %v2854, %v2600
      %v2856 = vadd.f32 %v2855, %v2601
      %v2857 = vadd.f32 %v2856, %v2602
      %v2858 = vadd.f32 %v2857, %v2603
      %v2859 = vadd.f32 %v2858, %v2604
      %v2860 = vadd.f32 %v2859, %v2605
      %v2861 = vadd.f32 %v2860, %v2606
      %v2862 = vadd.f32 %v2861, %v2607
      %v2863 = vadd.f32 %v2862, %v2608
      %v2864 = vadd.f32 %v2863, %v2609
      %v2865 = vadd.f32 %v2864, %v2610
      %v2866 = vadd.f32 %v2865, %v2611
      %v2867 = vadd.f32 %v2866, %v2612
      %v2868 = vadd.f32 %v2867, %v2613
      %v2869 = vadd.f32 %v2868, %v2614
      %v2870 = vadd.f32 %v2869, %v2615
      %v2871 = vadd.f32 %v2870, %v2616
      %v2872 = vadd.f32 %v2871, %v2617
      %v2873 = vadd.f32 %v2872, %v2618
      %v2874 = vadd.f32 %v2873, %v2619
      %v2875 = vadd.f32 %v2874, %v2620
      %v2876 = vadd.f32 %v2875, %v2621
      %v2877 = vadd.f32 %v2876, %v2622
      %v2878 = vadd.f32 %v2877, %v2623
      %v2879 = vadd.f32 %v2878, %v2624
      %v2880 = vadd.f32 %v2879, %v2625
      %v2881 = vadd.f32 %v2880, %v2626
      %v2882 = vadd.f32 %v2881, %v2627
      %v2883 = vadd.f32 %v2882, %v2628
      %v2884 = vadd.f32 %v2883, %v2629
      %v2885 = vadd.f32 %v2884, %v2630
      %v2886 = vadd.f32 %v2885, %v2631
      %v2887 = vadd.f32 %v2886, %v2632
      %v2888 = vadd.f32 %v2887, %v2633
      %v2889 = vadd.f32 %v2888, %v2634
      %v2890 = vadd.f32 %v2889, %v2635
      %v2891 = vadd.f32 %v2890, %v2636
      %v2892 = vadd.f32 %v2891, %v2637
      %v2893 = vadd.f32 %v2892, %v2638
      %v2894 = vadd.f32 %v2893, %v2639
      %v2895 = vadd.f32 %v2894, %v2640
      %v2896 = vadd.f32 %v2895, %v2641
      %v2897 = vadd.f32 %v2896, %v2642
      %v2898 = vadd.f32 %v2897, %v2643
      %v2899 = vadd.f32 %v2898, %v2644
      %v2900 = vadd.f32 %v2899, %v2645
      %v2901 = vadd.f32 %v2900, %v2646
      %v2902 = vadd.f32 %v2901, %v2647
      %v2903 = vadd.f32 %v2902, %v2648
      %v2904 = vadd.f32 %v2903, %v2649
      %v2905 = vadd.f32 %v2904, %v2650
      %v2906 = vadd.f32 %v2905, %v2651
      %v2907 = vadd.f32 %v2906, %v2652
      %v2908 = vadd.f32 %v2907, %v2653
      %v2909 = vadd.f32 %v2908, %v2654
      %v2910 = vadd.f32 %v2909, %v2655
      %v2911 = vadd.f32 %v2910, %v2656
      %v2912 = vadd.f32 %v2911, %v2657
      %v2913 = vadd.f32 %v2912, %v2658
      %v2914 = vadd.f32 %v2913, %v2659
      %v2915 = vadd.f32 %v2914, %v2660
      %v2916 = vadd.f32 %v2915, %v2661
      %v2917 = vadd.f32 %v2916, %v2662
      %v2918 = vadd.f32 %v2917, %v2663
      %v2919 = vadd.f32 %v2918, %v2664
      %v2920 = vadd.f32 %v2919, %v2665
      %v2921 = vadd.f32 %v2920, %v2666
      %v2922 = vadd.f32 %v2921, %v2667
      %v2923 = vadd.f32 %v2922, %v2668
      %v2924 = vadd.f32 %v2923, %v2669
      %v2925 = vadd.f32 %v2924, %v2670
      %v2926 = vadd.f32 %v2925, %v2671
      %v2927 = vadd.f32 %v2926, %v2672
      %v2928 = vadd.f32 %v2927, %v2673
      %v2929 = vadd.f32 %v2928, %v2674
      %v2930 = vadd.f32 %v2929, %v2675
      %v2931 = vadd.f32 %v2930, %v2676
      %v2932 = vadd.f32 %v2931, %v2677
      %v2933 = vadd.f32 %v2932, %v2678
      %v2934 = vadd.f32 %v2933, %v2679
      %v2935 = vadd.f32 %v2934, %v2680
      %v2936 = vadd.f32 %v2935, %v2681
      %v2937 = vadd.f32 %v2936, %v2682
      %v2938 = vadd.f32 %v2937, %v2683
      %v2939 = vadd.f32 %v2938, %v2684
      %v2940 = vadd.f32 %v2939, %v2685
      %v2941 = vadd.f32 %v2940, %v2686
      %v2942 = vadd.f32 %v2941, %v2687
      %v2943 = vadd.f32 %v2942, %v2688
      %v2944 = vadd.f32 %v2943, %v2689
      %v2945 = vadd.f32 %v2944, %v2690
      %v2946 = vadd.f32 %v2945, %v2691
      %v2947 = vadd.f32 %v2946, %v2692
      %v2948 = vadd.f32 %v2947, %v2693
      %v2949 = vadd.f32 %v2948, %v2694
      %v2950 = vadd.f32 %v2949, %v2695
      %v2951 = vadd.f32 %v2950, %v2696
      %v2952 = vadd.f32 %v2951, %v2697
      %v2953 = vadd.f32 %v2952, %v2698
      %v2954 = vadd.f32 %v2953, %v2699
      %v2955 = vadd.f32 %v2954, %v2700
      %v2956 = vadd.f32 %v2955, %v2701
      %v2957 = vadd.f32 %v2956, %v2702
      %v2958 = vadd.f32 %v2957, %v2703
      %v2959 = vadd.f32 %v2958, %v2704
      %v2960 = vadd.f32 %v2959, %v2705
      %v2961 = vadd.f32 %v2960, %v2706
      %v2962 = vadd.f32 %v2961, %v2707
      %v2963 = vadd.f32 %v2962, %v2708
      %v2964 = vadd.f32 %v2963, %v2709
      %v2965 = vadd.f32 %v2964, %v2710
      %v2966 = vadd.f32 %v2965, %v2711
      %v2967 = vadd.f32 %v2966, %v2712
      %v2968 = vadd.f32 %v2967, %v2713
      %v2969 = vadd.f32 %v2968, %v2714
      %v2970 = vadd.f32 %v2969, %v2715
      %v2971 = vadd.f32 %v2970, %v2716
      %v2972 = vadd.f32 %v2971, %v2717
      %v2973 = vadd.f32 %v2972, %v2718
      %v2974 = vadd.f32 %v2973, %v2719
      %v2975 = vadd.f32 %v2974, %v2720
      %v2976 = vadd.f32 %v2975, %v2721
      %v2977 = vadd.f32 %v2976, %v2722
      %v2978 = vadd.f32 %v2977, %v2723
      %v2979 = vadd.f32 %v2978, %v2724
      %v2980 = vadd.f32 %v2979, %v2725
      %v2981 = vadd.f32 %v2980, %v2726
      %v2982 = vadd.f32 %v2981, %v2727
      %v2983 = vadd.f32 %v2982, %v2728
      %v2984 = vadd.f32 %v2983, %v2729
      %v2985 = vadd.f32 %v2984, %v2730
      %v2986 = vadd.f32 %v2985, %v2731
      %v2987 = vadd.f32 %v2986, %v2732
      %v2988 = vadd.f32 %v2987, %v2733
      %v2989 = vadd.f32 %v2988, %v2734
      %v2990 = vadd.f32 %v2989, %v2735
      %v2991 = vadd.f32 %v2990, %v2736
      %v2992 = vadd.f32 %v2991, %v2737
      %v2993 = vadd.f32 %v2992, %v2738
      %v2994 = vadd.f32 %v2993, %v2739
      %v2995 = vadd.f32 %v2994, %v2740
      %v2996 = vadd.f32 %v2995, %v2741
      %v2997 = vadd.f32 %v2996, %v2742
      %v2998 = vadd.f32 %v2997, %v2743
      %v2999 = vadd.f32 %v2998, %v2744
      %v3000 = vadd.f32 %v2999, %v2745
      %v3001 = vadd.f32 %v3000, %v2746
      %v3002 = vadd.f32 %v3001, %v2747
      %v3003 = vadd.f32 %v3002, %v2748
      %v3004 = vadd.f32 %v3003, %v2749
      %v3005 = vadd.f32 %v3004, %v2750
      %v3006 = vadd.f32 %v3005, %v2751
      %v3007 = vadd.f32 %v3006, %v2752
      %v3008 = vadd.f32 %v3007, %v2753
      %v3009 = vadd.f32 %v3008, %v2754
      %v3010 = vadd.f32 %v3009, %v2755
      %v3011 = vadd.f32 %v3010, %v2756
      %v3012 = vadd.f32 %v3011, %v2757
      %v3013 = vadd.f32 %v3012, %v2758
      %v3014 = vadd.f32 %v3013, %v2759
      %v3015 = vadd.f32 %v3014, %v2760
      %v3016 = vadd.f32 %v3015, %v2761
      %v3017 = vadd.f32 %v3016, %v2762
      %v3018 = vadd.f32 %v3017, %v2763
      %v3019 = vadd.f32 %v3018, %v2764
      %v3020 = vadd.f32 %v3019, %v2765
      %v3021 = vadd.f32 %v3020, %v2766
      %v3022 = vadd.f32 %v3021, %v2767
      %v3023 = vadd.f32 %v3022, %v2768
      %v3024 = vadd.f32 %v3023, %v2769
      %v3025 = vadd.f32 %v3024, %v2770
      %v3026 = vadd.f32 %v3025, %v2771
      %v3027 = vadd.f32 %v3026, %v2772
      %v3028 = vadd.f32 %v3027, %v2773
      %v3029 = vadd.f32 %v3028, %v2774
      %v3030 = vadd.f32 %v3029, %v2775
      %v3031 = vadd.f32 %v3030, %v2776
      %v3032 = vadd.f32 %v3031, %v2777
      %v3033 = vadd.f32 %v3032, %v2778
      %v3034 = vadd.f32 %v3033, %v2779
      %v3035 = vadd.f32 %v3034, %v2780
      %v3036 = vadd.f32 %v3035, %v2781
      %v3037 = vadd.f32 %v3036, %v2782
      %v3038 = vadd.f32 %v3037, %v2783
      %v3039 = vadd.f32 %v3038, %v2784
      %v3040 = vadd.f32 %v3039, %v2785
      %v3041 = vadd.f32 %v3040, %v2786
      %v3042 = vadd.f32 %v3041, %v2787
      %v3043 = vadd.f32 %v3042, %v2788
      %v3044 = vadd.f32 %v3043, %v2789
      %v3045 = vadd.f32 %v3044, %v2790
      %v3046 = vadd.f32 %v3045, %v2791
      %v3047 = vadd.f32 %v3046, %v2792
      %v3048 = vadd.f32 %v3047, %v2793
      %v3049 = vadd.f32 %v3048, %v2794
      %v3050 = vadd.f32 %v3049, %v2795
      %v3051 = vadd.f32 %v3050, %v2796
      %v3052 = vadd.f32 %v3051, %v2797
      %v3053 = vadd.f32 %v3052, %v2798
      %v3054 = vadd.f32 %v3053, %v2799
      %v3055 = vadd.f32 %v3054, %v2800
      %v3056 = vadd.f32 %v3055, %v2801
      %v3057 = vadd.f32 %v3056, %v2802
      %v3058 = vadd.f32 %v3057, %v2803
      %v3059 = vadd.f32 %v3058, %v2804
      %v3060 = vadd.f32 %v3059, %v2805
      %v3061 = vadd.f32 %v3060, %v2806
      %v3062 = vrot.slane %v3061, 4
      %v3063 = vadd.f32 %v3061, %v3062
      %v3064 = vrot.slane %v3063, 2
      %v3065 = vadd.f32 %v3063, %v3064
      %v3066 = vrot.slane %v3065, 1
      %v3067 = vadd.f32 %v3065, %v3066
      %vm3068 = vcmask 1040384
      %v3069 = vsel %vm3068, %v2550, %v3067
      %vm3070 = vcmask 1041408
      %v3071 = vsel %vm3070, %v3069, 0.0
      %3072 = vst [vmem:[%s143] sm:$0xff] %v3071
      %p3073 = scmp.lt.s32.totalorder %s13, 1
      %s3074 = scalar_select %p3073, %s13, 1
      %s3075 = smul.addr %s3074, 8
      %s3076 = scalar_lea.vmem %s2, %s3075
      // Predicated region
      $region29: #{conv_block_forward.2} parent=27 // pred_check
        %p3077 = pneg %p78
      $region30: #{conv_block_forward.2} parent=27 // pred_check_branch
        %3079 = sbr.rel (%p3077) target = $region32
      $region31: #{conv_block_forward.2} parent=27 // pred_region
        _
      $region32: #{conv_block_forward.2} parent=27 // pred_fallthru
        _
    $region28: #{conv_block_forward.2} parent=5 // pred_fallthru
      _
    %p3080 = scmp.le.s32.totalorder 2, %s8
    // Predicated region
    $region33: #{conv_block_forward.2} parent=5 // pred_check
      %p3081 = pneg %p3080
    $region34: #{conv_block_forward.2} parent=5 // pred_check_branch
      %3083 = sbr.rel (%p3081) target = $region36
    $region35: #{conv_block_forward.2} parent=5 // pred_region
      %s3084 = ssub.s32 %s8, 2
      // Predicated region
      $region37: #{conv_block_forward.2} parent=35 // pred_check
        %p3085 = pneg %p84
      $region38: #{conv_block_forward.2} parent=35 // pred_check_branch
        %3087 = sbr.rel (%p3085) target = $region40
      $region39: #{conv_block_forward.2} parent=35 // pred_region
        %p3088 = scmp.lt.s32.totalorder %s14, 1
        %s3089 = scalar_select %p3088, %s14, 1
        %s3090 = smul.addr %s3089, 8
        %s3091 = scalar_lea.vmem %s2, %s3090
      $region40: #{conv_block_forward.2} parent=35 // pred_fallthru
        _
    $region36: #{conv_block_forward.2} parent=5 // pred_fallthru
      _
  $region6: #{conv_block_forward.2} parent=0 // loop_footer
    %s12 = sadd.s32 1, %s8
  $region7: #{conv_block_forward.2} parent=0 // loop_footer_branch
    %7 = sbr.rel target = $region3
  $region8: #{conv_block_forward.2} parent=0 // loop_exit
    _

// kernel: conv_block_forward.3
$region0: #{conv_block_forward.3}
  #allocation0 [shape = 'u32[]', space=smem, size = 0x4, offset = 0x4, fixed_abs, tag = 'smem constant byte address 0x4 - core index']
  #allocation1 [shape = 'u32[144,128]{1,0:T(1,128)}', space=vmem, size = 0x12000, scoped, tag = 'internal scratch']
  %s0 = inlined_call_operand.vmem [shape: bf16[4096,128], index: 0, kind: input, shape index: {}]
  %s1 = inlined_call_operand.vmem [shape: bf16[128,128], index: 1, kind: input, shape index: {}]
  %s2 = inlined_call_operand.vmem [shape: f32[1,128], index: 2, kind: input, shape index: {}]
  %s3 = inlined_call_operand.vmem [shape: f32[1,128], index: 3, kind: input, shape index: {}]
  %s4 = inlined_call_operand.hbm [shape: bf16[4096,128], index: 4, kind: output, shape index: {}]
  %s5 = sld [smem:[#allocation0]]
  $region49: #{conv_block_forward.3} parent=0
    _
  %s7 = ssub.s32 1, %s5
  %s8 = scalar_select 0, %s7, %s5
  $region1: #{conv_block_forward.3} parent=0
    #allocation2 [shape = 'u8[1048576]{0}', space=vmem, size = 0x100000, scoped, tag = 'output window, operand 0']
    #allocation3 [shape = 's32[2]{0}', space=sflag, size = 0x8, scoped, tag = 'scoped memory for conv_block_forward.3']
    %9 = vsyncpa [#allocation3], 0
    %s10 = scalar_lea.sflag [#allocation3], 1
    %11 = vsyncpa %s10, 0
    loop: start=0, step=1, limit=4
    $region2: #{conv_block_forward.3} parent=1 // loop_pre_header
      _
    $region3: #{conv_block_forward.3} parent=1 // loop_header
      %s13 = sphi 0, %s17
      %p14 = scmp.ge.s32.totalorder %s13, 4
      %s23 = sphi 0, %s25
      %s26 = sphi 0, %s23
      %s27 = sphi 0, %s26
      %s43 = sphi 0, %s27
      %s47 = sphi 0, %s47
      %s49 = sphi 0, %s47
      %s50 = sphi 0, %s49
      %s64 = sphi 0, %s50
      %s68 = sphi 0, %s68
      %s70 = sphi 0, %s68
      %s71 = sphi 0, %s70
      %s85 = sphi 0, %s71
      %s89 = sphi 0, %s89
      %s91 = sphi 0, %s89
      %s92 = sphi 0, %s91
      %s106 = sphi 0, %s92
      %s112 = sphi 0, %s114
      %s115 = sphi 0, %s112
      %s116 = sphi 0, %s115
      %s132 = sphi 0, %s116
    $region4: #{conv_block_forward.3} parent=1 // loop_header_branch
      %16 = sbr.rel (%p14) target = $region8
    $region5: #{conv_block_forward.3} parent=1 // loop_body
      %s18 = ssub.s32 %s13, 1
      %s19 = ssub.s32 %s13, 2
      %s20 = sadd.s32 %s13, 1
      %s21 = ssub.s32 %s13, %s20
      %p22 = scmp.eq.s32.totalorder %s21, 0
      %s24 = sadd.s32 %s23, 1
      %s25 = scalar_select %p22, %s23, %s24
      %p28 = pneg %p22
      %p29 = scmp.eq.s32.totalorder %s13, 1
      %p30 = por %p28, %p29
      %p31 = scmp.ne.s32.totalorder %s23, %s26
      %p32 = scmp.eq.s32.totalorder %s13, 0
      %p33 = por %p31, %p32
      %p34 = scmp.ne.s32.totalorder %s23, %s26
      %p35 = scmp.eq.s32.totalorder %s18, 1
      %p36 = por %p34, %p35
      %p37 = scmp.ne.s32.totalorder %s26, %s27
      %p38 = scmp.eq.s32.totalorder %s18, 0
      %p39 = por %p37, %p38
      %p40 = scmp.ne.s32.totalorder %s26, %s27
      %p41 = scmp.eq.s32.totalorder %s19, 1
      %p42 = por %p40, %p41
      %p44 = scmp.ne.s32.totalorder %s27, %s43
      %p45 = scmp.eq.s32.totalorder %s19, 0
      %p46 = por %p44, %p45
      %s48 = sadd.s32 %s47, 1
      %p51 = scmp.eq.s32.totalorder %s13, 1
      %p52 = scmp.ne.s32.totalorder %s47, %s49
      %p53 = scmp.eq.s32.totalorder %s13, 0
      %p54 = por %p52, %p53
      %p55 = scmp.ne.s32.totalorder %s47, %s49
      %p56 = scmp.eq.s32.totalorder %s18, 1
      %p57 = por %p55, %p56
      %p58 = scmp.ne.s32.totalorder %s49, %s50
      %p59 = scmp.eq.s32.totalorder %s18, 0
      %p60 = por %p58, %p59
      %p61 = scmp.ne.s32.totalorder %s49, %s50
      %p62 = scmp.eq.s32.totalorder %s19, 1
      %p63 = por %p61, %p62
      %p65 = scmp.ne.s32.totalorder %s50, %s64
      %p66 = scmp.eq.s32.totalorder %s19, 0
      %p67 = por %p65, %p66
      %s69 = sadd.s32 %s68, 1
      %p72 = scmp.eq.s32.totalorder %s13, 1
      %p73 = scmp.ne.s32.totalorder %s68, %s70
      %p74 = scmp.eq.s32.totalorder %s13, 0
      %p75 = por %p73, %p74
      %p76 = scmp.ne.s32.totalorder %s68, %s70
      %p77 = scmp.eq.s32.totalorder %s18, 1
      %p78 = por %p76, %p77
      %p79 = scmp.ne.s32.totalorder %s70, %s71
      %p80 = scmp.eq.s32.totalorder %s18, 0
      %p81 = por %p79, %p80
      %p82 = scmp.ne.s32.totalorder %s70, %s71
      %p83 = scmp.eq.s32.totalorder %s19, 1
      %p84 = por %p82, %p83
      %p86 = scmp.ne.s32.totalorder %s71, %s85
      %p87 = scmp.eq.s32.totalorder %s19, 0
      %p88 = por %p86, %p87
      %s90 = sadd.s32 %s89, 1
      %p93 = scmp.eq.s32.totalorder %s13, 1
      %p94 = scmp.ne.s32.totalorder %s89, %s91
      %p95 = scmp.eq.s32.totalorder %s13, 0
      %p96 = por %p94, %p95
      %p97 = scmp.ne.s32.totalorder %s89, %s91
      %p98 = scmp.eq.s32.totalorder %s18, 1
      %p99 = por %p97, %p98
      %p100 = scmp.ne.s32.totalorder %s91, %s92
      %p101 = scmp.eq.s32.totalorder %s18, 0
      %p102 = por %p100, %p101
      %p103 = scmp.ne.s32.totalorder %s91, %s92
      %p104 = scmp.eq.s32.totalorder %s19, 1
      %p105 = por %p103, %p104
      %p107 = scmp.ne.s32.totalorder %s92, %s106
      %p108 = scmp.eq.s32.totalorder %s19, 0
      %p109 = por %p107, %p108
      %s110 = ssub.s32 %s13, %s20
      %p111 = scmp.eq.s32.totalorder %s110, 0
      %s113 = sadd.s32 %s112, 1
      %s114 = scalar_select %p111, %s112, %s113
      %p117 = pneg %p111
      %p118 = scmp.eq.s32.totalorder %s13, 1
      %p119 = por %p117, %p118
      %p120 = scmp.ne.s32.totalorder %s112, %s115
      %p121 = scmp.eq.s32.totalorder %s13, 0
      %p122 = por %p120, %p121
      %p123 = scmp.ne.s32.totalorder %s112, %s115
      %p124 = scmp.eq.s32.totalorder %s18, 1
      %p125 = por %p123, %p124
      %p126 = scmp.ne.s32.totalorder %s115, %s116
      %p127 = scmp.eq.s32.totalorder %s18, 0
      %p128 = por %p126, %p127
      %p129 = scmp.ne.s32.totalorder %s115, %s116
      %p130 = scmp.eq.s32.totalorder %s19, 1
      %p131 = por %p129, %p130
      %p133 = scmp.ne.s32.totalorder %s116, %s132
      %p134 = scmp.eq.s32.totalorder %s19, 0
      %p135 = por %p133, %p134
      %p136 = scmp.le.s32.totalorder 1, %s13
      %p137 = scmp.lt.s32.totalorder %s13, 3
      %p138 = pnand %p136, %p137
      %p139 = pneg %p138
      // Predicated region
      $region9: #{conv_block_forward.3} parent=5 // pred_check
        _
      $region10: #{conv_block_forward.3} parent=5 // pred_check_branch
        %141 = sbr.rel (%p138) target = $region12
      $region11: #{conv_block_forward.3} parent=5 // pred_region
        %s142 = ssub.s32 %s13, 1
        // Predicated region
        $region13: #{conv_block_forward.3} parent=11 // pred_check
          %p143 = pneg %p60
        $region14: #{conv_block_forward.3} parent=11 // pred_check_branch
          %145 = sbr.rel (%p143) target = $region16
        $region15: #{conv_block_forward.3} parent=11 // pred_region
          _
        $region16: #{conv_block_forward.3} parent=11 // pred_fallthru
          _
        // Predicated region
        $region17: #{conv_block_forward.3} parent=11 // pred_check
          %p146 = pneg %p81
        $region18: #{conv_block_forward.3} parent=11 // pred_check_branch
          %148 = sbr.rel (%p146) target = $region20
        $region19: #{conv_block_forward.3} parent=11 // pred_region
          _
        $region20: #{conv_block_forward.3} parent=11 // pred_fallthru
          _
        // Predicated region
        $region21: #{conv_block_forward.3} parent=11 // pred_check
          %p149 = pneg %p102
        $region22: #{conv_block_forward.3} parent=11 // pred_check_branch
          %151 = sbr.rel (%p149) target = $region24
        $region23: #{conv_block_forward.3} parent=11 // pred_region
          _
        $region24: #{conv_block_forward.3} parent=11 // pred_fallthru
          _
      $region12: #{conv_block_forward.3} parent=5 // pred_fallthru
        _
      %p152 = scmp.lt.s32.totalorder %s13, 2
      // Predicated region
      $region25: #{conv_block_forward.3} parent=5 // pred_check
        %p153 = pneg %p152
      $region26: #{conv_block_forward.3} parent=5 // pred_check_branch
        %155 = sbr.rel (%p153) target = $region28
      $region27: #{conv_block_forward.3} parent=5 // pred_region
        // Predicated region
        $region29: #{conv_block_forward.3} parent=27 // pred_check
          %p156 = pneg %p33
        $region30: #{conv_block_forward.3} parent=27 // pred_check_branch
          %158 = sbr.rel (%p156) target = $region32
        $region31: #{conv_block_forward.3} parent=27 // pred_region
          %s159 = smul.u32 256, %s13
          %p160 = scmp.lt.s32.totalorder %s159, 511
          %s161 = scalar_select %p160, %s159, 511
          %s162 = smul.addr %s161, 4
          %s163 = scalar_lea.vmem %s0, %s162
          %s164 = smul.u32 256, %s13
        $region32: #{conv_block_forward.3} parent=27 // pred_fallthru
          _
      $region28: #{conv_block_forward.3} parent=5 // pred_fallthru
        _
      %p165 = scmp.le.s32.totalorder 1, %s13
      %p166 = scmp.lt.s32.totalorder %s13, 3
      %p167 = pnand %p165, %p166
      %p168 = pneg %p167
      // Predicated region
      $region33: #{conv_block_forward.3} parent=5 // pred_check
        _
      $region34: #{conv_block_forward.3} parent=5 // pred_check_branch
        %170 = sbr.rel (%p167) target = $region36
      $region35: #{conv_block_forward.3} parent=5 // pred_region
        %s171 = ssub.s32 %s13, 1
        %s172 = smul.u32 256, %s18
        %p173 = scmp.lt.s32.totalorder %s172, 511
        %s174 = scalar_select %p173, %s172, 511
        %s175 = smul.addr %s174, 4
        %s176 = scalar_lea.vmem %s0, %s175
        %p177 = pneg %p39
        %p178 = pneg %p36
        %p179 = pneg %p60
        %p180 = pneg %p57
        %p181 = pneg %p81
        %p182 = pneg %p78
        %p183 = pneg %p102
        %p184 = pneg %p99
        %p185 = pneg %p128
        %p186 = pneg %p125
        %s187 = sand.u32 %s115, 1
        %s188 = scalar_lea.sflag [#allocation3], %s187
        %s189 = sand.u32 %s115, 1
        %s190 = smul.addr %s189, 1024
        %s191 = scalar_lea.vmem [#allocation2], %s190
        %s192 = smul.u32 256, %s18
        %p193 = scmp.lt.s32.totalorder %s192, 511
        %s194 = scalar_select %p193, %s192, 511
        %s195 = smul.addr %s194, 4
        %s196 = scalar_lea.vmem %s0, %s195
        %s197 = smul.u32 256, %s18
        %s198 = smul.u32 256, %s18
        %v200 = vld [vmem:[%s196] sm:$0xf]
        %v201 = vld [vmem:[%s196 + $0x4] sm:$0xf]
        %v202 = vld [vmem:[%s196 + $0x8] sm:$0xf]
        %v203 = vld [vmem:[%s196 + $0xc] sm:$0xf]
        %v204 = vld [vmem:[%s196 + $0x10] sm:$0xf]
        %v205 = vld [vmem:[%s196 + $0x14] sm:$0xf]
        %v206 = vld [vmem:[%s196 + $0x18] sm:$0xf]
        %v207 = vld [vmem:[%s196 + $0x1c] sm:$0xf]
        %v208 = vld [vmem:[%s196 + $0x20] sm:$0xf]
        %v209 = vld [vmem:[%s196 + $0x24] sm:$0xf]
        %v210 = vld [vmem:[%s196 + $0x28] sm:$0xf]
        %v211 = vld [vmem:[%s196 + $0x2c] sm:$0xf]
        %v212 = vld [vmem:[%s196 + $0x30] sm:$0xf]
        %v213 = vld [vmem:[%s196 + $0x34] sm:$0xf]
        %v214 = vld [vmem:[%s196 + $0x38] sm:$0xf]
        %v215 = vld [vmem:[%s196 + $0x3c] sm:$0xf]
        %v216 = vld [vmem:[%s196 + $0x40] sm:$0xf]
        %v217 = vld [vmem:[%s196 + $0x44] sm:$0xf]
        %v218 = vld [vmem:[%s196 + $0x48] sm:$0xf]
        %v219 = vld [vmem:[%s196 + $0x4c] sm:$0xf]
        %v220 = vld [vmem:[%s196 + $0x50] sm:$0xf]
        %v221 = vld [vmem:[%s196 + $0x54] sm:$0xf]
        %v222 = vld [vmem:[%s196 + $0x58] sm:$0xf]
        %v223 = vld [vmem:[%s196 + $0x5c] sm:$0xf]
        %v224 = vld [vmem:[%s196 + $0x60] sm:$0xf]
        %v225 = vld [vmem:[%s196 + $0x64] sm:$0xf]
        %v226 = vld [vmem:[%s196 + $0x68] sm:$0xf]
        %v227 = vld [vmem:[%s196 + $0x6c] sm:$0xf]
        %v228 = vld [vmem:[%s196 + $0x70] sm:$0xf]
        %v229 = vld [vmem:[%s196 + $0x74] sm:$0xf]
        %v230 = vld [vmem:[%s196 + $0x78] sm:$0xf]
        %v231 = vld [vmem:[%s196 + $0x7c] sm:$0xf]
        %v232 = vld [vmem:[%s196 + $0x80] sm:$0xf]
        %v233 = vld [vmem:[%s196 + $0x84] sm:$0xf]
        %v234 = vld [vmem:[%s196 + $0x88] sm:$0xf]
        %v235 = vld [vmem:[%s196 + $0x8c] sm:$0xf]
        %v236 = vld [vmem:[%s196 + $0x90] sm:$0xf]
        %v237 = vld [vmem:[%s196 + $0x94] sm:$0xf]
        %v238 = vld [vmem:[%s196 + $0x98] sm:$0xf]
        %v239 = vld [vmem:[%s196 + $0x9c] sm:$0xf]
        %v240 = vld [vmem:[%s196 + $0xa0] sm:$0xf]
        %v241 = vld [vmem:[%s196 + $0xa4] sm:$0xf]
        %v242 = vld [vmem:[%s196 + $0xa8] sm:$0xf]
        %v243 = vld [vmem:[%s196 + $0xac] sm:$0xf]
        %v244 = vld [vmem:[%s196 + $0xb0] sm:$0xf]
        %v245 = vld [vmem:[%s196 + $0xb4] sm:$0xf]
        %v246 = vld [vmem:[%s196 + $0xb8] sm:$0xf]
        %v247 = vld [vmem:[%s196 + $0xbc] sm:$0xf]
        %v248 = vld [vmem:[%s196 + $0xc0] sm:$0xf]
        %v249 = vld [vmem:[%s196 + $0xc4] sm:$0xf]
        %v250 = vld [vmem:[%s196 + $0xc8] sm:$0xf]
        %v251 = vld [vmem:[%s196 + $0xcc] sm:$0xf]
        %v252 = vld [vmem:[%s196 + $0xd0] sm:$0xf]
        %v253 = vld [vmem:[%s196 + $0xd4] sm:$0xf]
        %v254 = vld [vmem:[%s196 + $0xd8] sm:$0xf]
        %v255 = vld [vmem:[%s196 + $0xdc] sm:$0xf]
        %v256 = vld [vmem:[%s196 + $0xe0] sm:$0xf]
        %v257 = vld [vmem:[%s196 + $0xe4] sm:$0xf]
        %v258 = vld [vmem:[%s196 + $0xe8] sm:$0xf]
        %v259 = vld [vmem:[%s196 + $0xec] sm:$0xf]
        %v260 = vld [vmem:[%s196 + $0xf0] sm:$0xf]
        %v261 = vld [vmem:[%s196 + $0xf4] sm:$0xf]
        %v262 = vld [vmem:[%s196 + $0xf8] sm:$0xf]
        %v263 = vld [vmem:[%s196 + $0xfc] sm:$0xf]
        %v264 = vld [vmem:[%s196 + $0x100] sm:$0xf]
        %v265 = vld [vmem:[%s196 + $0x104] sm:$0xf]
        %v266 = vld [vmem:[%s196 + $0x108] sm:$0xf]
        %v267 = vld [vmem:[%s196 + $0x10c] sm:$0xf]
        %v268 = vld [vmem:[%s196 + $0x110] sm:$0xf]
        %v269 = vld [vmem:[%s196 + $0x114] sm:$0xf]
        %v270 = vld [vmem:[%s196 + $0x118] sm:$0xf]
        %v271 = vld [vmem:[%s196 + $0x11c] sm:$0xf]
        %v272 = vld [vmem:[%s196 + $0x120] sm:$0xf]
        %v273 = vld [vmem:[%s196 + $0x124] sm:$0xf]
        %v274 = vld [vmem:[%s196 + $0x128] sm:$0xf]
        %v275 = vld [vmem:[%s196 + $0x12c] sm:$0xf]
        %v276 = vld [vmem:[%s196 + $0x130] sm:$0xf]
        %v277 = vld [vmem:[%s196 + $0x134] sm:$0xf]
        %v278 = vld [vmem:[%s196 + $0x138] sm:$0xf]
        %v279 = vld [vmem:[%s196 + $0x13c] sm:$0xf]
        %v280 = vld [vmem:[%s196 + $0x140] sm:$0xf]
        %v281 = vld [vmem:[%s196 + $0x144] sm:$0xf]
        %v282 = vld [vmem:[%s196 + $0x148] sm:$0xf]
        %v283 = vld [vmem:[%s196 + $0x14c] sm:$0xf]
        %v284 = vld [vmem:[%s196 + $0x150] sm:$0xf]
        %v285 = vld [vmem:[%s196 + $0x154] sm:$0xf]
        %v286 = vld [vmem:[%s196 + $0x158] sm:$0xf]
        %v287 = vld [vmem:[%s196 + $0x15c] sm:$0xf]
        %v288 = vld [vmem:[%s196 + $0x160] sm:$0xf]
        %v289 = vld [vmem:[%s196 + $0x164] sm:$0xf]
        %v290 = vld [vmem:[%s196 + $0x168] sm:$0xf]
        %v291 = vld [vmem:[%s196 + $0x16c] sm:$0xf]
        %v292 = vld [vmem:[%s196 + $0x170] sm:$0xf]
        %v293 = vld [vmem:[%s196 + $0x174] sm:$0xf]
        %v294 = vld [vmem:[%s196 + $0x178] sm:$0xf]
        %v295 = vld [vmem:[%s196 + $0x17c] sm:$0xf]
        %v296 = vld [vmem:[%s196 + $0x180] sm:$0xf]
        %v297 = vld [vmem:[%s196 + $0x184] sm:$0xf]
        %v298 = vld [vmem:[%s196 + $0x188] sm:$0xf]
        %v299 = vld [vmem:[%s196 + $0x18c] sm:$0xf]
        %v300 = vld [vmem:[%s196 + $0x190] sm:$0xf]
        %v301 = vld [vmem:[%s196 + $0x194] sm:$0xf]
        %v302 = vld [vmem:[%s196 + $0x198] sm:$0xf]
        %v303 = vld [vmem:[%s196 + $0x19c] sm:$0xf]
        %v304 = vld [vmem:[%s196 + $0x1a0] sm:$0xf]
        %v305 = vld [vmem:[%s196 + $0x1a4] sm:$0xf]
        %v306 = vld [vmem:[%s196 + $0x1a8] sm:$0xf]
        %v307 = vld [vmem:[%s196 + $0x1ac] sm:$0xf]
        %v308 = vld [vmem:[%s196 + $0x1b0] sm:$0xf]
        %v309 = vld [vmem:[%s196 + $0x1b4] sm:$0xf]
        %v310 = vld [vmem:[%s196 + $0x1b8] sm:$0xf]
        %v311 = vld [vmem:[%s196 + $0x1bc] sm:$0xf]
        %v312 = vld [vmem:[%s196 + $0x1c0] sm:$0xf]
        %v313 = vld [vmem:[%s196 + $0x1c4] sm:$0xf]
        %v314 = vld [vmem:[%s196 + $0x1c8] sm:$0xf]
        %v315 = vld [vmem:[%s196 + $0x1cc] sm:$0xf]
        %v316 = vld [vmem:[%s196 + $0x1d0] sm:$0xf]
        %v317 = vld [vmem:[%s196 + $0x1d4] sm:$0xf]
        %v318 = vld [vmem:[%s196 + $0x1d8] sm:$0xf]
        %v319 = vld [vmem:[%s196 + $0x1dc] sm:$0xf]
        %v320 = vld [vmem:[%s196 + $0x1e0] sm:$0xf]
        %v321 = vld [vmem:[%s196 + $0x1e4] sm:$0xf]
        %v322 = vld [vmem:[%s196 + $0x1e8] sm:$0xf]
        %v323 = vld [vmem:[%s196 + $0x1ec] sm:$0xf]
        %v324 = vld [vmem:[%s196 + $0x1f0] sm:$0xf]
        %v325 = vld [vmem:[%s196 + $0x1f4] sm:$0xf]
        %v326 = vld [vmem:[%s196 + $0x1f8] sm:$0xf]
        %v327 = vld [vmem:[%s196 + $0x1fc] sm:$0xf]
        %v328 = vld [vmem:[%s196 + $0x200] sm:$0xf]
        %v329 = vld [vmem:[%s196 + $0x204] sm:$0xf]
        %v330 = vld [vmem:[%s196 + $0x208] sm:$0xf]
        %v331 = vld [vmem:[%s196 + $0x20c] sm:$0xf]
        %v332 = vld [vmem:[%s196 + $0x210] sm:$0xf]
        %v333 = vld [vmem:[%s196 + $0x214] sm:$0xf]
        %v334 = vld [vmem:[%s196 + $0x218] sm:$0xf]
        %v335 = vld [vmem:[%s196 + $0x21c] sm:$0xf]
        %v336 = vld [vmem:[%s196 + $0x220] sm:$0xf]
        %v337 = vld [vmem:[%s196 + $0x224] sm:$0xf]
        %v338 = vld [vmem:[%s196 + $0x228] sm:$0xf]
        %v339 = vld [vmem:[%s196 + $0x22c] sm:$0xf]
        %v340 = vld [vmem:[%s196 + $0x230] sm:$0xf]
        %v341 = vld [vmem:[%s196 + $0x234] sm:$0xf]
        %v342 = vld [vmem:[%s196 + $0x238] sm:$0xf]
        %v343 = vld [vmem:[%s196 + $0x23c] sm:$0xf]
        %v344 = vld [vmem:[%s196 + $0x240] sm:$0xf]
        %v345 = vld [vmem:[%s196 + $0x244] sm:$0xf]
        %v346 = vld [vmem:[%s196 + $0x248] sm:$0xf]
        %v347 = vld [vmem:[%s196 + $0x24c] sm:$0xf]
        %v348 = vld [vmem:[%s196 + $0x250] sm:$0xf]
        %v349 = vld [vmem:[%s196 + $0x254] sm:$0xf]
        %v350 = vld [vmem:[%s196 + $0x258] sm:$0xf]
        %v351 = vld [vmem:[%s196 + $0x25c] sm:$0xf]
        %v352 = vld [vmem:[%s196 + $0x260] sm:$0xf]
        %v353 = vld [vmem:[%s196 + $0x264] sm:$0xf]
        %v354 = vld [vmem:[%s196 + $0x268] sm:$0xf]
        %v355 = vld [vmem:[%s196 + $0x26c] sm:$0xf]
        %v356 = vld [vmem:[%s196 + $0x270] sm:$0xf]
        %v357 = vld [vmem:[%s196 + $0x274] sm:$0xf]
        %v358 = vld [vmem:[%s196 + $0x278] sm:$0xf]
        %v359 = vld [vmem:[%s196 + $0x27c] sm:$0xf]
        %v360 = vld [vmem:[%s196 + $0x280] sm:$0xf]
        %v361 = vld [vmem:[%s196 + $0x284] sm:$0xf]
        %v362 = vld [vmem:[%s196 + $0x288] sm:$0xf]
        %v363 = vld [vmem:[%s196 + $0x28c] sm:$0xf]
        %v364 = vld [vmem:[%s196 + $0x290] sm:$0xf]
        %v365 = vld [vmem:[%s196 + $0x294] sm:$0xf]
        %v366 = vld [vmem:[%s196 + $0x298] sm:$0xf]
        %v367 = vld [vmem:[%s196 + $0x29c] sm:$0xf]
        %v368 = vld [vmem:[%s196 + $0x2a0] sm:$0xf]
        %v369 = vld [vmem:[%s196 + $0x2a4] sm:$0xf]
        %v370 = vld [vmem:[%s196 + $0x2a8] sm:$0xf]
        %v371 = vld [vmem:[%s196 + $0x2ac] sm:$0xf]
        %v372 = vld [vmem:[%s196 + $0x2b0] sm:$0xf]
        %v373 = vld [vmem:[%s196 + $0x2b4] sm:$0xf]
        %v374 = vld [vmem:[%s196 + $0x2b8] sm:$0xf]
        %v375 = vld [vmem:[%s196 + $0x2bc] sm:$0xf]
        %v376 = vld [vmem:[%s196 + $0x2c0] sm:$0xf]
        %v377 = vld [vmem:[%s196 + $0x2c4] sm:$0xf]
        %v378 = vld [vmem:[%s196 + $0x2c8] sm:$0xf]
        %v379 = vld [vmem:[%s196 + $0x2cc] sm:$0xf]
        %v380 = vld [vmem:[%s196 + $0x2d0] sm:$0xf]
        %v381 = vld [vmem:[%s196 + $0x2d4] sm:$0xf]
        %v382 = vld [vmem:[%s196 + $0x2d8] sm:$0xf]
        %v383 = vld [vmem:[%s196 + $0x2dc] sm:$0xf]
        %v384 = vld [vmem:[%s196 + $0x2e0] sm:$0xf]
        %v385 = vld [vmem:[%s196 + $0x2e4] sm:$0xf]
        %v386 = vld [vmem:[%s196 + $0x2e8] sm:$0xf]
        %v387 = vld [vmem:[%s196 + $0x2ec] sm:$0xf]
        %v388 = vld [vmem:[%s196 + $0x2f0] sm:$0xf]
        %v389 = vld [vmem:[%s196 + $0x2f4] sm:$0xf]
        %v390 = vld [vmem:[%s196 + $0x2f8] sm:$0xf]
        %v391 = vld [vmem:[%s196 + $0x2fc] sm:$0xf]
        %v392 = vld [vmem:[%s196 + $0x300] sm:$0xf]
        %v393 = vld [vmem:[%s196 + $0x304] sm:$0xf]
        %v394 = vld [vmem:[%s196 + $0x308] sm:$0xf]
        %v395 = vld [vmem:[%s196 + $0x30c] sm:$0xf]
        %v396 = vld [vmem:[%s196 + $0x310] sm:$0xf]
        %v397 = vld [vmem:[%s196 + $0x314] sm:$0xf]
        %v398 = vld [vmem:[%s196 + $0x318] sm:$0xf]
        %v399 = vld [vmem:[%s196 + $0x31c] sm:$0xf]
        %v400 = vld [vmem:[%s196 + $0x320] sm:$0xf]
        %v401 = vld [vmem:[%s196 + $0x324] sm:$0xf]
        %v402 = vld [vmem:[%s196 + $0x328] sm:$0xf]
        %v403 = vld [vmem:[%s196 + $0x32c] sm:$0xf]
        %v404 = vld [vmem:[%s196 + $0x330] sm:$0xf]
        %v405 = vld [vmem:[%s196 + $0x334] sm:$0xf]
        %v406 = vld [vmem:[%s196 + $0x338] sm:$0xf]
        %v407 = vld [vmem:[%s196 + $0x33c] sm:$0xf]
        %v408 = vld [vmem:[%s196 + $0x340] sm:$0xf]
        %v409 = vld [vmem:[%s196 + $0x344] sm:$0xf]
        %v410 = vld [vmem:[%s196 + $0x348] sm:$0xf]
        %v411 = vld [vmem:[%s196 + $0x34c] sm:$0xf]
        %v412 = vld [vmem:[%s196 + $0x350] sm:$0xf]
        %v413 = vld [vmem:[%s196 + $0x354] sm:$0xf]
        %v414 = vld [vmem:[%s196 + $0x358] sm:$0xf]
        %v415 = vld [vmem:[%s196 + $0x35c] sm:$0xf]
        %v416 = vld [vmem:[%s196 + $0x360] sm:$0xf]
        %v417 = vld [vmem:[%s196 + $0x364] sm:$0xf]
        %v418 = vld [vmem:[%s196 + $0x368] sm:$0xf]
        %v419 = vld [vmem:[%s196 + $0x36c] sm:$0xf]
        %v420 = vld [vmem:[%s196 + $0x370] sm:$0xf]
        %v421 = vld [vmem:[%s196 + $0x374] sm:$0xf]
        %v422 = vld [vmem:[%s196 + $0x378] sm:$0xf]
        %v423 = vld [vmem:[%s196 + $0x37c] sm:$0xf]
        %v424 = vld [vmem:[%s196 + $0x380] sm:$0xf]
        %v425 = vld [vmem:[%s196 + $0x384] sm:$0xf]
        %v426 = vld [vmem:[%s196 + $0x388] sm:$0xf]
        %v427 = vld [vmem:[%s196 + $0x38c] sm:$0xf]
        %v428 = vld [vmem:[%s196 + $0x390] sm:$0xf]
        %v429 = vld [vmem:[%s196 + $0x394] sm:$0xf]
        %v430 = vld [vmem:[%s196 + $0x398] sm:$0xf]
        %v431 = vld [vmem:[%s196 + $0x39c] sm:$0xf]
        %v432 = vld [vmem:[%s196 + $0x3a0] sm:$0xf]
        %v433 = vld [vmem:[%s196 + $0x3a4] sm:$0xf]
        %v434 = vld [vmem:[%s196 + $0x3a8] sm:$0xf]
        %v435 = vld [vmem:[%s196 + $0x3ac] sm:$0xf]
        %v436 = vld [vmem:[%s196 + $0x3b0] sm:$0xf]
        %v437 = vld [vmem:[%s196 + $0x3b4] sm:$0xf]
        %v438 = vld [vmem:[%s196 + $0x3b8] sm:$0xf]
        %v439 = vld [vmem:[%s196 + $0x3bc] sm:$0xf]
        %v440 = vld [vmem:[%s196 + $0x3c0] sm:$0xf]
        %v441 = vld [vmem:[%s196 + $0x3c4] sm:$0xf]
        %v442 = vld [vmem:[%s196 + $0x3c8] sm:$0xf]
        %v443 = vld [vmem:[%s196 + $0x3cc] sm:$0xf]
        %v444 = vld [vmem:[%s196 + $0x3d0] sm:$0xf]
        %v445 = vld [vmem:[%s196 + $0x3d4] sm:$0xf]
        %v446 = vld [vmem:[%s196 + $0x3d8] sm:$0xf]
        %v447 = vld [vmem:[%s196 + $0x3dc] sm:$0xf]
        %v448 = vld [vmem:[%s196 + $0x3e0] sm:$0xf]
        %v449 = vld [vmem:[%s196 + $0x3e4] sm:$0xf]
        %v450 = vld [vmem:[%s196 + $0x3e8] sm:$0xf]
        %v451 = vld [vmem:[%s196 + $0x3ec] sm:$0xf]
        %v452 = vld [vmem:[%s196 + $0x3f0] sm:$0xf]
        %v453 = vld [vmem:[%s196 + $0x3f4] sm:$0xf]
        %v454 = vld [vmem:[%s196 + $0x3f8] sm:$0xf]
        %v455 = vld [vmem:[%s196 + $0x3fc] sm:$0xf]
        %v456 = vld [vmem:[%s1] sm:$0xf]
        %v457 = vld [vmem:[%s1 + $0x4] sm:$0xf]
        %v458 = vld [vmem:[%s1 + $0x8] sm:$0xf]
        %v459 = vld [vmem:[%s1 + $0xc] sm:$0xf]
        %v460 = vld [vmem:[%s1 + $0x10] sm:$0xf]
        %v461 = vld [vmem:[%s1 + $0x14] sm:$0xf]
        %v462 = vld [vmem:[%s1 + $0x18] sm:$0xf]
        %v463 = vld [vmem:[%s1 + $0x1c] sm:$0xf]
        %v464 = vld [vmem:[%s1 + $0x20] sm:$0xf]
        %v465 = vld [vmem:[%s1 + $0x24] sm:$0xf]
        %v466 = vld [vmem:[%s1 + $0x28] sm:$0xf]
        %v467 = vld [vmem:[%s1 + $0x2c] sm:$0xf]
        %v468 = vld [vmem:[%s1 + $0x30] sm:$0xf]
        %v469 = vld [vmem:[%s1 + $0x34] sm:$0xf]
        %v470 = vld [vmem:[%s1 + $0x38] sm:$0xf]
        %v471 = vld [vmem:[%s1 + $0x3c] sm:$0xf]
        %v728 = vunpack.c.l.b16 %v200
        %v729 = vunpack.c.l.b16 %v201
        %v730 = vunpack.c.l.b16 %v202
        %v731 = vunpack.c.l.b16 %v203
        %v732 = vunpack.c.l.b16 %v204
        %v733 = vunpack.c.l.b16 %v205
        %v734 = vunpack.c.l.b16 %v206
        %v735 = vunpack.c.l.b16 %v207
        %v736 = vunpack.c.l.b16 %v208
        %v737 = vunpack.c.l.b16 %v209
        %v738 = vunpack.c.l.b16 %v210
        %v739 = vunpack.c.l.b16 %v211
        %v740 = vunpack.c.l.b16 %v212
        %v741 = vunpack.c.l.b16 %v213
        %v742 = vunpack.c.l.b16 %v214
        %v743 = vunpack.c.l.b16 %v215
        %v744 = vunpack.c.l.b16 %v216
        %v745 = vunpack.c.l.b16 %v217
        %v746 = vunpack.c.l.b16 %v218
        %v747 = vunpack.c.l.b16 %v219
        %v748 = vunpack.c.l.b16 %v220
        %v749 = vunpack.c.l.b16 %v221
        %v750 = vunpack.c.l.b16 %v222
        %v751 = vunpack.c.l.b16 %v223
        %v752 = vunpack.c.l.b16 %v224
        %v753 = vunpack.c.l.b16 %v225
        %v754 = vunpack.c.l.b16 %v226
        %v755 = vunpack.c.l.b16 %v227
        %v756 = vunpack.c.l.b16 %v228
        %v757 = vunpack.c.l.b16 %v229
        %v758 = vunpack.c.l.b16 %v230
        %v759 = vunpack.c.l.b16 %v231
        %v760 = vunpack.c.l.b16 %v232
        %v761 = vunpack.c.l.b16 %v233
        %v762 = vunpack.c.l.b16 %v234
        %v763 = vunpack.c.l.b16 %v235
        %v764 = vunpack.c.l.b16 %v236
        %v765 = vunpack.c.l.b16 %v237
        %v766 = vunpack.c.l.b16 %v238
        %v767 = vunpack.c.l.b16 %v239
        %v768 = vunpack.c.l.b16 %v240
        %v769 = vunpack.c.l.b16 %v241
        %v770 = vunpack.c.l.b16 %v242
        %v771 = vunpack.c.l.b16 %v243
        %v772 = vunpack.c.l.b16 %v244
        %v773 = vunpack.c.l.b16 %v245
        %v774 = vunpack.c.l.b16 %v246
        %v775 = vunpack.c.l.b16 %v247
        %v776 = vunpack.c.l.b16 %v248
        %v777 = vunpack.c.l.b16 %v249
        %v778 = vunpack.c.l.b16 %v250
        %v779 = vunpack.c.l.b16 %v251
        %v780 = vunpack.c.l.b16 %v252
        %v781 = vunpack.c.l.b16 %v253
        %v782 = vunpack.c.l.b16 %v254
        %v783 = vunpack.c.l.b16 %v255
        %v784 = vunpack.c.l.b16 %v256
        %v785 = vunpack.c.l.b16 %v257
        %v786 = vunpack.c.l.b16 %v258
        %v787 = vunpack.c.l.b16 %v259
        %v788 = vunpack.c.l.b16 %v260
        %v789 = vunpack.c.l.b16 %v261
        %v790 = vunpack.c.l.b16 %v262
        %v791 = vunpack.c.l.b16 %v263
        %v792 = vunpack.c.l.b16 %v264
        %v793 = vunpack.c.l.b16 %v265
        %v794 = vunpack.c.l.b16 %v266
        %v795 = vunpack.c.l.b16 %v267
        %v796 = vunpack.c.l.b16 %v268
        %v797 = vunpack.c.l.b16 %v269
        %v798 = vunpack.c.l.b16 %v270
        %v799 = vunpack.c.l.b16 %v271
        %v800 = vunpack.c.l.b16 %v272
        %v801 = vunpack.c.l.b16 %v273
        %v802 = vunpack.c.l.b16 %v274
        %v803 = vunpack.c.l.b16 %v275
        %v804 = vunpack.c.l.b16 %v276
        %v805 = vunpack.c.l.b16 %v277
        %v806 = vunpack.c.l.b16 %v278
        %v807 = vunpack.c.l.b16 %v279
        %v808 = vunpack.c.l.b16 %v280
        %v809 = vunpack.c.l.b16 %v281
        %v810 = vunpack.c.l.b16 %v282
        %v811 = vunpack.c.l.b16 %v283
        %v812 = vunpack.c.l.b16 %v284
        %v813 = vunpack.c.l.b16 %v285
        %v814 = vunpack.c.l.b16 %v286
        %v815 = vunpack.c.l.b16 %v287
        %v816 = vunpack.c.l.b16 %v288
        %v817 = vunpack.c.l.b16 %v289
        %v818 = vunpack.c.l.b16 %v290
        %v819 = vunpack.c.l.b16 %v291
        %v820 = vunpack.c.l.b16 %v292
        %v821 = vunpack.c.l.b16 %v293
        %v822 = vunpack.c.l.b16 %v294
        %v823 = vunpack.c.l.b16 %v295
        %v824 = vunpack.c.l.b16 %v296
        %v825 = vunpack.c.l.b16 %v297
        %v826 = vunpack.c.l.b16 %v298
        %v827 = vunpack.c.l.b16 %v299
        %v828 = vunpack.c.l.b16 %v300
        %v829 = vunpack.c.l.b16 %v301
        %v830 = vunpack.c.l.b16 %v302
        %v831 = vunpack.c.l.b16 %v303
        %v832 = vunpack.c.l.b16 %v304
        %v833 = vunpack.c.l.b16 %v305
        %v834 = vunpack.c.l.b16 %v306
        %v835 = vunpack.c.l.b16 %v307
        %v836 = vunpack.c.l.b16 %v308
        %v837 = vunpack.c.l.b16 %v309
        %v838 = vunpack.c.l.b16 %v310
        %v839 = vunpack.c.l.b16 %v311
        %v840 = vunpack.c.l.b16 %v312
        %v841 = vunpack.c.l.b16 %v313
        %v842 = vunpack.c.l.b16 %v314
        %v843 = vunpack.c.l.b16 %v315
        %v844 = vunpack.c.l.b16 %v316
        %v845 = vunpack.c.l.b16 %v317
        %v846 = vunpack.c.l.b16 %v318
        %v847 = vunpack.c.l.b16 %v319
        %v848 = vunpack.c.l.b16 %v320
        %v849 = vunpack.c.l.b16 %v321
        %v850 = vunpack.c.l.b16 %v322
        %v851 = vunpack.c.l.b16 %v323
        %v852 = vunpack.c.l.b16 %v324
        %v853 = vunpack.c.l.b16 %v325
        %v854 = vunpack.c.l.b16 %v326
        %v855 = vunpack.c.l.b16 %v327
        %v856 = vunpack.c.l.b16 %v328
        %v857 = vunpack.c.l.b16 %v329
        %v858 = vunpack.c.l.b16 %v330
        %v859 = vunpack.c.l.b16 %v331
        %v860 = vunpack.c.l.b16 %v332
        %v861 = vunpack.c.l.b16 %v333
        %v862 = vunpack.c.l.b16 %v334
        %v863 = vunpack.c.l.b16 %v335
        %v864 = vunpack.c.l.b16 %v336
        %v865 = vunpack.c.l.b16 %v337
        %v866 = vunpack.c.l.b16 %v338
        %v867 = vunpack.c.l.b16 %v339
        %v868 = vunpack.c.l.b16 %v340
        %v869 = vunpack.c.l.b16 %v341
        %v870 = vunpack.c.l.b16 %v342
        %v871 = vunpack.c.l.b16 %v343
        %v872 = vunpack.c.l.b16 %v344
        %v873 = vunpack.c.l.b16 %v345
        %v874 = vunpack.c.l.b16 %v346
        %v875 = vunpack.c.l.b16 %v347
        %v876 = vunpack.c.l.b16 %v348
        %v877 = vunpack.c.l.b16 %v349
        %v878 = vunpack.c.l.b16 %v350
        %v879 = vunpack.c.l.b16 %v351
        %v880 = vunpack.c.l.b16 %v352
        %v881 = vunpack.c.l.b16 %v353
        %v882 = vunpack.c.l.b16 %v354
        %v883 = vunpack.c.l.b16 %v355
        %v884 = vunpack.c.l.b16 %v356
        %v885 = vunpack.c.l.b16 %v357
        %v886 = vunpack.c.l.b16 %v358
        %v887 = vunpack.c.l.b16 %v359
        %v888 = vunpack.c.l.b16 %v360
        %v889 = vunpack.c.l.b16 %v361
        %v890 = vunpack.c.l.b16 %v362
        %v891 = vunpack.c.l.b16 %v363
        %v892 = vunpack.c.l.b16 %v364
        %v893 = vunpack.c.l.b16 %v365
        %v894 = vunpack.c.l.b16 %v366
        %v895 = vunpack.c.l.b16 %v367
        %v896 = vunpack.c.l.b16 %v368
        %v897 = vunpack.c.l.b16 %v369
        %v898 = vunpack.c.l.b16 %v370
        %v899 = vunpack.c.l.b16 %v371
        %v900 = vunpack.c.l.b16 %v372
        %v901 = vunpack.c.l.b16 %v373
        %v902 = vunpack.c.l.b16 %v374
        %v903 = vunpack.c.l.b16 %v375
        %v904 = vunpack.c.l.b16 %v376
        %v905 = vunpack.c.l.b16 %v377
        %v906 = vunpack.c.l.b16 %v378
        %v907 = vunpack.c.l.b16 %v379
        %v908 = vunpack.c.l.b16 %v380
        %v909 = vunpack.c.l.b16 %v381
        %v910 = vunpack.c.l.b16 %v382
        %v911 = vunpack.c.l.b16 %v383
        %v912 = vunpack.c.l.b16 %v384
        %v913 = vunpack.c.l.b16 %v385
        %v914 = vunpack.c.l.b16 %v386
        %v915 = vunpack.c.l.b16 %v387
        %v916 = vunpack.c.l.b16 %v388
        %v917 = vunpack.c.l.b16 %v389
        %v918 = vunpack.c.l.b16 %v390
        %v919 = vunpack.c.l.b16 %v391
        %v920 = vunpack.c.l.b16 %v392
        %v921 = vunpack.c.l.b16 %v393
        %v922 = vunpack.c.l.b16 %v394
        %v923 = vunpack.c.l.b16 %v395
        %v924 = vunpack.c.l.b16 %v396
        %v925 = vunpack.c.l.b16 %v397
        %v926 = vunpack.c.l.b16 %v398
        %v927 = vunpack.c.l.b16 %v399
        %v928 = vunpack.c.l.b16 %v400
        %v929 = vunpack.c.l.b16 %v401
        %v930 = vunpack.c.l.b16 %v402
        %v931 = vunpack.c.l.b16 %v403
        %v932 = vunpack.c.l.b16 %v404
        %v933 = vunpack.c.l.b16 %v405
        %v934 = vunpack.c.l.b16 %v406
        %v935 = vunpack.c.l.b16 %v407
        %v936 = vunpack.c.l.b16 %v408
        %v937 = vunpack.c.l.b16 %v409
        %v938 = vunpack.c.l.b16 %v410
        %v939 = vunpack.c.l.b16 %v411
        %v940 = vunpack.c.l.b16 %v412
        %v941 = vunpack.c.l.b16 %v413
        %v942 = vunpack.c.l.b16 %v414
        %v943 = vunpack.c.l.b16 %v415
        %v944 = vunpack.c.l.b16 %v416
        %v945 = vunpack.c.l.b16 %v417
        %v946 = vunpack.c.l.b16 %v418
        %v947 = vunpack.c.l.b16 %v419
        %v948 = vunpack.c.l.b16 %v420
        %v949 = vunpack.c.l.b16 %v421
        %v950 = vunpack.c.l.b16 %v422
        %v951 = vunpack.c.l.b16 %v423
        %v952 = vunpack.c.l.b16 %v424
        %v953 = vunpack.c.l.b16 %v425
        %v954 = vunpack.c.l.b16 %v426
        %v955 = vunpack.c.l.b16 %v427
        %v956 = vunpack.c.l.b16 %v428
        %v957 = vunpack.c.l.b16 %v429
        %v958 = vunpack.c.l.b16 %v430
        %v959 = vunpack.c.l.b16 %v431
        %v960 = vunpack.c.l.b16 %v432
        %v961 = vunpack.c.l.b16 %v433
        %v962 = vunpack.c.l.b16 %v434
        %v963 = vunpack.c.l.b16 %v435
        %v964 = vunpack.c.l.b16 %v436
        %v965 = vunpack.c.l.b16 %v437
        %v966 = vunpack.c.l.b16 %v438
        %v967 = vunpack.c.l.b16 %v439
        %v968 = vunpack.c.l.b16 %v440
        %v969 = vunpack.c.l.b16 %v441
        %v970 = vunpack.c.l.b16 %v442
        %v971 = vunpack.c.l.b16 %v443
        %v972 = vunpack.c.l.b16 %v444
        %v973 = vunpack.c.l.b16 %v445
        %v974 = vunpack.c.l.b16 %v446
        %v975 = vunpack.c.l.b16 %v447
        %v976 = vunpack.c.l.b16 %v448
        %v977 = vunpack.c.l.b16 %v449
        %v978 = vunpack.c.l.b16 %v450
        %v979 = vunpack.c.l.b16 %v451
        %v980 = vunpack.c.l.b16 %v452
        %v981 = vunpack.c.l.b16 %v453
        %v982 = vunpack.c.l.b16 %v454
        %v983 = vunpack.c.l.b16 %v455
        %v984 = vpack.c.b16 %v729, %v728
        %v985 = vpack.c.b16 %v731, %v730
        %v986 = vpack.c.b16 %v733, %v732
        %v987 = vpack.c.b16 %v735, %v734
        %v988 = vpack.c.b16 %v737, %v736
        %v989 = vpack.c.b16 %v739, %v738
        %v990 = vpack.c.b16 %v741, %v740
        %v991 = vpack.c.b16 %v743, %v742
        %v992 = vpack.c.b16 %v745, %v744
        %v993 = vpack.c.b16 %v747, %v746
        %v994 = vpack.c.b16 %v749, %v748
        %v995 = vpack.c.b16 %v751, %v750
        %v996 = vpack.c.b16 %v753, %v752
        %v997 = vpack.c.b16 %v755, %v754
        %v998 = vpack.c.b16 %v757, %v756
        %v999 = vpack.c.b16 %v759, %v758
        %v1000 = vpack.c.b16 %v761, %v760
        %v1001 = vpack.c.b16 %v763, %v762
        %v1002 = vpack.c.b16 %v765, %v764
        %v1003 = vpack.c.b16 %v767, %v766
        %v1004 = vpack.c.b16 %v769, %v768
        %v1005 = vpack.c.b16 %v771, %v770
        %v1006 = vpack.c.b16 %v773, %v772
        %v1007 = vpack.c.b16 %v775, %v774
        %v1008 = vpack.c.b16 %v777, %v776
        %v1009 = vpack.c.b16 %v779, %v778
        %v1010 = vpack.c.b16 %v781, %v780
        %v1011 = vpack.c.b16 %v783, %v782
        %v1012 = vpack.c.b16 %v785, %v784
        %v1013 = vpack.c.b16 %v787, %v786
        %v1014 = vpack.c.b16 %v789, %v788
        %v1015 = vpack.c.b16 %v791, %v790
        %v1016 = vpack.c.b16 %v793, %v792
        %v1017 = vpack.c.b16 %v795, %v794
        %v1018 = vpack.c.b16 %v797, %v796
        %v1019 = vpack.c.b16 %v799, %v798
        %v1020 = vpack.c.b16 %v801, %v800
        %v1021 = vpack.c.b16 %v803, %v802
        %v1022 = vpack.c.b16 %v805, %v804
        %v1023 = vpack.c.b16 %v807, %v806
        %v1024 = vpack.c.b16 %v809, %v808
        %v1025 = vpack.c.b16 %v811, %v810
        %v1026 = vpack.c.b16 %v813, %v812
        %v1027 = vpack.c.b16 %v815, %v814
        %v1028 = vpack.c.b16 %v817, %v816
        %v1029 = vpack.c.b16 %v819, %v818
        %v1030 = vpack.c.b16 %v821, %v820
        %v1031 = vpack.c.b16 %v823, %v822
        %v1032 = vpack.c.b16 %v825, %v824
        %v1033 = vpack.c.b16 %v827, %v826
        %v1034 = vpack.c.b16 %v829, %v828
        %v1035 = vpack.c.b16 %v831, %v830
        %v1036 = vpack.c.b16 %v833, %v832
        %v1037 = vpack.c.b16 %v835, %v834
        %v1038 = vpack.c.b16 %v837, %v836
        %v1039 = vpack.c.b16 %v839, %v838
        %v1040 = vpack.c.b16 %v841, %v840
        %v1041 = vpack.c.b16 %v843, %v842
        %v1042 = vpack.c.b16 %v845, %v844
        %v1043 = vpack.c.b16 %v847, %v846
        %v1044 = vpack.c.b16 %v849, %v848
        %v1045 = vpack.c.b16 %v851, %v850
        %v1046 = vpack.c.b16 %v853, %v852
        %v1047 = vpack.c.b16 %v855, %v854
        %v1048 = vpack.c.b16 %v857, %v856
        %v1049 = vpack.c.b16 %v859, %v858
        %v1050 = vpack.c.b16 %v861, %v860
        %v1051 = vpack.c.b16 %v863, %v862
        %v1052 = vpack.c.b16 %v865, %v864
        %v1053 = vpack.c.b16 %v867, %v866
        %v1054 = vpack.c.b16 %v869, %v868
        %v1055 = vpack.c.b16 %v871, %v870
        %v1056 = vpack.c.b16 %v873, %v872
        %v1057 = vpack.c.b16 %v875, %v874
        %v1058 = vpack.c.b16 %v877, %v876
        %v1059 = vpack.c.b16 %v879, %v878
        %v1060 = vpack.c.b16 %v881, %v880
        %v1061 = vpack.c.b16 %v883, %v882
        %v1062 = vpack.c.b16 %v885, %v884
        %v1063 = vpack.c.b16 %v887, %v886
        %v1064 = vpack.c.b16 %v889, %v888
        %v1065 = vpack.c.b16 %v891, %v890
        %v1066 = vpack.c.b16 %v893, %v892
        %v1067 = vpack.c.b16 %v895, %v894
        %v1068 = vpack.c.b16 %v897, %v896
        %v1069 = vpack.c.b16 %v899, %v898
        %v1070 = vpack.c.b16 %v901, %v900
        %v1071 = vpack.c.b16 %v903, %v902
        %v1072 = vpack.c.b16 %v905, %v904
        %v1073 = vpack.c.b16 %v907, %v906
        %v1074 = vpack.c.b16 %v909, %v908
        %v1075 = vpack.c.b16 %v911, %v910
        %v1076 = vpack.c.b16 %v913, %v912
        %v1077 = vpack.c.b16 %v915, %v914
        %v1078 = vpack.c.b16 %v917, %v916
        %v1079 = vpack.c.b16 %v919, %v918
        %v1080 = vpack.c.b16 %v921, %v920
        %v1081 = vpack.c.b16 %v923, %v922
        %v1082 = vpack.c.b16 %v925, %v924
        %v1083 = vpack.c.b16 %v927, %v926
        %v1084 = vpack.c.b16 %v929, %v928
        %v1085 = vpack.c.b16 %v931, %v930
        %v1086 = vpack.c.b16 %v933, %v932
        %v1087 = vpack.c.b16 %v935, %v934
        %v1088 = vpack.c.b16 %v937, %v936
        %v1089 = vpack.c.b16 %v939, %v938
        %v1090 = vpack.c.b16 %v941, %v940
        %v1091 = vpack.c.b16 %v943, %v942
        %v1092 = vpack.c.b16 %v945, %v944
        %v1093 = vpack.c.b16 %v947, %v946
        %v1094 = vpack.c.b16 %v949, %v948
        %v1095 = vpack.c.b16 %v951, %v950
        %v1096 = vpack.c.b16 %v953, %v952
        %v1097 = vpack.c.b16 %v955, %v954
        %v1098 = vpack.c.b16 %v957, %v956
        %v1099 = vpack.c.b16 %v959, %v958
        %v1100 = vpack.c.b16 %v961, %v960
        %v1101 = vpack.c.b16 %v963, %v962
        %v1102 = vpack.c.b16 %v965, %v964
        %v1103 = vpack.c.b16 %v967, %v966
        %v1104 = vpack.c.b16 %v969, %v968
        %v1105 = vpack.c.b16 %v971, %v970
        %v1106 = vpack.c.b16 %v973, %v972
        %v1107 = vpack.c.b16 %v975, %v974
        %v1108 = vpack.c.b16 %v977, %v976
        %v1109 = vpack.c.b16 %v979, %v978
        %v1110 = vpack.c.b16 %v981, %v980
        %v1111 = vpack.c.b16 %v983, %v982
        %v1256 = vunpack.c.l.b16 %v456
        %v1257 = vunpack.c.l.b16 %v457
        %v1258 = vunpack.c.l.b16 %v458
        %v1259 = vunpack.c.l.b16 %v459
        %v1260 = vunpack.c.l.b16 %v460
        %v1261 = vunpack.c.l.b16 %v461
        %v1262 = vunpack.c.l.b16 %v462
        %v1263 = vunpack.c.l.b16 %v463
        %v1264 = vunpack.c.l.b16 %v464
        %v1265 = vunpack.c.l.b16 %v465
        %v1266 = vunpack.c.l.b16 %v466
        %v1267 = vunpack.c.l.b16 %v467
        %v1268 = vunpack.c.l.b16 %v468
        %v1269 = vunpack.c.l.b16 %v469
        %v1270 = vunpack.c.l.b16 %v470
        %v1271 = vunpack.c.l.b16 %v471
        %v1272 = vpack.c.b16 %v1257, %v1256
        %v1273 = vpack.c.b16 %v1259, %v1258
        %v1274 = vpack.c.b16 %v1261, %v1260
        %v1275 = vpack.c.b16 %v1263, %v1262
        %v1276 = vpack.c.b16 %v1265, %v1264
        %v1277 = vpack.c.b16 %v1267, %v1266
        %v1278 = vpack.c.b16 %v1269, %v1268
        %v1279 = vpack.c.b16 %v1271, %v1270
        %1288 = vmatprep.subr.bf16.mxu0 0
        %1289 = vmatpush1.bf16.msra.mxu0 %v1279
        %1290 = vmatprep.subr.bf16.mxu0 0
        %1291 = vmatpush1.bf16.msra.mxu0 %v1278
        %1292 = vmatprep.subr.bf16.mxu0 0
        %1293 = vmatpush1.bf16.msra.mxu0 %v1277
        %1294 = vmatprep.subr.bf16.mxu0 0
        %1295 = vmatpush1.bf16.msra.mxu0 %v1276
        %1296 = vmatprep.subr.bf16.mxu0 0
        %1297 = vmatpush1.bf16.msra.mxu0 %v1275
        %1298 = vmatprep.subr.bf16.mxu0 0
        %1299 = vmatpush1.bf16.msra.mxu0 %v1274
        %1300 = vmatprep.subr.bf16.mxu0 0
        %1301 = vmatpush1.bf16.msra.mxu0 %v1273
        %1302 = vmatprep.subr.bf16.mxu0 0
        %1303 = vmatpush1.bf16.msra.mxu0 %v1272
        %1304 = vmatprep.subr.bf16.mxu0 0
        %1305 = vmatpush2.bf16.msra.mxu0 0
        %1306 = vmatprep.subr.bf16.mxu0 0
        %1307 = vmatpush2.bf16.msra.mxu0 0
        %1308 = vmatprep.subr.bf16.mxu0 0
        %1309 = vmatpush2.bf16.msra.mxu0 0
        %1310 = vmatprep.subr.bf16.mxu0 0
        %1311 = vmatpush2.bf16.msra.mxu0 0
        %1312 = vmatprep.subr.bf16.mxu0 0
        %1313 = vmatpush2.bf16.msra.mxu0 0
        %1314 = vmatprep.subr.bf16.mxu0 0
        %1315 = vmatpush2.bf16.msra.mxu0 0
        %1316 = vmatprep.subr.bf16.mxu0 0
        %1317 = vmatpush2.bf16.msra.mxu0 0
        %1318 = vmatprep.subr.bf16.mxu0 0
        %1319 = vmatpush2.bf16.msra.mxu0 0
        %1320 = vmatprep.mubr.bf16.mxu0 0
        %1321 = vmatmul.mubr.bf16.gmra.mxu0 %v984
        %v1322 = vpop.f32.mrf.mxu0
        %v1323 = vadd.f32 0.0, %v1322
        %v1324 = vpop.f32.mrf.mxu0
        %v1325 = vpop.f32.mrf.mxu0
        %v1326 = vadd.f32 0.0, %v1325
        %v1327 = vpop.f32.mrf.mxu0
        %1328 = vmatprep.mubr.bf16.mxu0 0
        %1329 = vmatmul.mubr.bf16.gmra.mxu0 %v985
        %v1330 = vpop.f32.mrf.mxu0
        %v1331 = vadd.f32 0.0, %v1330
        %v1332 = vpop.f32.mrf.mxu0
        %v1333 = vpop.f32.mrf.mxu0
        %v1334 = vadd.f32 0.0, %v1333
        %v1335 = vpop.f32.mrf.mxu0
        %1336 = vmatprep.mubr.bf16.mxu0 0
        %1337 = vmatmul.mubr.bf16.gmra.mxu0 %v986
        %v1338 = vpop.f32.mrf.mxu0
        %v1339 = vadd.f32 0.0, %v1338
        %v1340 = vpop.f32.mrf.mxu0
        %v1341 = vpop.f32.mrf.mxu0
        %v1342 = vadd.f32 0.0, %v1341
        %v1343 = vpop.f32.mrf.mxu0
        %1344 = vmatprep.mubr.bf16.mxu0 0
        %1345 = vmatmul.mubr.bf16.gmra.mxu0 %v987
        %v1346 = vpop.f32.mrf.mxu0
        %v1347 = vadd.f32 0.0, %v1346
        %v1348 = vpop.f32.mrf.mxu0
        %v1349 = vpop.f32.mrf.mxu0
        %v1350 = vadd.f32 0.0, %v1349
        %v1351 = vpop.f32.mrf.mxu0
        %1352 = vmatprep.mubr.bf16.mxu0 0
        %1353 = vmatmul.mubr.bf16.gmra.mxu0 %v988
        %v1354 = vpop.f32.mrf.mxu0
        %v1355 = vadd.f32 0.0, %v1354
        %v1356 = vpop.f32.mrf.mxu0
        %v1357 = vpop.f32.mrf.mxu0
        %v1358 = vadd.f32 0.0, %v1357
        %v1359 = vpop.f32.mrf.mxu0
        %1360 = vmatprep.mubr.bf16.mxu0 0
        %1361 = vmatmul.mubr.bf16.gmra.mxu0 %v989
        %v1362 = vpop.f32.mrf.mxu0
        %v1363 = vadd.f32 0.0, %v1362
        %v1364 = vpop.f32.mrf.mxu0
        %v1365 = vpop.f32.mrf.mxu0
        %v1366 = vadd.f32 0.0, %v1365
        %v1367 = vpop.f32.mrf.mxu0
        %1368 = vmatprep.mubr.bf16.mxu0 0
        %1369 = vmatmul.mubr.bf16.gmra.mxu0 %v990
        %v1370 = vpop.f32.mrf.mxu0
        %v1371 = vadd.f32 0.0, %v1370
        %v1372 = vpop.f32.mrf.mxu0
        %v1373 = vpop.f32.mrf.mxu0
        %v1374 = vadd.f32 0.0, %v1373
        %v1375 = vpop.f32.mrf.mxu0
        %1376 = vmatprep.mubr.bf16.mxu0 0
        %1377 = vmatmul.mubr.bf16.gmra.mxu0 %v991
        %v1378 = vpop.f32.mrf.mxu0
        %v1379 = vadd.f32 0.0, %v1378
        %v1380 = vpop.f32.mrf.mxu0
        %v1381 = vpop.f32.mrf.mxu0
        %v1382 = vadd.f32 0.0, %v1381
        %v1383 = vpop.f32.mrf.mxu0
        %1384 = vmatprep.mubr.bf16.mxu0 0
        %1385 = vmatmul.mubr.bf16.gmra.mxu0 %v992
        %v1386 = vpop.f32.mrf.mxu0
        %v1387 = vadd.f32 0.0, %v1386
        %v1388 = vpop.f32.mrf.mxu0
        %v1389 = vpop.f32.mrf.mxu0
        %v1390 = vadd.f32 0.0, %v1389
        %v1391 = vpop.f32.mrf.mxu0
        %1392 = vmatprep.mubr.bf16.mxu0 0
        %1393 = vmatmul.mubr.bf16.gmra.mxu0 %v993
        %v1394 = vpop.f32.mrf.mxu0
        %v1395 = vadd.f32 0.0, %v1394
        %v1396 = vpop.f32.mrf.mxu0
        %v1397 = vpop.f32.mrf.mxu0
        %v1398 = vadd.f32 0.0, %v1397
        %v1399 = vpop.f32.mrf.mxu0
        %1400 = vmatprep.mubr.bf16.mxu0 0
        %1401 = vmatmul.mubr.bf16.gmra.mxu0 %v994
        %v1402 = vpop.f32.mrf.mxu0
        %v1403 = vadd.f32 0.0, %v1402
        %v1404 = vpop.f32.mrf.mxu0
        %v1405 = vpop.f32.mrf.mxu0
        %v1406 = vadd.f32 0.0, %v1405
        %v1407 = vpop.f32.mrf.mxu0
        %1408 = vmatprep.mubr.bf16.mxu0 0
        %1409 = vmatmul.mubr.bf16.gmra.mxu0 %v995
        %v1410 = vpop.f32.mrf.mxu0
        %v1411 = vadd.f32 0.0, %v1410
        %v1412 = vpop.f32.mrf.mxu0
        %v1413 = vpop.f32.mrf.mxu0
        %v1414 = vadd.f32 0.0, %v1413
        %v1415 = vpop.f32.mrf.mxu0
        %1416 = vmatprep.mubr.bf16.mxu0 0
        %1417 = vmatmul.mubr.bf16.gmra.mxu0 %v996
        %v1418 = vpop.f32.mrf.mxu0
        %v1419 = vadd.f32 0.0, %v1418
        %v1420 = vpop.f32.mrf.mxu0
        %v1421 = vpop.f32.mrf.mxu0
        %v1422 = vadd.f32 0.0, %v1421
        %v1423 = vpop.f32.mrf.mxu0
        %1424 = vmatprep.mubr.bf16.mxu0 0
        %1425 = vmatmul.mubr.bf16.gmra.mxu0 %v997
        %v1426 = vpop.f32.mrf.mxu0
        %v1427 = vadd.f32 0.0, %v1426
        %v1428 = vpop.f32.mrf.mxu0
        %v1429 = vpop.f32.mrf.mxu0
        %v1430 = vadd.f32 0.0, %v1429
        %v1431 = vpop.f32.mrf.mxu0
        %1432 = vmatprep.mubr.bf16.mxu0 0
        %1433 = vmatmul.mubr.bf16.gmra.mxu0 %v998
        %v1434 = vpop.f32.mrf.mxu0
        %v1435 = vadd.f32 0.0, %v1434
        %v1436 = vpop.f32.mrf.mxu0
        %v1437 = vpop.f32.mrf.mxu0
        %v1438 = vadd.f32 0.0, %v1437
        %v1439 = vpop.f32.mrf.mxu0
        %1440 = vmatprep.mubr.bf16.mxu0 0
        %1441 = vmatmul.mubr.bf16.gmra.mxu0 %v999
        %v1442 = vpop.f32.mrf.mxu0
        %v1443 = vadd.f32 0.0, %v1442
        %v1444 = vpop.f32.mrf.mxu0
        %v1445 = vpop.f32.mrf.mxu0
        %v1446 = vadd.f32 0.0, %v1445
        %v1447 = vpop.f32.mrf.mxu0
        %1448 = vmatprep.mubr.bf16.mxu0 0
        %1449 = vmatmul.mubr.bf16.gmra.mxu0 %v1000
        %v1450 = vpop.f32.mrf.mxu0
        %v1451 = vadd.f32 0.0, %v1450
        %v1452 = vpop.f32.mrf.mxu0
        %v1453 = vpop.f32.mrf.mxu0
        %v1454 = vadd.f32 0.0, %v1453
        %v1455 = vpop.f32.mrf.mxu0
        %1456 = vmatprep.mubr.bf16.mxu0 0
        %1457 = vmatmul.mubr.bf16.gmra.mxu0 %v1001
        %v1458 = vpop.f32.mrf.mxu0
        %v1459 = vadd.f32 0.0, %v1458
        %v1460 = vpop.f32.mrf.mxu0
        %v1461 = vpop.f32.mrf.mxu0
        %v1462 = vadd.f32 0.0, %v1461
        %v1463 = vpop.f32.mrf.mxu0
        %1464 = vmatprep.mubr.bf16.mxu0 0
        %1465 = vmatmul.mubr.bf16.gmra.mxu0 %v1002
        %v1466 = vpop.f32.mrf.mxu0
        %v1467 = vadd.f32 0.0, %v1466
        %v1468 = vpop.f32.mrf.mxu0
        %v1469 = vpop.f32.mrf.mxu0
        %v1470 = vadd.f32 0.0, %v1469
        %v1471 = vpop.f32.mrf.mxu0
        %1472 = vmatprep.mubr.bf16.mxu0 0
        %1473 = vmatmul.mubr.bf16.gmra.mxu0 %v1003
        %v1474 = vpop.f32.mrf.mxu0
        %v1475 = vadd.f32 0.0, %v1474
        %v1476 = vpop.f32.mrf.mxu0
        %v1477 = vpop.f32.mrf.mxu0
        %v1478 = vadd.f32 0.0, %v1477
        %v1479 = vpop.f32.mrf.mxu0
        %1480 = vmatprep.mubr.bf16.mxu0 0
        %1481 = vmatmul.mubr.bf16.gmra.mxu0 %v1004
        %v1482 = vpop.f32.mrf.mxu0
        %v1483 = vadd.f32 0.0, %v1482
        %v1484 = vpop.f32.mrf.mxu0
        %v1485 = vpop.f32.mrf.mxu0
        %v1486 = vadd.f32 0.0, %v1485
        %v1487 = vpop.f32.mrf.mxu0
        %1488 = vmatprep.mubr.bf16.mxu0 0
        %1489 = vmatmul.mubr.bf16.gmra.mxu0 %v1005
        %v1490 = vpop.f32.mrf.mxu0
        %v1491 = vadd.f32 0.0, %v1490
        %v1492 = vpop.f32.mrf.mxu0
        %v1493 = vpop.f32.mrf.mxu0
        %v1494 = vadd.f32 0.0, %v1493
        %v1495 = vpop.f32.mrf.mxu0
        %1496 = vmatprep.mubr.bf16.mxu0 0
        %1497 = vmatmul.mubr.bf16.gmra.mxu0 %v1006
        %v1498 = vpop.f32.mrf.mxu0
        %v1499 = vadd.f32 0.0, %v1498
        %v1500 = vpop.f32.mrf.mxu0
        %v1501 = vpop.f32.mrf.mxu0
        %v1502 = vadd.f32 0.0, %v1501
        %v1503 = vpop.f32.mrf.mxu0
        %1504 = vmatprep.mubr.bf16.mxu0 0
        %1505 = vmatmul.mubr.bf16.gmra.mxu0 %v1007
        %v1506 = vpop.f32.mrf.mxu0
        %v1507 = vadd.f32 0.0, %v1506
        %v1508 = vpop.f32.mrf.mxu0
        %v1509 = vpop.f32.mrf.mxu0
        %v1510 = vadd.f32 0.0, %v1509
        %v1511 = vpop.f32.mrf.mxu0
        %1512 = vmatprep.mubr.bf16.mxu0 0
        %1513 = vmatmul.mubr.bf16.gmra.mxu0 %v1008
        %v1514 = vpop.f32.mrf.mxu0
        %v1515 = vadd.f32 0.0, %v1514
        %v1516 = vpop.f32.mrf.mxu0
        %v1517 = vpop.f32.mrf.mxu0
        %v1518 = vadd.f32 0.0, %v1517
        %v1519 = vpop.f32.mrf.mxu0
        %1520 = vmatprep.mubr.bf16.mxu0 0
        %1521 = vmatmul.mubr.bf16.gmra.mxu0 %v1009
        %v1522 = vpop.f32.mrf.mxu0
        %v1523 = vadd.f32 0.0, %v1522
        %v1524 = vpop.f32.mrf.mxu0
        %v1525 = vpop.f32.mrf.mxu0
        %v1526 = vadd.f32 0.0, %v1525
        %v1527 = vpop.f32.mrf.mxu0
        %1528 = vmatprep.mubr.bf16.mxu0 0
        %1529 = vmatmul.mubr.bf16.gmra.mxu0 %v1010
        %v1530 = vpop.f32.mrf.mxu0
        %v1531 = vadd.f32 0.0, %v1530
        %v1532 = vpop.f32.mrf.mxu0
        %v1533 = vpop.f32.mrf.mxu0
        %v1534 = vadd.f32 0.0, %v1533
        %v1535 = vpop.f32.mrf.mxu0
        %1536 = vmatprep.mubr.bf16.mxu0 0
        %1537 = vmatmul.mubr.bf16.gmra.mxu0 %v1011
        %v1538 = vpop.f32.mrf.mxu0
        %v1539 = vadd.f32 0.0, %v1538
        %v1540 = vpop.f32.mrf.mxu0
        %v1541 = vpop.f32.mrf.mxu0
        %v1542 = vadd.f32 0.0, %v1541
        %v1543 = vpop.f32.mrf.mxu0
        %1544 = vmatprep.mubr.bf16.mxu0 0
        %1545 = vmatmul.mubr.bf16.gmra.mxu0 %v1012
        %v1546 = vpop.f32.mrf.mxu0
        %v1547 = vadd.f32 0.0, %v1546
        %v1548 = vpop.f32.mrf.mxu0
        %v1549 = vpop.f32.mrf.mxu0
        %v1550 = vadd.f32 0.0, %v1549
        %v1551 = vpop.f32.mrf.mxu0
        %1552 = vmatprep.mubr.bf16.mxu0 0
        %1553 = vmatmul.mubr.bf16.gmra.mxu0 %v1013
        %v1554 = vpop.f32.mrf.mxu0
        %v1555 = vadd.f32 0.0, %v1554
        %v1556 = vpop.f32.mrf.mxu0
        %v1557 = vpop.f32.mrf.mxu0
        %v1558 = vadd.f32 0.0, %v1557
        %v1559 = vpop.f32.mrf.mxu0
        %1560 = vmatprep.mubr.bf16.mxu0 0
        %1561 = vmatmul.mubr.bf16.gmra.mxu0 %v1014
        %v1562 = vpop.f32.mrf.mxu0
        %v1563 = vadd.f32 0.0, %v1562
        %v1564 = vpop.f32.mrf.mxu0
        %v1565 = vpop.f32.mrf.mxu0
        %v1566 = vadd.f32 0.0, %v1565
        %v1567 = vpop.f32.mrf.mxu0
        %1568 = vmatprep.mubr.bf16.mxu0 0
        %1569 = vmatmul.mubr.bf16.gmra.mxu0 %v1015
        %v1570 = vpop.f32.mrf.mxu0
        %v1571 = vadd.f32 0.0, %v1570
        %v1572 = vpop.f32.mrf.mxu0
        %v1573 = vpop.f32.mrf.mxu0
        %v1574 = vadd.f32 0.0, %v1573
        %v1575 = vpop.f32.mrf.mxu0
        %1576 = vmatprep.mubr.bf16.mxu0 0
        %1577 = vmatmul.mubr.bf16.gmra.mxu0 %v1016
        %v1578 = vpop.f32.mrf.mxu0
        %v1579 = vadd.f32 0.0, %v1578
        %v1580 = vpop.f32.mrf.mxu0
        %v1581 = vpop.f32.mrf.mxu0
        %v1582 = vadd.f32 0.0, %v1581
        %v1583 = vpop.f32.mrf.mxu0
        %1584 = vmatprep.mubr.bf16.mxu0 0
        %1585 = vmatmul.mubr.bf16.gmra.mxu0 %v1017
        %v1586 = vpop.f32.mrf.mxu0
        %v1587 = vadd.f32 0.0, %v1586
        %v1588 = vpop.f32.mrf.mxu0
        %v1589 = vpop.f32.mrf.mxu0
        %v1590 = vadd.f32 0.0, %v1589
        %v1591 = vpop.f32.mrf.mxu0
        %1592 = vmatprep.mubr.bf16.mxu0 0
        %1593 = vmatmul.mubr.bf16.gmra.mxu0 %v1018
        %v1594 = vpop.f32.mrf.mxu0
        %v1595 = vadd.f32 0.0, %v1594
        %v1596 = vpop.f32.mrf.mxu0
        %v1597 = vpop.f32.mrf.mxu0
        %v1598 = vadd.f32 0.0, %v1597
        %v1599 = vpop.f32.mrf.mxu0
        %1600 = vmatprep.mubr.bf16.mxu0 0
        %1601 = vmatmul.mubr.bf16.gmra.mxu0 %v1019
        %v1602 = vpop.f32.mrf.mxu0
        %v1603 = vadd.f32 0.0, %v1602
        %v1604 = vpop.f32.mrf.mxu0
        %v1605 = vpop.f32.mrf.mxu0
        %v1606 = vadd.f32 0.0, %v1605
        %v1607 = vpop.f32.mrf.mxu0
        %1608 = vmatprep.mubr.bf16.mxu0 0
        %1609 = vmatmul.mubr.bf16.gmra.mxu0 %v1020
        %v1610 = vpop.f32.mrf.mxu0
        %v1611 = vadd.f32 0.0, %v1610
        %v1612 = vpop.f32.mrf.mxu0
        %v1613 = vpop.f32.mrf.mxu0
        %v1614 = vadd.f32 0.0, %v1613
        %v1615 = vpop.f32.mrf.mxu0
        %1616 = vmatprep.mubr.bf16.mxu0 0
        %1617 = vmatmul.mubr.bf16.gmra.mxu0 %v1021
        %v1618 = vpop.f32.mrf.mxu0
        %v1619 = vadd.f32 0.0, %v1618
        %v1620 = vpop.f32.mrf.mxu0
        %v1621 = vpop.f32.mrf.mxu0
        %v1622 = vadd.f32 0.0, %v1621
        %v1623 = vpop.f32.mrf.mxu0
        %1624 = vmatprep.mubr.bf16.mxu0 0
        %1625 = vmatmul.mubr.bf16.gmra.mxu0 %v1022
        %v1626 = vpop.f32.mrf.mxu0
        %v1627 = vadd.f32 0.0, %v1626
        %v1628 = vpop.f32.mrf.mxu0
        %v1629 = vpop.f32.mrf.mxu0
        %v1630 = vadd.f32 0.0, %v1629
        %v1631 = vpop.f32.mrf.mxu0
        %1632 = vmatprep.mubr.bf16.mxu0 0
        %1633 = vmatmul.mubr.bf16.gmra.mxu0 %v1023
        %v1634 = vpop.f32.mrf.mxu0
        %v1635 = vadd.f32 0.0, %v1634
        %v1636 = vpop.f32.mrf.mxu0
        %v1637 = vpop.f32.mrf.mxu0
        %v1638 = vadd.f32 0.0, %v1637
        %v1639 = vpop.f32.mrf.mxu0
        %1640 = vmatprep.mubr.bf16.mxu0 0
        %1641 = vmatmul.mubr.bf16.gmra.mxu0 %v1024
        %v1642 = vpop.f32.mrf.mxu0
        %v1643 = vadd.f32 0.0, %v1642
        %v1644 = vpop.f32.mrf.mxu0
        %v1645 = vpop.f32.mrf.mxu0
        %v1646 = vadd.f32 0.0, %v1645
        %v1647 = vpop.f32.mrf.mxu0
        %1648 = vmatprep.mubr.bf16.mxu0 0
        %1649 = vmatmul.mubr.bf16.gmra.mxu0 %v1025
        %v1650 = vpop.f32.mrf.mxu0
        %v1651 = vadd.f32 0.0, %v1650
        %v1652 = vpop.f32.mrf.mxu0
        %v1653 = vpop.f32.mrf.mxu0
        %v1654 = vadd.f32 0.0, %v1653
        %v1655 = vpop.f32.mrf.mxu0
        %1656 = vmatprep.mubr.bf16.mxu0 0
        %1657 = vmatmul.mubr.bf16.gmra.mxu0 %v1026
        %v1658 = vpop.f32.mrf.mxu0
        %v1659 = vadd.f32 0.0, %v1658
        %v1660 = vpop.f32.mrf.mxu0
        %v1661 = vpop.f32.mrf.mxu0
        %v1662 = vadd.f32 0.0, %v1661
        %v1663 = vpop.f32.mrf.mxu0
        %1664 = vmatprep.mubr.bf16.mxu0 0
        %1665 = vmatmul.mubr.bf16.gmra.mxu0 %v1027
        %v1666 = vpop.f32.mrf.mxu0
        %v1667 = vadd.f32 0.0, %v1666
        %v1668 = vpop.f32.mrf.mxu0
        %v1669 = vpop.f32.mrf.mxu0
        %v1670 = vadd.f32 0.0, %v1669
        %v1671 = vpop.f32.mrf.mxu0
        %1672 = vmatprep.mubr.bf16.mxu0 0
        %1673 = vmatmul.mubr.bf16.gmra.mxu0 %v1028
        %v1674 = vpop.f32.mrf.mxu0
        %v1675 = vadd.f32 0.0, %v1674
        %v1676 = vpop.f32.mrf.mxu0
        %v1677 = vpop.f32.mrf.mxu0
        %v1678 = vadd.f32 0.0, %v1677
        %v1679 = vpop.f32.mrf.mxu0
        %1680 = vmatprep.mubr.bf16.mxu0 0
        %1681 = vmatmul.mubr.bf16.gmra.mxu0 %v1029
        %v1682 = vpop.f32.mrf.mxu0
        %v1683 = vadd.f32 0.0, %v1682
        %v1684 = vpop.f32.mrf.mxu0
        %v1685 = vpop.f32.mrf.mxu0
        %v1686 = vadd.f32 0.0, %v1685
        %v1687 = vpop.f32.mrf.mxu0
        %1688 = vmatprep.mubr.bf16.mxu0 0
        %1689 = vmatmul.mubr.bf16.gmra.mxu0 %v1030
        %v1690 = vpop.f32.mrf.mxu0
        %v1691 = vadd.f32 0.0, %v1690
        %v1692 = vpop.f32.mrf.mxu0
        %v1693 = vpop.f32.mrf.mxu0
        %v1694 = vadd.f32 0.0, %v1693
        %v1695 = vpop.f32.mrf.mxu0
        %1696 = vmatprep.mubr.bf16.mxu0 0
        %1697 = vmatmul.mubr.bf16.gmra.mxu0 %v1031
        %v1698 = vpop.f32.mrf.mxu0
        %v1699 = vadd.f32 0.0, %v1698
        %v1700 = vpop.f32.mrf.mxu0
        %v1701 = vpop.f32.mrf.mxu0
        %v1702 = vadd.f32 0.0, %v1701
        %v1703 = vpop.f32.mrf.mxu0
        %1704 = vmatprep.mubr.bf16.mxu0 0
        %1705 = vmatmul.mubr.bf16.gmra.mxu0 %v1032
        %v1706 = vpop.f32.mrf.mxu0
        %v1707 = vadd.f32 0.0, %v1706
        %v1708 = vpop.f32.mrf.mxu0
        %v1709 = vpop.f32.mrf.mxu0
        %v1710 = vadd.f32 0.0, %v1709
        %v1711 = vpop.f32.mrf.mxu0
        %1712 = vmatprep.mubr.bf16.mxu0 0
        %1713 = vmatmul.mubr.bf16.gmra.mxu0 %v1033
        %v1714 = vpop.f32.mrf.mxu0
        %v1715 = vadd.f32 0.0, %v1714
        %v1716 = vpop.f32.mrf.mxu0
        %v1717 = vpop.f32.mrf.mxu0
        %v1718 = vadd.f32 0.0, %v1717
        %v1719 = vpop.f32.mrf.mxu0
        %1720 = vmatprep.mubr.bf16.mxu0 0
        %1721 = vmatmul.mubr.bf16.gmra.mxu0 %v1034
        %v1722 = vpop.f32.mrf.mxu0
        %v1723 = vadd.f32 0.0, %v1722
        %v1724 = vpop.f32.mrf.mxu0
        %v1725 = vpop.f32.mrf.mxu0
        %v1726 = vadd.f32 0.0, %v1725
        %v1727 = vpop.f32.mrf.mxu0
        %1728 = vmatprep.mubr.bf16.mxu0 0
        %1729 = vmatmul.mubr.bf16.gmra.mxu0 %v1035
        %v1730 = vpop.f32.mrf.mxu0
        %v1731 = vadd.f32 0.0, %v1730
        %v1732 = vpop.f32.mrf.mxu0
        %v1733 = vpop.f32.mrf.mxu0
        %v1734 = vadd.f32 0.0, %v1733
        %v1735 = vpop.f32.mrf.mxu0
        %1736 = vmatprep.mubr.bf16.mxu0 0
        %1737 = vmatmul.mubr.bf16.gmra.mxu0 %v1036
        %v1738 = vpop.f32.mrf.mxu0
        %v1739 = vadd.f32 0.0, %v1738
        %v1740 = vpop.f32.mrf.mxu0
        %v1741 = vpop.f32.mrf.mxu0
        %v1742 = vadd.f32 0.0, %v1741
        %v1743 = vpop.f32.mrf.mxu0
        %1744 = vmatprep.mubr.bf16.mxu0 0
        %1745 = vmatmul.mubr.bf16.gmra.mxu0 %v1037
        %v1746 = vpop.f32.mrf.mxu0
        %v1747 = vadd.f32 0.0, %v1746
        %v1748 = vpop.f32.mrf.mxu0
        %v1749 = vpop.f32.mrf.mxu0
        %v1750 = vadd.f32 0.0, %v1749
        %v1751 = vpop.f32.mrf.mxu0
        %1752 = vmatprep.mubr.bf16.mxu0 0
        %1753 = vmatmul.mubr.bf16.gmra.mxu0 %v1038
        %v1754 = vpop.f32.mrf.mxu0
        %v1755 = vadd.f32 0.0, %v1754
        %v1756 = vpop.f32.mrf.mxu0
        %v1757 = vpop.f32.mrf.mxu0
        %v1758 = vadd.f32 0.0, %v1757
        %v1759 = vpop.f32.mrf.mxu0
        %1760 = vmatprep.mubr.bf16.mxu0 0
        %1761 = vmatmul.mubr.bf16.gmra.mxu0 %v1039
        %v1762 = vpop.f32.mrf.mxu0
        %v1763 = vadd.f32 0.0, %v1762
        %v1764 = vpop.f32.mrf.mxu0
        %v1765 = vpop.f32.mrf.mxu0
        %v1766 = vadd.f32 0.0, %v1765
        %v1767 = vpop.f32.mrf.mxu0
        %1768 = vmatprep.mubr.bf16.mxu0 0
        %1769 = vmatmul.mubr.bf16.gmra.mxu0 %v1040
        %v1770 = vpop.f32.mrf.mxu0
        %v1771 = vadd.f32 0.0, %v1770
        %v1772 = vpop.f32.mrf.mxu0
        %v1773 = vpop.f32.mrf.mxu0
        %v1774 = vadd.f32 0.0, %v1773
        %v1775 = vpop.f32.mrf.mxu0
        %1776 = vmatprep.mubr.bf16.mxu0 0
        %1777 = vmatmul.mubr.bf16.gmra.mxu0 %v1041
        %v1778 = vpop.f32.mrf.mxu0
        %v1779 = vadd.f32 0.0, %v1778
        %v1780 = vpop.f32.mrf.mxu0
        %v1781 = vpop.f32.mrf.mxu0
        %v1782 = vadd.f32 0.0, %v1781
        %v1783 = vpop.f32.mrf.mxu0
        %1784 = vmatprep.mubr.bf16.mxu0 0
        %1785 = vmatmul.mubr.bf16.gmra.mxu0 %v1042
        %v1786 = vpop.f32.mrf.mxu0
        %v1787 = vadd.f32 0.0, %v1786
        %v1788 = vpop.f32.mrf.mxu0
        %v1789 = vpop.f32.mrf.mxu0
        %v1790 = vadd.f32 0.0, %v1789
        %v1791 = vpop.f32.mrf.mxu0
        %1792 = vmatprep.mubr.bf16.mxu0 0
        %1793 = vmatmul.mubr.bf16.gmra.mxu0 %v1043
        %v1794 = vpop.f32.mrf.mxu0
        %v1795 = vadd.f32 0.0, %v1794
        %v1796 = vpop.f32.mrf.mxu0
        %v1797 = vpop.f32.mrf.mxu0
        %v1798 = vadd.f32 0.0, %v1797
        %v1799 = vpop.f32.mrf.mxu0
        %1800 = vmatprep.mubr.bf16.mxu0 0
        %1801 = vmatmul.mubr.bf16.gmra.mxu0 %v1044
        %v1802 = vpop.f32.mrf.mxu0
        %v1803 = vadd.f32 0.0, %v1802
        %v1804 = vpop.f32.mrf.mxu0
        %v1805 = vpop.f32.mrf.mxu0
        %v1806 = vadd.f32 0.0, %v1805
        %v1807 = vpop.f32.mrf.mxu0
        %1808 = vmatprep.mubr.bf16.mxu0 0
        %1809 = vmatmul.mubr.bf16.gmra.mxu0 %v1045
        %v1810 = vpop.f32.mrf.mxu0
        %v1811 = vadd.f32 0.0, %v1810
        %v1812 = vpop.f32.mrf.mxu0
        %v1813 = vpop.f32.mrf.mxu0
        %v1814 = vadd.f32 0.0, %v1813
        %v1815 = vpop.f32.mrf.mxu0
        %1816 = vmatprep.mubr.bf16.mxu0 0
        %1817 = vmatmul.mubr.bf16.gmra.mxu0 %v1046
        %v1818 = vpop.f32.mrf.mxu0
        %v1819 = vadd.f32 0.0, %v1818
        %v1820 = vpop.f32.mrf.mxu0
        %v1821 = vpop.f32.mrf.mxu0
        %v1822 = vadd.f32 0.0, %v1821
        %v1823 = vpop.f32.mrf.mxu0
        %1824 = vmatprep.mubr.bf16.mxu0 0
        %1825 = vmatmul.mubr.bf16.gmra.mxu0 %v1047
        %v1826 = vpop.f32.mrf.mxu0
        %v1827 = vadd.f32 0.0, %v1826
        %v1828 = vpop.f32.mrf.mxu0
        %v1829 = vpop.f32.mrf.mxu0
        %v1830 = vadd.f32 0.0, %v1829
        %v1831 = vpop.f32.mrf.mxu0
        %1832 = vmatprep.mubr.bf16.mxu0 0
        %1833 = vmatmul.mubr.bf16.gmra.mxu0 %v1048
        %v1834 = vpop.f32.mrf.mxu0
        %v1835 = vadd.f32 0.0, %v1834
        %v1836 = vpop.f32.mrf.mxu0
        %v1837 = vpop.f32.mrf.mxu0
        %v1838 = vadd.f32 0.0, %v1837
        %v1839 = vpop.f32.mrf.mxu0
        %1840 = vmatprep.mubr.bf16.mxu0 0
        %1841 = vmatmul.mubr.bf16.gmra.mxu0 %v1049
        %v1842 = vpop.f32.mrf.mxu0
        %v1843 = vadd.f32 0.0, %v1842
        %v1844 = vpop.f32.mrf.mxu0
        %v1845 = vpop.f32.mrf.mxu0
        %v1846 = vadd.f32 0.0, %v1845
        %v1847 = vpop.f32.mrf.mxu0
        %1848 = vmatprep.mubr.bf16.mxu0 0
        %1849 = vmatmul.mubr.bf16.gmra.mxu0 %v1050
        %v1850 = vpop.f32.mrf.mxu0
        %v1851 = vadd.f32 0.0, %v1850
        %v1852 = vpop.f32.mrf.mxu0
        %v1853 = vpop.f32.mrf.mxu0
        %v1854 = vadd.f32 0.0, %v1853
        %v1855 = vpop.f32.mrf.mxu0
        %1856 = vmatprep.mubr.bf16.mxu0 0
        %1857 = vmatmul.mubr.bf16.gmra.mxu0 %v1051
        %v1858 = vpop.f32.mrf.mxu0
        %v1859 = vadd.f32 0.0, %v1858
        %v1860 = vpop.f32.mrf.mxu0
        %v1861 = vpop.f32.mrf.mxu0
        %v1862 = vadd.f32 0.0, %v1861
        %v1863 = vpop.f32.mrf.mxu0
        %1864 = vmatprep.mubr.bf16.mxu0 0
        %1865 = vmatmul.mubr.bf16.gmra.mxu0 %v1052
        %v1866 = vpop.f32.mrf.mxu0
        %v1867 = vadd.f32 0.0, %v1866
        %v1868 = vpop.f32.mrf.mxu0
        %v1869 = vpop.f32.mrf.mxu0
        %v1870 = vadd.f32 0.0, %v1869
        %v1871 = vpop.f32.mrf.mxu0
        %1872 = vmatprep.mubr.bf16.mxu0 0
        %1873 = vmatmul.mubr.bf16.gmra.mxu0 %v1053
        %v1874 = vpop.f32.mrf.mxu0
        %v1875 = vadd.f32 0.0, %v1874
        %v1876 = vpop.f32.mrf.mxu0
        %v1877 = vpop.f32.mrf.mxu0
        %v1878 = vadd.f32 0.0, %v1877
        %v1879 = vpop.f32.mrf.mxu0
        %1880 = vmatprep.mubr.bf16.mxu0 0
        %1881 = vmatmul.mubr.bf16.gmra.mxu0 %v1054
        %v1882 = vpop.f32.mrf.mxu0
        %v1883 = vadd.f32 0.0, %v1882
        %v1884 = vpop.f32.mrf.mxu0
        %v1885 = vpop.f32.mrf.mxu0
        %v1886 = vadd.f32 0.0, %v1885
        %v1887 = vpop.f32.mrf.mxu0
        %1888 = vmatprep.mubr.bf16.mxu0 0
        %1889 = vmatmul.mubr.bf16.gmra.mxu0 %v1055
        %v1890 = vpop.f32.mrf.mxu0
        %v1891 = vadd.f32 0.0, %v1890
        %v1892 = vpop.f32.mrf.mxu0
        %v1893 = vpop.f32.mrf.mxu0
        %v1894 = vadd.f32 0.0, %v1893
        %v1895 = vpop.f32.mrf.mxu0
        %1896 = vmatprep.mubr.bf16.mxu0 0
        %1897 = vmatmul.mubr.bf16.gmra.mxu0 %v1056
        %v1898 = vpop.f32.mrf.mxu0
        %v1899 = vadd.f32 0.0, %v1898
        %v1900 = vpop.f32.mrf.mxu0
        %v1901 = vpop.f32.mrf.mxu0
        %v1902 = vadd.f32 0.0, %v1901
        %v1903 = vpop.f32.mrf.mxu0
        %1904 = vmatprep.mubr.bf16.mxu0 0
        %1905 = vmatmul.mubr.bf16.gmra.mxu0 %v1057
        %v1906 = vpop.f32.mrf.mxu0
        %v1907 = vadd.f32 0.0, %v1906
        %v1908 = vpop.f32.mrf.mxu0
        %v1909 = vpop.f32.mrf.mxu0
        %v1910 = vadd.f32 0.0, %v1909
        %v1911 = vpop.f32.mrf.mxu0
        %1912 = vmatprep.mubr.bf16.mxu0 0
        %1913 = vmatmul.mubr.bf16.gmra.mxu0 %v1058
        %v1914 = vpop.f32.mrf.mxu0
        %v1915 = vadd.f32 0.0, %v1914
        %v1916 = vpop.f32.mrf.mxu0
        %v1917 = vpop.f32.mrf.mxu0
        %v1918 = vadd.f32 0.0, %v1917
        %v1919 = vpop.f32.mrf.mxu0
        %1920 = vmatprep.mubr.bf16.mxu0 0
        %1921 = vmatmul.mubr.bf16.gmra.mxu0 %v1059
        %v1922 = vpop.f32.mrf.mxu0
        %v1923 = vadd.f32 0.0, %v1922
        %v1924 = vpop.f32.mrf.mxu0
        %v1925 = vpop.f32.mrf.mxu0
        %v1926 = vadd.f32 0.0, %v1925
        %v1927 = vpop.f32.mrf.mxu0
        %1928 = vmatprep.mubr.bf16.mxu0 0
        %1929 = vmatmul.mubr.bf16.gmra.mxu0 %v1060
        %v1930 = vpop.f32.mrf.mxu0
        %v1931 = vadd.f32 0.0, %v1930
        %v1932 = vpop.f32.mrf.mxu0
        %v1933 = vpop.f32.mrf.mxu0
        %v1934 = vadd.f32 0.0, %v1933
        %v1935 = vpop.f32.mrf.mxu0
        %1936 = vmatprep.mubr.bf16.mxu0 0
        %1937 = vmatmul.mubr.bf16.gmra.mxu0 %v1061
        %v1938 = vpop.f32.mrf.mxu0
        %v1939 = vadd.f32 0.0, %v1938
        %v1940 = vpop.f32.mrf.mxu0
        %v1941 = vpop.f32.mrf.mxu0
        %v1942 = vadd.f32 0.0, %v1941
        %v1943 = vpop.f32.mrf.mxu0
        %1944 = vmatprep.mubr.bf16.mxu0 0
        %1945 = vmatmul.mubr.bf16.gmra.mxu0 %v1062
        %v1946 = vpop.f32.mrf.mxu0
        %v1947 = vadd.f32 0.0, %v1946
        %v1948 = vpop.f32.mrf.mxu0
        %v1949 = vpop.f32.mrf.mxu0
        %v1950 = vadd.f32 0.0, %v1949
        %v1951 = vpop.f32.mrf.mxu0
        %1952 = vmatprep.mubr.bf16.mxu0 0
        %1953 = vmatmul.mubr.bf16.gmra.mxu0 %v1063
        %v1954 = vpop.f32.mrf.mxu0
        %v1955 = vadd.f32 0.0, %v1954
        %v1956 = vpop.f32.mrf.mxu0
        %v1957 = vpop.f32.mrf.mxu0
        %v1958 = vadd.f32 0.0, %v1957
        %v1959 = vpop.f32.mrf.mxu0
        %1960 = vmatprep.mubr.bf16.mxu0 0
        %1961 = vmatmul.mubr.bf16.gmra.mxu0 %v1064
        %v1962 = vpop.f32.mrf.mxu0
        %v1963 = vadd.f32 0.0, %v1962
        %v1964 = vpop.f32.mrf.mxu0
        %v1965 = vpop.f32.mrf.mxu0
        %v1966 = vadd.f32 0.0, %v1965
        %v1967 = vpop.f32.mrf.mxu0
        %1968 = vmatprep.mubr.bf16.mxu0 0
        %1969 = vmatmul.mubr.bf16.gmra.mxu0 %v1065
        %v1970 = vpop.f32.mrf.mxu0
        %v1971 = vadd.f32 0.0, %v1970
        %v1972 = vpop.f32.mrf.mxu0
        %v1973 = vpop.f32.mrf.mxu0
        %v1974 = vadd.f32 0.0, %v1973
        %v1975 = vpop.f32.mrf.mxu0
        %1976 = vmatprep.mubr.bf16.mxu0 0
        %1977 = vmatmul.mubr.bf16.gmra.mxu0 %v1066
        %v1978 = vpop.f32.mrf.mxu0
        %v1979 = vadd.f32 0.0, %v1978
        %v1980 = vpop.f32.mrf.mxu0
        %v1981 = vpop.f32.mrf.mxu0
        %v1982 = vadd.f32 0.0, %v1981
        %v1983 = vpop.f32.mrf.mxu0
        %1984 = vmatprep.mubr.bf16.mxu0 0
        %1985 = vmatmul.mubr.bf16.gmra.mxu0 %v1067
        %v1986 = vpop.f32.mrf.mxu0
        %v1987 = vadd.f32 0.0, %v1986
        %v1988 = vpop.f32.mrf.mxu0
        %v1989 = vpop.f32.mrf.mxu0
        %v1990 = vadd.f32 0.0, %v1989
        %v1991 = vpop.f32.mrf.mxu0
        %1992 = vmatprep.mubr.bf16.mxu0 0
        %1993 = vmatmul.mubr.bf16.gmra.mxu0 %v1068
        %v1994 = vpop.f32.mrf.mxu0
        %v1995 = vadd.f32 0.0, %v1994
        %v1996 = vpop.f32.mrf.mxu0
        %v1997 = vpop.f32.mrf.mxu0
        %v1998 = vadd.f32 0.0, %v1997
        %v1999 = vpop.f32.mrf.mxu0
        %2000 = vmatprep.mubr.bf16.mxu0 0
        %2001 = vmatmul.mubr.bf16.gmra.mxu0 %v1069
        %v2002 = vpop.f32.mrf.mxu0
        %v2003 = vadd.f32 0.0, %v2002
        %v2004 = vpop.f32.mrf.mxu0
        %v2005 = vpop.f32.mrf.mxu0
        %v2006 = vadd.f32 0.0, %v2005
        %v2007 = vpop.f32.mrf.mxu0
        %2008 = vmatprep.mubr.bf16.mxu0 0
        %2009 = vmatmul.mubr.bf16.gmra.mxu0 %v1070
        %v2010 = vpop.f32.mrf.mxu0
        %v2011 = vadd.f32 0.0, %v2010
        %v2012 = vpop.f32.mrf.mxu0
        %v2013 = vpop.f32.mrf.mxu0
        %v2014 = vadd.f32 0.0, %v2013
        %v2015 = vpop.f32.mrf.mxu0
        %2016 = vmatprep.mubr.bf16.mxu0 0
        %2017 = vmatmul.mubr.bf16.gmra.mxu0 %v1071
        %v2018 = vpop.f32.mrf.mxu0
        %v2019 = vadd.f32 0.0, %v2018
        %v2020 = vpop.f32.mrf.mxu0
        %v2021 = vpop.f32.mrf.mxu0
        %v2022 = vadd.f32 0.0, %v2021
        %v2023 = vpop.f32.mrf.mxu0
        %2024 = vmatprep.mubr.bf16.mxu0 0
        %2025 = vmatmul.mubr.bf16.gmra.mxu0 %v1072
        %v2026 = vpop.f32.mrf.mxu0
        %v2027 = vadd.f32 0.0, %v2026
        %v2028 = vpop.f32.mrf.mxu0
        %v2029 = vpop.f32.mrf.mxu0
        %v2030 = vadd.f32 0.0, %v2029
        %v2031 = vpop.f32.mrf.mxu0
        %2032 = vmatprep.mubr.bf16.mxu0 0
        %2033 = vmatmul.mubr.bf16.gmra.mxu0 %v1073
        %v2034 = vpop.f32.mrf.mxu0
        %v2035 = vadd.f32 0.0, %v2034
        %v2036 = vpop.f32.mrf.mxu0
        %v2037 = vpop.f32.mrf.mxu0
        %v2038 = vadd.f32 0.0, %v2037
        %v2039 = vpop.f32.mrf.mxu0
        %2040 = vmatprep.mubr.bf16.mxu0 0
        %2041 = vmatmul.mubr.bf16.gmra.mxu0 %v1074
        %v2042 = vpop.f32.mrf.mxu0
        %v2043 = vadd.f32 0.0, %v2042
        %v2044 = vpop.f32.mrf.mxu0
        %v2045 = vpop.f32.mrf.mxu0
        %v2046 = vadd.f32 0.0, %v2045
        %v2047 = vpop.f32.mrf.mxu0
        %2048 = vmatprep.mubr.bf16.mxu0 0
        %2049 = vmatmul.mubr.bf16.gmra.mxu0 %v1075
        %v2050 = vpop.f32.mrf.mxu0
        %v2051 = vadd.f32 0.0, %v2050
        %v2052 = vpop.f32.mrf.mxu0
        %v2053 = vpop.f32.mrf.mxu0
        %v2054 = vadd.f32 0.0, %v2053
        %v2055 = vpop.f32.mrf.mxu0
        %2056 = vmatprep.mubr.bf16.mxu0 0
        %2057 = vmatmul.mubr.bf16.gmra.mxu0 %v1076
        %v2058 = vpop.f32.mrf.mxu0
        %v2059 = vadd.f32 0.0, %v2058
        %v2060 = vpop.f32.mrf.mxu0
        %v2061 = vpop.f32.mrf.mxu0
        %v2062 = vadd.f32 0.0, %v2061
        %v2063 = vpop.f32.mrf.mxu0
        %2064 = vmatprep.mubr.bf16.mxu0 0
        %2065 = vmatmul.mubr.bf16.gmra.mxu0 %v1077
        %v2066 = vpop.f32.mrf.mxu0
        %v2067 = vadd.f32 0.0, %v2066
        %v2068 = vpop.f32.mrf.mxu0
        %v2069 = vpop.f32.mrf.mxu0
        %v2070 = vadd.f32 0.0, %v2069
        %v2071 = vpop.f32.mrf.mxu0
        %2072 = vmatprep.mubr.bf16.mxu0 0
        %2073 = vmatmul.mubr.bf16.gmra.mxu0 %v1078
        %v2074 = vpop.f32.mrf.mxu0
        %v2075 = vadd.f32 0.0, %v2074
        %v2076 = vpop.f32.mrf.mxu0
        %v2077 = vpop.f32.mrf.mxu0
        %v2078 = vadd.f32 0.0, %v2077
        %v2079 = vpop.f32.mrf.mxu0
        %2080 = vmatprep.mubr.bf16.mxu0 0
        %2081 = vmatmul.mubr.bf16.gmra.mxu0 %v1079
        %v2082 = vpop.f32.mrf.mxu0
        %v2083 = vadd.f32 0.0, %v2082
        %v2084 = vpop.f32.mrf.mxu0
        %v2085 = vpop.f32.mrf.mxu0
        %v2086 = vadd.f32 0.0, %v2085
        %v2087 = vpop.f32.mrf.mxu0
        %2088 = vmatprep.mubr.bf16.mxu0 0
        %2089 = vmatmul.mubr.bf16.gmra.mxu0 %v1080
        %v2090 = vpop.f32.mrf.mxu0
        %v2091 = vadd.f32 0.0, %v2090
        %v2092 = vpop.f32.mrf.mxu0
        %v2093 = vpop.f32.mrf.mxu0
        %v2094 = vadd.f32 0.0, %v2093
        %v2095 = vpop.f32.mrf.mxu0
        %2096 = vmatprep.mubr.bf16.mxu0 0
        %2097 = vmatmul.mubr.bf16.gmra.mxu0 %v1081
        %v2098 = vpop.f32.mrf.mxu0
        %v2099 = vadd.f32 0.0, %v2098
        %v2100 = vpop.f32.mrf.mxu0
        %v2101 = vpop.f32.mrf.mxu0
        %v2102 = vadd.f32 0.0, %v2101
        %v2103 = vpop.f32.mrf.mxu0
        %2104 = vmatprep.mubr.bf16.mxu0 0
        %2105 = vmatmul.mubr.bf16.gmra.mxu0 %v1082
        %v2106 = vpop.f32.mrf.mxu0
        %v2107 = vadd.f32 0.0, %v2106
        %v2108 = vpop.f32.mrf.mxu0
        %v2109 = vpop.f32.mrf.mxu0
        %v2110 = vadd.f32 0.0, %v2109
        %v2111 = vpop.f32.mrf.mxu0
        %2112 = vmatprep.mubr.bf16.mxu0 0
        %2113 = vmatmul.mubr.bf16.gmra.mxu0 %v1083
        %v2114 = vpop.f32.mrf.mxu0
        %v2115 = vadd.f32 0.0, %v2114
        %v2116 = vpop.f32.mrf.mxu0
        %v2117 = vpop.f32.mrf.mxu0
        %v2118 = vadd.f32 0.0, %v2117
        %v2119 = vpop.f32.mrf.mxu0
        %2120 = vmatprep.mubr.bf16.mxu0 0
        %2121 = vmatmul.mubr.bf16.gmra.mxu0 %v1084
        %v2122 = vpop.f32.mrf.mxu0
        %v2123 = vadd.f32 0.0, %v2122
        %v2124 = vpop.f32.mrf.mxu0
        %v2125 = vpop.f32.mrf.mxu0
        %v2126 = vadd.f32 0.0, %v2125
        %v2127 = vpop.f32.mrf.mxu0
        %2128 = vmatprep.mubr.bf16.mxu0 0
        %2129 = vmatmul.mubr.bf16.gmra.mxu0 %v1085
        %v2130 = vpop.f32.mrf.mxu0
        %v2131 = vadd.f32 0.0, %v2130
        %v2132 = vpop.f32.mrf.mxu0
        %v2133 = vpop.f32.mrf.mxu0
        %v2134 = vadd.f32 0.0, %v2133
        %v2135 = vpop.f32.mrf.mxu0
        %2136 = vmatprep.mubr.bf16.mxu0 0
        %2137 = vmatmul.mubr.bf16.gmra.mxu0 %v1086
        %v2138 = vpop.f32.mrf.mxu0
        %v2139 = vadd.f32 0.0, %v2138
        %v2140 = vpop.f32.mrf.mxu0
        %v2141 = vpop.f32.mrf.mxu0
        %v2142 = vadd.f32 0.0, %v2141
        %v2143 = vpop.f32.mrf.mxu0
        %2144 = vmatprep.mubr.bf16.mxu0 0
        %2145 = vmatmul.mubr.bf16.gmra.mxu0 %v1087
        %v2146 = vpop.f32.mrf.mxu0
        %v2147 = vadd.f32 0.0, %v2146
        %v2148 = vpop.f32.mrf.mxu0
        %v2149 = vpop.f32.mrf.mxu0
        %v2150 = vadd.f32 0.0, %v2149
        %v2151 = vpop.f32.mrf.mxu0
        %2152 = vmatprep.mubr.bf16.mxu0 0
        %2153 = vmatmul.mubr.bf16.gmra.mxu0 %v1088
        %v2154 = vpop.f32.mrf.mxu0
        %v2155 = vadd.f32 0.0, %v2154
        %v2156 = vpop.f32.mrf.mxu0
        %v2157 = vpop.f32.mrf.mxu0
        %v2158 = vadd.f32 0.0, %v2157
        %v2159 = vpop.f32.mrf.mxu0
        %2160 = vmatprep.mubr.bf16.mxu0 0
        %2161 = vmatmul.mubr.bf16.gmra.mxu0 %v1089
        %v2162 = vpop.f32.mrf.mxu0
        %v2163 = vadd.f32 0.0, %v2162
        %v2164 = vpop.f32.mrf.mxu0
        %v2165 = vpop.f32.mrf.mxu0
        %v2166 = vadd.f32 0.0, %v2165
        %v2167 = vpop.f32.mrf.mxu0
        %2168 = vmatprep.mubr.bf16.mxu0 0
        %2169 = vmatmul.mubr.bf16.gmra.mxu0 %v1090
        %v2170 = vpop.f32.mrf.mxu0
        %v2171 = vadd.f32 0.0, %v2170
        %v2172 = vpop.f32.mrf.mxu0
        %v2173 = vpop.f32.mrf.mxu0
        %v2174 = vadd.f32 0.0, %v2173
        %v2175 = vpop.f32.mrf.mxu0
        %2176 = vmatprep.mubr.bf16.mxu0 0
        %2177 = vmatmul.mubr.bf16.gmra.mxu0 %v1091
        %v2178 = vpop.f32.mrf.mxu0
        %v2179 = vadd.f32 0.0, %v2178
        %v2180 = vpop.f32.mrf.mxu0
        %v2181 = vpop.f32.mrf.mxu0
        %v2182 = vadd.f32 0.0, %v2181
        %v2183 = vpop.f32.mrf.mxu0
        %2184 = vmatprep.mubr.bf16.mxu0 0
        %2185 = vmatmul.mubr.bf16.gmra.mxu0 %v1092
        %v2186 = vpop.f32.mrf.mxu0
        %v2187 = vadd.f32 0.0, %v2186
        %v2188 = vpop.f32.mrf.mxu0
        %v2189 = vpop.f32.mrf.mxu0
        %v2190 = vadd.f32 0.0, %v2189
        %v2191 = vpop.f32.mrf.mxu0
        %2192 = vmatprep.mubr.bf16.mxu0 0
        %2193 = vmatmul.mubr.bf16.gmra.mxu0 %v1093
        %v2194 = vpop.f32.mrf.mxu0
        %v2195 = vadd.f32 0.0, %v2194
        %v2196 = vpop.f32.mrf.mxu0
        %v2197 = vpop.f32.mrf.mxu0
        %v2198 = vadd.f32 0.0, %v2197
        %v2199 = vpop.f32.mrf.mxu0
        %2200 = vmatprep.mubr.bf16.mxu0 0
        %2201 = vmatmul.mubr.bf16.gmra.mxu0 %v1094
        %v2202 = vpop.f32.mrf.mxu0
        %v2203 = vadd.f32 0.0, %v2202
        %v2204 = vpop.f32.mrf.mxu0
        %v2205 = vpop.f32.mrf.mxu0
        %v2206 = vadd.f32 0.0, %v2205
        %v2207 = vpop.f32.mrf.mxu0
        %2208 = vmatprep.mubr.bf16.mxu0 0
        %2209 = vmatmul.mubr.bf16.gmra.mxu0 %v1095
        %v2210 = vpop.f32.mrf.mxu0
        %v2211 = vadd.f32 0.0, %v2210
        %v2212 = vpop.f32.mrf.mxu0
        %v2213 = vpop.f32.mrf.mxu0
        %v2214 = vadd.f32 0.0, %v2213
        %v2215 = vpop.f32.mrf.mxu0
        %2216 = vmatprep.mubr.bf16.mxu0 0
        %2217 = vmatmul.mubr.bf16.gmra.mxu0 %v1096
        %v2218 = vpop.f32.mrf.mxu0
        %v2219 = vadd.f32 0.0, %v2218
        %v2220 = vpop.f32.mrf.mxu0
        %v2221 = vpop.f32.mrf.mxu0
        %v2222 = vadd.f32 0.0, %v2221
        %v2223 = vpop.f32.mrf.mxu0
        %2224 = vmatprep.mubr.bf16.mxu0 0
        %2225 = vmatmul.mubr.bf16.gmra.mxu0 %v1097
        %v2226 = vpop.f32.mrf.mxu0
        %v2227 = vadd.f32 0.0, %v2226
        %v2228 = vpop.f32.mrf.mxu0
        %v2229 = vpop.f32.mrf.mxu0
        %v2230 = vadd.f32 0.0, %v2229
        %v2231 = vpop.f32.mrf.mxu0
        %2232 = vmatprep.mubr.bf16.mxu0 0
        %2233 = vmatmul.mubr.bf16.gmra.mxu0 %v1098
        %v2234 = vpop.f32.mrf.mxu0
        %v2235 = vadd.f32 0.0, %v2234
        %v2236 = vpop.f32.mrf.mxu0
        %v2237 = vpop.f32.mrf.mxu0
        %v2238 = vadd.f32 0.0, %v2237
        %v2239 = vpop.f32.mrf.mxu0
        %2240 = vmatprep.mubr.bf16.mxu0 0
        %2241 = vmatmul.mubr.bf16.gmra.mxu0 %v1099
        %v2242 = vpop.f32.mrf.mxu0
        %v2243 = vadd.f32 0.0, %v2242
        %v2244 = vpop.f32.mrf.mxu0
        %v2245 = vpop.f32.mrf.mxu0
        %v2246 = vadd.f32 0.0, %v2245
        %v2247 = vpop.f32.mrf.mxu0
        %2248 = vmatprep.mubr.bf16.mxu0 0
        %2249 = vmatmul.mubr.bf16.gmra.mxu0 %v1100
        %v2250 = vpop.f32.mrf.mxu0
        %v2251 = vadd.f32 0.0, %v2250
        %v2252 = vpop.f32.mrf.mxu0
        %v2253 = vpop.f32.mrf.mxu0
        %v2254 = vadd.f32 0.0, %v2253
        %v2255 = vpop.f32.mrf.mxu0
        %2256 = vmatprep.mubr.bf16.mxu0 0
        %2257 = vmatmul.mubr.bf16.gmra.mxu0 %v1101
        %v2258 = vpop.f32.mrf.mxu0
        %v2259 = vadd.f32 0.0, %v2258
        %v2260 = vpop.f32.mrf.mxu0
        %v2261 = vpop.f32.mrf.mxu0
        %v2262 = vadd.f32 0.0, %v2261
        %v2263 = vpop.f32.mrf.mxu0
        %2264 = vmatprep.mubr.bf16.mxu0 0
        %2265 = vmatmul.mubr.bf16.gmra.mxu0 %v1102
        %v2266 = vpop.f32.mrf.mxu0
        %v2267 = vadd.f32 0.0, %v2266
        %v2268 = vpop.f32.mrf.mxu0
        %v2269 = vpop.f32.mrf.mxu0
        %v2270 = vadd.f32 0.0, %v2269
        %v2271 = vpop.f32.mrf.mxu0
        %2272 = vmatprep.mubr.bf16.mxu0 0
        %2273 = vmatmul.mubr.bf16.gmra.mxu0 %v1103
        %v2274 = vpop.f32.mrf.mxu0
        %v2275 = vadd.f32 0.0, %v2274
        %v2276 = vpop.f32.mrf.mxu0
        %v2277 = vpop.f32.mrf.mxu0
        %v2278 = vadd.f32 0.0, %v2277
        %v2279 = vpop.f32.mrf.mxu0
        %2280 = vmatprep.mubr.bf16.mxu0 0
        %2281 = vmatmul.mubr.bf16.gmra.mxu0 %v1104
        %v2282 = vpop.f32.mrf.mxu0
        %v2283 = vadd.f32 0.0, %v2282
        %v2284 = vpop.f32.mrf.mxu0
        %v2285 = vpop.f32.mrf.mxu0
        %v2286 = vadd.f32 0.0, %v2285
        %v2287 = vpop.f32.mrf.mxu0
        %2288 = vmatprep.mubr.bf16.mxu0 0
        %2289 = vmatmul.mubr.bf16.gmra.mxu0 %v1105
        %v2290 = vpop.f32.mrf.mxu0
        %v2291 = vadd.f32 0.0, %v2290
        %v2292 = vpop.f32.mrf.mxu0
        %v2293 = vpop.f32.mrf.mxu0
        %v2294 = vadd.f32 0.0, %v2293
        %v2295 = vpop.f32.mrf.mxu0
        %2296 = vmatprep.mubr.bf16.mxu0 0
        %2297 = vmatmul.mubr.bf16.gmra.mxu0 %v1106
        %v2298 = vpop.f32.mrf.mxu0
        %v2299 = vadd.f32 0.0, %v2298
        %v2300 = vpop.f32.mrf.mxu0
        %v2301 = vpop.f32.mrf.mxu0
        %v2302 = vadd.f32 0.0, %v2301
        %v2303 = vpop.f32.mrf.mxu0
        %2304 = vmatprep.mubr.bf16.mxu0 0
        %2305 = vmatmul.mubr.bf16.gmra.mxu0 %v1107
        %v2306 = vpop.f32.mrf.mxu0
        %v2307 = vadd.f32 0.0, %v2306
        %v2308 = vpop.f32.mrf.mxu0
        %v2309 = vpop.f32.mrf.mxu0
        %v2310 = vadd.f32 0.0, %v2309
        %v2311 = vpop.f32.mrf.mxu0
        %2312 = vmatprep.mubr.bf16.mxu0 0
        %2313 = vmatmul.mubr.bf16.gmra.mxu0 %v1108
        %v2314 = vpop.f32.mrf.mxu0
        %v2315 = vadd.f32 0.0, %v2314
        %v2316 = vpop.f32.mrf.mxu0
        %v2317 = vpop.f32.mrf.mxu0
        %v2318 = vadd.f32 0.0, %v2317
        %v2319 = vpop.f32.mrf.mxu0
        %2320 = vmatprep.mubr.bf16.mxu0 0
        %2321 = vmatmul.mubr.bf16.gmra.mxu0 %v1109
        %v2322 = vpop.f32.mrf.mxu0
        %v2323 = vadd.f32 0.0, %v2322
        %v2324 = vpop.f32.mrf.mxu0
        %v2325 = vpop.f32.mrf.mxu0
        %v2326 = vadd.f32 0.0, %v2325
        %v2327 = vpop.f32.mrf.mxu0
        %2328 = vmatprep.mubr.bf16.mxu0 0
        %2329 = vmatmul.mubr.bf16.gmra.mxu0 %v1110
        %v2330 = vpop.f32.mrf.mxu0
        %v2331 = vadd.f32 0.0, %v2330
        %v2332 = vpop.f32.mrf.mxu0
        %v2333 = vpop.f32.mrf.mxu0
        %v2334 = vadd.f32 0.0, %v2333
        %v2335 = vpop.f32.mrf.mxu0
        %2336 = vmatprep.mubr.bf16.mxu0 0
        %2337 = vmatmul.mubr.bf16.gmra.mxu0 %v1111
        %v2338 = vpop.f32.mrf.mxu0
        %v2339 = vadd.f32 0.0, %v2338
        %v2340 = vpop.f32.mrf.mxu0
        %v2341 = vpop.f32.mrf.mxu0
        %v2342 = vadd.f32 0.0, %v2341
        %v2343 = vpop.f32.mrf.mxu0
        %2344 = vdwg.mxu0
        %v2345 = vld [vmem:[%s2] sm:$0x1]
        %v2347 = vlaneseq
        %v2348 = vshrl.u32 %v2347, 7
        %v2349 = vsub.s32 0, %v2348
        %v2350 = vrot.slane %v2345, %v2349
        %v2352 = vmul.f32 %v1323, %v2350
        %v2353 = vmul.f32 %v1326, %v2350
        %v2354 = vmul.f32 %v1331, %v2350
        %v2355 = vmul.f32 %v1334, %v2350
        %v2356 = vmul.f32 %v1339, %v2350
        %v2357 = vmul.f32 %v1342, %v2350
        %v2358 = vmul.f32 %v1347, %v2350
        %v2359 = vmul.f32 %v1350, %v2350
        %v2360 = vmul.f32 %v1355, %v2350
        %v2361 = vmul.f32 %v1358, %v2350
        %v2362 = vmul.f32 %v1363, %v2350
        %v2363 = vmul.f32 %v1366, %v2350
        %v2364 = vmul.f32 %v1371, %v2350
        %v2365 = vmul.f32 %v1374, %v2350
        %v2366 = vmul.f32 %v1379, %v2350
        %v2367 = vmul.f32 %v1382, %v2350
        %v2368 = vmul.f32 %v1387, %v2350
        %v2369 = vmul.f32 %v1390, %v2350
        %v2370 = vmul.f32 %v1395, %v2350
        %v2371 = vmul.f32 %v1398, %v2350
        %v2372 = vmul.f32 %v1403, %v2350
        %v2373 = vmul.f32 %v1406, %v2350
        %v2374 = vmul.f32 %v1411, %v2350
        %v2375 = vmul.f32 %v1414, %v2350
        %v2376 = vmul.f32 %v1419, %v2350
        %v2377 = vmul.f32 %v1422, %v2350
        %v2378 = vmul.f32 %v1427, %v2350
        %v2379 = vmul.f32 %v1430, %v2350
        %v2380 = vmul.f32 %v1435, %v2350
        %v2381 = vmul.f32 %v1438, %v2350
        %v2382 = vmul.f32 %v1443, %v2350
        %v2383 = vmul.f32 %v1446, %v2350
        %v2384 = vmul.f32 %v1451, %v2350
        %v2385 = vmul.f32 %v1454, %v2350
        %v2386 = vmul.f32 %v1459, %v2350
        %v2387 = vmul.f32 %v1462, %v2350
        %v2388 = vmul.f32 %v1467, %v2350
        %v2389 = vmul.f32 %v1470, %v2350
        %v2390 = vmul.f32 %v1475, %v2350
        %v2391 = vmul.f32 %v1478, %v2350
        %v2392 = vmul.f32 %v1483, %v2350
        %v2393 = vmul.f32 %v1486, %v2350
        %v2394 = vmul.f32 %v1491, %v2350
        %v2395 = vmul.f32 %v1494, %v2350
        %v2396 = vmul.f32 %v1499, %v2350
        %v2397 = vmul.f32 %v1502, %v2350
        %v2398 = vmul.f32 %v1507, %v2350
        %v2399 = vmul.f32 %v1510, %v2350
        %v2400 = vmul.f32 %v1515, %v2350
        %v2401 = vmul.f32 %v1518, %v2350
        %v2402 = vmul.f32 %v1523, %v2350
        %v2403 = vmul.f32 %v1526, %v2350
        %v2404 = vmul.f32 %v1531, %v2350
        %v2405 = vmul.f32 %v1534, %v2350
        %v2406 = vmul.f32 %v1539, %v2350
        %v2407 = vmul.f32 %v1542, %v2350
        %v2408 = vmul.f32 %v1547, %v2350
        %v2409 = vmul.f32 %v1550, %v2350
        %v2410 = vmul.f32 %v1555, %v2350
        %v2411 = vmul.f32 %v1558, %v2350
        %v2412 = vmul.f32 %v1563, %v2350
        %v2413 = vmul.f32 %v1566, %v2350
        %v2414 = vmul.f32 %v1571, %v2350
        %v2415 = vmul.f32 %v1574, %v2350
        %v2416 = vmul.f32 %v1579, %v2350
        %v2417 = vmul.f32 %v1582, %v2350
        %v2418 = vmul.f32 %v1587, %v2350
        %v2419 = vmul.f32 %v1590, %v2350
        %v2420 = vmul.f32 %v1595, %v2350
        %v2421 = vmul.f32 %v1598, %v2350
        %v2422 = vmul.f32 %v1603, %v2350
        %v2423 = vmul.f32 %v1606, %v2350
        %v2424 = vmul.f32 %v1611, %v2350
        %v2425 = vmul.f32 %v1614, %v2350
        %v2426 = vmul.f32 %v1619, %v2350
        %v2427 = vmul.f32 %v1622, %v2350
        %v2428 = vmul.f32 %v1627, %v2350
        %v2429 = vmul.f32 %v1630, %v2350
        %v2430 = vmul.f32 %v1635, %v2350
        %v2431 = vmul.f32 %v1638, %v2350
        %v2432 = vmul.f32 %v1643, %v2350
        %v2433 = vmul.f32 %v1646, %v2350
        %v2434 = vmul.f32 %v1651, %v2350
        %v2435 = vmul.f32 %v1654, %v2350
        %v2436 = vmul.f32 %v1659, %v2350
        %v2437 = vmul.f32 %v1662, %v2350
        %v2438 = vmul.f32 %v1667, %v2350
        %v2439 = vmul.f32 %v1670, %v2350
        %v2440 = vmul.f32 %v1675, %v2350
        %v2441 = vmul.f32 %v1678, %v2350
        %v2442 = vmul.f32 %v1683, %v2350
        %v2443 = vmul.f32 %v1686, %v2350
        %v2444 = vmul.f32 %v1691, %v2350
        %v2445 = vmul.f32 %v1694, %v2350
        %v2446 = vmul.f32 %v1699, %v2350
        %v2447 = vmul.f32 %v1702, %v2350
        %v2448 = vmul.f32 %v1707, %v2350
        %v2449 = vmul.f32 %v1710, %v2350
        %v2450 = vmul.f32 %v1715, %v2350
        %v2451 = vmul.f32 %v1718, %v2350
        %v2452 = vmul.f32 %v1723, %v2350
        %v2453 = vmul.f32 %v1726, %v2350
        %v2454 = vmul.f32 %v1731, %v2350
        %v2455 = vmul.f32 %v1734, %v2350
        %v2456 = vmul.f32 %v1739, %v2350
        %v2457 = vmul.f32 %v1742, %v2350
        %v2458 = vmul.f32 %v1747, %v2350
        %v2459 = vmul.f32 %v1750, %v2350
        %v2460 = vmul.f32 %v1755, %v2350
        %v2461 = vmul.f32 %v1758, %v2350
        %v2462 = vmul.f32 %v1763, %v2350
        %v2463 = vmul.f32 %v1766, %v2350
        %v2464 = vmul.f32 %v1771, %v2350
        %v2465 = vmul.f32 %v1774, %v2350
        %v2466 = vmul.f32 %v1779, %v2350
        %v2467 = vmul.f32 %v1782, %v2350
        %v2468 = vmul.f32 %v1787, %v2350
        %v2469 = vmul.f32 %v1790, %v2350
        %v2470 = vmul.f32 %v1795, %v2350
        %v2471 = vmul.f32 %v1798, %v2350
        %v2472 = vmul.f32 %v1803, %v2350
        %v2473 = vmul.f32 %v1806, %v2350
        %v2474 = vmul.f32 %v1811, %v2350
        %v2475 = vmul.f32 %v1814, %v2350
        %v2476 = vmul.f32 %v1819, %v2350
        %v2477 = vmul.f32 %v1822, %v2350
        %v2478 = vmul.f32 %v1827, %v2350
        %v2479 = vmul.f32 %v1830, %v2350
        %v2480 = vmul.f32 %v1835, %v2350
        %v2481 = vmul.f32 %v1838, %v2350
        %v2482 = vmul.f32 %v1843, %v2350
        %v2483 = vmul.f32 %v1846, %v2350
        %v2484 = vmul.f32 %v1851, %v2350
        %v2485 = vmul.f32 %v1854, %v2350
        %v2486 = vmul.f32 %v1859, %v2350
        %v2487 = vmul.f32 %v1862, %v2350
        %v2488 = vmul.f32 %v1867, %v2350
        %v2489 = vmul.f32 %v1870, %v2350
        %v2490 = vmul.f32 %v1875, %v2350
        %v2491 = vmul.f32 %v1878, %v2350
        %v2492 = vmul.f32 %v1883, %v2350
        %v2493 = vmul.f32 %v1886, %v2350
        %v2494 = vmul.f32 %v1891, %v2350
        %v2495 = vmul.f32 %v1894, %v2350
        %v2496 = vmul.f32 %v1899, %v2350
        %v2497 = vmul.f32 %v1902, %v2350
        %v2498 = vmul.f32 %v1907, %v2350
        %v2499 = vmul.f32 %v1910, %v2350
        %v2500 = vmul.f32 %v1915, %v2350
        %v2501 = vmul.f32 %v1918, %v2350
        %v2502 = vmul.f32 %v1923, %v2350
        %v2503 = vmul.f32 %v1926, %v2350
        %v2504 = vmul.f32 %v1931, %v2350
        %v2505 = vmul.f32 %v1934, %v2350
        %v2506 = vmul.f32 %v1939, %v2350
        %v2507 = vmul.f32 %v1942, %v2350
        %v2508 = vmul.f32 %v1947, %v2350
        %v2509 = vmul.f32 %v1950, %v2350
        %v2510 = vmul.f32 %v1955, %v2350
        %v2511 = vmul.f32 %v1958, %v2350
        %v2512 = vmul.f32 %v1963, %v2350
        %v2513 = vmul.f32 %v1966, %v2350
        %v2514 = vmul.f32 %v1971, %v2350
        %v2515 = vmul.f32 %v1974, %v2350
        %v2516 = vmul.f32 %v1979, %v2350
        %v2517 = vmul.f32 %v1982, %v2350
        %v2518 = vmul.f32 %v1987, %v2350
        %v2519 = vmul.f32 %v1990, %v2350
        %v2520 = vmul.f32 %v1995, %v2350
        %v2521 = vmul.f32 %v1998, %v2350
        %v2522 = vmul.f32 %v2003, %v2350
        %v2523 = vmul.f32 %v2006, %v2350
        %v2524 = vmul.f32 %v2011, %v2350
        %v2525 = vmul.f32 %v2014, %v2350
        %v2526 = vmul.f32 %v2019, %v2350
        %v2527 = vmul.f32 %v2022, %v2350
        %v2528 = vmul.f32 %v2027, %v2350
        %v2529 = vmul.f32 %v2030, %v2350
        %v2530 = vmul.f32 %v2035, %v2350
        %v2531 = vmul.f32 %v2038, %v2350
        %v2532 = vmul.f32 %v2043, %v2350
        %v2533 = vmul.f32 %v2046, %v2350
        %v2534 = vmul.f32 %v2051, %v2350
        %v2535 = vmul.f32 %v2054, %v2350
        %v2536 = vmul.f32 %v2059, %v2350
        %v2537 = vmul.f32 %v2062, %v2350
        %v2538 = vmul.f32 %v2067, %v2350
        %v2539 = vmul.f32 %v2070, %v2350
        %v2540 = vmul.f32 %v2075, %v2350
        %v2541 = vmul.f32 %v2078, %v2350
        %v2542 = vmul.f32 %v2083, %v2350
        %v2543 = vmul.f32 %v2086, %v2350
        %v2544 = vmul.f32 %v2091, %v2350
        %v2545 = vmul.f32 %v2094, %v2350
        %v2546 = vmul.f32 %v2099, %v2350
        %v2547 = vmul.f32 %v2102, %v2350
        %v2548 = vmul.f32 %v2107, %v2350
        %v2549 = vmul.f32 %v2110, %v2350
        %v2550 = vmul.f32 %v2115, %v2350
        %v2551 = vmul.f32 %v2118, %v2350
        %v2552 = vmul.f32 %v2123, %v2350
        %v2553 = vmul.f32 %v2126, %v2350
        %v2554 = vmul.f32 %v2131, %v2350
        %v2555 = vmul.f32 %v2134, %v2350
        %v2556 = vmul.f32 %v2139, %v2350
        %v2557 = vmul.f32 %v2142, %v2350
        %v2558 = vmul.f32 %v2147, %v2350
        %v2559 = vmul.f32 %v2150, %v2350
        %v2560 = vmul.f32 %v2155, %v2350
        %v2561 = vmul.f32 %v2158, %v2350
        %v2562 = vmul.f32 %v2163, %v2350
        %v2563 = vmul.f32 %v2166, %v2350
        %v2564 = vmul.f32 %v2171, %v2350
        %v2565 = vmul.f32 %v2174, %v2350
        %v2566 = vmul.f32 %v2179, %v2350
        %v2567 = vmul.f32 %v2182, %v2350
        %v2568 = vmul.f32 %v2187, %v2350
        %v2569 = vmul.f32 %v2190, %v2350
        %v2570 = vmul.f32 %v2195, %v2350
        %v2571 = vmul.f32 %v2198, %v2350
        %v2572 = vmul.f32 %v2203, %v2350
        %v2573 = vmul.f32 %v2206, %v2350
        %v2574 = vmul.f32 %v2211, %v2350
        %v2575 = vmul.f32 %v2214, %v2350
        %v2576 = vmul.f32 %v2219, %v2350
        %v2577 = vmul.f32 %v2222, %v2350
        %v2578 = vmul.f32 %v2227, %v2350
        %v2579 = vmul.f32 %v2230, %v2350
        %v2580 = vmul.f32 %v2235, %v2350
        %v2581 = vmul.f32 %v2238, %v2350
        %v2582 = vmul.f32 %v2243, %v2350
        %v2583 = vmul.f32 %v2246, %v2350
        %v2584 = vmul.f32 %v2251, %v2350
        %v2585 = vmul.f32 %v2254, %v2350
        %v2586 = vmul.f32 %v2259, %v2350
        %v2587 = vmul.f32 %v2262, %v2350
        %v2588 = vmul.f32 %v2267, %v2350
        %v2589 = vmul.f32 %v2270, %v2350
        %v2590 = vmul.f32 %v2275, %v2350
        %v2591 = vmul.f32 %v2278, %v2350
        %v2592 = vmul.f32 %v2283, %v2350
        %v2593 = vmul.f32 %v2286, %v2350
        %v2594 = vmul.f32 %v2291, %v2350
        %v2595 = vmul.f32 %v2294, %v2350
        %v2596 = vmul.f32 %v2299, %v2350
        %v2597 = vmul.f32 %v2302, %v2350
        %v2598 = vmul.f32 %v2307, %v2350
        %v2599 = vmul.f32 %v2310, %v2350
        %v2600 = vmul.f32 %v2315, %v2350
        %v2601 = vmul.f32 %v2318, %v2350
        %v2602 = vmul.f32 %v2323, %v2350
        %v2603 = vmul.f32 %v2326, %v2350
        %v2604 = vmul.f32 %v2331, %v2350
        %v2605 = vmul.f32 %v2334, %v2350
        %v2606 = vmul.f32 %v2339, %v2350
        %v2607 = vmul.f32 %v2342, %v2350
        %v2608 = vld [vmem:[%s3] sm:$0x1]
        %v2610 = vlaneseq
        %v2611 = vshrl.u32 %v2610, 7
        %v2612 = vsub.s32 0, %v2611
        %v2613 = vrot.slane %v2608, %v2612
        %v2615 = vadd.f32 %v2352, %v2613
        %v2616 = vadd.f32 %v2353, %v2613
        %v2617 = vadd.f32 %v2354, %v2613
        %v2618 = vadd.f32 %v2355, %v2613
        %v2619 = vadd.f32 %v2356, %v2613
        %v2620 = vadd.f32 %v2357, %v2613
        %v2621 = vadd.f32 %v2358, %v2613
        %v2622 = vadd.f32 %v2359, %v2613
        %v2623 = vadd.f32 %v2360, %v2613
        %v2624 = vadd.f32 %v2361, %v2613
        %v2625 = vadd.f32 %v2362, %v2613
        %v2626 = vadd.f32 %v2363, %v2613
        %v2627 = vadd.f32 %v2364, %v2613
        %v2628 = vadd.f32 %v2365, %v2613
        %v2629 = vadd.f32 %v2366, %v2613
        %v2630 = vadd.f32 %v2367, %v2613
        %v2631 = vadd.f32 %v2368, %v2613
        %v2632 = vadd.f32 %v2369, %v2613
        %v2633 = vadd.f32 %v2370, %v2613
        %v2634 = vadd.f32 %v2371, %v2613
        %v2635 = vadd.f32 %v2372, %v2613
        %v2636 = vadd.f32 %v2373, %v2613
        %v2637 = vadd.f32 %v2374, %v2613
        %v2638 = vadd.f32 %v2375, %v2613
        %v2639 = vadd.f32 %v2376, %v2613
        %v2640 = vadd.f32 %v2377, %v2613
        %v2641 = vadd.f32 %v2378, %v2613
        %v2642 = vadd.f32 %v2379, %v2613
        %v2643 = vadd.f32 %v2380, %v2613
        %v2644 = vadd.f32 %v2381, %v2613
        %v2645 = vadd.f32 %v2382, %v2613
        %v2646 = vadd.f32 %v2383, %v2613
        %v2647 = vadd.f32 %v2384, %v2613
        %v2648 = vadd.f32 %v2385, %v2613
        %v2649 = vadd.f32 %v2386, %v2613
        %v2650 = vadd.f32 %v2387, %v2613
        %v2651 = vadd.f32 %v2388, %v2613
        %v2652 = vadd.f32 %v2389, %v2613
        %v2653 = vadd.f32 %v2390, %v2613
        %v2654 = vadd.f32 %v2391, %v2613
        %v2655 = vadd.f32 %v2392, %v2613
        %v2656 = vadd.f32 %v2393, %v2613
        %v2657 = vadd.f32 %v2394, %v2613
        %v2658 = vadd.f32 %v2395, %v2613
        %v2659 = vadd.f32 %v2396, %v2613
        %v2660 = vadd.f32 %v2397, %v2613
        %v2661 = vadd.f32 %v2398, %v2613
        %v2662 = vadd.f32 %v2399, %v2613
        %v2663 = vadd.f32 %v2400, %v2613
        %v2664 = vadd.f32 %v2401, %v2613
        %v2665 = vadd.f32 %v2402, %v2613
        %v2666 = vadd.f32 %v2403, %v2613
        %v2667 = vadd.f32 %v2404, %v2613
        %v2668 = vadd.f32 %v2405, %v2613
        %v2669 = vadd.f32 %v2406, %v2613
        %v2670 = vadd.f32 %v2407, %v2613
        %v2671 = vadd.f32 %v2408, %v2613
        %v2672 = vadd.f32 %v2409, %v2613
        %v2673 = vadd.f32 %v2410, %v2613
        %v2674 = vadd.f32 %v2411, %v2613
        %v2675 = vadd.f32 %v2412, %v2613
        %v2676 = vadd.f32 %v2413, %v2613
        %v2677 = vadd.f32 %v2414, %v2613
        %v2678 = vadd.f32 %v2415, %v2613
        %v2679 = vadd.f32 %v2416, %v2613
        %v2680 = vadd.f32 %v2417, %v2613
        %v2681 = vadd.f32 %v2418, %v2613
        %v2682 = vadd.f32 %v2419, %v2613
        %v2683 = vadd.f32 %v2420, %v2613
        %v2684 = vadd.f32 %v2421, %v2613
        %v2685 = vadd.f32 %v2422, %v2613
        %v2686 = vadd.f32 %v2423, %v2613
        %v2687 = vadd.f32 %v2424, %v2613
        %v2688 = vadd.f32 %v2425, %v2613
        %v2689 = vadd.f32 %v2426, %v2613
        %v2690 = vadd.f32 %v2427, %v2613
        %v2691 = vadd.f32 %v2428, %v2613
        %v2692 = vadd.f32 %v2429, %v2613
        %v2693 = vadd.f32 %v2430, %v2613
        %v2694 = vadd.f32 %v2431, %v2613
        %v2695 = vadd.f32 %v2432, %v2613
        %v2696 = vadd.f32 %v2433, %v2613
        %v2697 = vadd.f32 %v2434, %v2613
        %v2698 = vadd.f32 %v2435, %v2613
        %v2699 = vadd.f32 %v2436, %v2613
        %v2700 = vadd.f32 %v2437, %v2613
        %v2701 = vadd.f32 %v2438, %v2613
        %v2702 = vadd.f32 %v2439, %v2613
        %v2703 = vadd.f32 %v2440, %v2613
        %v2704 = vadd.f32 %v2441, %v2613
        %v2705 = vadd.f32 %v2442, %v2613
        %v2706 = vadd.f32 %v2443, %v2613
        %v2707 = vadd.f32 %v2444, %v2613
        %v2708 = vadd.f32 %v2445, %v2613
        %v2709 = vadd.f32 %v2446, %v2613
        %v2710 = vadd.f32 %v2447, %v2613
        %v2711 = vadd.f32 %v2448, %v2613
        %v2712 = vadd.f32 %v2449, %v2613
        %v2713 = vadd.f32 %v2450, %v2613
        %v2714 = vadd.f32 %v2451, %v2613
        %v2715 = vadd.f32 %v2452, %v2613
        %v2716 = vadd.f32 %v2453, %v2613
        %v2717 = vadd.f32 %v2454, %v2613
        %v2718 = vadd.f32 %v2455, %v2613
        %v2719 = vadd.f32 %v2456, %v2613
        %v2720 = vadd.f32 %v2457, %v2613
        %v2721 = vadd.f32 %v2458, %v2613
        %v2722 = vadd.f32 %v2459, %v2613
        %v2723 = vadd.f32 %v2460, %v2613
        %v2724 = vadd.f32 %v2461, %v2613
        %v2725 = vadd.f32 %v2462, %v2613
        %v2726 = vadd.f32 %v2463, %v2613
        %v2727 = vadd.f32 %v2464, %v2613
        %v2728 = vadd.f32 %v2465, %v2613
        %v2729 = vadd.f32 %v2466, %v2613
        %v2730 = vadd.f32 %v2467, %v2613
        %v2731 = vadd.f32 %v2468, %v2613
        %v2732 = vadd.f32 %v2469, %v2613
        %v2733 = vadd.f32 %v2470, %v2613
        %v2734 = vadd.f32 %v2471, %v2613
        %v2735 = vadd.f32 %v2472, %v2613
        %v2736 = vadd.f32 %v2473, %v2613
        %v2737 = vadd.f32 %v2474, %v2613
        %v2738 = vadd.f32 %v2475, %v2613
        %v2739 = vadd.f32 %v2476, %v2613
        %v2740 = vadd.f32 %v2477, %v2613
        %v2741 = vadd.f32 %v2478, %v2613
        %v2742 = vadd.f32 %v2479, %v2613
        %v2743 = vadd.f32 %v2480, %v2613
        %v2744 = vadd.f32 %v2481, %v2613
        %v2745 = vadd.f32 %v2482, %v2613
        %v2746 = vadd.f32 %v2483, %v2613
        %v2747 = vadd.f32 %v2484, %v2613
        %v2748 = vadd.f32 %v2485, %v2613
        %v2749 = vadd.f32 %v2486, %v2613
        %v2750 = vadd.f32 %v2487, %v2613
        %v2751 = vadd.f32 %v2488, %v2613
        %v2752 = vadd.f32 %v2489, %v2613
        %v2753 = vadd.f32 %v2490, %v2613
        %v2754 = vadd.f32 %v2491, %v2613
        %v2755 = vadd.f32 %v2492, %v2613
        %v2756 = vadd.f32 %v2493, %v2613
        %v2757 = vadd.f32 %v2494, %v2613
        %v2758 = vadd.f32 %v2495, %v2613
        %v2759 = vadd.f32 %v2496, %v2613
        %v2760 = vadd.f32 %v2497, %v2613
        %v2761 = vadd.f32 %v2498, %v2613
        %v2762 = vadd.f32 %v2499, %v2613
        %v2763 = vadd.f32 %v2500, %v2613
        %v2764 = vadd.f32 %v2501, %v2613
        %v2765 = vadd.f32 %v2502, %v2613
        %v2766 = vadd.f32 %v2503, %v2613
        %v2767 = vadd.f32 %v2504, %v2613
        %v2768 = vadd.f32 %v2505, %v2613
        %v2769 = vadd.f32 %v2506, %v2613
        %v2770 = vadd.f32 %v2507, %v2613
        %v2771 = vadd.f32 %v2508, %v2613
        %v2772 = vadd.f32 %v2509, %v2613
        %v2773 = vadd.f32 %v2510, %v2613
        %v2774 = vadd.f32 %v2511, %v2613
        %v2775 = vadd.f32 %v2512, %v2613
        %v2776 = vadd.f32 %v2513, %v2613
        %v2777 = vadd.f32 %v2514, %v2613
        %v2778 = vadd.f32 %v2515, %v2613
        %v2779 = vadd.f32 %v2516, %v2613
        %v2780 = vadd.f32 %v2517, %v2613
        %v2781 = vadd.f32 %v2518, %v2613
        %v2782 = vadd.f32 %v2519, %v2613
        %v2783 = vadd.f32 %v2520, %v2613
        %v2784 = vadd.f32 %v2521, %v2613
        %v2785 = vadd.f32 %v2522, %v2613
        %v2786 = vadd.f32 %v2523, %v2613
        %v2787 = vadd.f32 %v2524, %v2613
        %v2788 = vadd.f32 %v2525, %v2613
        %v2789 = vadd.f32 %v2526, %v2613
        %v2790 = vadd.f32 %v2527, %v2613
        %v2791 = vadd.f32 %v2528, %v2613
        %v2792 = vadd.f32 %v2529, %v2613
        %v2793 = vadd.f32 %v2530, %v2613
        %v2794 = vadd.f32 %v2531, %v2613
        %v2795 = vadd.f32 %v2532, %v2613
        %v2796 = vadd.f32 %v2533, %v2613
        %v2797 = vadd.f32 %v2534, %v2613
        %v2798 = vadd.f32 %v2535, %v2613
        %v2799 = vadd.f32 %v2536, %v2613
        %v2800 = vadd.f32 %v2537, %v2613
        %v2801 = vadd.f32 %v2538, %v2613
        %v2802 = vadd.f32 %v2539, %v2613
        %v2803 = vadd.f32 %v2540, %v2613
        %v2804 = vadd.f32 %v2541, %v2613
        %v2805 = vadd.f32 %v2542, %v2613
        %v2806 = vadd.f32 %v2543, %v2613
        %v2807 = vadd.f32 %v2544, %v2613
        %v2808 = vadd.f32 %v2545, %v2613
        %v2809 = vadd.f32 %v2546, %v2613
        %v2810 = vadd.f32 %v2547, %v2613
        %v2811 = vadd.f32 %v2548, %v2613
        %v2812 = vadd.f32 %v2549, %v2613
        %v2813 = vadd.f32 %v2550, %v2613
        %v2814 = vadd.f32 %v2551, %v2613
        %v2815 = vadd.f32 %v2552, %v2613
        %v2816 = vadd.f32 %v2553, %v2613
        %v2817 = vadd.f32 %v2554, %v2613
        %v2818 = vadd.f32 %v2555, %v2613
        %v2819 = vadd.f32 %v2556, %v2613
        %v2820 = vadd.f32 %v2557, %v2613
        %v2821 = vadd.f32 %v2558, %v2613
        %v2822 = vadd.f32 %v2559, %v2613
        %v2823 = vadd.f32 %v2560, %v2613
        %v2824 = vadd.f32 %v2561, %v2613
        %v2825 = vadd.f32 %v2562, %v2613
        %v2826 = vadd.f32 %v2563, %v2613
        %v2827 = vadd.f32 %v2564, %v2613
        %v2828 = vadd.f32 %v2565, %v2613
        %v2829 = vadd.f32 %v2566, %v2613
        %v2830 = vadd.f32 %v2567, %v2613
        %v2831 = vadd.f32 %v2568, %v2613
        %v2832 = vadd.f32 %v2569, %v2613
        %v2833 = vadd.f32 %v2570, %v2613
        %v2834 = vadd.f32 %v2571, %v2613
        %v2835 = vadd.f32 %v2572, %v2613
        %v2836 = vadd.f32 %v2573, %v2613
        %v2837 = vadd.f32 %v2574, %v2613
        %v2838 = vadd.f32 %v2575, %v2613
        %v2839 = vadd.f32 %v2576, %v2613
        %v2840 = vadd.f32 %v2577, %v2613
        %v2841 = vadd.f32 %v2578, %v2613
        %v2842 = vadd.f32 %v2579, %v2613
        %v2843 = vadd.f32 %v2580, %v2613
        %v2844 = vadd.f32 %v2581, %v2613
        %v2845 = vadd.f32 %v2582, %v2613
        %v2846 = vadd.f32 %v2583, %v2613
        %v2847 = vadd.f32 %v2584, %v2613
        %v2848 = vadd.f32 %v2585, %v2613
        %v2849 = vadd.f32 %v2586, %v2613
        %v2850 = vadd.f32 %v2587, %v2613
        %v2851 = vadd.f32 %v2588, %v2613
        %v2852 = vadd.f32 %v2589, %v2613
        %v2853 = vadd.f32 %v2590, %v2613
        %v2854 = vadd.f32 %v2591, %v2613
        %v2855 = vadd.f32 %v2592, %v2613
        %v2856 = vadd.f32 %v2593, %v2613
        %v2857 = vadd.f32 %v2594, %v2613
        %v2858 = vadd.f32 %v2595, %v2613
        %v2859 = vadd.f32 %v2596, %v2613
        %v2860 = vadd.f32 %v2597, %v2613
        %v2861 = vadd.f32 %v2598, %v2613
        %v2862 = vadd.f32 %v2599, %v2613
        %v2863 = vadd.f32 %v2600, %v2613
        %v2864 = vadd.f32 %v2601, %v2613
        %v2865 = vadd.f32 %v2602, %v2613
        %v2866 = vadd.f32 %v2603, %v2613
        %v2867 = vadd.f32 %v2604, %v2613
        %v2868 = vadd.f32 %v2605, %v2613
        %v2869 = vadd.f32 %v2606, %v2613
        %v2870 = vadd.f32 %v2607, %v2613
        %vm2871 = vcmp.gt.f32.partialorder %v2615, 0.0
        %vm2872 = vcmp.gt.f32.partialorder %v2616, 0.0
        %vm2873 = vcmp.gt.f32.partialorder %v2617, 0.0
        %vm2874 = vcmp.gt.f32.partialorder %v2618, 0.0
        %vm2875 = vcmp.gt.f32.partialorder %v2619, 0.0
        %vm2876 = vcmp.gt.f32.partialorder %v2620, 0.0
        %vm2877 = vcmp.gt.f32.partialorder %v2621, 0.0
        %vm2878 = vcmp.gt.f32.partialorder %v2622, 0.0
        %vm2879 = vcmp.gt.f32.partialorder %v2623, 0.0
        %vm2880 = vcmp.gt.f32.partialorder %v2624, 0.0
        %vm2881 = vcmp.gt.f32.partialorder %v2625, 0.0
        %vm2882 = vcmp.gt.f32.partialorder %v2626, 0.0
        %vm2883 = vcmp.gt.f32.partialorder %v2627, 0.0
        %vm2884 = vcmp.gt.f32.partialorder %v2628, 0.0
        %vm2885 = vcmp.gt.f32.partialorder %v2629, 0.0
        %vm2886 = vcmp.gt.f32.partialorder %v2630, 0.0
        %vm2887 = vcmp.gt.f32.partialorder %v2631, 0.0
        %vm2888 = vcmp.gt.f32.partialorder %v2632, 0.0
        %vm2889 = vcmp.gt.f32.partialorder %v2633, 0.0
        %vm2890 = vcmp.gt.f32.partialorder %v2634, 0.0
        %vm2891 = vcmp.gt.f32.partialorder %v2635, 0.0
        %vm2892 = vcmp.gt.f32.partialorder %v2636, 0.0
        %vm2893 = vcmp.gt.f32.partialorder %v2637, 0.0
        %vm2894 = vcmp.gt.f32.partialorder %v2638, 0.0
        %vm2895 = vcmp.gt.f32.partialorder %v2639, 0.0
        %vm2896 = vcmp.gt.f32.partialorder %v2640, 0.0
        %vm2897 = vcmp.gt.f32.partialorder %v2641, 0.0
        %vm2898 = vcmp.gt.f32.partialorder %v2642, 0.0
        %vm2899 = vcmp.gt.f32.partialorder %v2643, 0.0
        %vm2900 = vcmp.gt.f32.partialorder %v2644, 0.0
        %vm2901 = vcmp.gt.f32.partialorder %v2645, 0.0
        %vm2902 = vcmp.gt.f32.partialorder %v2646, 0.0
        %vm2903 = vcmp.gt.f32.partialorder %v2647, 0.0
        %vm2904 = vcmp.gt.f32.partialorder %v2648, 0.0
        %vm2905 = vcmp.gt.f32.partialorder %v2649, 0.0
        %vm2906 = vcmp.gt.f32.partialorder %v2650, 0.0
        %vm2907 = vcmp.gt.f32.partialorder %v2651, 0.0
        %vm2908 = vcmp.gt.f32.partialorder %v2652, 0.0
        %vm2909 = vcmp.gt.f32.partialorder %v2653, 0.0
        %vm2910 = vcmp.gt.f32.partialorder %v2654, 0.0
        %vm2911 = vcmp.gt.f32.partialorder %v2655, 0.0
        %vm2912 = vcmp.gt.f32.partialorder %v2656, 0.0
        %vm2913 = vcmp.gt.f32.partialorder %v2657, 0.0
        %vm2914 = vcmp.gt.f32.partialorder %v2658, 0.0
        %vm2915 = vcmp.gt.f32.partialorder %v2659, 0.0
        %vm2916 = vcmp.gt.f32.partialorder %v2660, 0.0
        %vm2917 = vcmp.gt.f32.partialorder %v2661, 0.0
        %vm2918 = vcmp.gt.f32.partialorder %v2662, 0.0
        %vm2919 = vcmp.gt.f32.partialorder %v2663, 0.0
        %vm2920 = vcmp.gt.f32.partialorder %v2664, 0.0
        %vm2921 = vcmp.gt.f32.partialorder %v2665, 0.0
        %vm2922 = vcmp.gt.f32.partialorder %v2666, 0.0
        %vm2923 = vcmp.gt.f32.partialorder %v2667, 0.0
        %vm2924 = vcmp.gt.f32.partialorder %v2668, 0.0
        %vm2925 = vcmp.gt.f32.partialorder %v2669, 0.0
        %vm2926 = vcmp.gt.f32.partialorder %v2670, 0.0
        %vm2927 = vcmp.gt.f32.partialorder %v2671, 0.0
        %vm2928 = vcmp.gt.f32.partialorder %v2672, 0.0
        %vm2929 = vcmp.gt.f32.partialorder %v2673, 0.0
        %vm2930 = vcmp.gt.f32.partialorder %v2674, 0.0
        %vm2931 = vcmp.gt.f32.partialorder %v2675, 0.0
        %vm2932 = vcmp.gt.f32.partialorder %v2676, 0.0
        %vm2933 = vcmp.gt.f32.partialorder %v2677, 0.0
        %vm2934 = vcmp.gt.f32.partialorder %v2678, 0.0
        %vm2935 = vcmp.gt.f32.partialorder %v2679, 0.0
        %vm2936 = vcmp.gt.f32.partialorder %v2680, 0.0
        %vm2937 = vcmp.gt.f32.partialorder %v2681, 0.0
        %vm2938 = vcmp.gt.f32.partialorder %v2682, 0.0
        %vm2939 = vcmp.gt.f32.partialorder %v2683, 0.0
        %vm2940 = vcmp.gt.f32.partialorder %v2684, 0.0
        %vm2941 = vcmp.gt.f32.partialorder %v2685, 0.0
        %vm2942 = vcmp.gt.f32.partialorder %v2686, 0.0
        %vm2943 = vcmp.gt.f32.partialorder %v2687, 0.0
        %vm2944 = vcmp.gt.f32.partialorder %v2688, 0.0
        %vm2945 = vcmp.gt.f32.partialorder %v2689, 0.0
        %vm2946 = vcmp.gt.f32.partialorder %v2690, 0.0
        %vm2947 = vcmp.gt.f32.partialorder %v2691, 0.0
        %vm2948 = vcmp.gt.f32.partialorder %v2692, 0.0
        %vm2949 = vcmp.gt.f32.partialorder %v2693, 0.0
        %vm2950 = vcmp.gt.f32.partialorder %v2694, 0.0
        %vm2951 = vcmp.gt.f32.partialorder %v2695, 0.0
        %vm2952 = vcmp.gt.f32.partialorder %v2696, 0.0
        %vm2953 = vcmp.gt.f32.partialorder %v2697, 0.0
        %vm2954 = vcmp.gt.f32.partialorder %v2698, 0.0
        %vm2955 = vcmp.gt.f32.partialorder %v2699, 0.0
        %vm2956 = vcmp.gt.f32.partialorder %v2700, 0.0
        %vm2957 = vcmp.gt.f32.partialorder %v2701, 0.0
        %vm2958 = vcmp.gt.f32.partialorder %v2702, 0.0
        %vm2959 = vcmp.gt.f32.partialorder %v2703, 0.0
        %vm2960 = vcmp.gt.f32.partialorder %v2704, 0.0
        %vm2961 = vcmp.gt.f32.partialorder %v2705, 0.0
        %vm2962 = vcmp.gt.f32.partialorder %v2706, 0.0
        %vm2963 = vcmp.gt.f32.partialorder %v2707, 0.0
        %vm2964 = vcmp.gt.f32.partialorder %v2708, 0.0
        %vm2965 = vcmp.gt.f32.partialorder %v2709, 0.0
        %vm2966 = vcmp.gt.f32.partialorder %v2710, 0.0
        %vm2967 = vcmp.gt.f32.partialorder %v2711, 0.0
        %vm2968 = vcmp.gt.f32.partialorder %v2712, 0.0
        %vm2969 = vcmp.gt.f32.partialorder %v2713, 0.0
        %vm2970 = vcmp.gt.f32.partialorder %v2714, 0.0
        %vm2971 = vcmp.gt.f32.partialorder %v2715, 0.0
        %vm2972 = vcmp.gt.f32.partialorder %v2716, 0.0
        %vm2973 = vcmp.gt.f32.partialorder %v2717, 0.0
        %vm2974 = vcmp.gt.f32.partialorder %v2718, 0.0
        %vm2975 = vcmp.gt.f32.partialorder %v2719, 0.0
        %vm2976 = vcmp.gt.f32.partialorder %v2720, 0.0
        %vm2977 = vcmp.gt.f32.partialorder %v2721, 0.0
        %vm2978 = vcmp.gt.f32.partialorder %v2722, 0.0
        %vm2979 = vcmp.gt.f32.partialorder %v2723, 0.0
        %vm2980 = vcmp.gt.f32.partialorder %v2724, 0.0
        %vm2981 = vcmp.gt.f32.partialorder %v2725, 0.0
        %vm2982 = vcmp.gt.f32.partialorder %v2726, 0.0
        %vm2983 = vcmp.gt.f32.partialorder %v2727, 0.0
        %vm2984 = vcmp.gt.f32.partialorder %v2728, 0.0
        %vm2985 = vcmp.gt.f32.partialorder %v2729, 0.0
        %vm2986 = vcmp.gt.f32.partialorder %v2730, 0.0
        %vm2987 = vcmp.gt.f32.partialorder %v2731, 0.0
        %vm2988 = vcmp.gt.f32.partialorder %v2732, 0.0
        %vm2989 = vcmp.gt.f32.partialorder %v2733, 0.0
        %vm2990 = vcmp.gt.f32.partialorder %v2734, 0.0
        %vm2991 = vcmp.gt.f32.partialorder %v2735, 0.0
        %vm2992 = vcmp.gt.f32.partialorder %v2736, 0.0
        %vm2993 = vcmp.gt.f32.partialorder %v2737, 0.0
        %vm2994 = vcmp.gt.f32.partialorder %v2738, 0.0
        %vm2995 = vcmp.gt.f32.partialorder %v2739, 0.0
        %vm2996 = vcmp.gt.f32.partialorder %v2740, 0.0
        %vm2997 = vcmp.gt.f32.partialorder %v2741, 0.0
        %vm2998 = vcmp.gt.f32.partialorder %v2742, 0.0
        %vm2999 = vcmp.gt.f32.partialorder %v2743, 0.0
        %vm3000 = vcmp.gt.f32.partialorder %v2744, 0.0
        %vm3001 = vcmp.gt.f32.partialorder %v2745, 0.0
        %vm3002 = vcmp.gt.f32.partialorder %v2746, 0.0
        %vm3003 = vcmp.gt.f32.partialorder %v2747, 0.0
        %vm3004 = vcmp.gt.f32.partialorder %v2748, 0.0
        %vm3005 = vcmp.gt.f32.partialorder %v2749, 0.0
        %vm3006 = vcmp.gt.f32.partialorder %v2750, 0.0
        %vm3007 = vcmp.gt.f32.partialorder %v2751, 0.0
        %vm3008 = vcmp.gt.f32.partialorder %v2752, 0.0
        %vm3009 = vcmp.gt.f32.partialorder %v2753, 0.0
        %vm3010 = vcmp.gt.f32.partialorder %v2754, 0.0
        %vm3011 = vcmp.gt.f32.partialorder %v2755, 0.0
        %vm3012 = vcmp.gt.f32.partialorder %v2756, 0.0
        %vm3013 = vcmp.gt.f32.partialorder %v2757, 0.0
        %vm3014 = vcmp.gt.f32.partialorder %v2758, 0.0
        %vm3015 = vcmp.gt.f32.partialorder %v2759, 0.0
        %vm3016 = vcmp.gt.f32.partialorder %v2760, 0.0
        %vm3017 = vcmp.gt.f32.partialorder %v2761, 0.0
        %vm3018 = vcmp.gt.f32.partialorder %v2762, 0.0
        %vm3019 = vcmp.gt.f32.partialorder %v2763, 0.0
        %vm3020 = vcmp.gt.f32.partialorder %v2764, 0.0
        %vm3021 = vcmp.gt.f32.partialorder %v2765, 0.0
        %vm3022 = vcmp.gt.f32.partialorder %v2766, 0.0
        %vm3023 = vcmp.gt.f32.partialorder %v2767, 0.0
        %vm3024 = vcmp.gt.f32.partialorder %v2768, 0.0
        %vm3025 = vcmp.gt.f32.partialorder %v2769, 0.0
        %vm3026 = vcmp.gt.f32.partialorder %v2770, 0.0
        %vm3027 = vcmp.gt.f32.partialorder %v2771, 0.0
        %vm3028 = vcmp.gt.f32.partialorder %v2772, 0.0
        %vm3029 = vcmp.gt.f32.partialorder %v2773, 0.0
        %vm3030 = vcmp.gt.f32.partialorder %v2774, 0.0
        %vm3031 = vcmp.gt.f32.partialorder %v2775, 0.0
        %vm3032 = vcmp.gt.f32.partialorder %v2776, 0.0
        %vm3033 = vcmp.gt.f32.partialorder %v2777, 0.0
        %vm3034 = vcmp.gt.f32.partialorder %v2778, 0.0
        %vm3035 = vcmp.gt.f32.partialorder %v2779, 0.0
        %vm3036 = vcmp.gt.f32.partialorder %v2780, 0.0
        %vm3037 = vcmp.gt.f32.partialorder %v2781, 0.0
        %vm3038 = vcmp.gt.f32.partialorder %v2782, 0.0
        %vm3039 = vcmp.gt.f32.partialorder %v2783, 0.0
        %vm3040 = vcmp.gt.f32.partialorder %v2784, 0.0
        %vm3041 = vcmp.gt.f32.partialorder %v2785, 0.0
        %vm3042 = vcmp.gt.f32.partialorder %v2786, 0.0
        %vm3043 = vcmp.gt.f32.partialorder %v2787, 0.0
        %vm3044 = vcmp.gt.f32.partialorder %v2788, 0.0
        %vm3045 = vcmp.gt.f32.partialorder %v2789, 0.0
        %vm3046 = vcmp.gt.f32.partialorder %v2790, 0.0
        %vm3047 = vcmp.gt.f32.partialorder %v2791, 0.0
        %vm3048 = vcmp.gt.f32.partialorder %v2792, 0.0
        %vm3049 = vcmp.gt.f32.partialorder %v2793, 0.0
        %vm3050 = vcmp.gt.f32.partialorder %v2794, 0.0
        %vm3051 = vcmp.gt.f32.partialorder %v2795, 0.0
        %vm3052 = vcmp.gt.f32.partialorder %v2796, 0.0
        %vm3053 = vcmp.gt.f32.partialorder %v2797, 0.0
        %vm3054 = vcmp.gt.f32.partialorder %v2798, 0.0
        %vm3055 = vcmp.gt.f32.partialorder %v2799, 0.0
        %vm3056 = vcmp.gt.f32.partialorder %v2800, 0.0
        %vm3057 = vcmp.gt.f32.partialorder %v2801, 0.0
        %vm3058 = vcmp.gt.f32.partialorder %v2802, 0.0
        %vm3059 = vcmp.gt.f32.partialorder %v2803, 0.0
        %vm3060 = vcmp.gt.f32.partialorder %v2804, 0.0
        %vm3061 = vcmp.gt.f32.partialorder %v2805, 0.0
        %vm3062 = vcmp.gt.f32.partialorder %v2806, 0.0
        %vm3063 = vcmp.gt.f32.partialorder %v2807, 0.0
        %vm3064 = vcmp.gt.f32.partialorder %v2808, 0.0
        %vm3065 = vcmp.gt.f32.partialorder %v2809, 0.0
        %vm3066 = vcmp.gt.f32.partialorder %v2810, 0.0
        %vm3067 = vcmp.gt.f32.partialorder %v2811, 0.0
        %vm3068 = vcmp.gt.f32.partialorder %v2812, 0.0
        %vm3069 = vcmp.gt.f32.partialorder %v2813, 0.0
        %vm3070 = vcmp.gt.f32.partialorder %v2814, 0.0
        %vm3071 = vcmp.gt.f32.partialorder %v2815, 0.0
        %vm3072 = vcmp.gt.f32.partialorder %v2816, 0.0
        %vm3073 = vcmp.gt.f32.partialorder %v2817, 0.0
        %vm3074 = vcmp.gt.f32.partialorder %v2818, 0.0
        %vm3075 = vcmp.gt.f32.partialorder %v2819, 0.0
        %vm3076 = vcmp.gt.f32.partialorder %v2820, 0.0
        %vm3077 = vcmp.gt.f32.partialorder %v2821, 0.0
        %vm3078 = vcmp.gt.f32.partialorder %v2822, 0.0
        %vm3079 = vcmp.gt.f32.partialorder %v2823, 0.0
        %vm3080 = vcmp.gt.f32.partialorder %v2824, 0.0
        %vm3081 = vcmp.gt.f32.partialorder %v2825, 0.0
        %vm3082 = vcmp.gt.f32.partialorder %v2826, 0.0
        %vm3083 = vcmp.gt.f32.partialorder %v2827, 0.0
        %vm3084 = vcmp.gt.f32.partialorder %v2828, 0.0
        %vm3085 = vcmp.gt.f32.partialorder %v2829, 0.0
        %vm3086 = vcmp.gt.f32.partialorder %v2830, 0.0
        %vm3087 = vcmp.gt.f32.partialorder %v2831, 0.0
        %vm3088 = vcmp.gt.f32.partialorder %v2832, 0.0
        %vm3089 = vcmp.gt.f32.partialorder %v2833, 0.0
        %vm3090 = vcmp.gt.f32.partialorder %v2834, 0.0
        %vm3091 = vcmp.gt.f32.partialorder %v2835, 0.0
        %vm3092 = vcmp.gt.f32.partialorder %v2836, 0.0
        %vm3093 = vcmp.gt.f32.partialorder %v2837, 0.0
        %vm3094 = vcmp.gt.f32.partialorder %v2838, 0.0
        %vm3095 = vcmp.gt.f32.partialorder %v2839, 0.0
        %vm3096 = vcmp.gt.f32.partialorder %v2840, 0.0
        %vm3097 = vcmp.gt.f32.partialorder %v2841, 0.0
        %vm3098 = vcmp.gt.f32.partialorder %v2842, 0.0
        %vm3099 = vcmp.gt.f32.partialorder %v2843, 0.0
        %vm3100 = vcmp.gt.f32.partialorder %v2844, 0.0
        %vm3101 = vcmp.gt.f32.partialorder %v2845, 0.0
        %vm3102 = vcmp.gt.f32.partialorder %v2846, 0.0
        %vm3103 = vcmp.gt.f32.partialorder %v2847, 0.0
        %vm3104 = vcmp.gt.f32.partialorder %v2848, 0.0
        %vm3105 = vcmp.gt.f32.partialorder %v2849, 0.0
        %vm3106 = vcmp.gt.f32.partialorder %v2850, 0.0
        %vm3107 = vcmp.gt.f32.partialorder %v2851, 0.0
        %vm3108 = vcmp.gt.f32.partialorder %v2852, 0.0
        %vm3109 = vcmp.gt.f32.partialorder %v2853, 0.0
        %vm3110 = vcmp.gt.f32.partialorder %v2854, 0.0
        %vm3111 = vcmp.gt.f32.partialorder %v2855, 0.0
        %vm3112 = vcmp.gt.f32.partialorder %v2856, 0.0
        %vm3113 = vcmp.gt.f32.partialorder %v2857, 0.0
        %vm3114 = vcmp.gt.f32.partialorder %v2858, 0.0
        %vm3115 = vcmp.gt.f32.partialorder %v2859, 0.0
        %vm3116 = vcmp.gt.f32.partialorder %v2860, 0.0
        %vm3117 = vcmp.gt.f32.partialorder %v2861, 0.0
        %vm3118 = vcmp.gt.f32.partialorder %v2862, 0.0
        %vm3119 = vcmp.gt.f32.partialorder %v2863, 0.0
        %vm3120 = vcmp.gt.f32.partialorder %v2864, 0.0
        %vm3121 = vcmp.gt.f32.partialorder %v2865, 0.0
        %vm3122 = vcmp.gt.f32.partialorder %v2866, 0.0
        %vm3123 = vcmp.gt.f32.partialorder %v2867, 0.0
        %vm3124 = vcmp.gt.f32.partialorder %v2868, 0.0
        %vm3125 = vcmp.gt.f32.partialorder %v2869, 0.0
        %vm3126 = vcmp.gt.f32.partialorder %v2870, 0.0
        %v3127 = vmul.f32 %v2615, 0.2
        %v3128 = vmul.f32 %v2616, 0.2
        %v3129 = vmul.f32 %v2617, 0.2
        %v3130 = vmul.f32 %v2618, 0.2
        %v3131 = vmul.f32 %v2619, 0.2
        %v3132 = vmul.f32 %v2620, 0.2
        %v3133 = vmul.f32 %v2621, 0.2
        %v3134 = vmul.f32 %v2622, 0.2
        %v3135 = vmul.f32 %v2623, 0.2
        %v3136 = vmul.f32 %v2624, 0.2
        %v3137 = vmul.f32 %v2625, 0.2
        %v3138 = vmul.f32 %v2626, 0.2
        %v3139 = vmul.f32 %v2627, 0.2
        %v3140 = vmul.f32 %v2628, 0.2
        %v3141 = vmul.f32 %v2629, 0.2
        %v3142 = vmul.f32 %v2630, 0.2
        %v3143 = vmul.f32 %v2631, 0.2
        %v3144 = vmul.f32 %v2632, 0.2
        %v3145 = vmul.f32 %v2633, 0.2
        %v3146 = vmul.f32 %v2634, 0.2
        %v3147 = vmul.f32 %v2635, 0.2
        %v3148 = vmul.f32 %v2636, 0.2
        %v3149 = vmul.f32 %v2637, 0.2
        %v3150 = vmul.f32 %v2638, 0.2
        %v3151 = vmul.f32 %v2639, 0.2
        %v3152 = vmul.f32 %v2640, 0.2
        %v3153 = vmul.f32 %v2641, 0.2
        %v3154 = vmul.f32 %v2642, 0.2
        %v3155 = vmul.f32 %v2643, 0.2
        %v3156 = vmul.f32 %v2644, 0.2
        %v3157 = vmul.f32 %v2645, 0.2
        %v3158 = vmul.f32 %v2646, 0.2
        %v3159 = vmul.f32 %v2647, 0.2
        %v3160 = vmul.f32 %v2648, 0.2
        %v3161 = vmul.f32 %v2649, 0.2
        %v3162 = vmul.f32 %v2650, 0.2
        %v3163 = vmul.f32 %v2651, 0.2
        %v3164 = vmul.f32 %v2652, 0.2
        %v3165 = vmul.f32 %v2653, 0.2
        %v3166 = vmul.f32 %v2654, 0.2
        %v3167 = vmul.f32 %v2655, 0.2
        %v3168 = vmul.f32 %v2656, 0.2
        %v3169 = vmul.f32 %v2657, 0.2
        %v3170 = vmul.f32 %v2658, 0.2
        %v3171 = vmul.f32 %v2659, 0.2
        %v3172 = vmul.f32 %v2660, 0.2
        %v3173 = vmul.f32 %v2661, 0.2
        %v3174 = vmul.f32 %v2662, 0.2
        %v3175 = vmul.f32 %v2663, 0.2
        %v3176 = vmul.f32 %v2664, 0.2
        %v3177 = vmul.f32 %v2665, 0.2
        %v3178 = vmul.f32 %v2666, 0.2
        %v3179 = vmul.f32 %v2667, 0.2
        %v3180 = vmul.f32 %v2668, 0.2
        %v3181 = vmul.f32 %v2669, 0.2
        %v3182 = vmul.f32 %v2670, 0.2
        %v3183 = vmul.f32 %v2671, 0.2
        %v3184 = vmul.f32 %v2672, 0.2
        %v3185 = vmul.f32 %v2673, 0.2
        %v3186 = vmul.f32 %v2674, 0.2
        %v3187 = vmul.f32 %v2675, 0.2
        %v3188 = vmul.f32 %v2676, 0.2
        %v3189 = vmul.f32 %v2677, 0.2
        %v3190 = vmul.f32 %v2678, 0.2
        %v3191 = vmul.f32 %v2679, 0.2
        %v3192 = vmul.f32 %v2680, 0.2
        %v3193 = vmul.f32 %v2681, 0.2
        %v3194 = vmul.f32 %v2682, 0.2
        %v3195 = vmul.f32 %v2683, 0.2
        %v3196 = vmul.f32 %v2684, 0.2
        %v3197 = vmul.f32 %v2685, 0.2
        %v3198 = vmul.f32 %v2686, 0.2
        %v3199 = vmul.f32 %v2687, 0.2
        %v3200 = vmul.f32 %v2688, 0.2
        %v3201 = vmul.f32 %v2689, 0.2
        %v3202 = vmul.f32 %v2690, 0.2
        %v3203 = vmul.f32 %v2691, 0.2
        %v3204 = vmul.f32 %v2692, 0.2
        %v3205 = vmul.f32 %v2693, 0.2
        %v3206 = vmul.f32 %v2694, 0.2
        %v3207 = vmul.f32 %v2695, 0.2
        %v3208 = vmul.f32 %v2696, 0.2
        %v3209 = vmul.f32 %v2697, 0.2
        %v3210 = vmul.f32 %v2698, 0.2
        %v3211 = vmul.f32 %v2699, 0.2
        %v3212 = vmul.f32 %v2700, 0.2
        %v3213 = vmul.f32 %v2701, 0.2
        %v3214 = vmul.f32 %v2702, 0.2
        %v3215 = vmul.f32 %v2703, 0.2
        %v3216 = vmul.f32 %v2704, 0.2
        %v3217 = vmul.f32 %v2705, 0.2
        %v3218 = vmul.f32 %v2706, 0.2
        %v3219 = vmul.f32 %v2707, 0.2
        %v3220 = vmul.f32 %v2708, 0.2
        %v3221 = vmul.f32 %v2709, 0.2
        %v3222 = vmul.f32 %v2710, 0.2
        %v3223 = vmul.f32 %v2711, 0.2
        %v3224 = vmul.f32 %v2712, 0.2
        %v3225 = vmul.f32 %v2713, 0.2
        %v3226 = vmul.f32 %v2714, 0.2
        %v3227 = vmul.f32 %v2715, 0.2
        %v3228 = vmul.f32 %v2716, 0.2
        %v3229 = vmul.f32 %v2717, 0.2
        %v3230 = vmul.f32 %v2718, 0.2
        %v3231 = vmul.f32 %v2719, 0.2
        %v3232 = vmul.f32 %v2720, 0.2
        %v3233 = vmul.f32 %v2721, 0.2
        %v3234 = vmul.f32 %v2722, 0.2
        %v3235 = vmul.f32 %v2723, 0.2
        %v3236 = vmul.f32 %v2724, 0.2
        %v3237 = vmul.f32 %v2725, 0.2
        %v3238 = vmul.f32 %v2726, 0.2
        %v3239 = vmul.f32 %v2727, 0.2
        %v3240 = vmul.f32 %v2728, 0.2
        %v3241 = vmul.f32 %v2729, 0.2
        %v3242 = vmul.f32 %v2730, 0.2
        %v3243 = vmul.f32 %v2731, 0.2
        %v3244 = vmul.f32 %v2732, 0.2
        %v3245 = vmul.f32 %v2733, 0.2
        %v3246 = vmul.f32 %v2734, 0.2
        %v3247 = vmul.f32 %v2735, 0.2
        %v3248 = vmul.f32 %v2736, 0.2
        %v3249 = vmul.f32 %v2737, 0.2
        %v3250 = vmul.f32 %v2738, 0.2
        %v3251 = vmul.f32 %v2739, 0.2
        %v3252 = vmul.f32 %v2740, 0.2
        %v3253 = vmul.f32 %v2741, 0.2
        %v3254 = vmul.f32 %v2742, 0.2
        %v3255 = vmul.f32 %v2743, 0.2
        %v3256 = vmul.f32 %v2744, 0.2
        %v3257 = vmul.f32 %v2745, 0.2
        %v3258 = vmul.f32 %v2746, 0.2
        %v3259 = vmul.f32 %v2747, 0.2
        %v3260 = vmul.f32 %v2748, 0.2
        %v3261 = vmul.f32 %v2749, 0.2
        %v3262 = vmul.f32 %v2750, 0.2
        %v3263 = vmul.f32 %v2751, 0.2
        %v3264 = vmul.f32 %v2752, 0.2
        %v3265 = vmul.f32 %v2753, 0.2
        %v3266 = vmul.f32 %v2754, 0.2
        %v3267 = vmul.f32 %v2755, 0.2
        %v3268 = vmul.f32 %v2756, 0.2
        %v3269 = vmul.f32 %v2757, 0.2
        %v3270 = vmul.f32 %v2758, 0.2
        %v3271 = vmul.f32 %v2759, 0.2
        %v3272 = vmul.f32 %v2760, 0.2
        %v3273 = vmul.f32 %v2761, 0.2
        %v3274 = vmul.f32 %v2762, 0.2
        %v3275 = vmul.f32 %v2763, 0.2
        %v3276 = vmul.f32 %v2764, 0.2
        %v3277 = vmul.f32 %v2765, 0.2
        %v3278 = vmul.f32 %v2766, 0.2
        %v3279 = vmul.f32 %v2767, 0.2
        %v3280 = vmul.f32 %v2768, 0.2
        %v3281 = vmul.f32 %v2769, 0.2
        %v3282 = vmul.f32 %v2770, 0.2
        %v3283 = vmul.f32 %v2771, 0.2
        %v3284 = vmul.f32 %v2772, 0.2
        %v3285 = vmul.f32 %v2773, 0.2
        %v3286 = vmul.f32 %v2774, 0.2
        %v3287 = vmul.f32 %v2775, 0.2
        %v3288 = vmul.f32 %v2776, 0.2
        %v3289 = vmul.f32 %v2777, 0.2
        %v3290 = vmul.f32 %v2778, 0.2
        %v3291 = vmul.f32 %v2779, 0.2
        %v3292 = vmul.f32 %v2780, 0.2
        %v3293 = vmul.f32 %v2781, 0.2
        %v3294 = vmul.f32 %v2782, 0.2
        %v3295 = vmul.f32 %v2783, 0.2
        %v3296 = vmul.f32 %v2784, 0.2
        %v3297 = vmul.f32 %v2785, 0.2
        %v3298 = vmul.f32 %v2786, 0.2
        %v3299 = vmul.f32 %v2787, 0.2
        %v3300 = vmul.f32 %v2788, 0.2
        %v3301 = vmul.f32 %v2789, 0.2
        %v3302 = vmul.f32 %v2790, 0.2
        %v3303 = vmul.f32 %v2791, 0.2
        %v3304 = vmul.f32 %v2792, 0.2
        %v3305 = vmul.f32 %v2793, 0.2
        %v3306 = vmul.f32 %v2794, 0.2
        %v3307 = vmul.f32 %v2795, 0.2
        %v3308 = vmul.f32 %v2796, 0.2
        %v3309 = vmul.f32 %v2797, 0.2
        %v3310 = vmul.f32 %v2798, 0.2
        %v3311 = vmul.f32 %v2799, 0.2
        %v3312 = vmul.f32 %v2800, 0.2
        %v3313 = vmul.f32 %v2801, 0.2
        %v3314 = vmul.f32 %v2802, 0.2
        %v3315 = vmul.f32 %v2803, 0.2
        %v3316 = vmul.f32 %v2804, 0.2
        %v3317 = vmul.f32 %v2805, 0.2
        %v3318 = vmul.f32 %v2806, 0.2
        %v3319 = vmul.f32 %v2807, 0.2
        %v3320 = vmul.f32 %v2808, 0.2
        %v3321 = vmul.f32 %v2809, 0.2
        %v3322 = vmul.f32 %v2810, 0.2
        %v3323 = vmul.f32 %v2811, 0.2
        %v3324 = vmul.f32 %v2812, 0.2
        %v3325 = vmul.f32 %v2813, 0.2
        %v3326 = vmul.f32 %v2814, 0.2
        %v3327 = vmul.f32 %v2815, 0.2
        %v3328 = vmul.f32 %v2816, 0.2
        %v3329 = vmul.f32 %v2817, 0.2
        %v3330 = vmul.f32 %v2818, 0.2
        %v3331 = vmul.f32 %v2819, 0.2
        %v3332 = vmul.f32 %v2820, 0.2
        %v3333 = vmul.f32 %v2821, 0.2
        %v3334 = vmul.f32 %v2822, 0.2
        %v3335 = vmul.f32 %v2823, 0.2
        %v3336 = vmul.f32 %v2824, 0.2
        %v3337 = vmul.f32 %v2825, 0.2
        %v3338 = vmul.f32 %v2826, 0.2
        %v3339 = vmul.f32 %v2827, 0.2
        %v3340 = vmul.f32 %v2828, 0.2
        %v3341 = vmul.f32 %v2829, 0.2
        %v3342 = vmul.f32 %v2830, 0.2
        %v3343 = vmul.f32 %v2831, 0.2
        %v3344 = vmul.f32 %v2832, 0.2
        %v3345 = vmul.f32 %v2833, 0.2
        %v3346 = vmul.f32 %v2834, 0.2
        %v3347 = vmul.f32 %v2835, 0.2
        %v3348 = vmul.f32 %v2836, 0.2
        %v3349 = vmul.f32 %v2837, 0.2
        %v3350 = vmul.f32 %v2838, 0.2
        %v3351 = vmul.f32 %v2839, 0.2
        %v3352 = vmul.f32 %v2840, 0.2
        %v3353 = vmul.f32 %v2841, 0.2
        %v3354 = vmul.f32 %v2842, 0.2
        %v3355 = vmul.f32 %v2843, 0.2
        %v3356 = vmul.f32 %v2844, 0.2
        %v3357 = vmul.f32 %v2845, 0.2
        %v3358 = vmul.f32 %v2846, 0.2
        %v3359 = vmul.f32 %v2847, 0.2
        %v3360 = vmul.f32 %v2848, 0.2
        %v3361 = vmul.f32 %v2849, 0.2
        %v3362 = vmul.f32 %v2850, 0.2
        %v3363 = vmul.f32 %v2851, 0.2
        %v3364 = vmul.f32 %v2852, 0.2
        %v3365 = vmul.f32 %v2853, 0.2
        %v3366 = vmul.f32 %v2854, 0.2
        %v3367 = vmul.f32 %v2855, 0.2
        %v3368 = vmul.f32 %v2856, 0.2
        %v3369 = vmul.f32 %v2857, 0.2
        %v3370 = vmul.f32 %v2858, 0.2
        %v3371 = vmul.f32 %v2859, 0.2
        %v3372 = vmul.f32 %v2860, 0.2
        %v3373 = vmul.f32 %v2861, 0.2
        %v3374 = vmul.f32 %v2862, 0.2
        %v3375 = vmul.f32 %v2863, 0.2
        %v3376 = vmul.f32 %v2864, 0.2
        %v3377 = vmul.f32 %v2865, 0.2
        %v3378 = vmul.f32 %v2866, 0.2
        %v3379 = vmul.f32 %v2867, 0.2
        %v3380 = vmul.f32 %v2868, 0.2
        %v3381 = vmul.f32 %v2869, 0.2
        %v3382 = vmul.f32 %v2870, 0.2
        %v3383 = vsel %vm2871, %v2615, %v3127
        %v3384 = vsel %vm2872, %v2616, %v3128
        %v3385 = vsel %vm2873, %v2617, %v3129
        %v3386 = vsel %vm2874, %v2618, %v3130
        %v3387 = vsel %vm2875, %v2619, %v3131
        %v3388 = vsel %vm2876, %v2620, %v3132
        %v3389 = vsel %vm2877, %v2621, %v3133
        %v3390 = vsel %vm2878, %v2622, %v3134
        %v3391 = vsel %vm2879, %v2623, %v3135
        %v3392 = vsel %vm2880, %v2624, %v3136
        %v3393 = vsel %vm2881, %v2625, %v3137
        %v3394 = vsel %vm2882, %v2626, %v3138
        %v3395 = vsel %vm2883, %v2627, %v3139
        %v3396 = vsel %vm2884, %v2628, %v3140
        %v3397 = vsel %vm2885, %v2629, %v3141
        %v3398 = vsel %vm2886, %v2630, %v3142
        %v3399 = vsel %vm2887, %v2631, %v3143
        %v3400 = vsel %vm2888, %v2632, %v3144
        %v3401 = vsel %vm2889, %v2633, %v3145
        %v3402 = vsel %vm2890, %v2634, %v3146
        %v3403 = vsel %vm2891, %v2635, %v3147
        %v3404 = vsel %vm2892, %v2636, %v3148
        %v3405 = vsel %vm2893, %v2637, %v3149
        %v3406 = vsel %vm2894, %v2638, %v3150
        %v3407 = vsel %vm2895, %v2639, %v3151
        %v3408 = vsel %vm2896, %v2640, %v3152
        %v3409 = vsel %vm2897, %v2641, %v3153
        %v3410 = vsel %vm2898, %v2642, %v3154
        %v3411 = vsel %vm2899, %v2643, %v3155
        %v3412 = vsel %vm2900, %v2644, %v3156
        %v3413 = vsel %vm2901, %v2645, %v3157
        %v3414 = vsel %vm2902, %v2646, %v3158
        %v3415 = vsel %vm2903, %v2647, %v3159
        %v3416 = vsel %vm2904, %v2648, %v3160
        %v3417 = vsel %vm2905, %v2649, %v3161
        %v3418 = vsel %vm2906, %v2650, %v3162
        %v3419 = vsel %vm2907, %v2651, %v3163
        %v3420 = vsel %vm2908, %v2652, %v3164
        %v3421 = vsel %vm2909, %v2653, %v3165
        %v3422 = vsel %vm2910, %v2654, %v3166
        %v3423 = vsel %vm2911, %v2655, %v3167
        %v3424 = vsel %vm2912, %v2656, %v3168
        %v3425 = vsel %vm2913, %v2657, %v3169
        %v3426 = vsel %vm2914, %v2658, %v3170
        %v3427 = vsel %vm2915, %v2659, %v3171
        %v3428 = vsel %vm2916, %v2660, %v3172
        %v3429 = vsel %vm2917, %v2661, %v3173
        %v3430 = vsel %vm2918, %v2662, %v3174
        %v3431 = vsel %vm2919, %v2663, %v3175
        %v3432 = vsel %vm2920, %v2664, %v3176
        %v3433 = vsel %vm2921, %v2665, %v3177
        %v3434 = vsel %vm2922, %v2666, %v3178
        %v3435 = vsel %vm2923, %v2667, %v3179
        %v3436 = vsel %vm2924, %v2668, %v3180
        %v3437 = vsel %vm2925, %v2669, %v3181
        %v3438 = vsel %vm2926, %v2670, %v3182
        %v3439 = vsel %vm2927, %v2671, %v3183
        %v3440 = vsel %vm2928, %v2672, %v3184
        %v3441 = vsel %vm2929, %v2673, %v3185
        %v3442 = vsel %vm2930, %v2674, %v3186
        %v3443 = vsel %vm2931, %v2675, %v3187
        %v3444 = vsel %vm2932, %v2676, %v3188
        %v3445 = vsel %vm2933, %v2677, %v3189
        %v3446 = vsel %vm2934, %v2678, %v3190
        %v3447 = vsel %vm2935, %v2679, %v3191
        %v3448 = vsel %vm2936, %v2680, %v3192
        %v3449 = vsel %vm2937, %v2681, %v3193
        %v3450 = vsel %vm2938, %v2682, %v3194
        %v3451 = vsel %vm2939, %v2683, %v3195
        %v3452 = vsel %vm2940, %v2684, %v3196
        %v3453 = vsel %vm2941, %v2685, %v3197
        %v3454 = vsel %vm2942, %v2686, %v3198
        %v3455 = vsel %vm2943, %v2687, %v3199
        %v3456 = vsel %vm2944, %v2688, %v3200
        %v3457 = vsel %vm2945, %v2689, %v3201
        %v3458 = vsel %vm2946, %v2690, %v3202
        %v3459 = vsel %vm2947, %v2691, %v3203
        %v3460 = vsel %vm2948, %v2692, %v3204
        %v3461 = vsel %vm2949, %v2693, %v3205
        %v3462 = vsel %vm2950, %v2694, %v3206
        %v3463 = vsel %vm2951, %v2695, %v3207
        %v3464 = vsel %vm2952, %v2696, %v3208
        %v3465 = vsel %vm2953, %v2697, %v3209
        %v3466 = vsel %vm2954, %v2698, %v3210
        %v3467 = vsel %vm2955, %v2699, %v3211
        %v3468 = vsel %vm2956, %v2700, %v3212
        %v3469 = vsel %vm2957, %v2701, %v3213
        %v3470 = vsel %vm2958, %v2702, %v3214
        %v3471 = vsel %vm2959, %v2703, %v3215
        %v3472 = vsel %vm2960, %v2704, %v3216
        %v3473 = vsel %vm2961, %v2705, %v3217
        %v3474 = vsel %vm2962, %v2706, %v3218
        %v3475 = vsel %vm2963, %v2707, %v3219
        %v3476 = vsel %vm2964, %v2708, %v3220
        %v3477 = vsel %vm2965, %v2709, %v3221
        %v3478 = vsel %vm2966, %v2710, %v3222
        %v3479 = vsel %vm2967, %v2711, %v3223
        %v3480 = vsel %vm2968, %v2712, %v3224
        %v3481 = vsel %vm2969, %v2713, %v3225
        %v3482 = vsel %vm2970, %v2714, %v3226
        %v3483 = vsel %vm2971, %v2715, %v3227
        %v3484 = vsel %vm2972, %v2716, %v3228
        %v3485 = vsel %vm2973, %v2717, %v3229
        %v3486 = vsel %vm2974, %v2718, %v3230
        %v3487 = vsel %vm2975, %v2719, %v3231
        %v3488 = vsel %vm2976, %v2720, %v3232
        %v3489 = vsel %vm2977, %v2721, %v3233
        %v3490 = vsel %vm2978, %v2722, %v3234
        %v3491 = vsel %vm2979, %v2723, %v3235
        %v3492 = vsel %vm2980, %v2724, %v3236
        %v3493 = vsel %vm2981, %v2725, %v3237
        %v3494 = vsel %vm2982, %v2726, %v3238
        %v3495 = vsel %vm2983, %v2727, %v3239
        %v3496 = vsel %vm2984, %v2728, %v3240
        %v3497 = vsel %vm2985, %v2729, %v3241
        %v3498 = vsel %vm2986, %v2730, %v3242
        %v3499 = vsel %vm2987, %v2731, %v3243
        %v3500 = vsel %vm2988, %v2732, %v3244
        %v3501 = vsel %vm2989, %v2733, %v3245
        %v3502 = vsel %vm2990, %v2734, %v3246
        %v3503 = vsel %vm2991, %v2735, %v3247
        %v3504 = vsel %vm2992, %v2736, %v3248
        %v3505 = vsel %vm2993, %v2737, %v3249
        %v3506 = vsel %vm2994, %v2738, %v3250
        %v3507 = vsel %vm2995, %v2739, %v3251
        %v3508 = vsel %vm2996, %v2740, %v3252
        %v3509 = vsel %vm2997, %v2741, %v3253
        %v3510 = vsel %vm2998, %v2742, %v3254
        %v3511 = vsel %vm2999, %v2743, %v3255
        %v3512 = vsel %vm3000, %v2744, %v3256
        %v3513 = vsel %vm3001, %v2745, %v3257
        %v3514 = vsel %vm3002, %v2746, %v3258
        %v3515 = vsel %vm3003, %v2747, %v3259
        %v3516 = vsel %vm3004, %v2748, %v3260
        %v3517 = vsel %vm3005, %v2749, %v3261
        %v3518 = vsel %vm3006, %v2750, %v3262
        %v3519 = vsel %vm3007, %v2751, %v3263
        %v3520 = vsel %vm3008, %v2752, %v3264
        %v3521 = vsel %vm3009, %v2753, %v3265
        %v3522 = vsel %vm3010, %v2754, %v3266
        %v3523 = vsel %vm3011, %v2755, %v3267
        %v3524 = vsel %vm3012, %v2756, %v3268
        %v3525 = vsel %vm3013, %v2757, %v3269
        %v3526 = vsel %vm3014, %v2758, %v3270
        %v3527 = vsel %vm3015, %v2759, %v3271
        %v3528 = vsel %vm3016, %v2760, %v3272
        %v3529 = vsel %vm3017, %v2761, %v3273
        %v3530 = vsel %vm3018, %v2762, %v3274
        %v3531 = vsel %vm3019, %v2763, %v3275
        %v3532 = vsel %vm3020, %v2764, %v3276
        %v3533 = vsel %vm3021, %v2765, %v3277
        %v3534 = vsel %vm3022, %v2766, %v3278
        %v3535 = vsel %vm3023, %v2767, %v3279
        %v3536 = vsel %vm3024, %v2768, %v3280
        %v3537 = vsel %vm3025, %v2769, %v3281
        %v3538 = vsel %vm3026, %v2770, %v3282
        %v3539 = vsel %vm3027, %v2771, %v3283
        %v3540 = vsel %vm3028, %v2772, %v3284
        %v3541 = vsel %vm3029, %v2773, %v3285
        %v3542 = vsel %vm3030, %v2774, %v3286
        %v3543 = vsel %vm3031, %v2775, %v3287
        %v3544 = vsel %vm3032, %v2776, %v3288
        %v3545 = vsel %vm3033, %v2777, %v3289
        %v3546 = vsel %vm3034, %v2778, %v3290
        %v3547 = vsel %vm3035, %v2779, %v3291
        %v3548 = vsel %vm3036, %v2780, %v3292
        %v3549 = vsel %vm3037, %v2781, %v3293
        %v3550 = vsel %vm3038, %v2782, %v3294
        %v3551 = vsel %vm3039, %v2783, %v3295
        %v3552 = vsel %vm3040, %v2784, %v3296
        %v3553 = vsel %vm3041, %v2785, %v3297
        %v3554 = vsel %vm3042, %v2786, %v3298
        %v3555 = vsel %vm3043, %v2787, %v3299
        %v3556 = vsel %vm3044, %v2788, %v3300
        %v3557 = vsel %vm3045, %v2789, %v3301
        %v3558 = vsel %vm3046, %v2790, %v3302
        %v3559 = vsel %vm3047, %v2791, %v3303
        %v3560 = vsel %vm3048, %v2792, %v3304
        %v3561 = vsel %vm3049, %v2793, %v3305
        %v3562 = vsel %vm3050, %v2794, %v3306
        %v3563 = vsel %vm3051, %v2795, %v3307
        %v3564 = vsel %vm3052, %v2796, %v3308
        %v3565 = vsel %vm3053, %v2797, %v3309
        %v3566 = vsel %vm3054, %v2798, %v3310
        %v3567 = vsel %vm3055, %v2799, %v3311
        %v3568 = vsel %vm3056, %v2800, %v3312
        %v3569 = vsel %vm3057, %v2801, %v3313
        %v3570 = vsel %vm3058, %v2802, %v3314
        %v3571 = vsel %vm3059, %v2803, %v3315
        %v3572 = vsel %vm3060, %v2804, %v3316
        %v3573 = vsel %vm3061, %v2805, %v3317
        %v3574 = vsel %vm3062, %v2806, %v3318
        %v3575 = vsel %vm3063, %v2807, %v3319
        %v3576 = vsel %vm3064, %v2808, %v3320
        %v3577 = vsel %vm3065, %v2809, %v3321
        %v3578 = vsel %vm3066, %v2810, %v3322
        %v3579 = vsel %vm3067, %v2811, %v3323
        %v3580 = vsel %vm3068, %v2812, %v3324
        %v3581 = vsel %vm3069, %v2813, %v3325
        %v3582 = vsel %vm3070, %v2814, %v3326
        %v3583 = vsel %vm3071, %v2815, %v3327
        %v3584 = vsel %vm3072, %v2816, %v3328
        %v3585 = vsel %vm3073, %v2817, %v3329
        %v3586 = vsel %vm3074, %v2818, %v3330
        %v3587 = vsel %vm3075, %v2819, %v3331
        %v3588 = vsel %vm3076, %v2820, %v3332
        %v3589 = vsel %vm3077, %v2821, %v3333
        %v3590 = vsel %vm3078, %v2822, %v3334
        %v3591 = vsel %vm3079, %v2823, %v3335
        %v3592 = vsel %vm3080, %v2824, %v3336
        %v3593 = vsel %vm3081, %v2825, %v3337
        %v3594 = vsel %vm3082, %v2826, %v3338
        %v3595 = vsel %vm3083, %v2827, %v3339
        %v3596 = vsel %vm3084, %v2828, %v3340
        %v3597 = vsel %vm3085, %v2829, %v3341
        %v3598 = vsel %vm3086, %v2830, %v3342
        %v3599 = vsel %vm3087, %v2831, %v3343
        %v3600 = vsel %vm3088, %v2832, %v3344
        %v3601 = vsel %vm3089, %v2833, %v3345
        %v3602 = vsel %vm3090, %v2834, %v3346
        %v3603 = vsel %vm3091, %v2835, %v3347
        %v3604 = vsel %vm3092, %v2836, %v3348
        %v3605 = vsel %vm3093, %v2837, %v3349
        %v3606 = vsel %vm3094, %v2838, %v3350
        %v3607 = vsel %vm3095, %v2839, %v3351
        %v3608 = vsel %vm3096, %v2840, %v3352
        %v3609 = vsel %vm3097, %v2841, %v3353
        %v3610 = vsel %vm3098, %v2842, %v3354
        %v3611 = vsel %vm3099, %v2843, %v3355
        %v3612 = vsel %vm3100, %v2844, %v3356
        %v3613 = vsel %vm3101, %v2845, %v3357
        %v3614 = vsel %vm3102, %v2846, %v3358
        %v3615 = vsel %vm3103, %v2847, %v3359
        %v3616 = vsel %vm3104, %v2848, %v3360
        %v3617 = vsel %vm3105, %v2849, %v3361
        %v3618 = vsel %vm3106, %v2850, %v3362
        %v3619 = vsel %vm3107, %v2851, %v3363
        %v3620 = vsel %vm3108, %v2852, %v3364
        %v3621 = vsel %vm3109, %v2853, %v3365
        %v3622 = vsel %vm3110, %v2854, %v3366
        %v3623 = vsel %vm3111, %v2855, %v3367
        %v3624 = vsel %vm3112, %v2856, %v3368
        %v3625 = vsel %vm3113, %v2857, %v3369
        %v3626 = vsel %vm3114, %v2858, %v3370
        %v3627 = vsel %vm3115, %v2859, %v3371
        %v3628 = vsel %vm3116, %v2860, %v3372
        %v3629 = vsel %vm3117, %v2861, %v3373
        %v3630 = vsel %vm3118, %v2862, %v3374
        %v3631 = vsel %vm3119, %v2863, %v3375
        %v3632 = vsel %vm3120, %v2864, %v3376
        %v3633 = vsel %vm3121, %v2865, %v3377
        %v3634 = vsel %vm3122, %v2866, %v3378
        %v3635 = vsel %vm3123, %v2867, %v3379
        %v3636 = vsel %vm3124, %v2868, %v3380
        %v3637 = vsel %vm3125, %v2869, %v3381
        %v3638 = vsel %vm3126, %v2870, %v3382
        %v3639 = vpack.c.bf16 %v3384, %v3383
        %v3640 = vpack.c.bf16 %v3386, %v3385
        %v3641 = vpack.c.bf16 %v3388, %v3387
        %v3642 = vpack.c.bf16 %v3390, %v3389
        %v3643 = vpack.c.bf16 %v3392, %v3391
        %v3644 = vpack.c.bf16 %v3394, %v3393
        %v3645 = vpack.c.bf16 %v3396, %v3395
        %v3646 = vpack.c.bf16 %v3398, %v3397
        %v3647 = vpack.c.bf16 %v3400, %v3399
        %v3648 = vpack.c.bf16 %v3402, %v3401
        %v3649 = vpack.c.bf16 %v3404, %v3403
        %v3650 = vpack.c.bf16 %v3406, %v3405
        %v3651 = vpack.c.bf16 %v3408, %v3407
        %v3652 = vpack.c.bf16 %v3410, %v3409
        %v3653 = vpack.c.bf16 %v3412, %v3411
        %v3654 = vpack.c.bf16 %v3414, %v3413
        %v3655 = vpack.c.bf16 %v3416, %v3415
        %v3656 = vpack.c.bf16 %v3418, %v3417
        %v3657 = vpack.c.bf16 %v3420, %v3419
        %v3658 = vpack.c.bf16 %v3422, %v3421
        %v3659 = vpack.c.bf16 %v3424, %v3423
        %v3660 = vpack.c.bf16 %v3426, %v3425
        %v3661 = vpack.c.bf16 %v3428, %v3427
        %v3662 = vpack.c.bf16 %v3430, %v3429
        %v3663 = vpack.c.bf16 %v3432, %v3431
        %v3664 = vpack.c.bf16 %v3434, %v3433
        %v3665 = vpack.c.bf16 %v3436, %v3435
        %v3666 = vpack.c.bf16 %v3438, %v3437
        %v3667 = vpack.c.bf16 %v3440, %v3439
        %v3668 = vpack.c.bf16 %v3442, %v3441
        %v3669 = vpack.c.bf16 %v3444, %v3443
        %v3670 = vpack.c.bf16 %v3446, %v3445
        %v3671 = vpack.c.bf16 %v3448, %v3447
        %v3672 = vpack.c.bf16 %v3450, %v3449
        %v3673 = vpack.c.bf16 %v3452, %v3451
        %v3674 = vpack.c.bf16 %v3454, %v3453
        %v3675 = vpack.c.bf16 %v3456, %v3455
        %v3676 = vpack.c.bf16 %v3458, %v3457
        %v3677 = vpack.c.bf16 %v3460, %v3459
        %v3678 = vpack.c.bf16 %v3462, %v3461
        %v3679 = vpack.c.bf16 %v3464, %v3463
        %v3680 = vpack.c.bf16 %v3466, %v3465
        %v3681 = vpack.c.bf16 %v3468, %v3467
        %v3682 = vpack.c.bf16 %v3470, %v3469
        %v3683 = vpack.c.bf16 %v3472, %v3471
        %v3684 = vpack.c.bf16 %v3474, %v3473
        %v3685 = vpack.c.bf16 %v3476, %v3475
        %v3686 = vpack.c.bf16 %v3478, %v3477
        %v3687 = vpack.c.bf16 %v3480, %v3479
        %v3688 = vpack.c.bf16 %v3482, %v3481
        %v3689 = vpack.c.bf16 %v3484, %v3483
        %v3690 = vpack.c.bf16 %v3486, %v3485
        %v3691 = vpack.c.bf16 %v3488, %v3487
        %v3692 = vpack.c.bf16 %v3490, %v3489
        %v3693 = vpack.c.bf16 %v3492, %v3491
        %v3694 = vpack.c.bf16 %v3494, %v3493
        %v3695 = vpack.c.bf16 %v3496, %v3495
        %v3696 = vpack.c.bf16 %v3498, %v3497
        %v3697 = vpack.c.bf16 %v3500, %v3499
        %v3698 = vpack.c.bf16 %v3502, %v3501
        %v3699 = vpack.c.bf16 %v3504, %v3503
        %v3700 = vpack.c.bf16 %v3506, %v3505
        %v3701 = vpack.c.bf16 %v3508, %v3507
        %v3702 = vpack.c.bf16 %v3510, %v3509
        %v3703 = vpack.c.bf16 %v3512, %v3511
        %v3704 = vpack.c.bf16 %v3514, %v3513
        %v3705 = vpack.c.bf16 %v3516, %v3515
        %v3706 = vpack.c.bf16 %v3518, %v3517
        %v3707 = vpack.c.bf16 %v3520, %v3519
        %v3708 = vpack.c.bf16 %v3522, %v3521
        %v3709 = vpack.c.bf16 %v3524, %v3523
        %v3710 = vpack.c.bf16 %v3526, %v3525
        %v3711 = vpack.c.bf16 %v3528, %v3527
        %v3712 = vpack.c.bf16 %v3530, %v3529
        %v3713 = vpack.c.bf16 %v3532, %v3531
        %v3714 = vpack.c.bf16 %v3534, %v3533
        %v3715 = vpack.c.bf16 %v3536, %v3535
        %v3716 = vpack.c.bf16 %v3538, %v3537
        %v3717 = vpack.c.bf16 %v3540, %v3539
        %v3718 = vpack.c.bf16 %v3542, %v3541
        %v3719 = vpack.c.bf16 %v3544, %v3543
        %v3720 = vpack.c.bf16 %v3546, %v3545
        %v3721 = vpack.c.bf16 %v3548, %v3547
        %v3722 = vpack.c.bf16 %v3550, %v3549
        %v3723 = vpack.c.bf16 %v3552, %v3551
        %v3724 = vpack.c.bf16 %v3554, %v3553
        %v3725 = vpack.c.bf16 %v3556, %v3555
        %v3726 = vpack.c.bf16 %v3558, %v3557
        %v3727 = vpack.c.bf16 %v3560, %v3559
        %v3728 = vpack.c.bf16 %v3562, %v3561
        %v3729 = vpack.c.bf16 %v3564, %v3563
        %v3730 = vpack.c.bf16 %v3566, %v3565
        %v3731 = vpack.c.bf16 %v3568, %v3567
        %v3732 = vpack.c.bf16 %v3570, %v3569
        %v3733 = vpack.c.bf16 %v3572, %v3571
        %v3734 = vpack.c.bf16 %v3574, %v3573
        %v3735 = vpack.c.bf16 %v3576, %v3575
        %v3736 = vpack.c.bf16 %v3578, %v3577
        %v3737 = vpack.c.bf16 %v3580, %v3579
        %v3738 = vpack.c.bf16 %v3582, %v3581
        %v3739 = vpack.c.bf16 %v3584, %v3583
        %v3740 = vpack.c.bf16 %v3586, %v3585
        %v3741 = vpack.c.bf16 %v3588, %v3587
        %v3742 = vpack.c.bf16 %v3590, %v3589
        %v3743 = vpack.c.bf16 %v3592, %v3591
        %v3744 = vpack.c.bf16 %v3594, %v3593
        %v3745 = vpack.c.bf16 %v3596, %v3595
        %v3746 = vpack.c.bf16 %v3598, %v3597
        %v3747 = vpack.c.bf16 %v3600, %v3599
        %v3748 = vpack.c.bf16 %v3602, %v3601
        %v3749 = vpack.c.bf16 %v3604, %v3603
        %v3750 = vpack.c.bf16 %v3606, %v3605
        %v3751 = vpack.c.bf16 %v3608, %v3607
        %v3752 = vpack.c.bf16 %v3610, %v3609
        %v3753 = vpack.c.bf16 %v3612, %v3611
        %v3754 = vpack.c.bf16 %v3614, %v3613
        %v3755 = vpack.c.bf16 %v3616, %v3615
        %v3756 = vpack.c.bf16 %v3618, %v3617
        %v3757 = vpack.c.bf16 %v3620, %v3619
        %v3758 = vpack.c.bf16 %v3622, %v3621
        %v3759 = vpack.c.bf16 %v3624, %v3623
        %v3760 = vpack.c.bf16 %v3626, %v3625
        %v3761 = vpack.c.bf16 %v3628, %v3627
        %v3762 = vpack.c.bf16 %v3630, %v3629
        %v3763 = vpack.c.bf16 %v3632, %v3631
        %v3764 = vpack.c.bf16 %v3634, %v3633
        %v3765 = vpack.c.bf16 %v3636, %v3635
        %v3766 = vpack.c.bf16 %v3638, %v3637
        %v3895 = vunpack.c.l.b16 %v3639
        %v3896 = vunpack.c.h.b16 %v3639
        %v3897 = vunpack.c.l.b16 %v3640
        %v3898 = vunpack.c.h.b16 %v3640
        %v3899 = vunpack.c.l.b16 %v3641
        %v3900 = vunpack.c.h.b16 %v3641
        %v3901 = vunpack.c.l.b16 %v3642
        %v3902 = vunpack.c.h.b16 %v3642
        %v3903 = vunpack.c.l.b16 %v3643
        %v3904 = vunpack.c.h.b16 %v3643
        %v3905 = vunpack.c.l.b16 %v3644
        %v3906 = vunpack.c.h.b16 %v3644
        %v3907 = vunpack.c.l.b16 %v3645
        %v3908 = vunpack.c.h.b16 %v3645
        %v3909 = vunpack.c.l.b16 %v3646
        %v3910 = vunpack.c.h.b16 %v3646
        %v3911 = vunpack.c.l.b16 %v3647
        %v3912 = vunpack.c.h.b16 %v3647
        %v3913 = vunpack.c.l.b16 %v3648
        %v3914 = vunpack.c.h.b16 %v3648
        %v3915 = vunpack.c.l.b16 %v3649
        %v3916 = vunpack.c.h.b16 %v3649
        %v3917 = vunpack.c.l.b16 %v3650
        %v3918 = vunpack.c.h.b16 %v3650
        %v3919 = vunpack.c.l.b16 %v3651
        %v3920 = vunpack.c.h.b16 %v3651
        %v3921 = vunpack.c.l.b16 %v3652
        %v3922 = vunpack.c.h.b16 %v3652
        %v3923 = vunpack.c.l.b16 %v3653
        %v3924 = vunpack.c.h.b16 %v3653
        %v3925 = vunpack.c.l.b16 %v3654
        %v3926 = vunpack.c.h.b16 %v3654
        %v3927 = vunpack.c.l.b16 %v3655
        %v3928 = vunpack.c.h.b16 %v3655
        %v3929 = vunpack.c.l.b16 %v3656
        %v3930 = vunpack.c.h.b16 %v3656
        %v3931 = vunpack.c.l.b16 %v3657
        %v3932 = vunpack.c.h.b16 %v3657
        %v3933 = vunpack.c.l.b16 %v3658
        %v3934 = vunpack.c.h.b16 %v3658
        %v3935 = vunpack.c.l.b16 %v3659
        %v3936 = vunpack.c.h.b16 %v3659
        %v3937 = vunpack.c.l.b16 %v3660
        %v3938 = vunpack.c.h.b16 %v3660
        %v3939 = vunpack.c.l.b16 %v3661
        %v3940 = vunpack.c.h.b16 %v3661
        %v3941 = vunpack.c.l.b16 %v3662
        %v3942 = vunpack.c.h.b16 %v3662
        %v3943 = vunpack.c.l.b16 %v3663
        %v3944 = vunpack.c.h.b16 %v3663
        %v3945 = vunpack.c.l.b16 %v3664
        %v3946 = vunpack.c.h.b16 %v3664
        %v3947 = vunpack.c.l.b16 %v3665
        %v3948 = vunpack.c.h.b16 %v3665
        %v3949 = vunpack.c.l.b16 %v3666
        %v3950 = vunpack.c.h.b16 %v3666
        %v3951 = vunpack.c.l.b16 %v3667
        %v3952 = vunpack.c.h.b16 %v3667
        %v3953 = vunpack.c.l.b16 %v3668
        %v3954 = vunpack.c.h.b16 %v3668
        %v3955 = vunpack.c.l.b16 %v3669
        %v3956 = vunpack.c.h.b16 %v3669
        %v3957 = vunpack.c.l.b16 %v3670
        %v3958 = vunpack.c.h.b16 %v3670
        %v3959 = vunpack.c.l.b16 %v3671
        %v3960 = vunpack.c.h.b16 %v3671
        %v3961 = vunpack.c.l.b16 %v3672
        %v3962 = vunpack.c.h.b16 %v3672
        %v3963 = vunpack.c.l.b16 %v3673
        %v3964 = vunpack.c.h.b16 %v3673
        %v3965 = vunpack.c.l.b16 %v3674
        %v3966 = vunpack.c.h.b16 %v3674
        %v3967 = vunpack.c.l.b16 %v3675
        %v3968 = vunpack.c.h.b16 %v3675
        %v3969 = vunpack.c.l.b16 %v3676
        %v3970 = vunpack.c.h.b16 %v3676
        %v3971 = vunpack.c.l.b16 %v3677
        %v3972 = vunpack.c.h.b16 %v3677
        %v3973 = vunpack.c.l.b16 %v3678
        %v3974 = vunpack.c.h.b16 %v3678
        %v3975 = vunpack.c.l.b16 %v3679
        %v3976 = vunpack.c.h.b16 %v3679
        %v3977 = vunpack.c.l.b16 %v3680
        %v3978 = vunpack.c.h.b16 %v3680
        %v3979 = vunpack.c.l.b16 %v3681
        %v3980 = vunpack.c.h.b16 %v3681
        %v3981 = vunpack.c.l.b16 %v3682
        %v3982 = vunpack.c.h.b16 %v3682
        %v3983 = vunpack.c.l.b16 %v3683
        %v3984 = vunpack.c.h.b16 %v3683
        %v3985 = vunpack.c.l.b16 %v3684
        %v3986 = vunpack.c.h.b16 %v3684
        %v3987 = vunpack.c.l.b16 %v3685
        %v3988 = vunpack.c.h.b16 %v3685
        %v3989 = vunpack.c.l.b16 %v3686
        %v3990 = vunpack.c.h.b16 %v3686
        %v3991 = vunpack.c.l.b16 %v3687
        %v3992 = vunpack.c.h.b16 %v3687
        %v3993 = vunpack.c.l.b16 %v3688
        %v3994 = vunpack.c.h.b16 %v3688
        %v3995 = vunpack.c.l.b16 %v3689
        %v3996 = vunpack.c.h.b16 %v3689
        %v3997 = vunpack.c.l.b16 %v3690
        %v3998 = vunpack.c.h.b16 %v3690
        %v3999 = vunpack.c.l.b16 %v3691
        %v4000 = vunpack.c.h.b16 %v3691
        %v4001 = vunpack.c.l.b16 %v3692
        %v4002 = vunpack.c.h.b16 %v3692
        %v4003 = vunpack.c.l.b16 %v3693
        %v4004 = vunpack.c.h.b16 %v3693
        %v4005 = vunpack.c.l.b16 %v3694
        %v4006 = vunpack.c.h.b16 %v3694
        %v4007 = vunpack.c.l.b16 %v3695
        %v4008 = vunpack.c.h.b16 %v3695
        %v4009 = vunpack.c.l.b16 %v3696
        %v4010 = vunpack.c.h.b16 %v3696
        %v4011 = vunpack.c.l.b16 %v3697
        %v4012 = vunpack.c.h.b16 %v3697
        %v4013 = vunpack.c.l.b16 %v3698
        %v4014 = vunpack.c.h.b16 %v3698
        %v4015 = vunpack.c.l.b16 %v3699
        %v4016 = vunpack.c.h.b16 %v3699
        %v4017 = vunpack.c.l.b16 %v3700
        %v4018 = vunpack.c.h.b16 %v3700
        %v4019 = vunpack.c.l.b16 %v3701
        %v4020 = vunpack.c.h.b16 %v3701
        %v4021 = vunpack.c.l.b16 %v3702
        %v4022 = vunpack.c.h.b16 %v3702
        %v4023 = vunpack.c.l.b16 %v3703
        %v4024 = vunpack.c.h.b16 %v3703
        %v4025 = vunpack.c.l.b16 %v3704
        %v4026 = vunpack.c.h.b16 %v3704
        %v4027 = vunpack.c.l.b16 %v3705
        %v4028 = vunpack.c.h.b16 %v3705
        %v4029 = vunpack.c.l.b16 %v3706
        %v4030 = vunpack.c.h.b16 %v3706
        %v4031 = vunpack.c.l.b16 %v3707
        %v4032 = vunpack.c.h.b16 %v3707
        %v4033 = vunpack.c.l.b16 %v3708
        %v4034 = vunpack.c.h.b16 %v3708
        %v4035 = vunpack.c.l.b16 %v3709
        %v4036 = vunpack.c.h.b16 %v3709
        %v4037 = vunpack.c.l.b16 %v3710
        %v4038 = vunpack.c.h.b16 %v3710
        %v4039 = vunpack.c.l.b16 %v3711
        %v4040 = vunpack.c.h.b16 %v3711
        %v4041 = vunpack.c.l.b16 %v3712
        %v4042 = vunpack.c.h.b16 %v3712
        %v4043 = vunpack.c.l.b16 %v3713
        %v4044 = vunpack.c.h.b16 %v3713
        %v4045 = vunpack.c.l.b16 %v3714
        %v4046 = vunpack.c.h.b16 %v3714
        %v4047 = vunpack.c.l.b16 %v3715
        %v4048 = vunpack.c.h.b16 %v3715
        %v4049 = vunpack.c.l.b16 %v3716
        %v4050 = vunpack.c.h.b16 %v3716
        %v4051 = vunpack.c.l.b16 %v3717
        %v4052 = vunpack.c.h.b16 %v3717
        %v4053 = vunpack.c.l.b16 %v3718
        %v4054 = vunpack.c.h.b16 %v3718
        %v4055 = vunpack.c.l.b16 %v3719
        %v4056 = vunpack.c.h.b16 %v3719
        %v4057 = vunpack.c.l.b16 %v3720
        %v4058 = vunpack.c.h.b16 %v3720
        %v4059 = vunpack.c.l.b16 %v3721
        %v4060 = vunpack.c.h.b16 %v3721
        %v4061 = vunpack.c.l.b16 %v3722
        %v4062 = vunpack.c.h.b16 %v3722
        %v4063 = vunpack.c.l.b16 %v3723
        %v4064 = vunpack.c.h.b16 %v3723
        %v4065 = vunpack.c.l.b16 %v3724
        %v4066 = vunpack.c.h.b16 %v3724
        %v4067 = vunpack.c.l.b16 %v3725
        %v4068 = vunpack.c.h.b16 %v3725
        %v4069 = vunpack.c.l.b16 %v3726
        %v4070 = vunpack.c.h.b16 %v3726
        %v4071 = vunpack.c.l.b16 %v3727
        %v4072 = vunpack.c.h.b16 %v3727
        %v4073 = vunpack.c.l.b16 %v3728
        %v4074 = vunpack.c.h.b16 %v3728
        %v4075 = vunpack.c.l.b16 %v3729
        %v4076 = vunpack.c.h.b16 %v3729
        %v4077 = vunpack.c.l.b16 %v3730
        %v4078 = vunpack.c.h.b16 %v3730
        %v4079 = vunpack.c.l.b16 %v3731
        %v4080 = vunpack.c.h.b16 %v3731
        %v4081 = vunpack.c.l.b16 %v3732
        %v4082 = vunpack.c.h.b16 %v3732
        %v4083 = vunpack.c.l.b16 %v3733
        %v4084 = vunpack.c.h.b16 %v3733
        %v4085 = vunpack.c.l.b16 %v3734
        %v4086 = vunpack.c.h.b16 %v3734
        %v4087 = vunpack.c.l.b16 %v3735
        %v4088 = vunpack.c.h.b16 %v3735
        %v4089 = vunpack.c.l.b16 %v3736
        %v4090 = vunpack.c.h.b16 %v3736
        %v4091 = vunpack.c.l.b16 %v3737
        %v4092 = vunpack.c.h.b16 %v3737
        %v4093 = vunpack.c.l.b16 %v3738
        %v4094 = vunpack.c.h.b16 %v3738
        %v4095 = vunpack.c.l.b16 %v3739
        %v4096 = vunpack.c.h.b16 %v3739
        %v4097 = vunpack.c.l.b16 %v3740
        %v4098 = vunpack.c.h.b16 %v3740
        %v4099 = vunpack.c.l.b16 %v3741
        %v4100 = vunpack.c.h.b16 %v3741
        %v4101 = vunpack.c.l.b16 %v3742
        %v4102 = vunpack.c.h.b16 %v3742
        %v4103 = vunpack.c.l.b16 %v3743
        %v4104 = vunpack.c.h.b16 %v3743
        %v4105 = vunpack.c.l.b16 %v3744
        %v4106 = vunpack.c.h.b16 %v3744
        %v4107 = vunpack.c.l.b16 %v3745
        %v4108 = vunpack.c.h.b16 %v3745
        %v4109 = vunpack.c.l.b16 %v3746
        %v4110 = vunpack.c.h.b16 %v3746
        %v4111 = vunpack.c.l.b16 %v3747
        %v4112 = vunpack.c.h.b16 %v3747
        %v4113 = vunpack.c.l.b16 %v3748
        %v4114 = vunpack.c.h.b16 %v3748
        %v4115 = vunpack.c.l.b16 %v3749
        %v4116 = vunpack.c.h.b16 %v3749
        %v4117 = vunpack.c.l.b16 %v3750
        %v4118 = vunpack.c.h.b16 %v3750
        %v4119 = vunpack.c.l.b16 %v3751
        %v4120 = vunpack.c.h.b16 %v3751
        %v4121 = vunpack.c.l.b16 %v3752
        %v4122 = vunpack.c.h.b16 %v3752
        %v4123 = vunpack.c.l.b16 %v3753
        %v4124 = vunpack.c.h.b16 %v3753
        %v4125 = vunpack.c.l.b16 %v3754
        %v4126 = vunpack.c.h.b16 %v3754
        %v4127 = vunpack.c.l.b16 %v3755
        %v4128 = vunpack.c.h.b16 %v3755
        %v4129 = vunpack.c.l.b16 %v3756
        %v4130 = vunpack.c.h.b16 %v3756
        %v4131 = vunpack.c.l.b16 %v3757
        %v4132 = vunpack.c.h.b16 %v3757
        %v4133 = vunpack.c.l.b16 %v3758
        %v4134 = vunpack.c.h.b16 %v3758
        %v4135 = vunpack.c.l.b16 %v3759
        %v4136 = vunpack.c.h.b16 %v3759
        %v4137 = vunpack.c.l.b16 %v3760
        %v4138 = vunpack.c.h.b16 %v3760
        %v4139 = vunpack.c.l.b16 %v3761
        %v4140 = vunpack.c.h.b16 %v3761
        %v4141 = vunpack.c.l.b16 %v3762
        %v4142 = vunpack.c.h.b16 %v3762
        %v4143 = vunpack.c.l.b16 %v3763
        %v4144 = vunpack.c.h.b16 %v3763
        %v4145 = vunpack.c.l.b16 %v3764
        %v4146 = vunpack.c.h.b16 %v3764
        %v4147 = vunpack.c.l.b16 %v3765
        %v4148 = vunpack.c.h.b16 %v3765
        %v4149 = vunpack.c.l.b16 %v3766
        %v4150 = vunpack.c.h.b16 %v3766
        %v4151 = vpack.c.b16 %v3895, %v3895
        %v4152 = vpack.c.b16 %v3896, %v3896
        %v4153 = vpack.c.b16 %v3897, %v3897
        %v4154 = vpack.c.b16 %v3898, %v3898
        %v4155 = vpack.c.b16 %v3899, %v3899
        %v4156 = vpack.c.b16 %v3900, %v3900
        %v4157 = vpack.c.b16 %v3901, %v3901
        %v4158 = vpack.c.b16 %v3902, %v3902
        %v4159 = vpack.c.b16 %v3903, %v3903
        %v4160 = vpack.c.b16 %v3904, %v3904
        %v4161 = vpack.c.b16 %v3905, %v3905
        %v4162 = vpack.c.b16 %v3906, %v3906
        %v4163 = vpack.c.b16 %v3907, %v3907
        %v4164 = vpack.c.b16 %v3908, %v3908
        %v4165 = vpack.c.b16 %v3909, %v3909
        %v4166 = vpack.c.b16 %v3910, %v3910
        %v4167 = vpack.c.b16 %v3911, %v3911
        %v4168 = vpack.c.b16 %v3912, %v3912
        %v4169 = vpack.c.b16 %v3913, %v3913
        %v4170 = vpack.c.b16 %v3914, %v3914
        %v4171 = vpack.c.b16 %v3915, %v3915
        %v4172 = vpack.c.b16 %v3916, %v3916
        %v4173 = vpack.c.b16 %v3917, %v3917
        %v4174 = vpack.c.b16 %v3918, %v3918
        %v4175 = vpack.c.b16 %v3919, %v3919
        %v4176 = vpack.c.b16 %v3920, %v3920
        %v4177 = vpack.c.b16 %v3921, %v3921
        %v4178 = vpack.c.b16 %v3922, %v3922
        %v4179 = vpack.c.b16 %v3923, %v3923
        %v4180 = vpack.c.b16 %v3924, %v3924
        %v4181 = vpack.c.b16 %v3925, %v3925
        %v4182 = vpack.c.b16 %v3926, %v3926
        %v4183 = vpack.c.b16 %v3927, %v3927
        %v4184 = vpack.c.b16 %v3928, %v3928
        %v4185 = vpack.c.b16 %v3929, %v3929
        %v4186 = vpack.c.b16 %v3930, %v3930
        %v4187 = vpack.c.b16 %v3931, %v3931
        %v4188 = vpack.c.b16 %v3932, %v3932
        %v4189 = vpack.c.b16 %v3933, %v3933
        %v4190 = vpack.c.b16 %v3934, %v3934
        %v4191 = vpack.c.b16 %v3935, %v3935
        %v4192 = vpack.c.b16 %v3936, %v3936
        %v4193 = vpack.c.b16 %v3937, %v3937
        %v4194 = vpack.c.b16 %v3938, %v3938
        %v4195 = vpack.c.b16 %v3939, %v3939
        %v4196 = vpack.c.b16 %v3940, %v3940
        %v4197 = vpack.c.b16 %v3941, %v3941
        %v4198 = vpack.c.b16 %v3942, %v3942
        %v4199 = vpack.c.b16 %v3943, %v3943
        %v4200 = vpack.c.b16 %v3944, %v3944
        %v4201 = vpack.c.b16 %v3945, %v3945
        %v4202 = vpack.c.b16 %v3946, %v3946
        %v4203 = vpack.c.b16 %v3947, %v3947
        %v4204 = vpack.c.b16 %v3948, %v3948
        %v4205 = vpack.c.b16 %v3949, %v3949
        %v4206 = vpack.c.b16 %v3950, %v3950
        %v4207 = vpack.c.b16 %v3951, %v3951
        %v4208 = vpack.c.b16 %v3952, %v3952
        %v4209 = vpack.c.b16 %v3953, %v3953
        %v4210 = vpack.c.b16 %v3954, %v3954
        %v4211 = vpack.c.b16 %v3955, %v3955
        %v4212 = vpack.c.b16 %v3956, %v3956
        %v4213 = vpack.c.b16 %v3957, %v3957
        %v4214 = vpack.c.b16 %v3958, %v3958
        %v4215 = vpack.c.b16 %v3959, %v3959
        %v4216 = vpack.c.b16 %v3960, %v3960
        %v4217 = vpack.c.b16 %v3961, %v3961
        %v4218 = vpack.c.b16 %v3962, %v3962
        %v4219 = vpack.c.b16 %v3963, %v3963
        %v4220 = vpack.c.b16 %v3964, %v3964
        %v4221 = vpack.c.b16 %v3965, %v3965
        %v4222 = vpack.c.b16 %v3966, %v3966
        %v4223 = vpack.c.b16 %v3967, %v3967
        %v4224 = vpack.c.b16 %v3968, %v3968
        %v4225 = vpack.c.b16 %v3969, %v3969
        %v4226 = vpack.c.b16 %v3970, %v3970
        %v4227 = vpack.c.b16 %v3971, %v3971
        %v4228 = vpack.c.b16 %v3972, %v3972
        %v4229 = vpack.c.b16 %v3973, %v3973
        %v4230 = vpack.c.b16 %v3974, %v3974
        %v4231 = vpack.c.b16 %v3975, %v3975
        %v4232 = vpack.c.b16 %v3976, %v3976
        %v4233 = vpack.c.b16 %v3977, %v3977
        %v4234 = vpack.c.b16 %v3978, %v3978
        %v4235 = vpack.c.b16 %v3979, %v3979
        %v4236 = vpack.c.b16 %v3980, %v3980
        %v4237 = vpack.c.b16 %v3981, %v3981
        %v4238 = vpack.c.b16 %v3982, %v3982
        %v4239 = vpack.c.b16 %v3983, %v3983
        %v4240 = vpack.c.b16 %v3984, %v3984
        %v4241 = vpack.c.b16 %v3985, %v3985
        %v4242 = vpack.c.b16 %v3986, %v3986
        %v4243 = vpack.c.b16 %v3987, %v3987
        %v4244 = vpack.c.b16 %v3988, %v3988
        %v4245 = vpack.c.b16 %v3989, %v3989
        %v4246 = vpack.c.b16 %v3990, %v3990
        %v4247 = vpack.c.b16 %v3991, %v3991
        %v4248 = vpack.c.b16 %v3992, %v3992
        %v4249 = vpack.c.b16 %v3993, %v3993
        %v4250 = vpack.c.b16 %v3994, %v3994
        %v4251 = vpack.c.b16 %v3995, %v3995
        %v4252 = vpack.c.b16 %v3996, %v3996
        %v4253 = vpack.c.b16 %v3997, %v3997
        %v4254 = vpack.c.b16 %v3998, %v3998
        %v4255 = vpack.c.b16 %v3999, %v3999
        %v4256 = vpack.c.b16 %v4000, %v4000
        %v4257 = vpack.c.b16 %v4001, %v4001
        %v4258 = vpack.c.b16 %v4002, %v4002
        %v4259 = vpack.c.b16 %v4003, %v4003
        %v4260 = vpack.c.b16 %v4004, %v4004
        %v4261 = vpack.c.b16 %v4005, %v4005
        %v4262 = vpack.c.b16 %v4006, %v4006
        %v4263 = vpack.c.b16 %v4007, %v4007
        %v4264 = vpack.c.b16 %v4008, %v4008
        %v4265 = vpack.c.b16 %v4009, %v4009
        %v4266 = vpack.c.b16 %v4010, %v4010
        %v4267 = vpack.c.b16 %v4011, %v4011
        %v4268 = vpack.c.b16 %v4012, %v4012
        %v4269 = vpack.c.b16 %v4013, %v4013
        %v4270 = vpack.c.b16 %v4014, %v4014
        %v4271 = vpack.c.b16 %v4015, %v4015
        %v4272 = vpack.c.b16 %v4016, %v4016
        %v4273 = vpack.c.b16 %v4017, %v4017
        %v4274 = vpack.c.b16 %v4018, %v4018
        %v4275 = vpack.c.b16 %v4019, %v4019
        %v4276 = vpack.c.b16 %v4020, %v4020
        %v4277 = vpack.c.b16 %v4021, %v4021
        %v4278 = vpack.c.b16 %v4022, %v4022
        %v4279 = vpack.c.b16 %v4023, %v4023
        %v4280 = vpack.c.b16 %v4024, %v4024
        %v4281 = vpack.c.b16 %v4025, %v4025
        %v4282 = vpack.c.b16 %v4026, %v4026
        %v4283 = vpack.c.b16 %v4027, %v4027
        %v4284 = vpack.c.b16 %v4028, %v4028
        %v4285 = vpack.c.b16 %v4029, %v4029
        %v4286 = vpack.c.b16 %v4030, %v4030
        %v4287 = vpack.c.b16 %v4031, %v4031
        %v4288 = vpack.c.b16 %v4032, %v4032
        %v4289 = vpack.c.b16 %v4033, %v4033
        %v4290 = vpack.c.b16 %v4034, %v4034
        %v4291 = vpack.c.b16 %v4035, %v4035
        %v4292 = vpack.c.b16 %v4036, %v4036
        %v4293 = vpack.c.b16 %v4037, %v4037
        %v4294 = vpack.c.b16 %v4038, %v4038
        %v4295 = vpack.c.b16 %v4039, %v4039
        %v4296 = vpack.c.b16 %v4040, %v4040
        %v4297 = vpack.c.b16 %v4041, %v4041
        %v4298 = vpack.c.b16 %v4042, %v4042
        %v4299 = vpack.c.b16 %v4043, %v4043
        %v4300 = vpack.c.b16 %v4044, %v4044
        %v4301 = vpack.c.b16 %v4045, %v4045
        %v4302 = vpack.c.b16 %v4046, %v4046
        %v4303 = vpack.c.b16 %v4047, %v4047
        %v4304 = vpack.c.b16 %v4048, %v4048
        %v4305 = vpack.c.b16 %v4049, %v4049
        %v4306 = vpack.c.b16 %v4050, %v4050
        %v4307 = vpack.c.b16 %v4051, %v4051
        %v4308 = vpack.c.b16 %v4052, %v4052
        %v4309 = vpack.c.b16 %v4053, %v4053
        %v4310 = vpack.c.b16 %v4054, %v4054
        %v4311 = vpack.c.b16 %v4055, %v4055
        %v4312 = vpack.c.b16 %v4056, %v4056
        %v4313 = vpack.c.b16 %v4057, %v4057
        %v4314 = vpack.c.b16 %v4058, %v4058
        %v4315 = vpack.c.b16 %v4059, %v4059
        %v4316 = vpack.c.b16 %v4060, %v4060
        %v4317 = vpack.c.b16 %v4061, %v4061
        %v4318 = vpack.c.b16 %v4062, %v4062
        %v4319 = vpack.c.b16 %v4063, %v4063
        %v4320 = vpack.c.b16 %v4064, %v4064
        %v4321 = vpack.c.b16 %v4065, %v4065
        %v4322 = vpack.c.b16 %v4066, %v4066
        %v4323 = vpack.c.b16 %v4067, %v4067
        %v4324 = vpack.c.b16 %v4068, %v4068
        %v4325 = vpack.c.b16 %v4069, %v4069
        %v4326 = vpack.c.b16 %v4070, %v4070
        %v4327 = vpack.c.b16 %v4071, %v4071
        %v4328 = vpack.c.b16 %v4072, %v4072
        %v4329 = vpack.c.b16 %v4073, %v4073
        %v4330 = vpack.c.b16 %v4074, %v4074
        %v4331 = vpack.c.b16 %v4075, %v4075
        %v4332 = vpack.c.b16 %v4076, %v4076
        %v4333 = vpack.c.b16 %v4077, %v4077
        %v4334 = vpack.c.b16 %v4078, %v4078
        %v4335 = vpack.c.b16 %v4079, %v4079
        %v4336 = vpack.c.b16 %v4080, %v4080
        %v4337 = vpack.c.b16 %v4081, %v4081
        %v4338 = vpack.c.b16 %v4082, %v4082
        %v4339 = vpack.c.b16 %v4083, %v4083
        %v4340 = vpack.c.b16 %v4084, %v4084
        %v4341 = vpack.c.b16 %v4085, %v4085
        %v4342 = vpack.c.b16 %v4086, %v4086
        %v4343 = vpack.c.b16 %v4087, %v4087
        %v4344 = vpack.c.b16 %v4088, %v4088
        %v4345 = vpack.c.b16 %v4089, %v4089
        %v4346 = vpack.c.b16 %v4090, %v4090
        %v4347 = vpack.c.b16 %v4091, %v4091
        %v4348 = vpack.c.b16 %v4092, %v4092
        %v4349 = vpack.c.b16 %v4093, %v4093
        %v4350 = vpack.c.b16 %v4094, %v4094
        %v4351 = vpack.c.b16 %v4095, %v4095
        %v4352 = vpack.c.b16 %v4096, %v4096
        %v4353 = vpack.c.b16 %v4097, %v4097
        %v4354 = vpack.c.b16 %v4098, %v4098
        %v4355 = vpack.c.b16 %v4099, %v4099
        %v4356 = vpack.c.b16 %v4100, %v4100
        %v4357 = vpack.c.b16 %v4101, %v4101
        %v4358 = vpack.c.b16 %v4102, %v4102
        %v4359 = vpack.c.b16 %v4103, %v4103
        %v4360 = vpack.c.b16 %v4104, %v4104
        %v4361 = vpack.c.b16 %v4105, %v4105
        %v4362 = vpack.c.b16 %v4106, %v4106
        %v4363 = vpack.c.b16 %v4107, %v4107
        %v4364 = vpack.c.b16 %v4108, %v4108
        %v4365 = vpack.c.b16 %v4109, %v4109
        %v4366 = vpack.c.b16 %v4110, %v4110
        %v4367 = vpack.c.b16 %v4111, %v4111
        %v4368 = vpack.c.b16 %v4112, %v4112
        %v4369 = vpack.c.b16 %v4113, %v4113
        %v4370 = vpack.c.b16 %v4114, %v4114
        %v4371 = vpack.c.b16 %v4115, %v4115
        %v4372 = vpack.c.b16 %v4116, %v4116
        %v4373 = vpack.c.b16 %v4117, %v4117
        %v4374 = vpack.c.b16 %v4118, %v4118
        %v4375 = vpack.c.b16 %v4119, %v4119
        %v4376 = vpack.c.b16 %v4120, %v4120
        %v4377 = vpack.c.b16 %v4121, %v4121
        %v4378 = vpack.c.b16 %v4122, %v4122
        %v4379 = vpack.c.b16 %v4123, %v4123
        %v4380 = vpack.c.b16 %v4124, %v4124
        %v4381 = vpack.c.b16 %v4125, %v4125
        %v4382 = vpack.c.b16 %v4126, %v4126
        %v4383 = vpack.c.b16 %v4127, %v4127
        %v4384 = vpack.c.b16 %v4128, %v4128
        %v4385 = vpack.c.b16 %v4129, %v4129
        %v4386 = vpack.c.b16 %v4130, %v4130
        %v4387 = vpack.c.b16 %v4131, %v4131
        %v4388 = vpack.c.b16 %v4132, %v4132
        %v4389 = vpack.c.b16 %v4133, %v4133
        %v4390 = vpack.c.b16 %v4134, %v4134
        %v4391 = vpack.c.b16 %v4135, %v4135
        %v4392 = vpack.c.b16 %v4136, %v4136
        %v4393 = vpack.c.b16 %v4137, %v4137
        %v4394 = vpack.c.b16 %v4138, %v4138
        %v4395 = vpack.c.b16 %v4139, %v4139
        %v4396 = vpack.c.b16 %v4140, %v4140
        %v4397 = vpack.c.b16 %v4141, %v4141
        %v4398 = vpack.c.b16 %v4142, %v4142
        %v4399 = vpack.c.b16 %v4143, %v4143
        %v4400 = vpack.c.b16 %v4144, %v4144
        %v4401 = vpack.c.b16 %v4145, %v4145
        %v4402 = vpack.c.b16 %v4146, %v4146
        %v4403 = vpack.c.b16 %v4147, %v4147
        %v4404 = vpack.c.b16 %v4148, %v4148
        %v4405 = vpack.c.b16 %v4149, %v4149
        %v4406 = vpack.c.b16 %v4150, %v4150
        %4663 = vst [vmem:[%s191] sm:$0xf] %v4151
        %4664 = vst [vmem:[%s191 + $0x4] sm:$0xf] %v4152
        %4665 = vst [vmem:[%s191 + $0x8] sm:$0xf] %v4153
        %4666 = vst [vmem:[%s191 + $0xc] sm:$0xf] %v4154
        %4667 = vst [vmem:[%s191 + $0x10] sm:$0xf] %v4155
        %4668 = vst [vmem:[%s191 + $0x14] sm:$0xf] %v4156
        %4669 = vst [vmem:[%s191 + $0x18] sm:$0xf] %v4157
        %4670 = vst [vmem:[%s191 + $0x1c] sm:$0xf] %v4158
        %4671 = vst [vmem:[%s191 + $0x20] sm:$0xf] %v4159
        %4672 = vst [vmem:[%s191 + $0x24] sm:$0xf] %v4160
        %4673 = vst [vmem:[%s191 + $0x28] sm:$0xf] %v4161
        %4674 = vst [vmem:[%s191 + $0x2c] sm:$0xf] %v4162
        %4675 = vst [vmem:[%s191 + $0x30] sm:$0xf] %v4163
        %4676 = vst [vmem:[%s191 + $0x34] sm:$0xf] %v4164
        %4677 = vst [vmem:[%s191 + $0x38] sm:$0xf] %v4165
        %4678 = vst [vmem:[%s191 + $0x3c] sm:$0xf] %v4166
        %4679 = vst [vmem:[%s191 + $0x40] sm:$0xf] %v4167
        %4680 = vst [vmem:[%s191 + $0x44] sm:$0xf] %v4168
        %4681 = vst [vmem:[%s191 + $0x48] sm:$0xf] %v4169
        %4682 = vst [vmem:[%s191 + $0x4c] sm:$0xf] %v4170
        %4683 = vst [vmem:[%s191 + $0x50] sm:$0xf] %v4171
        %4684 = vst [vmem:[%s191 + $0x54] sm:$0xf] %v4172
        %4685 = vst [vmem:[%s191 + $0x58] sm:$0xf] %v4173
        %4686 = vst [vmem:[%s191 + $0x5c] sm:$0xf] %v4174
        %4687 = vst [vmem:[%s191 + $0x60] sm:$0xf] %v4175
        %4688 = vst [vmem:[%s191 + $0x64] sm:$0xf] %v4176
        %4689 = vst [vmem:[%s191 + $0x68] sm:$0xf] %v4177
        %4690 = vst [vmem:[%s191 + $0x6c] sm:$0xf] %v4178
        %4691 = vst [vmem:[%s191 + $0x70] sm:$0xf] %v4179
        %4692 = vst [vmem:[%s191 + $0x74] sm:$0xf] %v4180
        %4693 = vst [vmem:[%s191 + $0x78] sm:$0xf] %v4181
        %4694 = vst [vmem:[%s191 + $0x7c] sm:$0xf] %v4182
        %4695 = vst [vmem:[%s191 + $0x80] sm:$0xf] %v4183
        %4696 = vst [vmem:[%s191 + $0x84] sm:$0xf] %v4184
        %4697 = vst [vmem:[%s191 + $0x88] sm:$0xf] %v4185
        %4698 = vst [vmem:[%s191 + $0x8c] sm:$0xf] %v4186
        %4699 = vst [vmem:[%s191 + $0x90] sm:$0xf] %v4187
        %4700 = vst [vmem:[%s191 + $0x94] sm:$0xf] %v4188
        %4701 = vst [vmem:[%s191 + $0x98] sm:$0xf] %v4189
        %4702 = vst [vmem:[%s191 + $0x9c] sm:$0xf] %v4190
        %4703 = vst [vmem:[%s191 + $0xa0] sm:$0xf] %v4191
        %4704 = vst [vmem:[%s191 + $0xa4] sm:$0xf] %v4192
        %4705 = vst [vmem:[%s191 + $0xa8] sm:$0xf] %v4193
        %4706 = vst [vmem:[%s191 + $0xac] sm:$0xf] %v4194
        %4707 = vst [vmem:[%s191 + $0xb0] sm:$0xf] %v4195
        %4708 = vst [vmem:[%s191 + $0xb4] sm:$0xf] %v4196
        %4709 = vst [vmem:[%s191 + $0xb8] sm:$0xf] %v4197
        %4710 = vst [vmem:[%s191 + $0xbc] sm:$0xf] %v4198
        %4711 = vst [vmem:[%s191 + $0xc0] sm:$0xf] %v4199
        %4712 = vst [vmem:[%s191 + $0xc4] sm:$0xf] %v4200
        %4713 = vst [vmem:[%s191 + $0xc8] sm:$0xf] %v4201
        %4714 = vst [vmem:[%s191 + $0xcc] sm:$0xf] %v4202
        %4715 = vst [vmem:[%s191 + $0xd0] sm:$0xf] %v4203
        %4716 = vst [vmem:[%s191 + $0xd4] sm:$0xf] %v4204
        %4717 = vst [vmem:[%s191 + $0xd8] sm:$0xf] %v4205
        %4718 = vst [vmem:[%s191 + $0xdc] sm:$0xf] %v4206
        %4719 = vst [vmem:[%s191 + $0xe0] sm:$0xf] %v4207
        %4720 = vst [vmem:[%s191 + $0xe4] sm:$0xf] %v4208
        %4721 = vst [vmem:[%s191 + $0xe8] sm:$0xf] %v4209
        %4722 = vst [vmem:[%s191 + $0xec] sm:$0xf] %v4210
        %4723 = vst [vmem:[%s191 + $0xf0] sm:$0xf] %v4211
        %4724 = vst [vmem:[%s191 + $0xf4] sm:$0xf] %v4212
        %4725 = vst [vmem:[%s191 + $0xf8] sm:$0xf] %v4213
        %4726 = vst [vmem:[%s191 + $0xfc] sm:$0xf] %v4214
        %4727 = vst [vmem:[%s191 + $0x100] sm:$0xf] %v4215
        %4728 = vst [vmem:[%s191 + $0x104] sm:$0xf] %v4216
        %4729 = vst [vmem:[%s191 + $0x108] sm:$0xf] %v4217
        %4730 = vst [vmem:[%s191 + $0x10c] sm:$0xf] %v4218
        %4731 = vst [vmem:[%s191 + $0x110] sm:$0xf] %v4219
        %4732 = vst [vmem:[%s191 + $0x114] sm:$0xf] %v4220
        %4733 = vst [vmem:[%s191 + $0x118] sm:$0xf] %v4221
        %4734 = vst [vmem:[%s191 + $0x11c] sm:$0xf] %v4222
        %4735 = vst [vmem:[%s191 + $0x120] sm:$0xf] %v4223
        %4736 = vst [vmem:[%s191 + $0x124] sm:$0xf] %v4224
        %4737 = vst [vmem:[%s191 + $0x128] sm:$0xf] %v4225
        %4738 = vst [vmem:[%s191 + $0x12c] sm:$0xf] %v4226
        %4739 = vst [vmem:[%s191 + $0x130] sm:$0xf] %v4227
        %4740 = vst [vmem:[%s191 + $0x134] sm:$0xf] %v4228
        %4741 = vst [vmem:[%s191 + $0x138] sm:$0xf] %v4229
        %4742 = vst [vmem:[%s191 + $0x13c] sm:$0xf] %v4230
        %4743 = vst [vmem:[%s191 + $0x140] sm:$0xf] %v4231
        %4744 = vst [vmem:[%s191 + $0x144] sm:$0xf] %v4232
        %4745 = vst [vmem:[%s191 + $0x148] sm:$0xf] %v4233
        %4746 = vst [vmem:[%s191 + $0x14c] sm:$0xf] %v4234
        %4747 = vst [vmem:[%s191 + $0x150] sm:$0xf] %v4235
        %4748 = vst [vmem:[%s191 + $0x154] sm:$0xf] %v4236
        %4749 = vst [vmem:[%s191 + $0x158] sm:$0xf] %v4237
        %4750 = vst [vmem:[%s191 + $0x15c] sm:$0xf] %v4238
        %4751 = vst [vmem:[%s191 + $0x160] sm:$0xf] %v4239
        %4752 = vst [vmem:[%s191 + $0x164] sm:$0xf] %v4240
        %4753 = vst [vmem:[%s191 + $0x168] sm:$0xf] %v4241
        %4754 = vst [vmem:[%s191 + $0x16c] sm:$0xf] %v4242
        %4755 = vst [vmem:[%s191 + $0x170] sm:$0xf] %v4243
        %4756 = vst [vmem:[%s191 + $0x174] sm:$0xf] %v4244
        %4757 = vst [vmem:[%s191 + $0x178] sm:$0xf] %v4245
        %4758 = vst [vmem:[%s191 + $0x17c] sm:$0xf] %v4246
        %4759 = vst [vmem:[%s191 + $0x180] sm:$0xf] %v4247
        %4760 = vst [vmem:[%s191 + $0x184] sm:$0xf] %v4248
        %4761 = vst [vmem:[%s191 + $0x188] sm:$0xf] %v4249
        %4762 = vst [vmem:[%s191 + $0x18c] sm:$0xf] %v4250
        %4763 = vst [vmem:[%s191 + $0x190] sm:$0xf] %v4251
        %4764 = vst [vmem:[%s191 + $0x194] sm:$0xf] %v4252
        %4765 = vst [vmem:[%s191 + $0x198] sm:$0xf] %v4253
        %4766 = vst [vmem:[%s191 + $0x19c] sm:$0xf] %v4254
        %4767 = vst [vmem:[%s191 + $0x1a0] sm:$0xf] %v4255
        %4768 = vst [vmem:[%s191 + $0x1a4] sm:$0xf] %v4256
        %4769 = vst [vmem:[%s191 + $0x1a8] sm:$0xf] %v4257
        %4770 = vst [vmem:[%s191 + $0x1ac] sm:$0xf] %v4258
        %4771 = vst [vmem:[%s191 + $0x1b0] sm:$0xf] %v4259
        %4772 = vst [vmem:[%s191 + $0x1b4] sm:$0xf] %v4260
        %4773 = vst [vmem:[%s191 + $0x1b8] sm:$0xf] %v4261
        %4774 = vst [vmem:[%s191 + $0x1bc] sm:$0xf] %v4262
        %4775 = vst [vmem:[%s191 + $0x1c0] sm:$0xf] %v4263
        %4776 = vst [vmem:[%s191 + $0x1c4] sm:$0xf] %v4264
        %4777 = vst [vmem:[%s191 + $0x1c8] sm:$0xf] %v4265
        %4778 = vst [vmem:[%s191 + $0x1cc] sm:$0xf] %v4266
        %4779 = vst [vmem:[%s191 + $0x1d0] sm:$0xf] %v4267
        %4780 = vst [vmem:[%s191 + $0x1d4] sm:$0xf] %v4268
        %4781 = vst [vmem:[%s191 + $0x1d8] sm:$0xf] %v4269
        %4782 = vst [vmem:[%s191 + $0x1dc] sm:$0xf] %v4270
        %4783 = vst [vmem:[%s191 + $0x1e0] sm:$0xf] %v4271
        %4784 = vst [vmem:[%s191 + $0x1e4] sm:$0xf] %v4272
        %4785 = vst [vmem:[%s191 + $0x1e8] sm:$0xf] %v4273
        %4786 = vst [vmem:[%s191 + $0x1ec] sm:$0xf] %v4274
        %4787 = vst [vmem:[%s191 + $0x1f0] sm:$0xf] %v4275
        %4788 = vst [vmem:[%s191 + $0x1f4] sm:$0xf] %v4276
        %4789 = vst [vmem:[%s191 + $0x1f8] sm:$0xf] %v4277
        %4790 = vst [vmem:[%s191 + $0x1fc] sm:$0xf] %v4278
        %4791 = vst [vmem:[%s191 + $0x200] sm:$0xf] %v4279
        %4792 = vst [vmem:[%s191 + $0x204] sm:$0xf] %v4280
        %4793 = vst [vmem:[%s191 + $0x208] sm:$0xf] %v4281
        %4794 = vst [vmem:[%s191 + $0x20c] sm:$0xf] %v4282
        %4795 = vst [vmem:[%s191 + $0x210] sm:$0xf] %v4283
        %4796 = vst [vmem:[%s191 + $0x214] sm:$0xf] %v4284
        %4797 = vst [vmem:[%s191 + $0x218] sm:$0xf] %v4285
        %4798 = vst [vmem:[%s191 + $0x21c] sm:$0xf] %v4286
        %4799 = vst [vmem:[%s191 + $0x220] sm:$0xf] %v4287
        %4800 = vst [vmem:[%s191 + $0x224] sm:$0xf] %v4288
        %4801 = vst [vmem:[%s191 + $0x228] sm:$0xf] %v4289
        %4802 = vst [vmem:[%s191 + $0x22c] sm:$0xf] %v4290
        %4803 = vst [vmem:[%s191 + $0x230] sm:$0xf] %v4291
        %4804 = vst [vmem:[%s191 + $0x234] sm:$0xf] %v4292
        %4805 = vst [vmem:[%s191 + $0x238] sm:$0xf] %v4293
        %4806 = vst [vmem:[%s191 + $0x23c] sm:$0xf] %v4294
        %4807 = vst [vmem:[%s191 + $0x240] sm:$0xf] %v4295
        %4808 = vst [vmem:[%s191 + $0x244] sm:$0xf] %v4296
        %4809 = vst [vmem:[%s191 + $0x248] sm:$0xf] %v4297
        %4810 = vst [vmem:[%s191 + $0x24c] sm:$0xf] %v4298
        %4811 = vst [vmem:[%s191 + $0x250] sm:$0xf] %v4299
        %4812 = vst [vmem:[%s191 + $0x254] sm:$0xf] %v4300
        %4813 = vst [vmem:[%s191 + $0x258] sm:$0xf] %v4301
        %4814 = vst [vmem:[%s191 + $0x25c] sm:$0xf] %v4302
        %4815 = vst [vmem:[%s191 + $0x260] sm:$0xf] %v4303
        %4816 = vst [vmem:[%s191 + $0x264] sm:$0xf] %v4304
        %4817 = vst [vmem:[%s191 + $0x268] sm:$0xf] %v4305
        %4818 = vst [vmem:[%s191 + $0x26c] sm:$0xf] %v4306
        %4819 = vst [vmem:[%s191 + $0x270] sm:$0xf] %v4307
        %4820 = vst [vmem:[%s191 + $0x274] sm:$0xf] %v4308
        %4821 = vst [vmem:[%s191 + $0x278] sm:$0xf] %v4309
        %4822 = vst [vmem:[%s191 + $0x27c] sm:$0xf] %v4310
        %4823 = vst [vmem:[%s191 + $0x280] sm:$0xf] %v4311
        %4824 = vst [vmem:[%s191 + $0x284] sm:$0xf] %v4312
        %4825 = vst [vmem:[%s191 + $0x288] sm:$0xf] %v4313
        %4826 = vst [vmem:[%s191 + $0x28c] sm:$0xf] %v4314
        %4827 = vst [vmem:[%s191 + $0x290] sm:$0xf] %v4315
        %4828 = vst [vmem:[%s191 + $0x294] sm:$0xf] %v4316
        %4829 = vst [vmem:[%s191 + $0x298] sm:$0xf] %v4317
        %4830 = vst [vmem:[%s191 + $0x29c] sm:$0xf] %v4318
        %4831 = vst [vmem:[%s191 + $0x2a0] sm:$0xf] %v4319
        %4832 = vst [vmem:[%s191 + $0x2a4] sm:$0xf] %v4320
        %4833 = vst [vmem:[%s191 + $0x2a8] sm:$0xf] %v4321
        %4834 = vst [vmem:[%s191 + $0x2ac] sm:$0xf] %v4322
        %4835 = vst [vmem:[%s191 + $0x2b0] sm:$0xf] %v4323
        %4836 = vst [vmem:[%s191 + $0x2b4] sm:$0xf] %v4324
        %4837 = vst [vmem:[%s191 + $0x2b8] sm:$0xf] %v4325
        %4838 = vst [vmem:[%s191 + $0x2bc] sm:$0xf] %v4326
        %4839 = vst [vmem:[%s191 + $0x2c0] sm:$0xf] %v4327
        %4840 = vst [vmem:[%s191 + $0x2c4] sm:$0xf] %v4328
        %4841 = vst [vmem:[%s191 + $0x2c8] sm:$0xf] %v4329
        %4842 = vst [vmem:[%s191 + $0x2cc] sm:$0xf] %v4330
        %4843 = vst [vmem:[%s191 + $0x2d0] sm:$0xf] %v4331
        %4844 = vst [vmem:[%s191 + $0x2d4] sm:$0xf] %v4332
        %4845 = vst [vmem:[%s191 + $0x2d8] sm:$0xf] %v4333
        %4846 = vst [vmem:[%s191 + $0x2dc] sm:$0xf] %v4334
        %4847 = vst [vmem:[%s191 + $0x2e0] sm:$0xf] %v4335
        %4848 = vst [vmem:[%s191 + $0x2e4] sm:$0xf] %v4336
        %4849 = vst [vmem:[%s191 + $0x2e8] sm:$0xf] %v4337
        %4850 = vst [vmem:[%s191 + $0x2ec] sm:$0xf] %v4338
        %4851 = vst [vmem:[%s191 + $0x2f0] sm:$0xf] %v4339
        %4852 = vst [vmem:[%s191 + $0x2f4] sm:$0xf] %v4340
        %4853 = vst [vmem:[%s191 + $0x2f8] sm:$0xf] %v4341
        %4854 = vst [vmem:[%s191 + $0x2fc] sm:$0xf] %v4342
        %4855 = vst [vmem:[%s191 + $0x300] sm:$0xf] %v4343
        %4856 = vst [vmem:[%s191 + $0x304] sm:$0xf] %v4344
        %4857 = vst [vmem:[%s191 + $0x308] sm:$0xf] %v4345
        %4858 = vst [vmem:[%s191 + $0x30c] sm:$0xf] %v4346
        %4859 = vst [vmem:[%s191 + $0x310] sm:$0xf] %v4347
        %4860 = vst [vmem:[%s191 + $0x314] sm:$0xf] %v4348
        %4861 = vst [vmem:[%s191 + $0x318] sm:$0xf] %v4349
        %4862 = vst [vmem:[%s191 + $0x31c] sm:$0xf] %v4350
        %4863 = vst [vmem:[%s191 + $0x320] sm:$0xf] %v4351
        %4864 = vst [vmem:[%s191 + $0x324] sm:$0xf] %v4352
        %4865 = vst [vmem:[%s191 + $0x328] sm:$0xf] %v4353
        %4866 = vst [vmem:[%s191 + $0x32c] sm:$0xf] %v4354
        %4867 = vst [vmem:[%s191 + $0x330] sm:$0xf] %v4355
        %4868 = vst [vmem:[%s191 + $0x334] sm:$0xf] %v4356
        %4869 = vst [vmem:[%s191 + $0x338] sm:$0xf] %v4357
        %4870 = vst [vmem:[%s191 + $0x33c] sm:$0xf] %v4358
        %4871 = vst [vmem:[%s191 + $0x340] sm:$0xf] %v4359
        %4872 = vst [vmem:[%s191 + $0x344] sm:$0xf] %v4360
        %4873 = vst [vmem:[%s191 + $0x348] sm:$0xf] %v4361
        %4874 = vst [vmem:[%s191 + $0x34c] sm:$0xf] %v4362
        %4875 = vst [vmem:[%s191 + $0x350] sm:$0xf] %v4363
        %4876 = vst [vmem:[%s191 + $0x354] sm:$0xf] %v4364
        %4877 = vst [vmem:[%s191 + $0x358] sm:$0xf] %v4365
        %4878 = vst [vmem:[%s191 + $0x35c] sm:$0xf] %v4366
        %4879 = vst [vmem:[%s191 + $0x360] sm:$0xf] %v4367
        %4880 = vst [vmem:[%s191 + $0x364] sm:$0xf] %v4368
        %4881 = vst [vmem:[%s191 + $0x368] sm:$0xf] %v4369
        %4882 = vst [vmem:[%s191 + $0x36c] sm:$0xf] %v4370
        %4883 = vst [vmem:[%s191 + $0x370] sm:$0xf] %v4371
        %4884 = vst [vmem:[%s191 + $0x374] sm:$0xf] %v4372
        %4885 = vst [vmem:[%s191 + $0x378] sm:$0xf] %v4373
        %4886 = vst [vmem:[%s191 + $0x37c] sm:$0xf] %v4374
        %4887 = vst [vmem:[%s191 + $0x380] sm:$0xf] %v4375
        %4888 = vst [vmem:[%s191 + $0x384] sm:$0xf] %v4376
        %4889 = vst [vmem:[%s191 + $0x388] sm:$0xf] %v4377
        %4890 = vst [vmem:[%s191 + $0x38c] sm:$0xf] %v4378
        %4891 = vst [vmem:[%s191 + $0x390] sm:$0xf] %v4379
        %4892 = vst [vmem:[%s191 + $0x394] sm:$0xf] %v4380
        %4893 = vst [vmem:[%s191 + $0x398] sm:$0xf] %v4381
        %4894 = vst [vmem:[%s191 + $0x39c] sm:$0xf] %v4382
        %4895 = vst [vmem:[%s191 + $0x3a0] sm:$0xf] %v4383
        %4896 = vst [vmem:[%s191 + $0x3a4] sm:$0xf] %v4384
        %4897 = vst [vmem:[%s191 + $0x3a8] sm:$0xf] %v4385
        %4898 = vst [vmem:[%s191 + $0x3ac] sm:$0xf] %v4386
        %4899 = vst [vmem:[%s191 + $0x3b0] sm:$0xf] %v4387
        %4900 = vst [vmem:[%s191 + $0x3b4] sm:$0xf] %v4388
        %4901 = vst [vmem:[%s191 + $0x3b8] sm:$0xf] %v4389
        %4902 = vst [vmem:[%s191 + $0x3bc] sm:$0xf] %v4390
        %4903 = vst [vmem:[%s191 + $0x3c0] sm:$0xf] %v4391
        %4904 = vst [vmem:[%s191 + $0x3c4] sm:$0xf] %v4392
        %4905 = vst [vmem:[%s191 + $0x3c8] sm:$0xf] %v4393
        %4906 = vst [vmem:[%s191 + $0x3cc] sm:$0xf] %v4394
        %4907 = vst [vmem:[%s191 + $0x3d0] sm:$0xf] %v4395
        %4908 = vst [vmem:[%s191 + $0x3d4] sm:$0xf] %v4396
        %4909 = vst [vmem:[%s191 + $0x3d8] sm:$0xf] %v4397
        %4910 = vst [vmem:[%s191 + $0x3dc] sm:$0xf] %v4398
        %4911 = vst [vmem:[%s191 + $0x3e0] sm:$0xf] %v4399
        %4912 = vst [vmem:[%s191 + $0x3e4] sm:$0xf] %v4400
        %4913 = vst [vmem:[%s191 + $0x3e8] sm:$0xf] %v4401
        %4914 = vst [vmem:[%s191 + $0x3ec] sm:$0xf] %v4402
        %4915 = vst [vmem:[%s191 + $0x3f0] sm:$0xf] %v4403
        %4916 = vst [vmem:[%s191 + $0x3f4] sm:$0xf] %v4404
        %4917 = vst [vmem:[%s191 + $0x3f8] sm:$0xf] %v4405
        %4918 = vst [vmem:[%s191 + $0x3fc] sm:$0xf] %v4406
        %s4919 = sand.u32 %s115, 1
        %s4920 = scalar_lea.sflag [#allocation3], %s4919
        %s4921 = sand.u32 %s115, 1
        %s4922 = smul.addr %s4921, 1024
        %s4923 = scalar_lea.vmem [#allocation2], %s4922
        // Predicated region
        $region37: #{conv_block_forward.3} parent=35 // pred_check
          %p4924 = pneg %p125
        $region38: #{conv_block_forward.3} parent=35 // pred_check_branch
          %4926 = sbr.rel (%p4924) target = $region40
        $region39: #{conv_block_forward.3} parent=35 // pred_region
          %s4927 = smul.u32 256, %s18
          %s4929 = ssub.s32 16384, 16384
          %4930 = vsyncadd %s4920, %s4929
          %s4931 = smul.addr %s4927, 64
          %s4932 = scalar_lea.hbm %s4, %s4931
          %s4933 = sshll.u32 %s4923, 4
          %s4934 = int_to_ptr.vmem [resolvable:$true] %s4933
          %4939 = dma.vmem_to_hbm [thread:$0]  %s4934, 16384, %s4932, %s4920, 64, 64, 4
        $region40: #{conv_block_forward.3} parent=35 // pred_fallthru
          _
      $region36: #{conv_block_forward.3} parent=5 // pred_fallthru
        _
      %p4940 = scmp.le.s32.totalorder 2, %s13
      // Predicated region
      $region41: #{conv_block_forward.3} parent=5 // pred_check
        %p4941 = pneg %p4940
      $region42: #{conv_block_forward.3} parent=5 // pred_check_branch
        %4943 = sbr.rel (%p4941) target = $region44
      $region43: #{conv_block_forward.3} parent=5 // pred_region
        %s4944 = ssub.s32 %s13, 2
        // Predicated region
        $region45: #{conv_block_forward.3} parent=43 // pred_check
          %p4945 = pneg %p131
        $region46: #{conv_block_forward.3} parent=43 // pred_check_branch
          %4947 = sbr.rel (%p4945) target = $region48
        $region47: #{conv_block_forward.3} parent=43 // pred_region
          %s4948 = sand.u32 %s116, 1
          %s4949 = scalar_lea.sflag [#allocation3], %s4948
          %s4950 = sand.u32 %s116, 1
          %s4951 = smul.addr %s4950, 1024
          %s4952 = scalar_lea.vmem [#allocation2], %s4951
          %4953 = dma.done %s4949, 16384
        $region48: #{conv_block_forward.3} parent=43 // pred_fallthru
          _
      $region44: #{conv_block_forward.3} parent=5 // pred_fallthru
        _
    $region6: #{conv_block_forward.3} parent=1 // loop_footer
      %s17 = sadd.s32 1, %s13
    $region7: #{conv_block_forward.3} parent=1 // loop_footer_branch
      %12 = sbr.rel target = $region3
    $region8: #{conv_block_forward.3} parent=1 // loop_exit
      _
    %4954 = vsyncpa [#allocation3], 1
    %s4955 = scalar_lea.sflag [#allocation3], 1
    %4956 = vsyncpa %s4955, 1

</llo_original>
